<compile_context>
chip_gen: v6e
topology: v6e:2x2x1
jax: 0.10.0
libtpu: 0.0.40
codegen_flags: <defaults>
</compile_context>

<pallas_src>
import functools
import math

import jax
import jax.numpy as jnp
from jax.experimental import pallas as pl
from jax.experimental.pallas import tpu as pltpu

# Make the plain-JAX reference matmuls f32-accurate so the tolerance check is meaningful.
jax.config.update("jax_default_matmul_precision", "highest")

_VMEM_LIMIT = 32 * 1024 * 1024  # v7x-safe (64 MiB phys); plenty for this working set


# ---------------------------------------------------------------------------
# Fused Block kernel: ln1 -> qkv -> causal attention -> out-proj + residual
#                      -> ln2 -> c_fc + gelu -> c_proj + residual
# One grid step = one batch element; all heads processed inside the step.
# ---------------------------------------------------------------------------
def _block_kernel(x_ref, mask_ref,
                  ln1_w_ref, ln1_b_ref,
                  w_qkv_ref, b_qkv_ref,
                  w_ap_ref, b_ap_ref,
                  ln2_w_ref, ln2_b_ref,
                  w_fc_ref, b_fc_ref,
                  w_mp_ref, b_mp_ref,
                  out_ref, att_ref,
                  *, n_head, eps):
    T, C = x_ref.shape
    hd = C // n_head
    scale = 1.0 / math.sqrt(hd)

    x = x_ref[...].astype(jnp.float32)           # (T, C)
    mask = mask_ref[...].astype(jnp.float32)     # (T, T)

    def ln(v, w, b):
        # Two-pass (centered) variance: robust against cancellation / negative var.
        m = jnp.mean(v, axis=-1, keepdims=True)
        c = v - m
        var = jnp.mean(c * c, axis=-1, keepdims=True)
        return c * jax.lax.rsqrt(var + eps) * w + b

    def gelu(v):
        k = math.sqrt(2.0 / math.pi)
        return 0.5 * v * (1.0 + jnp.tanh(k * (v + 0.044715 * v * v * v)))

    # ---- ln_1 + fused QKV projection ----
    h = ln(x, ln1_w_ref[...].astype(jnp.float32), ln1_b_ref[...].astype(jnp.float32))
    qkv = jnp.dot(h, w_qkv_ref[...].astype(jnp.float32),
                  preferred_element_type=jnp.float32)
    qkv = qkv + b_qkv_ref[...].astype(jnp.float32)          # (T, 3C)

    # ---- causal self-attention: all heads in this step (static per-head slices) ----
    dn_t = (((1,), (1,)), ((), ()))  # contract last dims: q @ k^T without a transpose
    y_heads = []
    for hh in range(n_head):
        qh = qkv[:, hh * hd:(hh + 1) * hd]
        kh = qkv[:, C + hh * hd:C + (hh + 1) * hd]
        vh = qkv[:, 2 * C + hh * hd:2 * C + (hh + 1) * hd]
        s = jax.lax.dot_general(qh, kh, dn_t, preferred_element_type=jnp.float32) * scale
        s = jnp.where(mask == 0.0, -1e30, s)
        s = s - jnp.max(s, axis=-1, keepdims=True)
        p = jnp.exp(s)
        p = p / jnp.sum(p, axis=-1, keepdims=True)           # (T, T) softmax
        att_ref[hh, :, :] = p.astype(att_ref.dtype)
        y_heads.append(jnp.dot(p, vh, preferred_element_type=jnp.float32))
    y = jnp.concatenate(y_heads, axis=-1)                     # (T, C)

    # ---- attention output projection + first residual (never leaves VMEM) ----
    x1 = jnp.dot(y, w_ap_ref[...].astype(jnp.float32),
                 preferred_element_type=jnp.float32)
    x1 = x1 + b_ap_ref[...].astype(jnp.float32) + x

    # ---- ln_2 -> MLP (c_fc + new_gelu, c_proj + second residual) ----
    h2 = ln(x1, ln2_w_ref[...].astype(jnp.float32), ln2_b_ref[...].astype(jnp.float32))
    u = jnp.dot(h2, w_fc_ref[...].astype(jnp.float32),
                preferred_element_type=jnp.float32)
    u = gelu(u + b_fc_ref[...].astype(jnp.float32))           # (T, 4C)
    x2 = jnp.dot(u, w_mp_ref[...].astype(jnp.float32),
                 preferred_element_type=jnp.float32)
    x2 = x2 + b_mp_ref[...].astype(jnp.float32) + x1

    out_ref[...] = x2.astype(out_ref.dtype)


def block_forward(x, attn_mask, params, *, n_head, eps=1e-5):
    """x: (B, T, C); attn_mask: (1, 1, T, T). Returns (out (B,T,C), att (B,nh,T,T))."""
    B, T, C = x.shape
    assert C % n_head == 0
    mask2 = attn_mask.reshape(T, T).astype(jnp.float32)

    def row(v):                      # 1-D param -> (1, N) for lane-major VMEM layout
        return v.reshape(1, -1)

    args = [
        x, mask2,
        row(params["ln1_w"]), row(params["ln1_b"]),
        params["w_qkv"], row(params["b_qkv"]),
        params["w_aproj"], row(params["b_aproj"]),
        row(params["ln2_w"]), row(params["ln2_b"]),
        params["w_fc"], row(params["b_fc"]),
        params["w_mproj"], row(params["b_mproj"]),
    ]

    def const_spec(a):
        # Full-array block, constant index map (weights / biases / mask).
        # TODO(synk): at scale, hold weights single-buffered (pl.Buffered(1)) or in scratch.
        return pl.BlockSpec(a.shape, lambda b: (0,) * a.ndim)

    in_specs = [pl.BlockSpec((None, T, C), lambda b: (b, 0, 0))]   # x: one batch per step
    in_specs += [const_spec(a) for a in args[1:]]

    out_specs = (
        pl.BlockSpec((None, T, C), lambda b: (b, 0, 0)),
        pl.BlockSpec((None, n_head, T, T), lambda b: (b, 0, 0, 0)),
    )
    out_shape = (
        jax.ShapeDtypeStruct((B, T, C), x.dtype),
        jax.ShapeDtypeStruct((B, n_head, T, T), jnp.float32),
    )

    out, att = pl.pallas_call(
        functools.partial(_block_kernel, n_head=n_head, eps=eps),
        out_shape=out_shape,
        grid_spec=pltpu.PrefetchScalarGridSpec(
            num_scalar_prefetch=0,
            grid=(B,),                       # size-B parallel axis -> v7x megacore sharding
            in_specs=in_specs,
            out_specs=out_specs,
        ),
        compiler_params=pltpu.CompilerParams(
            dimension_semantics=("parallel",),
            vmem_limit_bytes=_VMEM_LIMIT,
        ),
    )(*args)
    return out, att


# ---------------------------------------------------------------------------
# Pure-JAX reference (matches the PyTorch Block forward with dropout = 0)
# ---------------------------------------------------------------------------
def _ref_block(x, attn_mask, params, n_head, eps=1e-5):
    def ln(v, w, b):
        m = jnp.mean(v, axis=-1, keepdims=True)
        var = jnp.mean((v - m) ** 2, axis=-1, keepdims=True)
        return (v - m) / jnp.sqrt(var + eps) * w + b

    def gelu(v):
        return 0.5 * v * (1.0 + jnp.tanh(math.sqrt(2.0 / math.pi)
                                         * (v + 0.044715 * v ** 3)))

    B, T, C = x.shape
    hd = C // n_head
    h = ln(x, params["ln1_w"], params["ln1_b"])
    qkv = h @ params["w_qkv"] + params["b_qkv"]
    q, k, v = jnp.split(qkv, 3, axis=-1)
    q = q.reshape(B, T, n_head, hd).transpose(0, 2, 1, 3)
    k = k.reshape(B, T, n_head, hd).transpose(0, 2, 1, 3)
    v = v.reshape(B, T, n_head, hd).transpose(0, 2, 1, 3)
    att = (q @ jnp.swapaxes(k, -2, -1)) / math.sqrt(hd)
    att = jnp.where(attn_mask == 0, -jnp.inf, att)
    att = jax.nn.softmax(att, axis=-1)
    y = (att @ v).transpose(0, 2, 1, 3).reshape(B, T, C)
    x1 = x + (y @ params["w_aproj"] + params["b_aproj"])
    h2 = ln(x1, params["ln2_w"], params["ln2_b"])
    u = gelu(h2 @ params["w_fc"] + params["b_fc"])
    x2 = x1 + (u @ params["w_mproj"] + params["b_mproj"])
    return x2, att


if __name__ == "__main__":
    # Config: n_embd=32, n_head=4, block_size=8, bias=True, dropout=0.0
    B, T, C, n_head = 2, 8, 32, 4

    key = jax.random.PRNGKey(0)
    ks = jax.random.split(key, 10)

    def w_init(k, shape, std=0.02):
        return (std * jax.random.normal(k, shape)).astype(jnp.float32)

    params = {
        "ln1_w": jnp.ones((C,), jnp.float32),
        "ln1_b": jnp.zeros((C,), jnp.float32),
        "ln2_w": jnp.ones((C,), jnp.float32),
        "ln2_b": jnp.zeros((C,), jnp.float32),
        "w_qkv": w_init(ks[0], (C, 3 * C)),
        "b_qkv": w_init(ks[1], (3 * C,)),
        "w_aproj": w_init(ks[2], (C, C)),
        "b_aproj": w_init(ks[3], (C,)),
        "w_fc": w_init(ks[4], (C, 4 * C)),
        "b_fc": w_init(ks[5], (4 * C,)),
        "w_mproj": w_init(ks[6], (4 * C, C)),
        "b_mproj": w_init(ks[7], (C,)),
    }

    x = jax.random.normal(ks[8], (B, T, C), dtype=jnp.float32)
    attn_mask = jnp.tril(jnp.ones((T, T), jnp.float32)).reshape(1, 1, T, T)

    fwd = jax.jit(functools.partial(block_forward, n_head=n_head))
    out, att = fwd(x, attn_mask, params)
    out = jax.block_until_ready(out)
    att = jax.block_until_ready(att)

    ref_out, ref_att = _ref_block(x, attn_mask, params, n_head)
    assert jnp.allclose(out, ref_out, atol=1e-3, rtol=1e-3), (
        float(jnp.max(jnp.abs(out - ref_out))))
    assert jnp.allclose(att, ref_att, atol=1e-3, rtol=1e-3), (
        float(jnp.max(jnp.abs(att - ref_att))))

    print("KERNEL_OK")
</pallas_src>

<mosaic_0001>
module attributes {stable_mosaic.version = 11 : i64} {
  func.func @_block_kernel(%arg0: i32, %arg1: memref<1x8x32xf32, #tpu.memory_space<vmem>>, %arg2: memref<8x8xf32, #tpu.memory_space<vmem>>, %arg3: memref<1x32xf32, #tpu.memory_space<vmem>>, %arg4: memref<1x32xf32, #tpu.memory_space<vmem>>, %arg5: memref<32x96xf32, #tpu.memory_space<vmem>>, %arg6: memref<1x96xf32, #tpu.memory_space<vmem>>, %arg7: memref<32x32xf32, #tpu.memory_space<vmem>>, %arg8: memref<1x32xf32, #tpu.memory_space<vmem>>, %arg9: memref<1x32xf32, #tpu.memory_space<vmem>>, %arg10: memref<1x32xf32, #tpu.memory_space<vmem>>, %arg11: memref<32x128xf32, #tpu.memory_space<vmem>>, %arg12: memref<1x128xf32, #tpu.memory_space<vmem>>, %arg13: memref<128x32xf32, #tpu.memory_space<vmem>>, %arg14: memref<1x32xf32, #tpu.memory_space<vmem>>, %arg15: memref<1x8x32xf32, #tpu.memory_space<vmem>>, %arg16: memref<1x4x8x8xf32, #tpu.memory_space<vmem>>) attributes {dimension_semantics = [#tpu.dimension_semantics<parallel>], iteration_bounds = array<i64: 2>, scalar_prefetch = 0 : i64, scratch_operands = 0 : i64, tpu.core_type = #tpu.core_type<tc>, window_params = [{transform_indices = @transform_0, window_bounds = array<i64: 1, 8, 32>}, {pipeline_mode = #tpu.pipeline_mode<synchronous>, transform_indices = @transform_1, window_bounds = array<i64: 8, 8>}, {pipeline_mode = #tpu.pipeline_mode<synchronous>, transform_indices = @transform_2, window_bounds = array<i64: 1, 32>}, {pipeline_mode = #tpu.pipeline_mode<synchronous>, transform_indices = @transform_3, window_bounds = array<i64: 1, 32>}, {pipeline_mode = #tpu.pipeline_mode<synchronous>, transform_indices = @transform_4, window_bounds = array<i64: 32, 96>}, {pipeline_mode = #tpu.pipeline_mode<synchronous>, transform_indices = @transform_5, window_bounds = array<i64: 1, 96>}, {pipeline_mode = #tpu.pipeline_mode<synchronous>, transform_indices = @transform_6, window_bounds = array<i64: 32, 32>}, {pipeline_mode = #tpu.pipeline_mode<synchronous>, transform_indices = @transform_7, window_bounds = array<i64: 1, 32>}, {pipeline_mode = #tpu.pipeline_mode<synchronous>, transform_indices = @transform_8, window_bounds = array<i64: 1, 32>}, {pipeline_mode = #tpu.pipeline_mode<synchronous>, transform_indices = @transform_9, window_bounds = array<i64: 1, 32>}, {pipeline_mode = #tpu.pipeline_mode<synchronous>, transform_indices = @transform_10, window_bounds = array<i64: 32, 128>}, {pipeline_mode = #tpu.pipeline_mode<synchronous>, transform_indices = @transform_11, window_bounds = array<i64: 1, 128>}, {pipeline_mode = #tpu.pipeline_mode<synchronous>, transform_indices = @transform_12, window_bounds = array<i64: 128, 32>}, {pipeline_mode = #tpu.pipeline_mode<synchronous>, transform_indices = @transform_13, window_bounds = array<i64: 1, 32>}, {transform_indices = @transform_14, window_bounds = array<i64: 1, 8, 32>}, {transform_indices = @transform_15, window_bounds = array<i64: 1, 4, 8, 8>}]} {
    %c0 = arith.constant 0 : index
    %c0_0 = arith.constant 0 : index
    %c0_1 = arith.constant 0 : index
    %0 = vector.load %arg1[%c0, %c0_0, %c0_1] : memref<1x8x32xf32, #tpu.memory_space<vmem>>, vector<1x8x32xf32>
    %1 = vector.shape_cast %0 : vector<1x8x32xf32> to vector<8x32xf32>
    %c0_2 = arith.constant 0 : index
    %c0_3 = arith.constant 0 : index
    %2 = vector.load %arg2[%c0_2, %c0_3] : memref<8x8xf32, #tpu.memory_space<vmem>>, vector<8x8xf32>
    %c0_4 = arith.constant 0 : index
    %c0_5 = arith.constant 0 : index
    %3 = vector.load %arg3[%c0_4, %c0_5] : memref<1x32xf32, #tpu.memory_space<vmem>>, vector<1x32xf32>
    %c0_6 = arith.constant 0 : index
    %c0_7 = arith.constant 0 : index
    %4 = vector.load %arg4[%c0_6, %c0_7] : memref<1x32xf32, #tpu.memory_space<vmem>>, vector<1x32xf32>
    %cst = arith.constant dense<0.000000e+00> : vector<8xf32>
    %5 = vector.multi_reduction <add>, %1, %cst [1] : vector<8x32xf32> to vector<8xf32>
    %6 = vector.shape_cast %5 : vector<8xf32> to vector<8x1xf32>
    %cst_8 = arith.constant 3.200000e+01 : f32
    %7 = vector.broadcast %cst_8 : f32 to vector<8x1xf32>
    %8 = arith.divf %6, %7 : vector<8x1xf32>
    %9 = vector.broadcast %8 : vector<8x1xf32> to vector<8x32xf32>
    %10 = arith.subf %1, %9 : vector<8x32xf32>
    %11 = arith.mulf %10, %10 : vector<8x32xf32>
    %cst_9 = arith.constant dense<0.000000e+00> : vector<8xf32>
    %12 = vector.multi_reduction <add>, %11, %cst_9 [1] : vector<8x32xf32> to vector<8xf32>
    %13 = vector.shape_cast %12 : vector<8xf32> to vector<8x1xf32>
    %cst_10 = arith.constant 3.200000e+01 : f32
    %14 = vector.broadcast %cst_10 : f32 to vector<8x1xf32>
    %15 = arith.divf %13, %14 : vector<8x1xf32>
    %cst_11 = arith.constant 9.99999974E-6 : f32
    %16 = vector.broadcast %cst_11 : f32 to vector<8x1xf32>
    %17 = arith.addf %15, %16 : vector<8x1xf32>
    %18 = math.rsqrt %17 : vector<8x1xf32>
    %19 = vector.broadcast %18 : vector<8x1xf32> to vector<8x32xf32>
    %20 = arith.mulf %10, %19 : vector<8x32xf32>
    %21 = vector.broadcast %3 : vector<1x32xf32> to vector<8x32xf32>
    %22 = arith.mulf %20, %21 : vector<8x32xf32>
    %23 = vector.broadcast %4 : vector<1x32xf32> to vector<8x32xf32>
    %24 = arith.addf %22, %23 : vector<8x32xf32>
    %c0_12 = arith.constant 0 : index
    %c0_13 = arith.constant 0 : index
    %25 = vector.load %arg5[%c0_12, %c0_13] : memref<32x96xf32, #tpu.memory_space<vmem>>, vector<32x96xf32>
    %cst_14 = arith.constant dense<0.000000e+00> : vector<8x96xf32>
    %26 = tpu.matmul %24, %25, %cst_14 {dimension_numbers = #tpu.dot_dimension_numbers<[1], [0], [0], [1], [0, 0, 1, 1], [], []>, precision = #tpu.contract_precision<fp32>} : vector<8x32xf32>, vector<32x96xf32>, vector<8x96xf32> -> vector<8x96xf32>
    %c0_15 = arith.constant 0 : index
    %c0_16 = arith.constant 0 : index
    %27 = vector.load %arg6[%c0_15, %c0_16] : memref<1x96xf32, #tpu.memory_space<vmem>>, vector<1x96xf32>
    %28 = vector.broadcast %27 : vector<1x96xf32> to vector<8x96xf32>
    %29 = arith.addf %26, %28 : vector<8x96xf32>
    %30 = vector.extract_strided_slice %29 {offsets = [0, 0], sizes = [8, 8], strides = [1, 1]} : vector<8x96xf32> to vector<8x8xf32>
    %31 = vector.extract_strided_slice %29 {offsets = [0, 32], sizes = [8, 8], strides = [1, 1]} : vector<8x96xf32> to vector<8x8xf32>
    %32 = vector.extract_strided_slice %29 {offsets = [0, 64], sizes = [8, 8], strides = [1, 1]} : vector<8x96xf32> to vector<8x8xf32>
    %cst_17 = arith.constant dense<0.000000e+00> : vector<8x8xf32>
    %33 = tpu.matmul %30, %31, %cst_17 {dimension_numbers = #tpu.dot_dimension_numbers<[1], [1], [0], [0], [0, 0, 1, 0], [], []>, precision = #tpu.contract_precision<fp32>} : vector<8x8xf32>, vector<8x8xf32>, vector<8x8xf32> -> vector<8x8xf32>
    %cst_18 = arith.constant 0.353553385 : f32
    %34 = vector.broadcast %cst_18 : f32 to vector<8x8xf32>
    %35 = arith.mulf %33, %34 : vector<8x8xf32>
    %cst_19 = arith.constant 0.000000e+00 : f32
    %36 = vector.broadcast %cst_19 : f32 to vector<8x8xf32>
    %37 = arith.cmpf oeq, %2, %36 : vector<8x8xf32>
    %cst_20 = arith.constant -1.000000e+30 : f32
    %38 = vector.broadcast %cst_20 : f32 to vector<8x8xf32>
    %39 = arith.select %37, %38, %35 : vector<8x8xi1>, vector<8x8xf32>
    %cst_21 = arith.constant dense<0xFF800000> : vector<8xf32>
    %40 = vector.multi_reduction <maximumf>, %39, %cst_21 [1] : vector<8x8xf32> to vector<8xf32>
    %41 = vector.shape_cast %40 : vector<8xf32> to vector<8x1xf32>
    %42 = vector.broadcast %41 : vector<8x1xf32> to vector<8x8xf32>
    %43 = arith.subf %39, %42 : vector<8x8xf32>
    %44 = math.exp %43 : vector<8x8xf32>
    %cst_22 = arith.constant dense<0.000000e+00> : vector<8xf32>
    %45 = vector.multi_reduction <add>, %44, %cst_22 [1] : vector<8x8xf32> to vector<8xf32>
    %46 = vector.shape_cast %45 : vector<8xf32> to vector<8x1xf32>
    %47 = vector.broadcast %46 : vector<8x1xf32> to vector<8x8xf32>
    %48 = arith.divf %44, %47 : vector<8x8xf32>
    %c0_23 = arith.constant 0 : index
    %c0_24 = arith.constant 0 : index
    %c0_25 = arith.constant 0 : index
    %c0_26 = arith.constant 0 : index
    %49 = vector.load %arg16[%c0_23, %c0_24, %c0_25, %c0_26] : memref<1x4x8x8xf32, #tpu.memory_space<vmem>>, vector<1x1x8x8xf32>
    %50 = vector.shape_cast %49 : vector<1x1x8x8xf32> to vector<8x8xf32>
    %51 = vector.shape_cast %48 : vector<8x8xf32> to vector<1x1x8x8xf32>
    tpu.vector_store %arg16[%c0_23, %c0_24, %c0_25, %c0_26], %51 {strides = array<i32>} : memref<1x4x8x8xf32, #tpu.memory_space<vmem>>, vector<1x1x8x8xf32>,
    %cst_27 = arith.constant dense<0.000000e+00> : vector<8x8xf32>
    %52 = tpu.matmul %48, %32, %cst_27 {dimension_numbers = #tpu.dot_dimension_numbers<[1], [0], [0], [1], [0, 0, 1, 1], [], []>, precision = #tpu.contract_precision<fp32>} : vector<8x8xf32>, vector<8x8xf32>, vector<8x8xf32> -> vector<8x8xf32>
    %53 = vector.extract_strided_slice %29 {offsets = [0, 8], sizes = [8, 8], strides = [1, 1]} : vector<8x96xf32> to vector<8x8xf32>
    %54 = vector.extract_strided_slice %29 {offsets = [0, 40], sizes = [8, 8], strides = [1, 1]} : vector<8x96xf32> to vector<8x8xf32>
    %55 = vector.extract_strided_slice %29 {offsets = [0, 72], sizes = [8, 8], strides = [1, 1]} : vector<8x96xf32> to vector<8x8xf32>
    %cst_28 = arith.constant dense<0.000000e+00> : vector<8x8xf32>
    %56 = tpu.matmul %53, %54, %cst_28 {dimension_numbers = #tpu.dot_dimension_numbers<[1], [1], [0], [0], [0, 0, 1, 0], [], []>, precision = #tpu.contract_precision<fp32>} : vector<8x8xf32>, vector<8x8xf32>, vector<8x8xf32> -> vector<8x8xf32>
    %cst_29 = arith.constant 0.353553385 : f32
    %57 = vector.broadcast %cst_29 : f32 to vector<8x8xf32>
    %58 = arith.mulf %56, %57 : vector<8x8xf32>
    %cst_30 = arith.constant 0.000000e+00 : f32
    %59 = vector.broadcast %cst_30 : f32 to vector<8x8xf32>
    %60 = arith.cmpf oeq, %2, %59 : vector<8x8xf32>
    %cst_31 = arith.constant -1.000000e+30 : f32
    %61 = vector.broadcast %cst_31 : f32 to vector<8x8xf32>
    %62 = arith.select %60, %61, %58 : vector<8x8xi1>, vector<8x8xf32>
    %cst_32 = arith.constant dense<0xFF800000> : vector<8xf32>
    %63 = vector.multi_reduction <maximumf>, %62, %cst_32 [1] : vector<8x8xf32> to vector<8xf32>
    %64 = vector.shape_cast %63 : vector<8xf32> to vector<8x1xf32>
    %65 = vector.broadcast %64 : vector<8x1xf32> to vector<8x8xf32>
    %66 = arith.subf %62, %65 : vector<8x8xf32>
    %67 = math.exp %66 : vector<8x8xf32>
    %cst_33 = arith.constant dense<0.000000e+00> : vector<8xf32>
    %68 = vector.multi_reduction <add>, %67, %cst_33 [1] : vector<8x8xf32> to vector<8xf32>
    %69 = vector.shape_cast %68 : vector<8xf32> to vector<8x1xf32>
    %70 = vector.broadcast %69 : vector<8x1xf32> to vector<8x8xf32>
    %71 = arith.divf %67, %70 : vector<8x8xf32>
    %c0_34 = arith.constant 0 : index
    %c1 = arith.constant 1 : index
    %c0_35 = arith.constant 0 : index
    %c0_36 = arith.constant 0 : index
    %72 = vector.load %arg16[%c0_34, %c1, %c0_35, %c0_36] : memref<1x4x8x8xf32, #tpu.memory_space<vmem>>, vector<1x1x8x8xf32>
    %73 = vector.shape_cast %72 : vector<1x1x8x8xf32> to vector<8x8xf32>
    %74 = vector.shape_cast %71 : vector<8x8xf32> to vector<1x1x8x8xf32>
    tpu.vector_store %arg16[%c0_34, %c1, %c0_35, %c0_36], %74 {strides = array<i32>} : memref<1x4x8x8xf32, #tpu.memory_space<vmem>>, vector<1x1x8x8xf32>,
    %cst_37 = arith.constant dense<0.000000e+00> : vector<8x8xf32>
    %75 = tpu.matmul %71, %55, %cst_37 {dimension_numbers = #tpu.dot_dimension_numbers<[1], [0], [0], [1], [0, 0, 1, 1], [], []>, precision = #tpu.contract_precision<fp32>} : vector<8x8xf32>, vector<8x8xf32>, vector<8x8xf32> -> vector<8x8xf32>
    %76 = vector.extract_strided_slice %29 {offsets = [0, 16], sizes = [8, 8], strides = [1, 1]} : vector<8x96xf32> to vector<8x8xf32>
    %77 = vector.extract_strided_slice %29 {offsets = [0, 48], sizes = [8, 8], strides = [1, 1]} : vector<8x96xf32> to vector<8x8xf32>
    %78 = vector.extract_strided_slice %29 {offsets = [0, 80], sizes = [8, 8], strides = [1, 1]} : vector<8x96xf32> to vector<8x8xf32>
    %cst_38 = arith.constant dense<0.000000e+00> : vector<8x8xf32>
    %79 = tpu.matmul %76, %77, %cst_38 {dimension_numbers = #tpu.dot_dimension_numbers<[1], [1], [0], [0], [0, 0, 1, 0], [], []>, precision = #tpu.contract_precision<fp32>} : vector<8x8xf32>, vector<8x8xf32>, vector<8x8xf32> -> vector<8x8xf32>
    %cst_39 = arith.constant 0.353553385 : f32
    %80 = vector.broadcast %cst_39 : f32 to vector<8x8xf32>
    %81 = arith.mulf %79, %80 : vector<8x8xf32>
    %cst_40 = arith.constant 0.000000e+00 : f32
    %82 = vector.broadcast %cst_40 : f32 to vector<8x8xf32>
    %83 = arith.cmpf oeq, %2, %82 : vector<8x8xf32>
    %cst_41 = arith.constant -1.000000e+30 : f32
    %84 = vector.broadcast %cst_41 : f32 to vector<8x8xf32>
    %85 = arith.select %83, %84, %81 : vector<8x8xi1>, vector<8x8xf32>
    %cst_42 = arith.constant dense<0xFF800000> : vector<8xf32>
    %86 = vector.multi_reduction <maximumf>, %85, %cst_42 [1] : vector<8x8xf32> to vector<8xf32>
    %87 = vector.shape_cast %86 : vector<8xf32> to vector<8x1xf32>
    %88 = vector.broadcast %87 : vector<8x1xf32> to vector<8x8xf32>
    %89 = arith.subf %85, %88 : vector<8x8xf32>
    %90 = math.exp %89 : vector<8x8xf32>
    %cst_43 = arith.constant dense<0.000000e+00> : vector<8xf32>
    %91 = vector.multi_reduction <add>, %90, %cst_43 [1] : vector<8x8xf32> to vector<8xf32>
    %92 = vector.shape_cast %91 : vector<8xf32> to vector<8x1xf32>
    %93 = vector.broadcast %92 : vector<8x1xf32> to vector<8x8xf32>
    %94 = arith.divf %90, %93 : vector<8x8xf32>
    %c0_44 = arith.constant 0 : index
    %c2 = arith.constant 2 : index
    %c0_45 = arith.constant 0 : index
    %c0_46 = arith.constant 0 : index
    %95 = vector.load %arg16[%c0_44, %c2, %c0_45, %c0_46] : memref<1x4x8x8xf32, #tpu.memory_space<vmem>>, vector<1x1x8x8xf32>
    %96 = vector.shape_cast %95 : vector<1x1x8x8xf32> to vector<8x8xf32>
    %97 = vector.shape_cast %94 : vector<8x8xf32> to vector<1x1x8x8xf32>
    tpu.vector_store %arg16[%c0_44, %c2, %c0_45, %c0_46], %97 {strides = array<i32>} : memref<1x4x8x8xf32, #tpu.memory_space<vmem>>, vector<1x1x8x8xf32>,
    %cst_47 = arith.constant dense<0.000000e+00> : vector<8x8xf32>
    %98 = tpu.matmul %94, %78, %cst_47 {dimension_numbers = #tpu.dot_dimension_numbers<[1], [0], [0], [1], [0, 0, 1, 1], [], []>, precision = #tpu.contract_precision<fp32>} : vector<8x8xf32>, vector<8x8xf32>, vector<8x8xf32> -> vector<8x8xf32>
    %99 = vector.extract_strided_slice %29 {offsets = [0, 24], sizes = [8, 8], strides = [1, 1]} : vector<8x96xf32> to vector<8x8xf32>
    %100 = vector.extract_strided_slice %29 {offsets = [0, 56], sizes = [8, 8], strides = [1, 1]} : vector<8x96xf32> to vector<8x8xf32>
    %101 = vector.extract_strided_slice %29 {offsets = [0, 88], sizes = [8, 8], strides = [1, 1]} : vector<8x96xf32> to vector<8x8xf32>
    %cst_48 = arith.constant dense<0.000000e+00> : vector<8x8xf32>
    %102 = tpu.matmul %99, %100, %cst_48 {dimension_numbers = #tpu.dot_dimension_numbers<[1], [1], [0], [0], [0, 0, 1, 0], [], []>, precision = #tpu.contract_precision<fp32>} : vector<8x8xf32>, vector<8x8xf32>, vector<8x8xf32> -> vector<8x8xf32>
    %cst_49 = arith.constant 0.353553385 : f32
    %103 = vector.broadcast %cst_49 : f32 to vector<8x8xf32>
    %104 = arith.mulf %102, %103 : vector<8x8xf32>
    %cst_50 = arith.constant 0.000000e+00 : f32
    %105 = vector.broadcast %cst_50 : f32 to vector<8x8xf32>
    %106 = arith.cmpf oeq, %2, %105 : vector<8x8xf32>
    %cst_51 = arith.constant -1.000000e+30 : f32
    %107 = vector.broadcast %cst_51 : f32 to vector<8x8xf32>
    %108 = arith.select %106, %107, %104 : vector<8x8xi1>, vector<8x8xf32>
    %cst_52 = arith.constant dense<0xFF800000> : vector<8xf32>
    %109 = vector.multi_reduction <maximumf>, %108, %cst_52 [1] : vector<8x8xf32> to vector<8xf32>
    %110 = vector.shape_cast %109 : vector<8xf32> to vector<8x1xf32>
    %111 = vector.broadcast %110 : vector<8x1xf32> to vector<8x8xf32>
    %112 = arith.subf %108, %111 : vector<8x8xf32>
    %113 = math.exp %112 : vector<8x8xf32>
    %cst_53 = arith.constant dense<0.000000e+00> : vector<8xf32>
    %114 = vector.multi_reduction <add>, %113, %cst_53 [1] : vector<8x8xf32> to vector<8xf32>
    %115 = vector.shape_cast %114 : vector<8xf32> to vector<8x1xf32>
    %116 = vector.broadcast %115 : vector<8x1xf32> to vector<8x8xf32>
    %117 = arith.divf %113, %116 : vector<8x8xf32>
    %c0_54 = arith.constant 0 : index
    %c3 = arith.constant 3 : index
    %c0_55 = arith.constant 0 : index
    %c0_56 = arith.constant 0 : index
    %118 = vector.load %arg16[%c0_54, %c3, %c0_55, %c0_56] : memref<1x4x8x8xf32, #tpu.memory_space<vmem>>, vector<1x1x8x8xf32>
    %119 = vector.shape_cast %118 : vector<1x1x8x8xf32> to vector<8x8xf32>
    %120 = vector.shape_cast %117 : vector<8x8xf32> to vector<1x1x8x8xf32>
    tpu.vector_store %arg16[%c0_54, %c3, %c0_55, %c0_56], %120 {strides = array<i32>} : memref<1x4x8x8xf32, #tpu.memory_space<vmem>>, vector<1x1x8x8xf32>,
    %cst_57 = arith.constant dense<0.000000e+00> : vector<8x8xf32>
    %121 = tpu.matmul %117, %101, %cst_57 {dimension_numbers = #tpu.dot_dimension_numbers<[1], [0], [0], [1], [0, 0, 1, 1], [], []>, precision = #tpu.contract_precision<fp32>} : vector<8x8xf32>, vector<8x8xf32>, vector<8x8xf32> -> vector<8x8xf32>
    %122 = tpu.concatenate %52, %75, %98, %121 in 1 : vector<8x8xf32>, vector<8x8xf32>, vector<8x8xf32>, vector<8x8xf32> -> vector<8x32xf32>
    %c0_58 = arith.constant 0 : index
    %c0_59 = arith.constant 0 : index
    %123 = vector.load %arg7[%c0_58, %c0_59] : memref<32x32xf32, #tpu.memory_space<vmem>>, vector<32x32xf32>
    %cst_60 = arith.constant dense<0.000000e+00> : vector<8x32xf32>
    %124 = tpu.matmul %122, %123, %cst_60 {dimension_numbers = #tpu.dot_dimension_numbers<[1], [0], [0], [1], [0, 0, 1, 1], [], []>, precision = #tpu.contract_precision<fp32>} : vector<8x32xf32>, vector<32x32xf32>, vector<8x32xf32> -> vector<8x32xf32>
    %c0_61 = arith.constant 0 : index
    %c0_62 = arith.constant 0 : index
    %125 = vector.load %arg8[%c0_61, %c0_62] : memref<1x32xf32, #tpu.memory_space<vmem>>, vector<1x32xf32>
    %126 = vector.broadcast %125 : vector<1x32xf32> to vector<8x32xf32>
    %127 = arith.addf %124, %126 : vector<8x32xf32>
    %128 = arith.addf %127, %1 : vector<8x32xf32>
    %c0_63 = arith.constant 0 : index
    %c0_64 = arith.constant 0 : index
    %129 = vector.load %arg9[%c0_63, %c0_64] : memref<1x32xf32, #tpu.memory_space<vmem>>, vector<1x32xf32>
    %c0_65 = arith.constant 0 : index
    %c0_66 = arith.constant 0 : index
    %130 = vector.load %arg10[%c0_65, %c0_66] : memref<1x32xf32, #tpu.memory_space<vmem>>, vector<1x32xf32>
    %cst_67 = arith.constant dense<0.000000e+00> : vector<8xf32>
    %131 = vector.multi_reduction <add>, %128, %cst_67 [1] : vector<8x32xf32> to vector<8xf32>
    %132 = vector.shape_cast %131 : vector<8xf32> to vector<8x1xf32>
    %cst_68 = arith.constant 3.200000e+01 : f32
    %133 = vector.broadcast %cst_68 : f32 to vector<8x1xf32>
    %134 = arith.divf %132, %133 : vector<8x1xf32>
    %135 = vector.broadcast %134 : vector<8x1xf32> to vector<8x32xf32>
    %136 = arith.subf %128, %135 : vector<8x32xf32>
    %137 = arith.mulf %136, %136 : vector<8x32xf32>
    %cst_69 = arith.constant dense<0.000000e+00> : vector<8xf32>
    %138 = vector.multi_reduction <add>, %137, %cst_69 [1] : vector<8x32xf32> to vector<8xf32>
    %139 = vector.shape_cast %138 : vector<8xf32> to vector<8x1xf32>
    %cst_70 = arith.constant 3.200000e+01 : f32
    %140 = vector.broadcast %cst_70 : f32 to vector<8x1xf32>
    %141 = arith.divf %139, %140 : vector<8x1xf32>
    %cst_71 = arith.constant 9.99999974E-6 : f32
    %142 = vector.broadcast %cst_71 : f32 to vector<8x1xf32>
    %143 = arith.addf %141, %142 : vector<8x1xf32>
    %144 = math.rsqrt %143 : vector<8x1xf32>
    %145 = vector.broadcast %144 : vector<8x1xf32> to vector<8x32xf32>
    %146 = arith.mulf %136, %145 : vector<8x32xf32>
    %147 = vector.broadcast %129 : vector<1x32xf32> to vector<8x32xf32>
    %148 = arith.mulf %146, %147 : vector<8x32xf32>
    %149 = vector.broadcast %130 : vector<1x32xf32> to vector<8x32xf32>
    %150 = arith.addf %148, %149 : vector<8x32xf32>
    %c0_72 = arith.constant 0 : index
    %c0_73 = arith.constant 0 : index
    %151 = vector.load %arg11[%c0_72, %c0_73] : memref<32x128xf32, #tpu.memory_space<vmem>>, vector<32x128xf32>
    %cst_74 = arith.constant dense<0.000000e+00> : vector<8x128xf32>
    %152 = tpu.matmul %150, %151, %cst_74 {dimension_numbers = #tpu.dot_dimension_numbers<[1], [0], [0], [1], [0, 0, 1, 1], [], []>, precision = #tpu.contract_precision<fp32>} : vector<8x32xf32>, vector<32x128xf32>, vector<8x128xf32> -> vector<8x128xf32>
    %c0_75 = arith.constant 0 : index
    %c0_76 = arith.constant 0 : index
    %153 = vector.load %arg12[%c0_75, %c0_76] : memref<1x128xf32, #tpu.memory_space<vmem>>, vector<1x128xf32>
    %154 = vector.broadcast %153 : vector<1x128xf32> to vector<8x128xf32>
    %155 = arith.addf %152, %154 : vector<8x128xf32>
    %cst_77 = arith.constant 5.000000e-01 : f32
    %156 = vector.broadcast %cst_77 : f32 to vector<8x128xf32>
    %157 = arith.mulf %156, %155 : vector<8x128xf32>
    %cst_78 = arith.constant 4.471500e-02 : f32
    %158 = vector.broadcast %cst_78 : f32 to vector<8x128xf32>
    %159 = arith.mulf %158, %155 : vector<8x128xf32>
    %160 = arith.mulf %159, %155 : vector<8x128xf32>
    %161 = arith.mulf %160, %155 : vector<8x128xf32>
    %162 = arith.addf %155, %161 : vector<8x128xf32>
    %cst_79 = arith.constant 0.797884583 : f32
    %163 = vector.broadcast %cst_79 : f32 to vector<8x128xf32>
    %164 = arith.mulf %163, %162 : vector<8x128xf32>
    %165 = math.tanh %164 : vector<8x128xf32>
    %cst_80 = arith.constant 1.000000e+00 : f32
    %166 = vector.broadcast %cst_80 : f32 to vector<8x128xf32>
    %167 = arith.addf %166, %165 : vector<8x128xf32>
    %168 = arith.mulf %157, %167 : vector<8x128xf32>
    %c0_81 = arith.constant 0 : index
    %c0_82 = arith.constant 0 : index
    %169 = vector.load %arg13[%c0_81, %c0_82] : memref<128x32xf32, #tpu.memory_space<vmem>>, vector<128x32xf32>
    %cst_83 = arith.constant dense<0.000000e+00> : vector<8x32xf32>
    %170 = tpu.matmul %168, %169, %cst_83 {dimension_numbers = #tpu.dot_dimension_numbers<[1], [0], [0], [1], [0, 0, 1, 1], [], []>, precision = #tpu.contract_precision<fp32>} : vector<8x128xf32>, vector<128x32xf32>, vector<8x32xf32> -> vector<8x32xf32>
    %c0_84 = arith.constant 0 : index
    %c0_85 = arith.constant 0 : index
    %171 = vector.load %arg14[%c0_84, %c0_85] : memref<1x32xf32, #tpu.memory_space<vmem>>, vector<1x32xf32>
    %172 = vector.broadcast %171 : vector<1x32xf32> to vector<8x32xf32>
    %173 = arith.addf %170, %172 : vector<8x32xf32>
    %174 = arith.addf %173, %128 : vector<8x32xf32>
    %c0_86 = arith.constant 0 : index
    %c0_87 = arith.constant 0 : index
    %c0_88 = arith.constant 0 : index
    %175 = vector.load %arg15[%c0_86, %c0_87, %c0_88] : memref<1x8x32xf32, #tpu.memory_space<vmem>>, vector<1x8x32xf32>
    %176 = vector.shape_cast %175 : vector<1x8x32xf32> to vector<8x32xf32>
    %177 = vector.shape_cast %174 : vector<8x32xf32> to vector<1x8x32xf32>
    tpu.vector_store %arg15[%c0_86, %c0_87, %c0_88], %177 {strides = array<i32>} : memref<1x8x32xf32, #tpu.memory_space<vmem>>, vector<1x8x32xf32>,
    return
  }
  func.func @transform_0(%arg0: i32) -> (i32, i32, i32) {
    %c0_i32 = arith.constant 0 : i32
    %c0_i32_0 = arith.constant 0 : i32
    %c0_i32_1 = arith.constant 0 : i32
    return %arg0, %c0_i32, %c0_i32_0 : i32, i32, i32
  }
  func.func @transform_1(%arg0: i32) -> (i32, i32) {
    %c0_i32 = arith.constant 0 : i32
    %c0_i32_0 = arith.constant 0 : i32
    %c0_i32_1 = arith.constant 0 : i32
    return %c0_i32, %c0_i32_0 : i32, i32
  }
  func.func @transform_2(%arg0: i32) -> (i32, i32) {
    %c0_i32 = arith.constant 0 : i32
    %c0_i32_0 = arith.constant 0 : i32
    %c0_i32_1 = arith.constant 0 : i32
    return %c0_i32, %c0_i32_0 : i32, i32
  }
  func.func @transform_3(%arg0: i32) -> (i32, i32) {
    %c0_i32 = arith.constant 0 : i32
    %c0_i32_0 = arith.constant 0 : i32
    %c0_i32_1 = arith.constant 0 : i32
    return %c0_i32, %c0_i32_0 : i32, i32
  }
  func.func @transform_4(%arg0: i32) -> (i32, i32) {
    %c0_i32 = arith.constant 0 : i32
    %c0_i32_0 = arith.constant 0 : i32
    %c0_i32_1 = arith.constant 0 : i32
    return %c0_i32, %c0_i32_0 : i32, i32
  }
  func.func @transform_5(%arg0: i32) -> (i32, i32) {
    %c0_i32 = arith.constant 0 : i32
    %c0_i32_0 = arith.constant 0 : i32
    %c0_i32_1 = arith.constant 0 : i32
    return %c0_i32, %c0_i32_0 : i32, i32
  }
  func.func @transform_6(%arg0: i32) -> (i32, i32) {
    %c0_i32 = arith.constant 0 : i32
    %c0_i32_0 = arith.constant 0 : i32
    %c0_i32_1 = arith.constant 0 : i32
    return %c0_i32, %c0_i32_0 : i32, i32
  }
  func.func @transform_7(%arg0: i32) -> (i32, i32) {
    %c0_i32 = arith.constant 0 : i32
    %c0_i32_0 = arith.constant 0 : i32
    %c0_i32_1 = arith.constant 0 : i32
    return %c0_i32, %c0_i32_0 : i32, i32
  }
  func.func @transform_8(%arg0: i32) -> (i32, i32) {
    %c0_i32 = arith.constant 0 : i32
    %c0_i32_0 = arith.constant 0 : i32
    %c0_i32_1 = arith.constant 0 : i32
    return %c0_i32, %c0_i32_0 : i32, i32
  }
  func.func @transform_9(%arg0: i32) -> (i32, i32) {
    %c0_i32 = arith.constant 0 : i32
    %c0_i32_0 = arith.constant 0 : i32
    %c0_i32_1 = arith.constant 0 : i32
    return %c0_i32, %c0_i32_0 : i32, i32
  }
  func.func @transform_10(%arg0: i32) -> (i32, i32) {
    %c0_i32 = arith.constant 0 : i32
    %c0_i32_0 = arith.constant 0 : i32
    %c0_i32_1 = arith.constant 0 : i32
    return %c0_i32, %c0_i32_0 : i32, i32
  }
  func.func @transform_11(%arg0: i32) -> (i32, i32) {
    %c0_i32 = arith.constant 0 : i32
    %c0_i32_0 = arith.constant 0 : i32
    %c0_i32_1 = arith.constant 0 : i32
    return %c0_i32, %c0_i32_0 : i32, i32
  }
  func.func @transform_12(%arg0: i32) -> (i32, i32) {
    %c0_i32 = arith.constant 0 : i32
    %c0_i32_0 = arith.constant 0 : i32
    %c0_i32_1 = arith.constant 0 : i32
    return %c0_i32, %c0_i32_0 : i32, i32
  }
  func.func @transform_13(%arg0: i32) -> (i32, i32) {
    %c0_i32 = arith.constant 0 : i32
    %c0_i32_0 = arith.constant 0 : i32
    %c0_i32_1 = arith.constant 0 : i32
    return %c0_i32, %c0_i32_0 : i32, i32
  }
  func.func @transform_14(%arg0: i32) -> (i32, i32, i32) {
    %c0_i32 = arith.constant 0 : i32
    %c0_i32_0 = arith.constant 0 : i32
    %c0_i32_1 = arith.constant 0 : i32
    return %arg0, %c0_i32, %c0_i32_0 : i32, i32, i32
  }
  func.func @transform_15(%arg0: i32) -> (i32, i32, i32, i32) {
    %c0_i32 = arith.constant 0 : i32
    %c0_i32_0 = arith.constant 0 : i32
    %c0_i32_1 = arith.constant 0 : i32
    %c0_i32_2 = arith.constant 0 : i32
    return %arg0, %c0_i32, %c0_i32_0, %c0_i32_1 : i32, i32, i32, i32
  }
}

</mosaic_0001>

<llo_original>
// kernel: block_forward.1
$region0: #{block_forward.1}
  #allocation0 [shape = 'u32[]', space=smem, size = 0x4, offset = 0x4, fixed_abs, tag = 'smem constant byte address 0x4 - core index']
  #allocation1 [shape = 'u32[144,128]{1,0:T(1,128)}', space=vmem, size = 0x12000, scoped, tag = 'internal scratch']
  %s0 = inlined_call_operand.vmem [shape: f32[2,8,32], index: 0, kind: input, shape index: {}]
  %s1 = inlined_call_operand.vmem [shape: f32[8,8], index: 1, kind: input, shape index: {}]
  %s2 = inlined_call_operand.vmem [shape: f32[1,32], index: 2, kind: input, shape index: {}]
  %s3 = inlined_call_operand.vmem [shape: f32[1,32], index: 3, kind: input, shape index: {}]
  %s4 = inlined_call_operand.vmem [shape: f32[32,96], index: 4, kind: input, shape index: {}]
  %s5 = inlined_call_operand.vmem [shape: f32[1,96], index: 5, kind: input, shape index: {}]
  %s6 = inlined_call_operand.vmem [shape: f32[32,32], index: 6, kind: input, shape index: {}]
  %s7 = inlined_call_operand.vmem [shape: f32[1,32], index: 7, kind: input, shape index: {}]
  %s8 = inlined_call_operand.vmem [shape: f32[1,32], index: 8, kind: input, shape index: {}]
  %s9 = inlined_call_operand.vmem [shape: f32[1,32], index: 9, kind: input, shape index: {}]
  %s10 = inlined_call_operand.vmem [shape: f32[32,128], index: 10, kind: input, shape index: {}]
  %s11 = inlined_call_operand.vmem [shape: f32[1,128], index: 11, kind: input, shape index: {}]
  %s12 = inlined_call_operand.vmem [shape: f32[128,32], index: 12, kind: input, shape index: {}]
  %s13 = inlined_call_operand.vmem [shape: f32[1,32], index: 13, kind: input, shape index: {}]
  %s14 = inlined_call_operand.hbm [shape: f32[2,8,32], index: 14, kind: output, shape index: {0}]
  %s15 = inlined_call_operand.hbm [shape: f32[2,4,8,8], index: 15, kind: output, shape index: {1}]
  %16 = xla_tuple %s14, %s15
  %s17 = sld [smem:[#allocation0]]
  $region97: #{block_forward.1} parent=0
    _
  %s19 = ssub.s32 1, %s17
  %s20 = scalar_select 0, %s19, %s17
  $region1: #{block_forward.1} parent=0
    #allocation2 [shape = 'u8[8192]{0}', space=vmem, size = 0x2000, scoped, tag = 'output window, operand 0']
    #allocation3 [shape = 's32[2]{0}', space=sflag, size = 0x8, scoped, tag = 'scoped memory for block_forward.1']
    #allocation4 [shape = 'u8[32768]{0}', space=vmem, size = 0x8000, scoped, tag = 'output window, operand 1']
    #allocation5 [shape = 's32[2]{0}', space=sflag, size = 0x8, scoped, tag = 'scoped memory for block_forward.1']
    %21 = vsyncpa [#allocation3], 0
    %s22 = scalar_lea.sflag [#allocation3], 1
    %23 = vsyncpa %s22, 0
    %24 = vsyncpa [#allocation5], 0
    %s25 = scalar_lea.sflag [#allocation5], 1
    %26 = vsyncpa %s25, 0
    loop: start=0, step=1, limit=4
    $region2: #{block_forward.1} parent=1 // loop_pre_header
      _
    $region3: #{block_forward.1} parent=1 // loop_header
      %s28 = sphi 0, %s32
      %p29 = scmp.ge.s32.totalorder %s28, 4
      %s38 = sphi 0, %s40
      %s41 = sphi 0, %s38
      %s42 = sphi 0, %s41
      %s58 = sphi 0, %s42
      %s62 = sphi 0, %s62
      %s64 = sphi 0, %s62
      %s65 = sphi 0, %s64
      %s79 = sphi 0, %s65
      %s83 = sphi 0, %s83
      %s85 = sphi 0, %s83
      %s86 = sphi 0, %s85
      %s100 = sphi 0, %s86
      %s104 = sphi 0, %s104
      %s106 = sphi 0, %s104
      %s107 = sphi 0, %s106
      %s121 = sphi 0, %s107
      %s125 = sphi 0, %s125
      %s127 = sphi 0, %s125
      %s128 = sphi 0, %s127
      %s142 = sphi 0, %s128
      %s146 = sphi 0, %s146
      %s148 = sphi 0, %s146
      %s149 = sphi 0, %s148
      %s163 = sphi 0, %s149
      %s167 = sphi 0, %s167
      %s169 = sphi 0, %s167
      %s170 = sphi 0, %s169
      %s184 = sphi 0, %s170
      %s188 = sphi 0, %s188
      %s190 = sphi 0, %s188
      %s191 = sphi 0, %s190
      %s205 = sphi 0, %s191
      %s209 = sphi 0, %s209
      %s211 = sphi 0, %s209
      %s212 = sphi 0, %s211
      %s226 = sphi 0, %s212
      %s230 = sphi 0, %s230
      %s232 = sphi 0, %s230
      %s233 = sphi 0, %s232
      %s247 = sphi 0, %s233
      %s251 = sphi 0, %s251
      %s253 = sphi 0, %s251
      %s254 = sphi 0, %s253
      %s268 = sphi 0, %s254
      %s272 = sphi 0, %s272
      %s274 = sphi 0, %s272
      %s275 = sphi 0, %s274
      %s289 = sphi 0, %s275
      %s293 = sphi 0, %s293
      %s295 = sphi 0, %s293
      %s296 = sphi 0, %s295
      %s310 = sphi 0, %s296
      %s314 = sphi 0, %s314
      %s316 = sphi 0, %s314
      %s317 = sphi 0, %s316
      %s331 = sphi 0, %s317
      %s337 = sphi 0, %s339
      %s340 = sphi 0, %s337
      %s341 = sphi 0, %s340
      %s357 = sphi 0, %s341
      %s363 = sphi 0, %s365
      %s366 = sphi 0, %s363
      %s367 = sphi 0, %s366
      %s383 = sphi 0, %s367
    $region4: #{block_forward.1} parent=1 // loop_header_branch
      %31 = sbr.rel (%p29) target = $region8
    $region5: #{block_forward.1} parent=1 // loop_body
      %s33 = ssub.s32 %s28, 1
      %s34 = ssub.s32 %s28, 2
      %s35 = sadd.s32 %s28, 1
      %s36 = ssub.s32 %s28, %s35
      %p37 = scmp.eq.s32.totalorder %s36, 0
      %s39 = sadd.s32 %s38, 1
      %s40 = scalar_select %p37, %s38, %s39
      %p43 = pneg %p37
      %p44 = scmp.eq.s32.totalorder %s28, 1
      %p45 = por %p43, %p44
      %p46 = scmp.ne.s32.totalorder %s38, %s41
      %p47 = scmp.eq.s32.totalorder %s28, 0
      %p48 = por %p46, %p47
      %p49 = scmp.ne.s32.totalorder %s38, %s41
      %p50 = scmp.eq.s32.totalorder %s33, 1
      %p51 = por %p49, %p50
      %p52 = scmp.ne.s32.totalorder %s41, %s42
      %p53 = scmp.eq.s32.totalorder %s33, 0
      %p54 = por %p52, %p53
      %p55 = scmp.ne.s32.totalorder %s41, %s42
      %p56 = scmp.eq.s32.totalorder %s34, 1
      %p57 = por %p55, %p56
      %p59 = scmp.ne.s32.totalorder %s42, %s58
      %p60 = scmp.eq.s32.totalorder %s34, 0
      %p61 = por %p59, %p60
      %s63 = sadd.s32 %s62, 1
      %p66 = scmp.eq.s32.totalorder %s28, 1
      %p67 = scmp.ne.s32.totalorder %s62, %s64
      %p68 = scmp.eq.s32.totalorder %s28, 0
      %p69 = por %p67, %p68
      %p70 = scmp.ne.s32.totalorder %s62, %s64
      %p71 = scmp.eq.s32.totalorder %s33, 1
      %p72 = por %p70, %p71
      %p73 = scmp.ne.s32.totalorder %s64, %s65
      %p74 = scmp.eq.s32.totalorder %s33, 0
      %p75 = por %p73, %p74
      %p76 = scmp.ne.s32.totalorder %s64, %s65
      %p77 = scmp.eq.s32.totalorder %s34, 1
      %p78 = por %p76, %p77
      %p80 = scmp.ne.s32.totalorder %s65, %s79
      %p81 = scmp.eq.s32.totalorder %s34, 0
      %p82 = por %p80, %p81
      %s84 = sadd.s32 %s83, 1
      %p87 = scmp.eq.s32.totalorder %s28, 1
      %p88 = scmp.ne.s32.totalorder %s83, %s85
      %p89 = scmp.eq.s32.totalorder %s28, 0
      %p90 = por %p88, %p89
      %p91 = scmp.ne.s32.totalorder %s83, %s85
      %p92 = scmp.eq.s32.totalorder %s33, 1
      %p93 = por %p91, %p92
      %p94 = scmp.ne.s32.totalorder %s85, %s86
      %p95 = scmp.eq.s32.totalorder %s33, 0
      %p96 = por %p94, %p95
      %p97 = scmp.ne.s32.totalorder %s85, %s86
      %p98 = scmp.eq.s32.totalorder %s34, 1
      %p99 = por %p97, %p98
      %p101 = scmp.ne.s32.totalorder %s86, %s100
      %p102 = scmp.eq.s32.totalorder %s34, 0
      %p103 = por %p101, %p102
      %s105 = sadd.s32 %s104, 1
      %p108 = scmp.eq.s32.totalorder %s28, 1
      %p109 = scmp.ne.s32.totalorder %s104, %s106
      %p110 = scmp.eq.s32.totalorder %s28, 0
      %p111 = por %p109, %p110
      %p112 = scmp.ne.s32.totalorder %s104, %s106
      %p113 = scmp.eq.s32.totalorder %s33, 1
      %p114 = por %p112, %p113
      %p115 = scmp.ne.s32.totalorder %s106, %s107
      %p116 = scmp.eq.s32.totalorder %s33, 0
      %p117 = por %p115, %p116
      %p118 = scmp.ne.s32.totalorder %s106, %s107
      %p119 = scmp.eq.s32.totalorder %s34, 1
      %p120 = por %p118, %p119
      %p122 = scmp.ne.s32.totalorder %s107, %s121
      %p123 = scmp.eq.s32.totalorder %s34, 0
      %p124 = por %p122, %p123
      %s126 = sadd.s32 %s125, 1
      %p129 = scmp.eq.s32.totalorder %s28, 1
      %p130 = scmp.ne.s32.totalorder %s125, %s127
      %p131 = scmp.eq.s32.totalorder %s28, 0
      %p132 = por %p130, %p131
      %p133 = scmp.ne.s32.totalorder %s125, %s127
      %p134 = scmp.eq.s32.totalorder %s33, 1
      %p135 = por %p133, %p134
      %p136 = scmp.ne.s32.totalorder %s127, %s128
      %p137 = scmp.eq.s32.totalorder %s33, 0
      %p138 = por %p136, %p137
      %p139 = scmp.ne.s32.totalorder %s127, %s128
      %p140 = scmp.eq.s32.totalorder %s34, 1
      %p141 = por %p139, %p140
      %p143 = scmp.ne.s32.totalorder %s128, %s142
      %p144 = scmp.eq.s32.totalorder %s34, 0
      %p145 = por %p143, %p144
      %s147 = sadd.s32 %s146, 1
      %p150 = scmp.eq.s32.totalorder %s28, 1
      %p151 = scmp.ne.s32.totalorder %s146, %s148
      %p152 = scmp.eq.s32.totalorder %s28, 0
      %p153 = por %p151, %p152
      %p154 = scmp.ne.s32.totalorder %s146, %s148
      %p155 = scmp.eq.s32.totalorder %s33, 1
      %p156 = por %p154, %p155
      %p157 = scmp.ne.s32.totalorder %s148, %s149
      %p158 = scmp.eq.s32.totalorder %s33, 0
      %p159 = por %p157, %p158
      %p160 = scmp.ne.s32.totalorder %s148, %s149
      %p161 = scmp.eq.s32.totalorder %s34, 1
      %p162 = por %p160, %p161
      %p164 = scmp.ne.s32.totalorder %s149, %s163
      %p165 = scmp.eq.s32.totalorder %s34, 0
      %p166 = por %p164, %p165
      %s168 = sadd.s32 %s167, 1
      %p171 = scmp.eq.s32.totalorder %s28, 1
      %p172 = scmp.ne.s32.totalorder %s167, %s169
      %p173 = scmp.eq.s32.totalorder %s28, 0
      %p174 = por %p172, %p173
      %p175 = scmp.ne.s32.totalorder %s167, %s169
      %p176 = scmp.eq.s32.totalorder %s33, 1
      %p177 = por %p175, %p176
      %p178 = scmp.ne.s32.totalorder %s169, %s170
      %p179 = scmp.eq.s32.totalorder %s33, 0
      %p180 = por %p178, %p179
      %p181 = scmp.ne.s32.totalorder %s169, %s170
      %p182 = scmp.eq.s32.totalorder %s34, 1
      %p183 = por %p181, %p182
      %p185 = scmp.ne.s32.totalorder %s170, %s184
      %p186 = scmp.eq.s32.totalorder %s34, 0
      %p187 = por %p185, %p186
      %s189 = sadd.s32 %s188, 1
      %p192 = scmp.eq.s32.totalorder %s28, 1
      %p193 = scmp.ne.s32.totalorder %s188, %s190
      %p194 = scmp.eq.s32.totalorder %s28, 0
      %p195 = por %p193, %p194
      %p196 = scmp.ne.s32.totalorder %s188, %s190
      %p197 = scmp.eq.s32.totalorder %s33, 1
      %p198 = por %p196, %p197
      %p199 = scmp.ne.s32.totalorder %s190, %s191
      %p200 = scmp.eq.s32.totalorder %s33, 0
      %p201 = por %p199, %p200
      %p202 = scmp.ne.s32.totalorder %s190, %s191
      %p203 = scmp.eq.s32.totalorder %s34, 1
      %p204 = por %p202, %p203
      %p206 = scmp.ne.s32.totalorder %s191, %s205
      %p207 = scmp.eq.s32.totalorder %s34, 0
      %p208 = por %p206, %p207
      %s210 = sadd.s32 %s209, 1
      %p213 = scmp.eq.s32.totalorder %s28, 1
      %p214 = scmp.ne.s32.totalorder %s209, %s211
      %p215 = scmp.eq.s32.totalorder %s28, 0
      %p216 = por %p214, %p215
      %p217 = scmp.ne.s32.totalorder %s209, %s211
      %p218 = scmp.eq.s32.totalorder %s33, 1
      %p219 = por %p217, %p218
      %p220 = scmp.ne.s32.totalorder %s211, %s212
      %p221 = scmp.eq.s32.totalorder %s33, 0
      %p222 = por %p220, %p221
      %p223 = scmp.ne.s32.totalorder %s211, %s212
      %p224 = scmp.eq.s32.totalorder %s34, 1
      %p225 = por %p223, %p224
      %p227 = scmp.ne.s32.totalorder %s212, %s226
      %p228 = scmp.eq.s32.totalorder %s34, 0
      %p229 = por %p227, %p228
      %s231 = sadd.s32 %s230, 1
      %p234 = scmp.eq.s32.totalorder %s28, 1
      %p235 = scmp.ne.s32.totalorder %s230, %s232
      %p236 = scmp.eq.s32.totalorder %s28, 0
      %p237 = por %p235, %p236
      %p238 = scmp.ne.s32.totalorder %s230, %s232
      %p239 = scmp.eq.s32.totalorder %s33, 1
      %p240 = por %p238, %p239
      %p241 = scmp.ne.s32.totalorder %s232, %s233
      %p242 = scmp.eq.s32.totalorder %s33, 0
      %p243 = por %p241, %p242
      %p244 = scmp.ne.s32.totalorder %s232, %s233
      %p245 = scmp.eq.s32.totalorder %s34, 1
      %p246 = por %p244, %p245
      %p248 = scmp.ne.s32.totalorder %s233, %s247
      %p249 = scmp.eq.s32.totalorder %s34, 0
      %p250 = por %p248, %p249
      %s252 = sadd.s32 %s251, 1
      %p255 = scmp.eq.s32.totalorder %s28, 1
      %p256 = scmp.ne.s32.totalorder %s251, %s253
      %p257 = scmp.eq.s32.totalorder %s28, 0
      %p258 = por %p256, %p257
      %p259 = scmp.ne.s32.totalorder %s251, %s253
      %p260 = scmp.eq.s32.totalorder %s33, 1
      %p261 = por %p259, %p260
      %p262 = scmp.ne.s32.totalorder %s253, %s254
      %p263 = scmp.eq.s32.totalorder %s33, 0
      %p264 = por %p262, %p263
      %p265 = scmp.ne.s32.totalorder %s253, %s254
      %p266 = scmp.eq.s32.totalorder %s34, 1
      %p267 = por %p265, %p266
      %p269 = scmp.ne.s32.totalorder %s254, %s268
      %p270 = scmp.eq.s32.totalorder %s34, 0
      %p271 = por %p269, %p270
      %s273 = sadd.s32 %s272, 1
      %p276 = scmp.eq.s32.totalorder %s28, 1
      %p277 = scmp.ne.s32.totalorder %s272, %s274
      %p278 = scmp.eq.s32.totalorder %s28, 0
      %p279 = por %p277, %p278
      %p280 = scmp.ne.s32.totalorder %s272, %s274
      %p281 = scmp.eq.s32.totalorder %s33, 1
      %p282 = por %p280, %p281
      %p283 = scmp.ne.s32.totalorder %s274, %s275
      %p284 = scmp.eq.s32.totalorder %s33, 0
      %p285 = por %p283, %p284
      %p286 = scmp.ne.s32.totalorder %s274, %s275
      %p287 = scmp.eq.s32.totalorder %s34, 1
      %p288 = por %p286, %p287
      %p290 = scmp.ne.s32.totalorder %s275, %s289
      %p291 = scmp.eq.s32.totalorder %s34, 0
      %p292 = por %p290, %p291
      %s294 = sadd.s32 %s293, 1
      %p297 = scmp.eq.s32.totalorder %s28, 1
      %p298 = scmp.ne.s32.totalorder %s293, %s295
      %p299 = scmp.eq.s32.totalorder %s28, 0
      %p300 = por %p298, %p299
      %p301 = scmp.ne.s32.totalorder %s293, %s295
      %p302 = scmp.eq.s32.totalorder %s33, 1
      %p303 = por %p301, %p302
      %p304 = scmp.ne.s32.totalorder %s295, %s296
      %p305 = scmp.eq.s32.totalorder %s33, 0
      %p306 = por %p304, %p305
      %p307 = scmp.ne.s32.totalorder %s295, %s296
      %p308 = scmp.eq.s32.totalorder %s34, 1
      %p309 = por %p307, %p308
      %p311 = scmp.ne.s32.totalorder %s296, %s310
      %p312 = scmp.eq.s32.totalorder %s34, 0
      %p313 = por %p311, %p312
      %s315 = sadd.s32 %s314, 1
      %p318 = scmp.eq.s32.totalorder %s28, 1
      %p319 = scmp.ne.s32.totalorder %s314, %s316
      %p320 = scmp.eq.s32.totalorder %s28, 0
      %p321 = por %p319, %p320
      %p322 = scmp.ne.s32.totalorder %s314, %s316
      %p323 = scmp.eq.s32.totalorder %s33, 1
      %p324 = por %p322, %p323
      %p325 = scmp.ne.s32.totalorder %s316, %s317
      %p326 = scmp.eq.s32.totalorder %s33, 0
      %p327 = por %p325, %p326
      %p328 = scmp.ne.s32.totalorder %s316, %s317
      %p329 = scmp.eq.s32.totalorder %s34, 1
      %p330 = por %p328, %p329
      %p332 = scmp.ne.s32.totalorder %s317, %s331
      %p333 = scmp.eq.s32.totalorder %s34, 0
      %p334 = por %p332, %p333
      %s335 = ssub.s32 %s28, %s35
      %p336 = scmp.eq.s32.totalorder %s335, 0
      %s338 = sadd.s32 %s337, 1
      %s339 = scalar_select %p336, %s337, %s338
      %p342 = pneg %p336
      %p343 = scmp.eq.s32.totalorder %s28, 1
      %p344 = por %p342, %p343
      %p345 = scmp.ne.s32.totalorder %s337, %s340
      %p346 = scmp.eq.s32.totalorder %s28, 0
      %p347 = por %p345, %p346
      %p348 = scmp.ne.s32.totalorder %s337, %s340
      %p349 = scmp.eq.s32.totalorder %s33, 1
      %p350 = por %p348, %p349
      %p351 = scmp.ne.s32.totalorder %s340, %s341
      %p352 = scmp.eq.s32.totalorder %s33, 0
      %p353 = por %p351, %p352
      %p354 = scmp.ne.s32.totalorder %s340, %s341
      %p355 = scmp.eq.s32.totalorder %s34, 1
      %p356 = por %p354, %p355
      %p358 = scmp.ne.s32.totalorder %s341, %s357
      %p359 = scmp.eq.s32.totalorder %s34, 0
      %p360 = por %p358, %p359
      %s361 = ssub.s32 %s28, %s35
      %p362 = scmp.eq.s32.totalorder %s361, 0
      %s364 = sadd.s32 %s363, 1
      %s365 = scalar_select %p362, %s363, %s364
      %p368 = pneg %p362
      %p369 = scmp.eq.s32.totalorder %s28, 1
      %p370 = por %p368, %p369
      %p371 = scmp.ne.s32.totalorder %s363, %s366
      %p372 = scmp.eq.s32.totalorder %s28, 0
      %p373 = por %p371, %p372
      %p374 = scmp.ne.s32.totalorder %s363, %s366
      %p375 = scmp.eq.s32.totalorder %s33, 1
      %p376 = por %p374, %p375
      %p377 = scmp.ne.s32.totalorder %s366, %s367
      %p378 = scmp.eq.s32.totalorder %s33, 0
      %p379 = por %p377, %p378
      %p380 = scmp.ne.s32.totalorder %s366, %s367
      %p381 = scmp.eq.s32.totalorder %s34, 1
      %p382 = por %p380, %p381
      %p384 = scmp.ne.s32.totalorder %s367, %s383
      %p385 = scmp.eq.s32.totalorder %s34, 0
      %p386 = por %p384, %p385
      %p387 = scmp.le.s32.totalorder 1, %s28
      %p388 = scmp.lt.s32.totalorder %s28, 3
      %p389 = pnand %p387, %p388
      %p390 = pneg %p389
      // Predicated region
      $region9: #{block_forward.1} parent=5 // pred_check
        _
      $region10: #{block_forward.1} parent=5 // pred_check_branch
        %392 = sbr.rel (%p389) target = $region12
      $region11: #{block_forward.1} parent=5 // pred_region
        %s393 = ssub.s32 %s28, 1
        // Predicated region
        $region13: #{block_forward.1} parent=11 // pred_check
          %p394 = pneg %p75
        $region14: #{block_forward.1} parent=11 // pred_check_branch
          %396 = sbr.rel (%p394) target = $region16
        $region15: #{block_forward.1} parent=11 // pred_region
          _
        $region16: #{block_forward.1} parent=11 // pred_fallthru
          _
        // Predicated region
        $region17: #{block_forward.1} parent=11 // pred_check
          %p397 = pneg %p96
        $region18: #{block_forward.1} parent=11 // pred_check_branch
          %399 = sbr.rel (%p397) target = $region20
        $region19: #{block_forward.1} parent=11 // pred_region
          _
        $region20: #{block_forward.1} parent=11 // pred_fallthru
          _
        // Predicated region
        $region21: #{block_forward.1} parent=11 // pred_check
          %p400 = pneg %p117
        $region22: #{block_forward.1} parent=11 // pred_check_branch
          %402 = sbr.rel (%p400) target = $region24
        $region23: #{block_forward.1} parent=11 // pred_region
          _
        $region24: #{block_forward.1} parent=11 // pred_fallthru
          _
        // Predicated region
        $region25: #{block_forward.1} parent=11 // pred_check
          %p403 = pneg %p138
        $region26: #{block_forward.1} parent=11 // pred_check_branch
          %405 = sbr.rel (%p403) target = $region28
        $region27: #{block_forward.1} parent=11 // pred_region
          _
        $region28: #{block_forward.1} parent=11 // pred_fallthru
          _
        // Predicated region
        $region29: #{block_forward.1} parent=11 // pred_check
          %p406 = pneg %p159
        $region30: #{block_forward.1} parent=11 // pred_check_branch
          %408 = sbr.rel (%p406) target = $region32
        $region31: #{block_forward.1} parent=11 // pred_region
          _
        $region32: #{block_forward.1} parent=11 // pred_fallthru
          _
        // Predicated region
        $region33: #{block_forward.1} parent=11 // pred_check
          %p409 = pneg %p180
        $region34: #{block_forward.1} parent=11 // pred_check_branch
          %411 = sbr.rel (%p409) target = $region36
        $region35: #{block_forward.1} parent=11 // pred_region
          _
        $region36: #{block_forward.1} parent=11 // pred_fallthru
          _
        // Predicated region
        $region37: #{block_forward.1} parent=11 // pred_check
          %p412 = pneg %p201
        $region38: #{block_forward.1} parent=11 // pred_check_branch
          %414 = sbr.rel (%p412) target = $region40
        $region39: #{block_forward.1} parent=11 // pred_region
          _
        $region40: #{block_forward.1} parent=11 // pred_fallthru
          _
        // Predicated region
        $region41: #{block_forward.1} parent=11 // pred_check
          %p415 = pneg %p222
        $region42: #{block_forward.1} parent=11 // pred_check_branch
          %417 = sbr.rel (%p415) target = $region44
        $region43: #{block_forward.1} parent=11 // pred_region
          _
        $region44: #{block_forward.1} parent=11 // pred_fallthru
          _
        // Predicated region
        $region45: #{block_forward.1} parent=11 // pred_check
          %p418 = pneg %p243
        $region46: #{block_forward.1} parent=11 // pred_check_branch
          %420 = sbr.rel (%p418) target = $region48
        $region47: #{block_forward.1} parent=11 // pred_region
          _
        $region48: #{block_forward.1} parent=11 // pred_fallthru
          _
        // Predicated region
        $region49: #{block_forward.1} parent=11 // pred_check
          %p421 = pneg %p264
        $region50: #{block_forward.1} parent=11 // pred_check_branch
          %423 = sbr.rel (%p421) target = $region52
        $region51: #{block_forward.1} parent=11 // pred_region
          _
        $region52: #{block_forward.1} parent=11 // pred_fallthru
          _
        // Predicated region
        $region53: #{block_forward.1} parent=11 // pred_check
          %p424 = pneg %p285
        $region54: #{block_forward.1} parent=11 // pred_check_branch
          %426 = sbr.rel (%p424) target = $region56
        $region55: #{block_forward.1} parent=11 // pred_region
          _
        $region56: #{block_forward.1} parent=11 // pred_fallthru
          _
        // Predicated region
        $region57: #{block_forward.1} parent=11 // pred_check
          %p427 = pneg %p306
        $region58: #{block_forward.1} parent=11 // pred_check_branch
          %429 = sbr.rel (%p427) target = $region60
        $region59: #{block_forward.1} parent=11 // pred_region
          _
        $region60: #{block_forward.1} parent=11 // pred_fallthru
          _
        // Predicated region
        $region61: #{block_forward.1} parent=11 // pred_check
          %p430 = pneg %p327
        $region62: #{block_forward.1} parent=11 // pred_check_branch
          %432 = sbr.rel (%p430) target = $region64
        $region63: #{block_forward.1} parent=11 // pred_region
          _
        $region64: #{block_forward.1} parent=11 // pred_fallthru
          _
      $region12: #{block_forward.1} parent=5 // pred_fallthru
        _
      %p433 = scmp.lt.s32.totalorder %s28, 2
      // Predicated region
      $region65: #{block_forward.1} parent=5 // pred_check
        %p434 = pneg %p433
      $region66: #{block_forward.1} parent=5 // pred_check_branch
        %436 = sbr.rel (%p434) target = $region68
      $region67: #{block_forward.1} parent=5 // pred_region
        // Predicated region
        $region69: #{block_forward.1} parent=67 // pred_check
          %p437 = pneg %p48
        $region70: #{block_forward.1} parent=67 // pred_check_branch
          %439 = sbr.rel (%p437) target = $region72
        $region71: #{block_forward.1} parent=67 // pred_region
          %p440 = scmp.lt.s32.totalorder %s28, 1
          %s441 = scalar_select %p440, %s28, 1
          %s442 = smul.addr %s441, 8
          %s443 = scalar_lea.vmem %s0, %s442
        $region72: #{block_forward.1} parent=67 // pred_fallthru
          _
      $region68: #{block_forward.1} parent=5 // pred_fallthru
        _
      %p444 = scmp.le.s32.totalorder 1, %s28
      %p445 = scmp.lt.s32.totalorder %s28, 3
      %p446 = pnand %p444, %p445
      %p447 = pneg %p446
      // Predicated region
      $region73: #{block_forward.1} parent=5 // pred_check
        _
      $region74: #{block_forward.1} parent=5 // pred_check_branch
        %449 = sbr.rel (%p446) target = $region76
      $region75: #{block_forward.1} parent=5 // pred_region
        %s450 = ssub.s32 %s28, 1
        %p451 = scmp.lt.s32.totalorder %s33, 1
        %s452 = scalar_select %p451, %s33, 1
        %s453 = smul.addr %s452, 8
        %s454 = scalar_lea.vmem %s0, %s453
        %p455 = pneg %p54
        %p456 = pneg %p51
        %p457 = pneg %p75
        %p458 = pneg %p72
        %p459 = pneg %p96
        %p460 = pneg %p93
        %p461 = pneg %p117
        %p462 = pneg %p114
        %p463 = pneg %p138
        %p464 = pneg %p135
        %p465 = pneg %p159
        %p466 = pneg %p156
        %p467 = pneg %p180
        %p468 = pneg %p177
        %p469 = pneg %p201
        %p470 = pneg %p198
        %p471 = pneg %p222
        %p472 = pneg %p219
        %p473 = pneg %p243
        %p474 = pneg %p240
        %p475 = pneg %p264
        %p476 = pneg %p261
        %p477 = pneg %p285
        %p478 = pneg %p282
        %p479 = pneg %p306
        %p480 = pneg %p303
        %p481 = pneg %p327
        %p482 = pneg %p324
        %p483 = pneg %p353
        %p484 = pneg %p350
        %s485 = sand.u32 %s340, 1
        %s486 = scalar_lea.sflag [#allocation3], %s485
        %s487 = sand.u32 %s340, 1
        %s488 = smul.addr %s487, 8
        %s489 = scalar_lea.vmem [#allocation2], %s488
        %p490 = pneg %p379
        %p491 = pneg %p376
        %s492 = sand.u32 %s366, 1
        %s493 = scalar_lea.sflag [#allocation5], %s492
        %s494 = sand.u32 %s366, 1
        %s495 = smul.addr %s494, 32
        %s496 = scalar_lea.vmem [#allocation4], %s495
        %p497 = scmp.lt.s32.totalorder %s33, 1
        %s498 = scalar_select %p497, %s33, 1
        %s499 = smul.addr %s498, 8
        %s500 = scalar_lea.vmem %s0, %s499
        %v501 = vld [vmem:[%s500] sm:$0xff]
        %v502 = vld [vmem:[%s1] sm:$0xff]
        %v503 = vld [vmem:[%s2] sm:$0x1]
        %v504 = vld [vmem:[%s3] sm:$0x1]
        %vm505 = vcmask 261120
        %v506 = vsel %vm505, %v501, 0.0
        %507 = vadd.xlane.f32.xlu0 %v506
        %v508 = vpop.xlane.xlu0 %507
        %v509 = vrcp.pop 32.0
        %v510 = vmul.f32 %v508, %v509
        %v511 = vsub.f32 %v501, %v510
        %v512 = vmul.f32 %v511, %v511
        %v513 = vsel %vm505, %v512, 0.0
        %514 = vadd.xlane.f32.xlu0 %v513
        %v515 = vpop.xlane.xlu0 %514
        %v516 = vmul.f32 %v515, %v509
        %v517 = vadd.f32 %v516, 1e-05
        %v518 = vrsqrt.pop %v517
        %v519 = vmul.f32 %v511, %v518
        %v521 = vlaneseq
        %v522 = vshrl.u32 %v521, 7
        %v523 = vsub.s32 0, %v522
        %v524 = vrot.slane %v503, %v523
        %v526 = vmul.f32 %v519, %v524
        %v528 = vlaneseq
        %v529 = vshrl.u32 %v528, 7
        %v530 = vsub.s32 0, %v529
        %v531 = vrot.slane %v504, %v530
        %v533 = vadd.f32 %v526, %v531
        %v534 = vld [vmem:[%s4] sm:$0xff]
        %v535 = vld [vmem:[%s4 + $0x8] sm:$0xff]
        %v536 = vld [vmem:[%s4 + $0x10] sm:$0xff]
        %v537 = vld [vmem:[%s4 + $0x18] sm:$0xff]
        %v538 = vld [vmem:[%s5] sm:$0x1]
        %v540 = vlaneseq
        %v541 = vshrl.u32 %v540, 7
        %v542 = vsub.s32 0, %v541
        %v543 = vrot.slane %v538, %v542
        %v546 = vsel %vm505, %v533, 0
        %548 = vmatprep.subr.mxu0 0.0
        %549 = vmatpush1.msra.mxu0 0.0
        %550 = vmatprep.subr.mxu0 0.0
        %551 = vmatpush1.msra.mxu0 0.0
        %552 = vmatprep.subr.mxu0 0.0
        %553 = vmatpush1.msra.mxu0 0.0
        %554 = vmatprep.subr.mxu0 0.0
        %555 = vmatpush1.msra.mxu0 0.0
        %556 = vmatprep.subr.mxu0 0.0
        %557 = vmatpush1.msra.mxu0 0.0
        %558 = vmatprep.subr.mxu0 0.0
        %559 = vmatpush1.msra.mxu0 0.0
        %560 = vmatprep.subr.mxu0 0.0
        %561 = vmatpush1.msra.mxu0 0.0
        %562 = vmatprep.subr.mxu0 0.0
        %563 = vmatpush1.msra.mxu0 0.0
        %564 = vmatprep.subr.mxu0 0.0
        %565 = vmatpush1.msra.mxu0 0.0
        %566 = vmatprep.subr.mxu0 0.0
        %567 = vmatpush1.msra.mxu0 0.0
        %568 = vmatprep.subr.mxu0 0.0
        %569 = vmatpush1.msra.mxu0 0.0
        %570 = vmatprep.subr.mxu0 0.0
        %571 = vmatpush1.msra.mxu0 0.0
        %572 = vmatprep.subr.mxu0 0.0
        %v573 = vand.u32 %v537, 4294901760
        %574 = vmatpush1.msra.mxu0 %v573
        %575 = vmatprep.subr.mxu0 0.0
        %v576 = vand.u32 %v536, 4294901760
        %577 = vmatpush1.msra.mxu0 %v576
        %578 = vmatprep.subr.mxu0 0.0
        %v579 = vand.u32 %v535, 4294901760
        %580 = vmatpush1.msra.mxu0 %v579
        %581 = vmatprep.subr.mxu0 0.0
        %v582 = vand.u32 %v534, 4294901760
        %583 = vmatpush1.msra.mxu0 %v582
        %584 = vmatprep.subr.mxu0 0.0
        %585 = vmatpush2.msra.mxu0 0.0
        %586 = vmatprep.subr.mxu0 0.0
        %587 = vmatpush2.msra.mxu0 0.0
        %588 = vmatprep.subr.mxu0 0.0
        %589 = vmatpush2.msra.mxu0 0.0
        %590 = vmatprep.subr.mxu0 0.0
        %591 = vmatpush2.msra.mxu0 0.0
        %592 = vmatprep.subr.mxu0 0.0
        %593 = vmatpush2.msra.mxu0 0.0
        %594 = vmatprep.subr.mxu0 0.0
        %595 = vmatpush2.msra.mxu0 0.0
        %596 = vmatprep.subr.mxu0 0.0
        %597 = vmatpush2.msra.mxu0 0.0
        %598 = vmatprep.subr.mxu0 0.0
        %599 = vmatpush2.msra.mxu0 0.0
        %600 = vmatprep.subr.mxu0 0.0
        %601 = vmatpush2.msra.mxu0 0.0
        %602 = vmatprep.subr.mxu0 0.0
        %603 = vmatpush2.msra.mxu0 0.0
        %604 = vmatprep.subr.mxu0 0.0
        %605 = vmatpush2.msra.mxu0 0.0
        %606 = vmatprep.subr.mxu0 0.0
        %607 = vmatpush2.msra.mxu0 0.0
        %608 = vmatprep.subr.mxu0 0.0
        %609 = vmatpush2.msra.mxu0 0.0
        %610 = vmatprep.subr.mxu0 0.0
        %611 = vmatpush2.msra.mxu0 0.0
        %612 = vmatprep.subr.mxu0 0.0
        %613 = vmatpush2.msra.mxu0 0.0
        %614 = vmatprep.subr.mxu0 0.0
        %615 = vmatpush2.msra.mxu0 0.0
        %616 = vmatprep.mubr.f32.mxu0 0.0
        %v617 = vand.u32 %v546, 4294901760
        %v618 = vsub.f32 %v546, %v617
        %v619 = vand.u32 %v618, 4294901760
        %v620 = vsub.f32 %v618, %v619
        %v621 = vand.u32 %v620, 4294901760
        %622 = vmatmul.mubr.f32.gmra.mxu0 %v621
        %v623 = vpop.f32.mrf.mxu0
        %v624 = vadd.f32 %v543, %v623
        %v625 = vpop.f32.mrf.mxu0
        %626 = vdwg.mxu0
        %627 = vmatprep.subr.mxu0 0.0
        %628 = vmatpush1.msra.mxu0 0.0
        %629 = vmatprep.subr.mxu0 0.0
        %630 = vmatpush1.msra.mxu0 0.0
        %631 = vmatprep.subr.mxu0 0.0
        %632 = vmatpush1.msra.mxu0 0.0
        %633 = vmatprep.subr.mxu0 0.0
        %634 = vmatpush1.msra.mxu0 0.0
        %635 = vmatprep.subr.mxu0 0.0
        %636 = vmatpush1.msra.mxu0 0.0
        %637 = vmatprep.subr.mxu0 0.0
        %638 = vmatpush1.msra.mxu0 0.0
        %639 = vmatprep.subr.mxu0 0.0
        %640 = vmatpush1.msra.mxu0 0.0
        %641 = vmatprep.subr.mxu0 0.0
        %642 = vmatpush1.msra.mxu0 0.0
        %643 = vmatprep.subr.mxu0 0.0
        %644 = vmatpush1.msra.mxu0 0.0
        %645 = vmatprep.subr.mxu0 0.0
        %646 = vmatpush1.msra.mxu0 0.0
        %647 = vmatprep.subr.mxu0 0.0
        %648 = vmatpush1.msra.mxu0 0.0
        %649 = vmatprep.subr.mxu0 0.0
        %650 = vmatpush1.msra.mxu0 0.0
        %651 = vmatprep.subr.mxu0 0.0
        %v652 = vand.u32 %v537, 4294901760
        %v653 = vsub.f32 %v537, %v652
        %v654 = vand.u32 %v653, 4294901760
        %v655 = vsub.f32 %v653, %v654
        %v656 = vand.u32 %v655, 4294901760
        %657 = vmatpush1.msra.mxu0 %v656
        %658 = vmatprep.subr.mxu0 0.0
        %v659 = vand.u32 %v536, 4294901760
        %v660 = vsub.f32 %v536, %v659
        %v661 = vand.u32 %v660, 4294901760
        %v662 = vsub.f32 %v660, %v661
        %v663 = vand.u32 %v662, 4294901760
        %664 = vmatpush1.msra.mxu0 %v663
        %665 = vmatprep.subr.mxu0 0.0
        %v666 = vand.u32 %v535, 4294901760
        %v667 = vsub.f32 %v535, %v666
        %v668 = vand.u32 %v667, 4294901760
        %v669 = vsub.f32 %v667, %v668
        %v670 = vand.u32 %v669, 4294901760
        %671 = vmatpush1.msra.mxu0 %v670
        %672 = vmatprep.subr.mxu0 0.0
        %v673 = vand.u32 %v534, 4294901760
        %v674 = vsub.f32 %v534, %v673
        %v675 = vand.u32 %v674, 4294901760
        %v676 = vsub.f32 %v674, %v675
        %v677 = vand.u32 %v676, 4294901760
        %678 = vmatpush1.msra.mxu0 %v677
        %679 = vmatprep.subr.mxu0 0.0
        %680 = vmatpush2.msra.mxu0 0.0
        %681 = vmatprep.subr.mxu0 0.0
        %682 = vmatpush2.msra.mxu0 0.0
        %683 = vmatprep.subr.mxu0 0.0
        %684 = vmatpush2.msra.mxu0 0.0
        %685 = vmatprep.subr.mxu0 0.0
        %686 = vmatpush2.msra.mxu0 0.0
        %687 = vmatprep.subr.mxu0 0.0
        %688 = vmatpush2.msra.mxu0 0.0
        %689 = vmatprep.subr.mxu0 0.0
        %690 = vmatpush2.msra.mxu0 0.0
        %691 = vmatprep.subr.mxu0 0.0
        %692 = vmatpush2.msra.mxu0 0.0
        %693 = vmatprep.subr.mxu0 0.0
        %694 = vmatpush2.msra.mxu0 0.0
        %695 = vmatprep.subr.mxu0 0.0
        %696 = vmatpush2.msra.mxu0 0.0
        %697 = vmatprep.subr.mxu0 0.0
        %698 = vmatpush2.msra.mxu0 0.0
        %699 = vmatprep.subr.mxu0 0.0
        %700 = vmatpush2.msra.mxu0 0.0
        %701 = vmatprep.subr.mxu0 0.0
        %702 = vmatpush2.msra.mxu0 0.0
        %703 = vmatprep.subr.mxu0 0.0
        %704 = vmatpush2.msra.mxu0 0.0
        %705 = vmatprep.subr.mxu0 0.0
        %706 = vmatpush2.msra.mxu0 0.0
        %707 = vmatprep.subr.mxu0 0.0
        %708 = vmatpush2.msra.mxu0 0.0
        %709 = vmatprep.subr.mxu0 0.0
        %710 = vmatpush2.msra.mxu0 0.0
        %711 = vmatprep.mubr.f32.mxu0 0.0
        %v712 = vand.u32 %v546, 4294901760
        %713 = vmatmul.mubr.f32.gmra.mxu0 %v712
        %v714 = vpop.f32.mrf.mxu0
        %v715 = vadd.f32 %v624, %v714
        %v716 = vpop.f32.mrf.mxu0
        %717 = vdwg.mxu0
        %718 = vmatprep.subr.mxu0 0.0
        %719 = vmatpush1.msra.mxu0 0.0
        %720 = vmatprep.subr.mxu0 0.0
        %721 = vmatpush1.msra.mxu0 0.0
        %722 = vmatprep.subr.mxu0 0.0
        %723 = vmatpush1.msra.mxu0 0.0
        %724 = vmatprep.subr.mxu0 0.0
        %725 = vmatpush1.msra.mxu0 0.0
        %726 = vmatprep.subr.mxu0 0.0
        %727 = vmatpush1.msra.mxu0 0.0
        %728 = vmatprep.subr.mxu0 0.0
        %729 = vmatpush1.msra.mxu0 0.0
        %730 = vmatprep.subr.mxu0 0.0
        %731 = vmatpush1.msra.mxu0 0.0
        %732 = vmatprep.subr.mxu0 0.0
        %733 = vmatpush1.msra.mxu0 0.0
        %734 = vmatprep.subr.mxu0 0.0
        %735 = vmatpush1.msra.mxu0 0.0
        %736 = vmatprep.subr.mxu0 0.0
        %737 = vmatpush1.msra.mxu0 0.0
        %738 = vmatprep.subr.mxu0 0.0
        %739 = vmatpush1.msra.mxu0 0.0
        %740 = vmatprep.subr.mxu0 0.0
        %741 = vmatpush1.msra.mxu0 0.0
        %742 = vmatprep.subr.mxu0 0.0
        %v743 = vand.u32 %v537, 4294901760
        %v744 = vsub.f32 %v537, %v743
        %745 = vmatpush1.msra.mxu0 %v744
        %746 = vmatprep.subr.mxu0 0.0
        %v747 = vand.u32 %v536, 4294901760
        %v748 = vsub.f32 %v536, %v747
        %749 = vmatpush1.msra.mxu0 %v748
        %750 = vmatprep.subr.mxu0 0.0
        %v751 = vand.u32 %v535, 4294901760
        %v752 = vsub.f32 %v535, %v751
        %753 = vmatpush1.msra.mxu0 %v752
        %754 = vmatprep.subr.mxu0 0.0
        %v755 = vand.u32 %v534, 4294901760
        %v756 = vsub.f32 %v534, %v755
        %757 = vmatpush1.msra.mxu0 %v756
        %758 = vmatprep.subr.mxu0 0.0
        %759 = vmatpush2.msra.mxu0 0.0
        %760 = vmatprep.subr.mxu0 0.0
        %761 = vmatpush2.msra.mxu0 0.0
        %762 = vmatprep.subr.mxu0 0.0
        %763 = vmatpush2.msra.mxu0 0.0
        %764 = vmatprep.subr.mxu0 0.0
        %765 = vmatpush2.msra.mxu0 0.0
        %766 = vmatprep.subr.mxu0 0.0
        %767 = vmatpush2.msra.mxu0 0.0
        %768 = vmatprep.subr.mxu0 0.0
        %769 = vmatpush2.msra.mxu0 0.0
        %770 = vmatprep.subr.mxu0 0.0
        %771 = vmatpush2.msra.mxu0 0.0
        %772 = vmatprep.subr.mxu0 0.0
        %773 = vmatpush2.msra.mxu0 0.0
        %774 = vmatprep.subr.mxu0 0.0
        %775 = vmatpush2.msra.mxu0 0.0
        %776 = vmatprep.subr.mxu0 0.0
        %777 = vmatpush2.msra.mxu0 0.0
        %778 = vmatprep.subr.mxu0 0.0
        %779 = vmatpush2.msra.mxu0 0.0
        %780 = vmatprep.subr.mxu0 0.0
        %781 = vmatpush2.msra.mxu0 0.0
        %782 = vmatprep.subr.mxu0 0.0
        %783 = vmatpush2.msra.mxu0 0.0
        %784 = vmatprep.subr.mxu0 0.0
        %785 = vmatpush2.msra.mxu0 0.0
        %786 = vmatprep.subr.mxu0 0.0
        %787 = vmatpush2.msra.mxu0 0.0
        %788 = vmatprep.subr.mxu0 0.0
        %789 = vmatpush2.msra.mxu0 0.0
        %790 = vmatprep.mubr.f32.mxu0 0.0
        %v791 = vand.u32 %v546, 4294901760
        %v792 = vsub.f32 %v546, %v791
        %793 = vmatmul.mubr.f32.gmra.mxu0 %v792
        %v794 = vpop.f32.mrf.mxu0
        %v795 = vadd.f32 %v715, %v794
        %v796 = vpop.f32.mrf.mxu0
        %797 = vdwg.mxu0
        %798 = vmatprep.subr.mxu0 0.0
        %799 = vmatpush1.msra.mxu0 0.0
        %800 = vmatprep.subr.mxu0 0.0
        %801 = vmatpush1.msra.mxu0 0.0
        %802 = vmatprep.subr.mxu0 0.0
        %803 = vmatpush1.msra.mxu0 0.0
        %804 = vmatprep.subr.mxu0 0.0
        %805 = vmatpush1.msra.mxu0 0.0
        %806 = vmatprep.subr.mxu0 0.0
        %807 = vmatpush1.msra.mxu0 0.0
        %808 = vmatprep.subr.mxu0 0.0
        %809 = vmatpush1.msra.mxu0 0.0
        %810 = vmatprep.subr.mxu0 0.0
        %811 = vmatpush1.msra.mxu0 0.0
        %812 = vmatprep.subr.mxu0 0.0
        %813 = vmatpush1.msra.mxu0 0.0
        %814 = vmatprep.subr.mxu0 0.0
        %815 = vmatpush1.msra.mxu0 0.0
        %816 = vmatprep.subr.mxu0 0.0
        %817 = vmatpush1.msra.mxu0 0.0
        %818 = vmatprep.subr.mxu0 0.0
        %819 = vmatpush1.msra.mxu0 0.0
        %820 = vmatprep.subr.mxu0 0.0
        %821 = vmatpush1.msra.mxu0 0.0
        %822 = vmatprep.subr.mxu0 0.0
        %v823 = vand.u32 %v537, 4294901760
        %824 = vmatpush1.msra.mxu0 %v823
        %825 = vmatprep.subr.mxu0 0.0
        %v826 = vand.u32 %v536, 4294901760
        %827 = vmatpush1.msra.mxu0 %v826
        %828 = vmatprep.subr.mxu0 0.0
        %v829 = vand.u32 %v535, 4294901760
        %830 = vmatpush1.msra.mxu0 %v829
        %831 = vmatprep.subr.mxu0 0.0
        %v832 = vand.u32 %v534, 4294901760
        %833 = vmatpush1.msra.mxu0 %v832
        %834 = vmatprep.subr.mxu0 0.0
        %835 = vmatpush2.msra.mxu0 0.0
        %836 = vmatprep.subr.mxu0 0.0
        %837 = vmatpush2.msra.mxu0 0.0
        %838 = vmatprep.subr.mxu0 0.0
        %839 = vmatpush2.msra.mxu0 0.0
        %840 = vmatprep.subr.mxu0 0.0
        %841 = vmatpush2.msra.mxu0 0.0
        %842 = vmatprep.subr.mxu0 0.0
        %843 = vmatpush2.msra.mxu0 0.0
        %844 = vmatprep.subr.mxu0 0.0
        %845 = vmatpush2.msra.mxu0 0.0
        %846 = vmatprep.subr.mxu0 0.0
        %847 = vmatpush2.msra.mxu0 0.0
        %848 = vmatprep.subr.mxu0 0.0
        %849 = vmatpush2.msra.mxu0 0.0
        %850 = vmatprep.subr.mxu0 0.0
        %851 = vmatpush2.msra.mxu0 0.0
        %852 = vmatprep.subr.mxu0 0.0
        %853 = vmatpush2.msra.mxu0 0.0
        %854 = vmatprep.subr.mxu0 0.0
        %855 = vmatpush2.msra.mxu0 0.0
        %856 = vmatprep.subr.mxu0 0.0
        %857 = vmatpush2.msra.mxu0 0.0
        %858 = vmatprep.subr.mxu0 0.0
        %859 = vmatpush2.msra.mxu0 0.0
        %860 = vmatprep.subr.mxu0 0.0
        %861 = vmatpush2.msra.mxu0 0.0
        %862 = vmatprep.subr.mxu0 0.0
        %863 = vmatpush2.msra.mxu0 0.0
        %864 = vmatprep.subr.mxu0 0.0
        %865 = vmatpush2.msra.mxu0 0.0
        %866 = vmatprep.mubr.f32.mxu0 0.0
        %v867 = vand.u32 %v546, 4294901760
        %v868 = vsub.f32 %v546, %v867
        %v869 = vand.u32 %v868, 4294901760
        %870 = vmatmul.mubr.f32.gmra.mxu0 %v869
        %v871 = vpop.f32.mrf.mxu0
        %v872 = vadd.f32 %v795, %v871
        %v873 = vpop.f32.mrf.mxu0
        %874 = vdwg.mxu0
        %875 = vmatprep.subr.mxu0 0.0
        %876 = vmatpush1.msra.mxu0 0.0
        %877 = vmatprep.subr.mxu0 0.0
        %878 = vmatpush1.msra.mxu0 0.0
        %879 = vmatprep.subr.mxu0 0.0
        %880 = vmatpush1.msra.mxu0 0.0
        %881 = vmatprep.subr.mxu0 0.0
        %882 = vmatpush1.msra.mxu0 0.0
        %883 = vmatprep.subr.mxu0 0.0
        %884 = vmatpush1.msra.mxu0 0.0
        %885 = vmatprep.subr.mxu0 0.0
        %886 = vmatpush1.msra.mxu0 0.0
        %887 = vmatprep.subr.mxu0 0.0
        %888 = vmatpush1.msra.mxu0 0.0
        %889 = vmatprep.subr.mxu0 0.0
        %890 = vmatpush1.msra.mxu0 0.0
        %891 = vmatprep.subr.mxu0 0.0
        %892 = vmatpush1.msra.mxu0 0.0
        %893 = vmatprep.subr.mxu0 0.0
        %894 = vmatpush1.msra.mxu0 0.0
        %895 = vmatprep.subr.mxu0 0.0
        %896 = vmatpush1.msra.mxu0 0.0
        %897 = vmatprep.subr.mxu0 0.0
        %898 = vmatpush1.msra.mxu0 0.0
        %899 = vmatprep.subr.mxu0 0.0
        %v900 = vand.u32 %v537, 4294901760
        %v901 = vsub.f32 %v537, %v900
        %v902 = vand.u32 %v901, 4294901760
        %903 = vmatpush1.msra.mxu0 %v902
        %904 = vmatprep.subr.mxu0 0.0
        %v905 = vand.u32 %v536, 4294901760
        %v906 = vsub.f32 %v536, %v905
        %v907 = vand.u32 %v906, 4294901760
        %908 = vmatpush1.msra.mxu0 %v907
        %909 = vmatprep.subr.mxu0 0.0
        %v910 = vand.u32 %v535, 4294901760
        %v911 = vsub.f32 %v535, %v910
        %v912 = vand.u32 %v911, 4294901760
        %913 = vmatpush1.msra.mxu0 %v912
        %914 = vmatprep.subr.mxu0 0.0
        %v915 = vand.u32 %v534, 4294901760
        %v916 = vsub.f32 %v534, %v915
        %v917 = vand.u32 %v916, 4294901760
        %918 = vmatpush1.msra.mxu0 %v917
        %919 = vmatprep.subr.mxu0 0.0
        %920 = vmatpush2.msra.mxu0 0.0
        %921 = vmatprep.subr.mxu0 0.0
        %922 = vmatpush2.msra.mxu0 0.0
        %923 = vmatprep.subr.mxu0 0.0
        %924 = vmatpush2.msra.mxu0 0.0
        %925 = vmatprep.subr.mxu0 0.0
        %926 = vmatpush2.msra.mxu0 0.0
        %927 = vmatprep.subr.mxu0 0.0
        %928 = vmatpush2.msra.mxu0 0.0
        %929 = vmatprep.subr.mxu0 0.0
        %930 = vmatpush2.msra.mxu0 0.0
        %931 = vmatprep.subr.mxu0 0.0
        %932 = vmatpush2.msra.mxu0 0.0
        %933 = vmatprep.subr.mxu0 0.0
        %934 = vmatpush2.msra.mxu0 0.0
        %935 = vmatprep.subr.mxu0 0.0
        %936 = vmatpush2.msra.mxu0 0.0
        %937 = vmatprep.subr.mxu0 0.0
        %938 = vmatpush2.msra.mxu0 0.0
        %939 = vmatprep.subr.mxu0 0.0
        %940 = vmatpush2.msra.mxu0 0.0
        %941 = vmatprep.subr.mxu0 0.0
        %942 = vmatpush2.msra.mxu0 0.0
        %943 = vmatprep.subr.mxu0 0.0
        %944 = vmatpush2.msra.mxu0 0.0
        %945 = vmatprep.subr.mxu0 0.0
        %946 = vmatpush2.msra.mxu0 0.0
        %947 = vmatprep.subr.mxu0 0.0
        %948 = vmatpush2.msra.mxu0 0.0
        %949 = vmatprep.subr.mxu0 0.0
        %950 = vmatpush2.msra.mxu0 0.0
        %951 = vmatprep.mubr.f32.mxu0 0.0
        %v952 = vand.u32 %v546, 4294901760
        %953 = vmatmul.mubr.f32.gmra.mxu0 %v952
        %v954 = vpop.f32.mrf.mxu0
        %v955 = vadd.f32 %v872, %v954
        %v956 = vpop.f32.mrf.mxu0
        %957 = vdwg.mxu0
        %958 = vmatprep.subr.mxu0 0.0
        %959 = vmatpush1.msra.mxu0 0.0
        %960 = vmatprep.subr.mxu0 0.0
        %961 = vmatpush1.msra.mxu0 0.0
        %962 = vmatprep.subr.mxu0 0.0
        %963 = vmatpush1.msra.mxu0 0.0
        %964 = vmatprep.subr.mxu0 0.0
        %965 = vmatpush1.msra.mxu0 0.0
        %966 = vmatprep.subr.mxu0 0.0
        %967 = vmatpush1.msra.mxu0 0.0
        %968 = vmatprep.subr.mxu0 0.0
        %969 = vmatpush1.msra.mxu0 0.0
        %970 = vmatprep.subr.mxu0 0.0
        %971 = vmatpush1.msra.mxu0 0.0
        %972 = vmatprep.subr.mxu0 0.0
        %973 = vmatpush1.msra.mxu0 0.0
        %974 = vmatprep.subr.mxu0 0.0
        %975 = vmatpush1.msra.mxu0 0.0
        %976 = vmatprep.subr.mxu0 0.0
        %977 = vmatpush1.msra.mxu0 0.0
        %978 = vmatprep.subr.mxu0 0.0
        %979 = vmatpush1.msra.mxu0 0.0
        %980 = vmatprep.subr.mxu0 0.0
        %981 = vmatpush1.msra.mxu0 0.0
        %982 = vmatprep.subr.mxu0 0.0
        %v983 = vand.u32 %v537, 4294901760
        %984 = vmatpush1.msra.mxu0 %v983
        %985 = vmatprep.subr.mxu0 0.0
        %v986 = vand.u32 %v536, 4294901760
        %987 = vmatpush1.msra.mxu0 %v986
        %988 = vmatprep.subr.mxu0 0.0
        %v989 = vand.u32 %v535, 4294901760
        %990 = vmatpush1.msra.mxu0 %v989
        %991 = vmatprep.subr.mxu0 0.0
        %v992 = vand.u32 %v534, 4294901760
        %993 = vmatpush1.msra.mxu0 %v992
        %994 = vmatprep.subr.mxu0 0.0
        %995 = vmatpush2.msra.mxu0 0.0
        %996 = vmatprep.subr.mxu0 0.0
        %997 = vmatpush2.msra.mxu0 0.0
        %998 = vmatprep.subr.mxu0 0.0
        %999 = vmatpush2.msra.mxu0 0.0
        %1000 = vmatprep.subr.mxu0 0.0
        %1001 = vmatpush2.msra.mxu0 0.0
        %1002 = vmatprep.subr.mxu0 0.0
        %1003 = vmatpush2.msra.mxu0 0.0
        %1004 = vmatprep.subr.mxu0 0.0
        %1005 = vmatpush2.msra.mxu0 0.0
        %1006 = vmatprep.subr.mxu0 0.0
        %1007 = vmatpush2.msra.mxu0 0.0
        %1008 = vmatprep.subr.mxu0 0.0
        %1009 = vmatpush2.msra.mxu0 0.0
        %1010 = vmatprep.subr.mxu0 0.0
        %1011 = vmatpush2.msra.mxu0 0.0
        %1012 = vmatprep.subr.mxu0 0.0
        %1013 = vmatpush2.msra.mxu0 0.0
        %1014 = vmatprep.subr.mxu0 0.0
        %1015 = vmatpush2.msra.mxu0 0.0
        %1016 = vmatprep.subr.mxu0 0.0
        %1017 = vmatpush2.msra.mxu0 0.0
        %1018 = vmatprep.subr.mxu0 0.0
        %1019 = vmatpush2.msra.mxu0 0.0
        %1020 = vmatprep.subr.mxu0 0.0
        %1021 = vmatpush2.msra.mxu0 0.0
        %1022 = vmatprep.subr.mxu0 0.0
        %1023 = vmatpush2.msra.mxu0 0.0
        %1024 = vmatprep.subr.mxu0 0.0
        %1025 = vmatpush2.msra.mxu0 0.0
        %1026 = vmatprep.mubr.f32.mxu0 0.0
        %v1027 = vand.u32 %v546, 4294901760
        %1028 = vmatmul.mubr.f32.gmra.mxu0 %v1027
        %v1029 = vpop.f32.mrf.mxu0
        %v1030 = vadd.f32 %v955, %v1029
        %v1031 = vpop.f32.mrf.mxu0
        %1032 = vdwg.mxu0
        %1034 = vrot.lane.b32.xlu0 %v1030, 96
        %v1035 = vpop.permute.xlu0 %1034
        %vm1036 = vcmask 64512
        %v1037 = vsel %vm1036, %v1030, 0
        %v1039 = vsel %vm1036, %v1035, 0
        %1041 = vmatprep.subr.mxu0 0.0
        %1042 = vmatpush1.xpose.msra.mxu0 0.0
        %1043 = vmatprep.subr.mxu0 0.0
        %1044 = vmatpush1.xpose.msra.mxu0 0.0
        %1045 = vmatprep.subr.mxu0 0.0
        %1046 = vmatpush1.xpose.msra.mxu0 0.0
        %1047 = vmatprep.subr.mxu0 0.0
        %1048 = vmatpush1.xpose.msra.mxu0 0.0
        %1049 = vmatprep.subr.mxu0 0.0
        %1050 = vmatpush1.xpose.msra.mxu0 0.0
        %1051 = vmatprep.subr.mxu0 0.0
        %1052 = vmatpush1.xpose.msra.mxu0 0.0
        %1053 = vmatprep.subr.mxu0 0.0
        %1054 = vmatpush1.xpose.msra.mxu0 0.0
        %1055 = vmatprep.subr.mxu0 0.0
        %1056 = vmatpush1.xpose.msra.mxu0 0.0
        %1057 = vmatprep.subr.mxu0 0.0
        %1058 = vmatpush1.xpose.msra.mxu0 0.0
        %1059 = vmatprep.subr.mxu0 0.0
        %1060 = vmatpush1.xpose.msra.mxu0 0.0
        %1061 = vmatprep.subr.mxu0 0.0
        %1062 = vmatpush1.xpose.msra.mxu0 0.0
        %1063 = vmatprep.subr.mxu0 0.0
        %1064 = vmatpush1.xpose.msra.mxu0 0.0
        %1065 = vmatprep.subr.mxu0 0.0
        %1066 = vmatpush1.xpose.msra.mxu0 0.0
        %1067 = vmatprep.subr.mxu0 0.0
        %1068 = vmatpush1.xpose.msra.mxu0 0.0
        %1069 = vmatprep.subr.mxu0 0.0
        %1070 = vmatpush1.xpose.msra.mxu0 0.0
        %1071 = vmatprep.subr.mxu0 0.0
        %v1072 = vand.u32 %v1039, 4294901760
        %1073 = vmatpush1.xpose.msra.mxu0 %v1072
        %1074 = vmatprep.subr.mxu0 0.0
        %1075 = vmatpush2.xpose.msra.mxu0 0.0
        %1076 = vmatprep.subr.mxu0 0.0
        %1077 = vmatpush2.xpose.msra.mxu0 0.0
        %1078 = vmatprep.subr.mxu0 0.0
        %1079 = vmatpush2.xpose.msra.mxu0 0.0
        %1080 = vmatprep.subr.mxu0 0.0
        %1081 = vmatpush2.xpose.msra.mxu0 0.0
        %1082 = vmatprep.subr.mxu0 0.0
        %1083 = vmatpush2.xpose.msra.mxu0 0.0
        %1084 = vmatprep.subr.mxu0 0.0
        %1085 = vmatpush2.xpose.msra.mxu0 0.0
        %1086 = vmatprep.subr.mxu0 0.0
        %1087 = vmatpush2.xpose.msra.mxu0 0.0
        %1088 = vmatprep.subr.mxu0 0.0
        %1089 = vmatpush2.xpose.msra.mxu0 0.0
        %1090 = vmatprep.subr.mxu0 0.0
        %1091 = vmatpush2.xpose.msra.mxu0 0.0
        %1092 = vmatprep.subr.mxu0 0.0
        %1093 = vmatpush2.xpose.msra.mxu0 0.0
        %1094 = vmatprep.subr.mxu0 0.0
        %1095 = vmatpush2.xpose.msra.mxu0 0.0
        %1096 = vmatprep.subr.mxu0 0.0
        %1097 = vmatpush2.xpose.msra.mxu0 0.0
        %1098 = vmatprep.subr.mxu0 0.0
        %1099 = vmatpush2.xpose.msra.mxu0 0.0
        %1100 = vmatprep.subr.mxu0 0.0
        %1101 = vmatpush2.xpose.msra.mxu0 0.0
        %1102 = vmatprep.subr.mxu0 0.0
        %1103 = vmatpush2.xpose.msra.mxu0 0.0
        %1104 = vmatprep.subr.mxu0 0.0
        %1105 = vmatpush2.xpose.msra.mxu0 0.0
        %1106 = vmatprep.mubr.f32.mxu0 0.0
        %v1107 = vand.u32 %v1037, 4294901760
        %v1108 = vsub.f32 %v1037, %v1107
        %v1109 = vand.u32 %v1108, 4294901760
        %v1110 = vsub.f32 %v1108, %v1109
        %v1111 = vand.u32 %v1110, 4294901760
        %1112 = vmatmul.mubr.f32.gmra.mxu0 %v1111
        %v1113 = vpop.f32.mrf.mxu0
        %v1114 = vadd.f32 0.0, %v1113
        %v1115 = vpop.f32.mrf.mxu0
        %1116 = vdwg.mxu0
        %1117 = vmatprep.subr.mxu0 0.0
        %1118 = vmatpush1.xpose.msra.mxu0 0.0
        %1119 = vmatprep.subr.mxu0 0.0
        %1120 = vmatpush1.xpose.msra.mxu0 0.0
        %1121 = vmatprep.subr.mxu0 0.0
        %1122 = vmatpush1.xpose.msra.mxu0 0.0
        %1123 = vmatprep.subr.mxu0 0.0
        %1124 = vmatpush1.xpose.msra.mxu0 0.0
        %1125 = vmatprep.subr.mxu0 0.0
        %1126 = vmatpush1.xpose.msra.mxu0 0.0
        %1127 = vmatprep.subr.mxu0 0.0
        %1128 = vmatpush1.xpose.msra.mxu0 0.0
        %1129 = vmatprep.subr.mxu0 0.0
        %1130 = vmatpush1.xpose.msra.mxu0 0.0
        %1131 = vmatprep.subr.mxu0 0.0
        %1132 = vmatpush1.xpose.msra.mxu0 0.0
        %1133 = vmatprep.subr.mxu0 0.0
        %1134 = vmatpush1.xpose.msra.mxu0 0.0
        %1135 = vmatprep.subr.mxu0 0.0
        %1136 = vmatpush1.xpose.msra.mxu0 0.0
        %1137 = vmatprep.subr.mxu0 0.0
        %1138 = vmatpush1.xpose.msra.mxu0 0.0
        %1139 = vmatprep.subr.mxu0 0.0
        %1140 = vmatpush1.xpose.msra.mxu0 0.0
        %1141 = vmatprep.subr.mxu0 0.0
        %1142 = vmatpush1.xpose.msra.mxu0 0.0
        %1143 = vmatprep.subr.mxu0 0.0
        %1144 = vmatpush1.xpose.msra.mxu0 0.0
        %1145 = vmatprep.subr.mxu0 0.0
        %1146 = vmatpush1.xpose.msra.mxu0 0.0
        %1147 = vmatprep.subr.mxu0 0.0
        %v1148 = vand.u32 %v1039, 4294901760
        %v1149 = vsub.f32 %v1039, %v1148
        %v1150 = vand.u32 %v1149, 4294901760
        %v1151 = vsub.f32 %v1149, %v1150
        %v1152 = vand.u32 %v1151, 4294901760
        %1153 = vmatpush1.xpose.msra.mxu0 %v1152
        %1154 = vmatprep.subr.mxu0 0.0
        %1155 = vmatpush2.xpose.msra.mxu0 0.0
        %1156 = vmatprep.subr.mxu0 0.0
        %1157 = vmatpush2.xpose.msra.mxu0 0.0
        %1158 = vmatprep.subr.mxu0 0.0
        %1159 = vmatpush2.xpose.msra.mxu0 0.0
        %1160 = vmatprep.subr.mxu0 0.0
        %1161 = vmatpush2.xpose.msra.mxu0 0.0
        %1162 = vmatprep.subr.mxu0 0.0
        %1163 = vmatpush2.xpose.msra.mxu0 0.0
        %1164 = vmatprep.subr.mxu0 0.0
        %1165 = vmatpush2.xpose.msra.mxu0 0.0
        %1166 = vmatprep.subr.mxu0 0.0
        %1167 = vmatpush2.xpose.msra.mxu0 0.0
        %1168 = vmatprep.subr.mxu0 0.0
        %1169 = vmatpush2.xpose.msra.mxu0 0.0
        %1170 = vmatprep.subr.mxu0 0.0
        %1171 = vmatpush2.xpose.msra.mxu0 0.0
        %1172 = vmatprep.subr.mxu0 0.0
        %1173 = vmatpush2.xpose.msra.mxu0 0.0
        %1174 = vmatprep.subr.mxu0 0.0
        %1175 = vmatpush2.xpose.msra.mxu0 0.0
        %1176 = vmatprep.subr.mxu0 0.0
        %1177 = vmatpush2.xpose.msra.mxu0 0.0
        %1178 = vmatprep.subr.mxu0 0.0
        %1179 = vmatpush2.xpose.msra.mxu0 0.0
        %1180 = vmatprep.subr.mxu0 0.0
        %1181 = vmatpush2.xpose.msra.mxu0 0.0
        %1182 = vmatprep.subr.mxu0 0.0
        %1183 = vmatpush2.xpose.msra.mxu0 0.0
        %1184 = vmatprep.subr.mxu0 0.0
        %1185 = vmatpush2.xpose.msra.mxu0 0.0
        %1186 = vmatprep.mubr.f32.mxu0 0.0
        %v1187 = vand.u32 %v1037, 4294901760
        %1188 = vmatmul.mubr.f32.gmra.mxu0 %v1187
        %v1189 = vpop.f32.mrf.mxu0
        %v1190 = vadd.f32 %v1114, %v1189
        %v1191 = vpop.f32.mrf.mxu0
        %1192 = vdwg.mxu0
        %1193 = vmatprep.subr.mxu0 0.0
        %1194 = vmatpush1.xpose.msra.mxu0 0.0
        %1195 = vmatprep.subr.mxu0 0.0
        %1196 = vmatpush1.xpose.msra.mxu0 0.0
        %1197 = vmatprep.subr.mxu0 0.0
        %1198 = vmatpush1.xpose.msra.mxu0 0.0
        %1199 = vmatprep.subr.mxu0 0.0
        %1200 = vmatpush1.xpose.msra.mxu0 0.0
        %1201 = vmatprep.subr.mxu0 0.0
        %1202 = vmatpush1.xpose.msra.mxu0 0.0
        %1203 = vmatprep.subr.mxu0 0.0
        %1204 = vmatpush1.xpose.msra.mxu0 0.0
        %1205 = vmatprep.subr.mxu0 0.0
        %1206 = vmatpush1.xpose.msra.mxu0 0.0
        %1207 = vmatprep.subr.mxu0 0.0
        %1208 = vmatpush1.xpose.msra.mxu0 0.0
        %1209 = vmatprep.subr.mxu0 0.0
        %1210 = vmatpush1.xpose.msra.mxu0 0.0
        %1211 = vmatprep.subr.mxu0 0.0
        %1212 = vmatpush1.xpose.msra.mxu0 0.0
        %1213 = vmatprep.subr.mxu0 0.0
        %1214 = vmatpush1.xpose.msra.mxu0 0.0
        %1215 = vmatprep.subr.mxu0 0.0
        %1216 = vmatpush1.xpose.msra.mxu0 0.0
        %1217 = vmatprep.subr.mxu0 0.0
        %1218 = vmatpush1.xpose.msra.mxu0 0.0
        %1219 = vmatprep.subr.mxu0 0.0
        %1220 = vmatpush1.xpose.msra.mxu0 0.0
        %1221 = vmatprep.subr.mxu0 0.0
        %1222 = vmatpush1.xpose.msra.mxu0 0.0
        %1223 = vmatprep.subr.mxu0 0.0
        %v1224 = vand.u32 %v1039, 4294901760
        %v1225 = vsub.f32 %v1039, %v1224
        %1226 = vmatpush1.xpose.msra.mxu0 %v1225
        %1227 = vmatprep.subr.mxu0 0.0
        %1228 = vmatpush2.xpose.msra.mxu0 0.0
        %1229 = vmatprep.subr.mxu0 0.0
        %1230 = vmatpush2.xpose.msra.mxu0 0.0
        %1231 = vmatprep.subr.mxu0 0.0
        %1232 = vmatpush2.xpose.msra.mxu0 0.0
        %1233 = vmatprep.subr.mxu0 0.0
        %1234 = vmatpush2.xpose.msra.mxu0 0.0
        %1235 = vmatprep.subr.mxu0 0.0
        %1236 = vmatpush2.xpose.msra.mxu0 0.0
        %1237 = vmatprep.subr.mxu0 0.0
        %1238 = vmatpush2.xpose.msra.mxu0 0.0
        %1239 = vmatprep.subr.mxu0 0.0
        %1240 = vmatpush2.xpose.msra.mxu0 0.0
        %1241 = vmatprep.subr.mxu0 0.0
        %1242 = vmatpush2.xpose.msra.mxu0 0.0
        %1243 = vmatprep.subr.mxu0 0.0
        %1244 = vmatpush2.xpose.msra.mxu0 0.0
        %1245 = vmatprep.subr.mxu0 0.0
        %1246 = vmatpush2.xpose.msra.mxu0 0.0
        %1247 = vmatprep.subr.mxu0 0.0
        %1248 = vmatpush2.xpose.msra.mxu0 0.0
        %1249 = vmatprep.subr.mxu0 0.0
        %1250 = vmatpush2.xpose.msra.mxu0 0.0
        %1251 = vmatprep.subr.mxu0 0.0
        %1252 = vmatpush2.xpose.msra.mxu0 0.0
        %1253 = vmatprep.subr.mxu0 0.0
        %1254 = vmatpush2.xpose.msra.mxu0 0.0
        %1255 = vmatprep.subr.mxu0 0.0
        %1256 = vmatpush2.xpose.msra.mxu0 0.0
        %1257 = vmatprep.subr.mxu0 0.0
        %1258 = vmatpush2.xpose.msra.mxu0 0.0
        %1259 = vmatprep.mubr.f32.mxu0 0.0
        %v1260 = vand.u32 %v1037, 4294901760
        %v1261 = vsub.f32 %v1037, %v1260
        %1262 = vmatmul.mubr.f32.gmra.mxu0 %v1261
        %v1263 = vpop.f32.mrf.mxu0
        %v1264 = vadd.f32 %v1190, %v1263
        %v1265 = vpop.f32.mrf.mxu0
        %1266 = vdwg.mxu0
        %1267 = vmatprep.subr.mxu0 0.0
        %1268 = vmatpush1.xpose.msra.mxu0 0.0
        %1269 = vmatprep.subr.mxu0 0.0
        %1270 = vmatpush1.xpose.msra.mxu0 0.0
        %1271 = vmatprep.subr.mxu0 0.0
        %1272 = vmatpush1.xpose.msra.mxu0 0.0
        %1273 = vmatprep.subr.mxu0 0.0
        %1274 = vmatpush1.xpose.msra.mxu0 0.0
        %1275 = vmatprep.subr.mxu0 0.0
        %1276 = vmatpush1.xpose.msra.mxu0 0.0
        %1277 = vmatprep.subr.mxu0 0.0
        %1278 = vmatpush1.xpose.msra.mxu0 0.0
        %1279 = vmatprep.subr.mxu0 0.0
        %1280 = vmatpush1.xpose.msra.mxu0 0.0
        %1281 = vmatprep.subr.mxu0 0.0
        %1282 = vmatpush1.xpose.msra.mxu0 0.0
        %1283 = vmatprep.subr.mxu0 0.0
        %1284 = vmatpush1.xpose.msra.mxu0 0.0
        %1285 = vmatprep.subr.mxu0 0.0
        %1286 = vmatpush1.xpose.msra.mxu0 0.0
        %1287 = vmatprep.subr.mxu0 0.0
        %1288 = vmatpush1.xpose.msra.mxu0 0.0
        %1289 = vmatprep.subr.mxu0 0.0
        %1290 = vmatpush1.xpose.msra.mxu0 0.0
        %1291 = vmatprep.subr.mxu0 0.0
        %1292 = vmatpush1.xpose.msra.mxu0 0.0
        %1293 = vmatprep.subr.mxu0 0.0
        %1294 = vmatpush1.xpose.msra.mxu0 0.0
        %1295 = vmatprep.subr.mxu0 0.0
        %1296 = vmatpush1.xpose.msra.mxu0 0.0
        %1297 = vmatprep.subr.mxu0 0.0
        %v1298 = vand.u32 %v1039, 4294901760
        %1299 = vmatpush1.xpose.msra.mxu0 %v1298
        %1300 = vmatprep.subr.mxu0 0.0
        %1301 = vmatpush2.xpose.msra.mxu0 0.0
        %1302 = vmatprep.subr.mxu0 0.0
        %1303 = vmatpush2.xpose.msra.mxu0 0.0
        %1304 = vmatprep.subr.mxu0 0.0
        %1305 = vmatpush2.xpose.msra.mxu0 0.0
        %1306 = vmatprep.subr.mxu0 0.0
        %1307 = vmatpush2.xpose.msra.mxu0 0.0
        %1308 = vmatprep.subr.mxu0 0.0
        %1309 = vmatpush2.xpose.msra.mxu0 0.0
        %1310 = vmatprep.subr.mxu0 0.0
        %1311 = vmatpush2.xpose.msra.mxu0 0.0
        %1312 = vmatprep.subr.mxu0 0.0
        %1313 = vmatpush2.xpose.msra.mxu0 0.0
        %1314 = vmatprep.subr.mxu0 0.0
        %1315 = vmatpush2.xpose.msra.mxu0 0.0
        %1316 = vmatprep.subr.mxu0 0.0
        %1317 = vmatpush2.xpose.msra.mxu0 0.0
        %1318 = vmatprep.subr.mxu0 0.0
        %1319 = vmatpush2.xpose.msra.mxu0 0.0
        %1320 = vmatprep.subr.mxu0 0.0
        %1321 = vmatpush2.xpose.msra.mxu0 0.0
        %1322 = vmatprep.subr.mxu0 0.0
        %1323 = vmatpush2.xpose.msra.mxu0 0.0
        %1324 = vmatprep.subr.mxu0 0.0
        %1325 = vmatpush2.xpose.msra.mxu0 0.0
        %1326 = vmatprep.subr.mxu0 0.0
        %1327 = vmatpush2.xpose.msra.mxu0 0.0
        %1328 = vmatprep.subr.mxu0 0.0
        %1329 = vmatpush2.xpose.msra.mxu0 0.0
        %1330 = vmatprep.subr.mxu0 0.0
        %1331 = vmatpush2.xpose.msra.mxu0 0.0
        %1332 = vmatprep.mubr.f32.mxu0 0.0
        %v1333 = vand.u32 %v1037, 4294901760
        %v1334 = vsub.f32 %v1037, %v1333
        %v1335 = vand.u32 %v1334, 4294901760
        %1336 = vmatmul.mubr.f32.gmra.mxu0 %v1335
        %v1337 = vpop.f32.mrf.mxu0
        %v1338 = vadd.f32 %v1264, %v1337
        %v1339 = vpop.f32.mrf.mxu0
        %1340 = vdwg.mxu0
        %1341 = vmatprep.subr.mxu0 0.0
        %1342 = vmatpush1.xpose.msra.mxu0 0.0
        %1343 = vmatprep.subr.mxu0 0.0
        %1344 = vmatpush1.xpose.msra.mxu0 0.0
        %1345 = vmatprep.subr.mxu0 0.0
        %1346 = vmatpush1.xpose.msra.mxu0 0.0
        %1347 = vmatprep.subr.mxu0 0.0
        %1348 = vmatpush1.xpose.msra.mxu0 0.0
        %1349 = vmatprep.subr.mxu0 0.0
        %1350 = vmatpush1.xpose.msra.mxu0 0.0
        %1351 = vmatprep.subr.mxu0 0.0
        %1352 = vmatpush1.xpose.msra.mxu0 0.0
        %1353 = vmatprep.subr.mxu0 0.0
        %1354 = vmatpush1.xpose.msra.mxu0 0.0
        %1355 = vmatprep.subr.mxu0 0.0
        %1356 = vmatpush1.xpose.msra.mxu0 0.0
        %1357 = vmatprep.subr.mxu0 0.0
        %1358 = vmatpush1.xpose.msra.mxu0 0.0
        %1359 = vmatprep.subr.mxu0 0.0
        %1360 = vmatpush1.xpose.msra.mxu0 0.0
        %1361 = vmatprep.subr.mxu0 0.0
        %1362 = vmatpush1.xpose.msra.mxu0 0.0
        %1363 = vmatprep.subr.mxu0 0.0
        %1364 = vmatpush1.xpose.msra.mxu0 0.0
        %1365 = vmatprep.subr.mxu0 0.0
        %1366 = vmatpush1.xpose.msra.mxu0 0.0
        %1367 = vmatprep.subr.mxu0 0.0
        %1368 = vmatpush1.xpose.msra.mxu0 0.0
        %1369 = vmatprep.subr.mxu0 0.0
        %1370 = vmatpush1.xpose.msra.mxu0 0.0
        %1371 = vmatprep.subr.mxu0 0.0
        %v1372 = vand.u32 %v1039, 4294901760
        %v1373 = vsub.f32 %v1039, %v1372
        %v1374 = vand.u32 %v1373, 4294901760
        %1375 = vmatpush1.xpose.msra.mxu0 %v1374
        %1376 = vmatprep.subr.mxu0 0.0
        %1377 = vmatpush2.xpose.msra.mxu0 0.0
        %1378 = vmatprep.subr.mxu0 0.0
        %1379 = vmatpush2.xpose.msra.mxu0 0.0
        %1380 = vmatprep.subr.mxu0 0.0
        %1381 = vmatpush2.xpose.msra.mxu0 0.0
        %1382 = vmatprep.subr.mxu0 0.0
        %1383 = vmatpush2.xpose.msra.mxu0 0.0
        %1384 = vmatprep.subr.mxu0 0.0
        %1385 = vmatpush2.xpose.msra.mxu0 0.0
        %1386 = vmatprep.subr.mxu0 0.0
        %1387 = vmatpush2.xpose.msra.mxu0 0.0
        %1388 = vmatprep.subr.mxu0 0.0
        %1389 = vmatpush2.xpose.msra.mxu0 0.0
        %1390 = vmatprep.subr.mxu0 0.0
        %1391 = vmatpush2.xpose.msra.mxu0 0.0
        %1392 = vmatprep.subr.mxu0 0.0
        %1393 = vmatpush2.xpose.msra.mxu0 0.0
        %1394 = vmatprep.subr.mxu0 0.0
        %1395 = vmatpush2.xpose.msra.mxu0 0.0
        %1396 = vmatprep.subr.mxu0 0.0
        %1397 = vmatpush2.xpose.msra.mxu0 0.0
        %1398 = vmatprep.subr.mxu0 0.0
        %1399 = vmatpush2.xpose.msra.mxu0 0.0
        %1400 = vmatprep.subr.mxu0 0.0
        %1401 = vmatpush2.xpose.msra.mxu0 0.0
        %1402 = vmatprep.subr.mxu0 0.0
        %1403 = vmatpush2.xpose.msra.mxu0 0.0
        %1404 = vmatprep.subr.mxu0 0.0
        %1405 = vmatpush2.xpose.msra.mxu0 0.0
        %1406 = vmatprep.subr.mxu0 0.0
        %1407 = vmatpush2.xpose.msra.mxu0 0.0
        %1408 = vmatprep.mubr.f32.mxu0 0.0
        %v1409 = vand.u32 %v1037, 4294901760
        %1410 = vmatmul.mubr.f32.gmra.mxu0 %v1409
        %v1411 = vpop.f32.mrf.mxu0
        %v1412 = vadd.f32 %v1338, %v1411
        %v1413 = vpop.f32.mrf.mxu0
        %1414 = vdwg.mxu0
        %1415 = vmatprep.subr.mxu0 0.0
        %1416 = vmatpush1.xpose.msra.mxu0 0.0
        %1417 = vmatprep.subr.mxu0 0.0
        %1418 = vmatpush1.xpose.msra.mxu0 0.0
        %1419 = vmatprep.subr.mxu0 0.0
        %1420 = vmatpush1.xpose.msra.mxu0 0.0
        %1421 = vmatprep.subr.mxu0 0.0
        %1422 = vmatpush1.xpose.msra.mxu0 0.0
        %1423 = vmatprep.subr.mxu0 0.0
        %1424 = vmatpush1.xpose.msra.mxu0 0.0
        %1425 = vmatprep.subr.mxu0 0.0
        %1426 = vmatpush1.xpose.msra.mxu0 0.0
        %1427 = vmatprep.subr.mxu0 0.0
        %1428 = vmatpush1.xpose.msra.mxu0 0.0
        %1429 = vmatprep.subr.mxu0 0.0
        %1430 = vmatpush1.xpose.msra.mxu0 0.0
        %1431 = vmatprep.subr.mxu0 0.0
        %1432 = vmatpush1.xpose.msra.mxu0 0.0
        %1433 = vmatprep.subr.mxu0 0.0
        %1434 = vmatpush1.xpose.msra.mxu0 0.0
        %1435 = vmatprep.subr.mxu0 0.0
        %1436 = vmatpush1.xpose.msra.mxu0 0.0
        %1437 = vmatprep.subr.mxu0 0.0
        %1438 = vmatpush1.xpose.msra.mxu0 0.0
        %1439 = vmatprep.subr.mxu0 0.0
        %1440 = vmatpush1.xpose.msra.mxu0 0.0
        %1441 = vmatprep.subr.mxu0 0.0
        %1442 = vmatpush1.xpose.msra.mxu0 0.0
        %1443 = vmatprep.subr.mxu0 0.0
        %1444 = vmatpush1.xpose.msra.mxu0 0.0
        %1445 = vmatprep.subr.mxu0 0.0
        %v1446 = vand.u32 %v1039, 4294901760
        %1447 = vmatpush1.xpose.msra.mxu0 %v1446
        %1448 = vmatprep.subr.mxu0 0.0
        %1449 = vmatpush2.xpose.msra.mxu0 0.0
        %1450 = vmatprep.subr.mxu0 0.0
        %1451 = vmatpush2.xpose.msra.mxu0 0.0
        %1452 = vmatprep.subr.mxu0 0.0
        %1453 = vmatpush2.xpose.msra.mxu0 0.0
        %1454 = vmatprep.subr.mxu0 0.0
        %1455 = vmatpush2.xpose.msra.mxu0 0.0
        %1456 = vmatprep.subr.mxu0 0.0
        %1457 = vmatpush2.xpose.msra.mxu0 0.0
        %1458 = vmatprep.subr.mxu0 0.0
        %1459 = vmatpush2.xpose.msra.mxu0 0.0
        %1460 = vmatprep.subr.mxu0 0.0
        %1461 = vmatpush2.xpose.msra.mxu0 0.0
        %1462 = vmatprep.subr.mxu0 0.0
        %1463 = vmatpush2.xpose.msra.mxu0 0.0
        %1464 = vmatprep.subr.mxu0 0.0
        %1465 = vmatpush2.xpose.msra.mxu0 0.0
        %1466 = vmatprep.subr.mxu0 0.0
        %1467 = vmatpush2.xpose.msra.mxu0 0.0
        %1468 = vmatprep.subr.mxu0 0.0
        %1469 = vmatpush2.xpose.msra.mxu0 0.0
        %1470 = vmatprep.subr.mxu0 0.0
        %1471 = vmatpush2.xpose.msra.mxu0 0.0
        %1472 = vmatprep.subr.mxu0 0.0
        %1473 = vmatpush2.xpose.msra.mxu0 0.0
        %1474 = vmatprep.subr.mxu0 0.0
        %1475 = vmatpush2.xpose.msra.mxu0 0.0
        %1476 = vmatprep.subr.mxu0 0.0
        %1477 = vmatpush2.xpose.msra.mxu0 0.0
        %1478 = vmatprep.subr.mxu0 0.0
        %1479 = vmatpush2.xpose.msra.mxu0 0.0
        %1480 = vmatprep.mubr.f32.mxu0 0.0
        %v1481 = vand.u32 %v1037, 4294901760
        %1482 = vmatmul.mubr.f32.gmra.mxu0 %v1481
        %v1483 = vpop.f32.mrf.mxu0
        %v1484 = vadd.f32 %v1412, %v1483
        %v1485 = vpop.f32.mrf.mxu0
        %1486 = vdwg.mxu0
        %v1487 = vmul.f32 %v1484, 0.35355338
        %vm1488 = vcmp.eq.f32.partialorder %v502, 0.0
        %v1489 = vsel %vm1488, -1e+30, %v1487
        %v1490 = vsel %vm1036, %v1489, -inf
        %1491 = vmax.xlane.f32.xlu0 %v1490
        %v1492 = vpop.xlane.xlu0 %1491
        %v1493 = vsub.f32 %v1489, %v1492
        %v1494 = vmul.f32 %v1493, 1.442695
        %v1495 = vpow.pop %v1494
        %v1496 = vsel %vm1036, %v1495, 0.0
        %1497 = vadd.xlane.f32.xlu0 %v1496
        %v1498 = vpop.xlane.xlu0 %1497
        %v1499 = vrcp.pop %v1498
        %v1500 = vmul.f32 %v1495, %v1499
        %1501 = vst.msk [vmem:[%s496] sm:$0xff] %vm1036, %v1500
        %1502 = vrot.lane.b32.xlu0 %v1030, 64
        %v1503 = vpop.permute.xlu0 %1502
        %v1506 = vsel %vm1036, %v1500, 0
        %1508 = vmatprep.subr.mxu0 0.0
        %1509 = vmatpush1.msra.mxu0 0.0
        %1510 = vmatprep.subr.mxu0 0.0
        %1511 = vmatpush1.msra.mxu0 0.0
        %1512 = vmatprep.subr.mxu0 0.0
        %1513 = vmatpush1.msra.mxu0 0.0
        %1514 = vmatprep.subr.mxu0 0.0
        %1515 = vmatpush1.msra.mxu0 0.0
        %1516 = vmatprep.subr.mxu0 0.0
        %1517 = vmatpush1.msra.mxu0 0.0
        %1518 = vmatprep.subr.mxu0 0.0
        %1519 = vmatpush1.msra.mxu0 0.0
        %1520 = vmatprep.subr.mxu0 0.0
        %1521 = vmatpush1.msra.mxu0 0.0
        %1522 = vmatprep.subr.mxu0 0.0
        %1523 = vmatpush1.msra.mxu0 0.0
        %1524 = vmatprep.subr.mxu0 0.0
        %1525 = vmatpush1.msra.mxu0 0.0
        %1526 = vmatprep.subr.mxu0 0.0
        %1527 = vmatpush1.msra.mxu0 0.0
        %1528 = vmatprep.subr.mxu0 0.0
        %1529 = vmatpush1.msra.mxu0 0.0
        %1530 = vmatprep.subr.mxu0 0.0
        %1531 = vmatpush1.msra.mxu0 0.0
        %1532 = vmatprep.subr.mxu0 0.0
        %1533 = vmatpush1.msra.mxu0 0.0
        %1534 = vmatprep.subr.mxu0 0.0
        %1535 = vmatpush1.msra.mxu0 0.0
        %1536 = vmatprep.subr.mxu0 0.0
        %1537 = vmatpush1.msra.mxu0 0.0
        %1538 = vmatprep.subr.mxu0 0.0
        %v1539 = vand.u32 %v1503, 4294901760
        %1540 = vmatpush1.msra.mxu0 %v1539
        %1541 = vmatprep.subr.mxu0 0.0
        %1542 = vmatpush2.msra.mxu0 0.0
        %1543 = vmatprep.subr.mxu0 0.0
        %1544 = vmatpush2.msra.mxu0 0.0
        %1545 = vmatprep.subr.mxu0 0.0
        %1546 = vmatpush2.msra.mxu0 0.0
        %1547 = vmatprep.subr.mxu0 0.0
        %1548 = vmatpush2.msra.mxu0 0.0
        %1549 = vmatprep.subr.mxu0 0.0
        %1550 = vmatpush2.msra.mxu0 0.0
        %1551 = vmatprep.subr.mxu0 0.0
        %1552 = vmatpush2.msra.mxu0 0.0
        %1553 = vmatprep.subr.mxu0 0.0
        %1554 = vmatpush2.msra.mxu0 0.0
        %1555 = vmatprep.subr.mxu0 0.0
        %1556 = vmatpush2.msra.mxu0 0.0
        %1557 = vmatprep.subr.mxu0 0.0
        %1558 = vmatpush2.msra.mxu0 0.0
        %1559 = vmatprep.subr.mxu0 0.0
        %1560 = vmatpush2.msra.mxu0 0.0
        %1561 = vmatprep.subr.mxu0 0.0
        %1562 = vmatpush2.msra.mxu0 0.0
        %1563 = vmatprep.subr.mxu0 0.0
        %1564 = vmatpush2.msra.mxu0 0.0
        %1565 = vmatprep.subr.mxu0 0.0
        %1566 = vmatpush2.msra.mxu0 0.0
        %1567 = vmatprep.subr.mxu0 0.0
        %1568 = vmatpush2.msra.mxu0 0.0
        %1569 = vmatprep.subr.mxu0 0.0
        %1570 = vmatpush2.msra.mxu0 0.0
        %1571 = vmatprep.subr.mxu0 0.0
        %1572 = vmatpush2.msra.mxu0 0.0
        %1573 = vmatprep.mubr.f32.mxu0 0.0
        %v1574 = vand.u32 %v1506, 4294901760
        %v1575 = vsub.f32 %v1506, %v1574
        %v1576 = vand.u32 %v1575, 4294901760
        %v1577 = vsub.f32 %v1575, %v1576
        %v1578 = vand.u32 %v1577, 4294901760
        %1579 = vmatmul.mubr.f32.gmra.mxu0 %v1578
        %v1580 = vpop.f32.mrf.mxu0
        %v1581 = vadd.f32 0.0, %v1580
        %v1582 = vpop.f32.mrf.mxu0
        %1583 = vdwg.mxu0
        %1584 = vmatprep.subr.mxu0 0.0
        %1585 = vmatpush1.msra.mxu0 0.0
        %1586 = vmatprep.subr.mxu0 0.0
        %1587 = vmatpush1.msra.mxu0 0.0
        %1588 = vmatprep.subr.mxu0 0.0
        %1589 = vmatpush1.msra.mxu0 0.0
        %1590 = vmatprep.subr.mxu0 0.0
        %1591 = vmatpush1.msra.mxu0 0.0
        %1592 = vmatprep.subr.mxu0 0.0
        %1593 = vmatpush1.msra.mxu0 0.0
        %1594 = vmatprep.subr.mxu0 0.0
        %1595 = vmatpush1.msra.mxu0 0.0
        %1596 = vmatprep.subr.mxu0 0.0
        %1597 = vmatpush1.msra.mxu0 0.0
        %1598 = vmatprep.subr.mxu0 0.0
        %1599 = vmatpush1.msra.mxu0 0.0
        %1600 = vmatprep.subr.mxu0 0.0
        %1601 = vmatpush1.msra.mxu0 0.0
        %1602 = vmatprep.subr.mxu0 0.0
        %1603 = vmatpush1.msra.mxu0 0.0
        %1604 = vmatprep.subr.mxu0 0.0
        %1605 = vmatpush1.msra.mxu0 0.0
        %1606 = vmatprep.subr.mxu0 0.0
        %1607 = vmatpush1.msra.mxu0 0.0
        %1608 = vmatprep.subr.mxu0 0.0
        %1609 = vmatpush1.msra.mxu0 0.0
        %1610 = vmatprep.subr.mxu0 0.0
        %1611 = vmatpush1.msra.mxu0 0.0
        %1612 = vmatprep.subr.mxu0 0.0
        %1613 = vmatpush1.msra.mxu0 0.0
        %1614 = vmatprep.subr.mxu0 0.0
        %v1615 = vand.u32 %v1503, 4294901760
        %v1616 = vsub.f32 %v1503, %v1615
        %v1617 = vand.u32 %v1616, 4294901760
        %v1618 = vsub.f32 %v1616, %v1617
        %v1619 = vand.u32 %v1618, 4294901760
        %1620 = vmatpush1.msra.mxu0 %v1619
        %1621 = vmatprep.subr.mxu0 0.0
        %1622 = vmatpush2.msra.mxu0 0.0
        %1623 = vmatprep.subr.mxu0 0.0
        %1624 = vmatpush2.msra.mxu0 0.0
        %1625 = vmatprep.subr.mxu0 0.0
        %1626 = vmatpush2.msra.mxu0 0.0
        %1627 = vmatprep.subr.mxu0 0.0
        %1628 = vmatpush2.msra.mxu0 0.0
        %1629 = vmatprep.subr.mxu0 0.0
        %1630 = vmatpush2.msra.mxu0 0.0
        %1631 = vmatprep.subr.mxu0 0.0
        %1632 = vmatpush2.msra.mxu0 0.0
        %1633 = vmatprep.subr.mxu0 0.0
        %1634 = vmatpush2.msra.mxu0 0.0
        %1635 = vmatprep.subr.mxu0 0.0
        %1636 = vmatpush2.msra.mxu0 0.0
        %1637 = vmatprep.subr.mxu0 0.0
        %1638 = vmatpush2.msra.mxu0 0.0
        %1639 = vmatprep.subr.mxu0 0.0
        %1640 = vmatpush2.msra.mxu0 0.0
        %1641 = vmatprep.subr.mxu0 0.0
        %1642 = vmatpush2.msra.mxu0 0.0
        %1643 = vmatprep.subr.mxu0 0.0
        %1644 = vmatpush2.msra.mxu0 0.0
        %1645 = vmatprep.subr.mxu0 0.0
        %1646 = vmatpush2.msra.mxu0 0.0
        %1647 = vmatprep.subr.mxu0 0.0
        %1648 = vmatpush2.msra.mxu0 0.0
        %1649 = vmatprep.subr.mxu0 0.0
        %1650 = vmatpush2.msra.mxu0 0.0
        %1651 = vmatprep.subr.mxu0 0.0
        %1652 = vmatpush2.msra.mxu0 0.0
        %1653 = vmatprep.mubr.f32.mxu0 0.0
        %v1654 = vand.u32 %v1506, 4294901760
        %1655 = vmatmul.mubr.f32.gmra.mxu0 %v1654
        %v1656 = vpop.f32.mrf.mxu0
        %v1657 = vadd.f32 %v1581, %v1656
        %v1658 = vpop.f32.mrf.mxu0
        %1659 = vdwg.mxu0
        %1660 = vmatprep.subr.mxu0 0.0
        %1661 = vmatpush1.msra.mxu0 0.0
        %1662 = vmatprep.subr.mxu0 0.0
        %1663 = vmatpush1.msra.mxu0 0.0
        %1664 = vmatprep.subr.mxu0 0.0
        %1665 = vmatpush1.msra.mxu0 0.0
        %1666 = vmatprep.subr.mxu0 0.0
        %1667 = vmatpush1.msra.mxu0 0.0
        %1668 = vmatprep.subr.mxu0 0.0
        %1669 = vmatpush1.msra.mxu0 0.0
        %1670 = vmatprep.subr.mxu0 0.0
        %1671 = vmatpush1.msra.mxu0 0.0
        %1672 = vmatprep.subr.mxu0 0.0
        %1673 = vmatpush1.msra.mxu0 0.0
        %1674 = vmatprep.subr.mxu0 0.0
        %1675 = vmatpush1.msra.mxu0 0.0
        %1676 = vmatprep.subr.mxu0 0.0
        %1677 = vmatpush1.msra.mxu0 0.0
        %1678 = vmatprep.subr.mxu0 0.0
        %1679 = vmatpush1.msra.mxu0 0.0
        %1680 = vmatprep.subr.mxu0 0.0
        %1681 = vmatpush1.msra.mxu0 0.0
        %1682 = vmatprep.subr.mxu0 0.0
        %1683 = vmatpush1.msra.mxu0 0.0
        %1684 = vmatprep.subr.mxu0 0.0
        %1685 = vmatpush1.msra.mxu0 0.0
        %1686 = vmatprep.subr.mxu0 0.0
        %1687 = vmatpush1.msra.mxu0 0.0
        %1688 = vmatprep.subr.mxu0 0.0
        %1689 = vmatpush1.msra.mxu0 0.0
        %1690 = vmatprep.subr.mxu0 0.0
        %v1691 = vand.u32 %v1503, 4294901760
        %v1692 = vsub.f32 %v1503, %v1691
        %1693 = vmatpush1.msra.mxu0 %v1692
        %1694 = vmatprep.subr.mxu0 0.0
        %1695 = vmatpush2.msra.mxu0 0.0
        %1696 = vmatprep.subr.mxu0 0.0
        %1697 = vmatpush2.msra.mxu0 0.0
        %1698 = vmatprep.subr.mxu0 0.0
        %1699 = vmatpush2.msra.mxu0 0.0
        %1700 = vmatprep.subr.mxu0 0.0
        %1701 = vmatpush2.msra.mxu0 0.0
        %1702 = vmatprep.subr.mxu0 0.0
        %1703 = vmatpush2.msra.mxu0 0.0
        %1704 = vmatprep.subr.mxu0 0.0
        %1705 = vmatpush2.msra.mxu0 0.0
        %1706 = vmatprep.subr.mxu0 0.0
        %1707 = vmatpush2.msra.mxu0 0.0
        %1708 = vmatprep.subr.mxu0 0.0
        %1709 = vmatpush2.msra.mxu0 0.0
        %1710 = vmatprep.subr.mxu0 0.0
        %1711 = vmatpush2.msra.mxu0 0.0
        %1712 = vmatprep.subr.mxu0 0.0
        %1713 = vmatpush2.msra.mxu0 0.0
        %1714 = vmatprep.subr.mxu0 0.0
        %1715 = vmatpush2.msra.mxu0 0.0
        %1716 = vmatprep.subr.mxu0 0.0
        %1717 = vmatpush2.msra.mxu0 0.0
        %1718 = vmatprep.subr.mxu0 0.0
        %1719 = vmatpush2.msra.mxu0 0.0
        %1720 = vmatprep.subr.mxu0 0.0
        %1721 = vmatpush2.msra.mxu0 0.0
        %1722 = vmatprep.subr.mxu0 0.0
        %1723 = vmatpush2.msra.mxu0 0.0
        %1724 = vmatprep.subr.mxu0 0.0
        %1725 = vmatpush2.msra.mxu0 0.0
        %1726 = vmatprep.mubr.f32.mxu0 0.0
        %v1727 = vand.u32 %v1506, 4294901760
        %v1728 = vsub.f32 %v1506, %v1727
        %1729 = vmatmul.mubr.f32.gmra.mxu0 %v1728
        %v1730 = vpop.f32.mrf.mxu0
        %v1731 = vadd.f32 %v1657, %v1730
        %v1732 = vpop.f32.mrf.mxu0
        %1733 = vdwg.mxu0
        %1734 = vmatprep.subr.mxu0 0.0
        %1735 = vmatpush1.msra.mxu0 0.0
        %1736 = vmatprep.subr.mxu0 0.0
        %1737 = vmatpush1.msra.mxu0 0.0
        %1738 = vmatprep.subr.mxu0 0.0
        %1739 = vmatpush1.msra.mxu0 0.0
        %1740 = vmatprep.subr.mxu0 0.0
        %1741 = vmatpush1.msra.mxu0 0.0
        %1742 = vmatprep.subr.mxu0 0.0
        %1743 = vmatpush1.msra.mxu0 0.0
        %1744 = vmatprep.subr.mxu0 0.0
        %1745 = vmatpush1.msra.mxu0 0.0
        %1746 = vmatprep.subr.mxu0 0.0
        %1747 = vmatpush1.msra.mxu0 0.0
        %1748 = vmatprep.subr.mxu0 0.0
        %1749 = vmatpush1.msra.mxu0 0.0
        %1750 = vmatprep.subr.mxu0 0.0
        %1751 = vmatpush1.msra.mxu0 0.0
        %1752 = vmatprep.subr.mxu0 0.0
        %1753 = vmatpush1.msra.mxu0 0.0
        %1754 = vmatprep.subr.mxu0 0.0
        %1755 = vmatpush1.msra.mxu0 0.0
        %1756 = vmatprep.subr.mxu0 0.0
        %1757 = vmatpush1.msra.mxu0 0.0
        %1758 = vmatprep.subr.mxu0 0.0
        %1759 = vmatpush1.msra.mxu0 0.0
        %1760 = vmatprep.subr.mxu0 0.0
        %1761 = vmatpush1.msra.mxu0 0.0
        %1762 = vmatprep.subr.mxu0 0.0
        %1763 = vmatpush1.msra.mxu0 0.0
        %1764 = vmatprep.subr.mxu0 0.0
        %v1765 = vand.u32 %v1503, 4294901760
        %1766 = vmatpush1.msra.mxu0 %v1765
        %1767 = vmatprep.subr.mxu0 0.0
        %1768 = vmatpush2.msra.mxu0 0.0
        %1769 = vmatprep.subr.mxu0 0.0
        %1770 = vmatpush2.msra.mxu0 0.0
        %1771 = vmatprep.subr.mxu0 0.0
        %1772 = vmatpush2.msra.mxu0 0.0
        %1773 = vmatprep.subr.mxu0 0.0
        %1774 = vmatpush2.msra.mxu0 0.0
        %1775 = vmatprep.subr.mxu0 0.0
        %1776 = vmatpush2.msra.mxu0 0.0
        %1777 = vmatprep.subr.mxu0 0.0
        %1778 = vmatpush2.msra.mxu0 0.0
        %1779 = vmatprep.subr.mxu0 0.0
        %1780 = vmatpush2.msra.mxu0 0.0
        %1781 = vmatprep.subr.mxu0 0.0
        %1782 = vmatpush2.msra.mxu0 0.0
        %1783 = vmatprep.subr.mxu0 0.0
        %1784 = vmatpush2.msra.mxu0 0.0
        %1785 = vmatprep.subr.mxu0 0.0
        %1786 = vmatpush2.msra.mxu0 0.0
        %1787 = vmatprep.subr.mxu0 0.0
        %1788 = vmatpush2.msra.mxu0 0.0
        %1789 = vmatprep.subr.mxu0 0.0
        %1790 = vmatpush2.msra.mxu0 0.0
        %1791 = vmatprep.subr.mxu0 0.0
        %1792 = vmatpush2.msra.mxu0 0.0
        %1793 = vmatprep.subr.mxu0 0.0
        %1794 = vmatpush2.msra.mxu0 0.0
        %1795 = vmatprep.subr.mxu0 0.0
        %1796 = vmatpush2.msra.mxu0 0.0
        %1797 = vmatprep.subr.mxu0 0.0
        %1798 = vmatpush2.msra.mxu0 0.0
        %1799 = vmatprep.mubr.f32.mxu0 0.0
        %v1800 = vand.u32 %v1506, 4294901760
        %v1801 = vsub.f32 %v1506, %v1800
        %v1802 = vand.u32 %v1801, 4294901760
        %1803 = vmatmul.mubr.f32.gmra.mxu0 %v1802
        %v1804 = vpop.f32.mrf.mxu0
        %v1805 = vadd.f32 %v1731, %v1804
        %v1806 = vpop.f32.mrf.mxu0
        %1807 = vdwg.mxu0
        %1808 = vmatprep.subr.mxu0 0.0
        %1809 = vmatpush1.msra.mxu0 0.0
        %1810 = vmatprep.subr.mxu0 0.0
        %1811 = vmatpush1.msra.mxu0 0.0
        %1812 = vmatprep.subr.mxu0 0.0
        %1813 = vmatpush1.msra.mxu0 0.0
        %1814 = vmatprep.subr.mxu0 0.0
        %1815 = vmatpush1.msra.mxu0 0.0
        %1816 = vmatprep.subr.mxu0 0.0
        %1817 = vmatpush1.msra.mxu0 0.0
        %1818 = vmatprep.subr.mxu0 0.0
        %1819 = vmatpush1.msra.mxu0 0.0
        %1820 = vmatprep.subr.mxu0 0.0
        %1821 = vmatpush1.msra.mxu0 0.0
        %1822 = vmatprep.subr.mxu0 0.0
        %1823 = vmatpush1.msra.mxu0 0.0
        %1824 = vmatprep.subr.mxu0 0.0
        %1825 = vmatpush1.msra.mxu0 0.0
        %1826 = vmatprep.subr.mxu0 0.0
        %1827 = vmatpush1.msra.mxu0 0.0
        %1828 = vmatprep.subr.mxu0 0.0
        %1829 = vmatpush1.msra.mxu0 0.0
        %1830 = vmatprep.subr.mxu0 0.0
        %1831 = vmatpush1.msra.mxu0 0.0
        %1832 = vmatprep.subr.mxu0 0.0
        %1833 = vmatpush1.msra.mxu0 0.0
        %1834 = vmatprep.subr.mxu0 0.0
        %1835 = vmatpush1.msra.mxu0 0.0
        %1836 = vmatprep.subr.mxu0 0.0
        %1837 = vmatpush1.msra.mxu0 0.0
        %1838 = vmatprep.subr.mxu0 0.0
        %v1839 = vand.u32 %v1503, 4294901760
        %v1840 = vsub.f32 %v1503, %v1839
        %v1841 = vand.u32 %v1840, 4294901760
        %1842 = vmatpush1.msra.mxu0 %v1841
        %1843 = vmatprep.subr.mxu0 0.0
        %1844 = vmatpush2.msra.mxu0 0.0
        %1845 = vmatprep.subr.mxu0 0.0
        %1846 = vmatpush2.msra.mxu0 0.0
        %1847 = vmatprep.subr.mxu0 0.0
        %1848 = vmatpush2.msra.mxu0 0.0
        %1849 = vmatprep.subr.mxu0 0.0
        %1850 = vmatpush2.msra.mxu0 0.0
        %1851 = vmatprep.subr.mxu0 0.0
        %1852 = vmatpush2.msra.mxu0 0.0
        %1853 = vmatprep.subr.mxu0 0.0
        %1854 = vmatpush2.msra.mxu0 0.0
        %1855 = vmatprep.subr.mxu0 0.0
        %1856 = vmatpush2.msra.mxu0 0.0
        %1857 = vmatprep.subr.mxu0 0.0
        %1858 = vmatpush2.msra.mxu0 0.0
        %1859 = vmatprep.subr.mxu0 0.0
        %1860 = vmatpush2.msra.mxu0 0.0
        %1861 = vmatprep.subr.mxu0 0.0
        %1862 = vmatpush2.msra.mxu0 0.0
        %1863 = vmatprep.subr.mxu0 0.0
        %1864 = vmatpush2.msra.mxu0 0.0
        %1865 = vmatprep.subr.mxu0 0.0
        %1866 = vmatpush2.msra.mxu0 0.0
        %1867 = vmatprep.subr.mxu0 0.0
        %1868 = vmatpush2.msra.mxu0 0.0
        %1869 = vmatprep.subr.mxu0 0.0
        %1870 = vmatpush2.msra.mxu0 0.0
        %1871 = vmatprep.subr.mxu0 0.0
        %1872 = vmatpush2.msra.mxu0 0.0
        %1873 = vmatprep.subr.mxu0 0.0
        %1874 = vmatpush2.msra.mxu0 0.0
        %1875 = vmatprep.mubr.f32.mxu0 0.0
        %v1876 = vand.u32 %v1506, 4294901760
        %1877 = vmatmul.mubr.f32.gmra.mxu0 %v1876
        %v1878 = vpop.f32.mrf.mxu0
        %v1879 = vadd.f32 %v1805, %v1878
        %v1880 = vpop.f32.mrf.mxu0
        %1881 = vdwg.mxu0
        %1882 = vmatprep.subr.mxu0 0.0
        %1883 = vmatpush1.msra.mxu0 0.0
        %1884 = vmatprep.subr.mxu0 0.0
        %1885 = vmatpush1.msra.mxu0 0.0
        %1886 = vmatprep.subr.mxu0 0.0
        %1887 = vmatpush1.msra.mxu0 0.0
        %1888 = vmatprep.subr.mxu0 0.0
        %1889 = vmatpush1.msra.mxu0 0.0
        %1890 = vmatprep.subr.mxu0 0.0
        %1891 = vmatpush1.msra.mxu0 0.0
        %1892 = vmatprep.subr.mxu0 0.0
        %1893 = vmatpush1.msra.mxu0 0.0
        %1894 = vmatprep.subr.mxu0 0.0
        %1895 = vmatpush1.msra.mxu0 0.0
        %1896 = vmatprep.subr.mxu0 0.0
        %1897 = vmatpush1.msra.mxu0 0.0
        %1898 = vmatprep.subr.mxu0 0.0
        %1899 = vmatpush1.msra.mxu0 0.0
        %1900 = vmatprep.subr.mxu0 0.0
        %1901 = vmatpush1.msra.mxu0 0.0
        %1902 = vmatprep.subr.mxu0 0.0
        %1903 = vmatpush1.msra.mxu0 0.0
        %1904 = vmatprep.subr.mxu0 0.0
        %1905 = vmatpush1.msra.mxu0 0.0
        %1906 = vmatprep.subr.mxu0 0.0
        %1907 = vmatpush1.msra.mxu0 0.0
        %1908 = vmatprep.subr.mxu0 0.0
        %1909 = vmatpush1.msra.mxu0 0.0
        %1910 = vmatprep.subr.mxu0 0.0
        %1911 = vmatpush1.msra.mxu0 0.0
        %1912 = vmatprep.subr.mxu0 0.0
        %v1913 = vand.u32 %v1503, 4294901760
        %1914 = vmatpush1.msra.mxu0 %v1913
        %1915 = vmatprep.subr.mxu0 0.0
        %1916 = vmatpush2.msra.mxu0 0.0
        %1917 = vmatprep.subr.mxu0 0.0
        %1918 = vmatpush2.msra.mxu0 0.0
        %1919 = vmatprep.subr.mxu0 0.0
        %1920 = vmatpush2.msra.mxu0 0.0
        %1921 = vmatprep.subr.mxu0 0.0
        %1922 = vmatpush2.msra.mxu0 0.0
        %1923 = vmatprep.subr.mxu0 0.0
        %1924 = vmatpush2.msra.mxu0 0.0
        %1925 = vmatprep.subr.mxu0 0.0
        %1926 = vmatpush2.msra.mxu0 0.0
        %1927 = vmatprep.subr.mxu0 0.0
        %1928 = vmatpush2.msra.mxu0 0.0
        %1929 = vmatprep.subr.mxu0 0.0
        %1930 = vmatpush2.msra.mxu0 0.0
        %1931 = vmatprep.subr.mxu0 0.0
        %1932 = vmatpush2.msra.mxu0 0.0
        %1933 = vmatprep.subr.mxu0 0.0
        %1934 = vmatpush2.msra.mxu0 0.0
        %1935 = vmatprep.subr.mxu0 0.0
        %1936 = vmatpush2.msra.mxu0 0.0
        %1937 = vmatprep.subr.mxu0 0.0
        %1938 = vmatpush2.msra.mxu0 0.0
        %1939 = vmatprep.subr.mxu0 0.0
        %1940 = vmatpush2.msra.mxu0 0.0
        %1941 = vmatprep.subr.mxu0 0.0
        %1942 = vmatpush2.msra.mxu0 0.0
        %1943 = vmatprep.subr.mxu0 0.0
        %1944 = vmatpush2.msra.mxu0 0.0
        %1945 = vmatprep.subr.mxu0 0.0
        %1946 = vmatpush2.msra.mxu0 0.0
        %1947 = vmatprep.mubr.f32.mxu0 0.0
        %v1948 = vand.u32 %v1506, 4294901760
        %1949 = vmatmul.mubr.f32.gmra.mxu0 %v1948
        %v1950 = vpop.f32.mrf.mxu0
        %v1951 = vadd.f32 %v1879, %v1950
        %v1952 = vpop.f32.mrf.mxu0
        %1953 = vdwg.mxu0
        %1954 = vrot.lane.b32.xlu0 %v1030, 120
        %v1955 = vpop.permute.xlu0 %1954
        %1956 = vrot.lane.b32.xlu0 %v1030, 88
        %v1957 = vpop.permute.xlu0 %1956
        %v1958 = vsel %vm1036, %v1955, 0
        %v1960 = vsel %vm1036, %v1957, 0
        %1962 = vmatprep.subr.mxu0 0.0
        %1963 = vmatpush1.xpose.msra.mxu0 0.0
        %1964 = vmatprep.subr.mxu0 0.0
        %1965 = vmatpush1.xpose.msra.mxu0 0.0
        %1966 = vmatprep.subr.mxu0 0.0
        %1967 = vmatpush1.xpose.msra.mxu0 0.0
        %1968 = vmatprep.subr.mxu0 0.0
        %1969 = vmatpush1.xpose.msra.mxu0 0.0
        %1970 = vmatprep.subr.mxu0 0.0
        %1971 = vmatpush1.xpose.msra.mxu0 0.0
        %1972 = vmatprep.subr.mxu0 0.0
        %1973 = vmatpush1.xpose.msra.mxu0 0.0
        %1974 = vmatprep.subr.mxu0 0.0
        %1975 = vmatpush1.xpose.msra.mxu0 0.0
        %1976 = vmatprep.subr.mxu0 0.0
        %1977 = vmatpush1.xpose.msra.mxu0 0.0
        %1978 = vmatprep.subr.mxu0 0.0
        %1979 = vmatpush1.xpose.msra.mxu0 0.0
        %1980 = vmatprep.subr.mxu0 0.0
        %1981 = vmatpush1.xpose.msra.mxu0 0.0
        %1982 = vmatprep.subr.mxu0 0.0
        %1983 = vmatpush1.xpose.msra.mxu0 0.0
        %1984 = vmatprep.subr.mxu0 0.0
        %1985 = vmatpush1.xpose.msra.mxu0 0.0
        %1986 = vmatprep.subr.mxu0 0.0
        %1987 = vmatpush1.xpose.msra.mxu0 0.0
        %1988 = vmatprep.subr.mxu0 0.0
        %1989 = vmatpush1.xpose.msra.mxu0 0.0
        %1990 = vmatprep.subr.mxu0 0.0
        %1991 = vmatpush1.xpose.msra.mxu0 0.0
        %1992 = vmatprep.subr.mxu0 0.0
        %v1993 = vand.u32 %v1960, 4294901760
        %1994 = vmatpush1.xpose.msra.mxu0 %v1993
        %1995 = vmatprep.subr.mxu0 0.0
        %1996 = vmatpush2.xpose.msra.mxu0 0.0
        %1997 = vmatprep.subr.mxu0 0.0
        %1998 = vmatpush2.xpose.msra.mxu0 0.0
        %1999 = vmatprep.subr.mxu0 0.0
        %2000 = vmatpush2.xpose.msra.mxu0 0.0
        %2001 = vmatprep.subr.mxu0 0.0
        %2002 = vmatpush2.xpose.msra.mxu0 0.0
        %2003 = vmatprep.subr.mxu0 0.0
        %2004 = vmatpush2.xpose.msra.mxu0 0.0
        %2005 = vmatprep.subr.mxu0 0.0
        %2006 = vmatpush2.xpose.msra.mxu0 0.0
        %2007 = vmatprep.subr.mxu0 0.0
        %2008 = vmatpush2.xpose.msra.mxu0 0.0
        %2009 = vmatprep.subr.mxu0 0.0
        %2010 = vmatpush2.xpose.msra.mxu0 0.0
        %2011 = vmatprep.subr.mxu0 0.0
        %2012 = vmatpush2.xpose.msra.mxu0 0.0
        %2013 = vmatprep.subr.mxu0 0.0
        %2014 = vmatpush2.xpose.msra.mxu0 0.0
        %2015 = vmatprep.subr.mxu0 0.0
        %2016 = vmatpush2.xpose.msra.mxu0 0.0
        %2017 = vmatprep.subr.mxu0 0.0
        %2018 = vmatpush2.xpose.msra.mxu0 0.0
        %2019 = vmatprep.subr.mxu0 0.0
        %2020 = vmatpush2.xpose.msra.mxu0 0.0
        %2021 = vmatprep.subr.mxu0 0.0
        %2022 = vmatpush2.xpose.msra.mxu0 0.0
        %2023 = vmatprep.subr.mxu0 0.0
        %2024 = vmatpush2.xpose.msra.mxu0 0.0
        %2025 = vmatprep.subr.mxu0 0.0
        %2026 = vmatpush2.xpose.msra.mxu0 0.0
        %2027 = vmatprep.mubr.f32.mxu0 0.0
        %v2028 = vand.u32 %v1958, 4294901760
        %v2029 = vsub.f32 %v1958, %v2028
        %v2030 = vand.u32 %v2029, 4294901760
        %v2031 = vsub.f32 %v2029, %v2030
        %v2032 = vand.u32 %v2031, 4294901760
        %2033 = vmatmul.mubr.f32.gmra.mxu0 %v2032
        %v2034 = vpop.f32.mrf.mxu0
        %v2035 = vadd.f32 0.0, %v2034
        %v2036 = vpop.f32.mrf.mxu0
        %2037 = vdwg.mxu0
        %2038 = vmatprep.subr.mxu0 0.0
        %2039 = vmatpush1.xpose.msra.mxu0 0.0
        %2040 = vmatprep.subr.mxu0 0.0
        %2041 = vmatpush1.xpose.msra.mxu0 0.0
        %2042 = vmatprep.subr.mxu0 0.0
        %2043 = vmatpush1.xpose.msra.mxu0 0.0
        %2044 = vmatprep.subr.mxu0 0.0
        %2045 = vmatpush1.xpose.msra.mxu0 0.0
        %2046 = vmatprep.subr.mxu0 0.0
        %2047 = vmatpush1.xpose.msra.mxu0 0.0
        %2048 = vmatprep.subr.mxu0 0.0
        %2049 = vmatpush1.xpose.msra.mxu0 0.0
        %2050 = vmatprep.subr.mxu0 0.0
        %2051 = vmatpush1.xpose.msra.mxu0 0.0
        %2052 = vmatprep.subr.mxu0 0.0
        %2053 = vmatpush1.xpose.msra.mxu0 0.0
        %2054 = vmatprep.subr.mxu0 0.0
        %2055 = vmatpush1.xpose.msra.mxu0 0.0
        %2056 = vmatprep.subr.mxu0 0.0
        %2057 = vmatpush1.xpose.msra.mxu0 0.0
        %2058 = vmatprep.subr.mxu0 0.0
        %2059 = vmatpush1.xpose.msra.mxu0 0.0
        %2060 = vmatprep.subr.mxu0 0.0
        %2061 = vmatpush1.xpose.msra.mxu0 0.0
        %2062 = vmatprep.subr.mxu0 0.0
        %2063 = vmatpush1.xpose.msra.mxu0 0.0
        %2064 = vmatprep.subr.mxu0 0.0
        %2065 = vmatpush1.xpose.msra.mxu0 0.0
        %2066 = vmatprep.subr.mxu0 0.0
        %2067 = vmatpush1.xpose.msra.mxu0 0.0
        %2068 = vmatprep.subr.mxu0 0.0
        %v2069 = vand.u32 %v1960, 4294901760
        %v2070 = vsub.f32 %v1960, %v2069
        %v2071 = vand.u32 %v2070, 4294901760
        %v2072 = vsub.f32 %v2070, %v2071
        %v2073 = vand.u32 %v2072, 4294901760
        %2074 = vmatpush1.xpose.msra.mxu0 %v2073
        %2075 = vmatprep.subr.mxu0 0.0
        %2076 = vmatpush2.xpose.msra.mxu0 0.0
        %2077 = vmatprep.subr.mxu0 0.0
        %2078 = vmatpush2.xpose.msra.mxu0 0.0
        %2079 = vmatprep.subr.mxu0 0.0
        %2080 = vmatpush2.xpose.msra.mxu0 0.0
        %2081 = vmatprep.subr.mxu0 0.0
        %2082 = vmatpush2.xpose.msra.mxu0 0.0
        %2083 = vmatprep.subr.mxu0 0.0
        %2084 = vmatpush2.xpose.msra.mxu0 0.0
        %2085 = vmatprep.subr.mxu0 0.0
        %2086 = vmatpush2.xpose.msra.mxu0 0.0
        %2087 = vmatprep.subr.mxu0 0.0
        %2088 = vmatpush2.xpose.msra.mxu0 0.0
        %2089 = vmatprep.subr.mxu0 0.0
        %2090 = vmatpush2.xpose.msra.mxu0 0.0
        %2091 = vmatprep.subr.mxu0 0.0
        %2092 = vmatpush2.xpose.msra.mxu0 0.0
        %2093 = vmatprep.subr.mxu0 0.0
        %2094 = vmatpush2.xpose.msra.mxu0 0.0
        %2095 = vmatprep.subr.mxu0 0.0
        %2096 = vmatpush2.xpose.msra.mxu0 0.0
        %2097 = vmatprep.subr.mxu0 0.0
        %2098 = vmatpush2.xpose.msra.mxu0 0.0
        %2099 = vmatprep.subr.mxu0 0.0
        %2100 = vmatpush2.xpose.msra.mxu0 0.0
        %2101 = vmatprep.subr.mxu0 0.0
        %2102 = vmatpush2.xpose.msra.mxu0 0.0
        %2103 = vmatprep.subr.mxu0 0.0
        %2104 = vmatpush2.xpose.msra.mxu0 0.0
        %2105 = vmatprep.subr.mxu0 0.0
        %2106 = vmatpush2.xpose.msra.mxu0 0.0
        %2107 = vmatprep.mubr.f32.mxu0 0.0
        %v2108 = vand.u32 %v1958, 4294901760
        %2109 = vmatmul.mubr.f32.gmra.mxu0 %v2108
        %v2110 = vpop.f32.mrf.mxu0
        %v2111 = vadd.f32 %v2035, %v2110
        %v2112 = vpop.f32.mrf.mxu0
        %2113 = vdwg.mxu0
        %2114 = vmatprep.subr.mxu0 0.0
        %2115 = vmatpush1.xpose.msra.mxu0 0.0
        %2116 = vmatprep.subr.mxu0 0.0
        %2117 = vmatpush1.xpose.msra.mxu0 0.0
        %2118 = vmatprep.subr.mxu0 0.0
        %2119 = vmatpush1.xpose.msra.mxu0 0.0
        %2120 = vmatprep.subr.mxu0 0.0
        %2121 = vmatpush1.xpose.msra.mxu0 0.0
        %2122 = vmatprep.subr.mxu0 0.0
        %2123 = vmatpush1.xpose.msra.mxu0 0.0
        %2124 = vmatprep.subr.mxu0 0.0
        %2125 = vmatpush1.xpose.msra.mxu0 0.0
        %2126 = vmatprep.subr.mxu0 0.0
        %2127 = vmatpush1.xpose.msra.mxu0 0.0
        %2128 = vmatprep.subr.mxu0 0.0
        %2129 = vmatpush1.xpose.msra.mxu0 0.0
        %2130 = vmatprep.subr.mxu0 0.0
        %2131 = vmatpush1.xpose.msra.mxu0 0.0
        %2132 = vmatprep.subr.mxu0 0.0
        %2133 = vmatpush1.xpose.msra.mxu0 0.0
        %2134 = vmatprep.subr.mxu0 0.0
        %2135 = vmatpush1.xpose.msra.mxu0 0.0
        %2136 = vmatprep.subr.mxu0 0.0
        %2137 = vmatpush1.xpose.msra.mxu0 0.0
        %2138 = vmatprep.subr.mxu0 0.0
        %2139 = vmatpush1.xpose.msra.mxu0 0.0
        %2140 = vmatprep.subr.mxu0 0.0
        %2141 = vmatpush1.xpose.msra.mxu0 0.0
        %2142 = vmatprep.subr.mxu0 0.0
        %2143 = vmatpush1.xpose.msra.mxu0 0.0
        %2144 = vmatprep.subr.mxu0 0.0
        %v2145 = vand.u32 %v1960, 4294901760
        %v2146 = vsub.f32 %v1960, %v2145
        %2147 = vmatpush1.xpose.msra.mxu0 %v2146
        %2148 = vmatprep.subr.mxu0 0.0
        %2149 = vmatpush2.xpose.msra.mxu0 0.0
        %2150 = vmatprep.subr.mxu0 0.0
        %2151 = vmatpush2.xpose.msra.mxu0 0.0
        %2152 = vmatprep.subr.mxu0 0.0
        %2153 = vmatpush2.xpose.msra.mxu0 0.0
        %2154 = vmatprep.subr.mxu0 0.0
        %2155 = vmatpush2.xpose.msra.mxu0 0.0
        %2156 = vmatprep.subr.mxu0 0.0
        %2157 = vmatpush2.xpose.msra.mxu0 0.0
        %2158 = vmatprep.subr.mxu0 0.0
        %2159 = vmatpush2.xpose.msra.mxu0 0.0
        %2160 = vmatprep.subr.mxu0 0.0
        %2161 = vmatpush2.xpose.msra.mxu0 0.0
        %2162 = vmatprep.subr.mxu0 0.0
        %2163 = vmatpush2.xpose.msra.mxu0 0.0
        %2164 = vmatprep.subr.mxu0 0.0
        %2165 = vmatpush2.xpose.msra.mxu0 0.0
        %2166 = vmatprep.subr.mxu0 0.0
        %2167 = vmatpush2.xpose.msra.mxu0 0.0
        %2168 = vmatprep.subr.mxu0 0.0
        %2169 = vmatpush2.xpose.msra.mxu0 0.0
        %2170 = vmatprep.subr.mxu0 0.0
        %2171 = vmatpush2.xpose.msra.mxu0 0.0
        %2172 = vmatprep.subr.mxu0 0.0
        %2173 = vmatpush2.xpose.msra.mxu0 0.0
        %2174 = vmatprep.subr.mxu0 0.0
        %2175 = vmatpush2.xpose.msra.mxu0 0.0
        %2176 = vmatprep.subr.mxu0 0.0
        %2177 = vmatpush2.xpose.msra.mxu0 0.0
        %2178 = vmatprep.subr.mxu0 0.0
        %2179 = vmatpush2.xpose.msra.mxu0 0.0
        %2180 = vmatprep.mubr.f32.mxu0 0.0
        %v2181 = vand.u32 %v1958, 4294901760
        %v2182 = vsub.f32 %v1958, %v2181
        %2183 = vmatmul.mubr.f32.gmra.mxu0 %v2182
        %v2184 = vpop.f32.mrf.mxu0
        %v2185 = vadd.f32 %v2111, %v2184
        %v2186 = vpop.f32.mrf.mxu0
        %2187 = vdwg.mxu0
        %2188 = vmatprep.subr.mxu0 0.0
        %2189 = vmatpush1.xpose.msra.mxu0 0.0
        %2190 = vmatprep.subr.mxu0 0.0
        %2191 = vmatpush1.xpose.msra.mxu0 0.0
        %2192 = vmatprep.subr.mxu0 0.0
        %2193 = vmatpush1.xpose.msra.mxu0 0.0
        %2194 = vmatprep.subr.mxu0 0.0
        %2195 = vmatpush1.xpose.msra.mxu0 0.0
        %2196 = vmatprep.subr.mxu0 0.0
        %2197 = vmatpush1.xpose.msra.mxu0 0.0
        %2198 = vmatprep.subr.mxu0 0.0
        %2199 = vmatpush1.xpose.msra.mxu0 0.0
        %2200 = vmatprep.subr.mxu0 0.0
        %2201 = vmatpush1.xpose.msra.mxu0 0.0
        %2202 = vmatprep.subr.mxu0 0.0
        %2203 = vmatpush1.xpose.msra.mxu0 0.0
        %2204 = vmatprep.subr.mxu0 0.0
        %2205 = vmatpush1.xpose.msra.mxu0 0.0
        %2206 = vmatprep.subr.mxu0 0.0
        %2207 = vmatpush1.xpose.msra.mxu0 0.0
        %2208 = vmatprep.subr.mxu0 0.0
        %2209 = vmatpush1.xpose.msra.mxu0 0.0
        %2210 = vmatprep.subr.mxu0 0.0
        %2211 = vmatpush1.xpose.msra.mxu0 0.0
        %2212 = vmatprep.subr.mxu0 0.0
        %2213 = vmatpush1.xpose.msra.mxu0 0.0
        %2214 = vmatprep.subr.mxu0 0.0
        %2215 = vmatpush1.xpose.msra.mxu0 0.0
        %2216 = vmatprep.subr.mxu0 0.0
        %2217 = vmatpush1.xpose.msra.mxu0 0.0
        %2218 = vmatprep.subr.mxu0 0.0
        %v2219 = vand.u32 %v1960, 4294901760
        %2220 = vmatpush1.xpose.msra.mxu0 %v2219
        %2221 = vmatprep.subr.mxu0 0.0
        %2222 = vmatpush2.xpose.msra.mxu0 0.0
        %2223 = vmatprep.subr.mxu0 0.0
        %2224 = vmatpush2.xpose.msra.mxu0 0.0
        %2225 = vmatprep.subr.mxu0 0.0
        %2226 = vmatpush2.xpose.msra.mxu0 0.0
        %2227 = vmatprep.subr.mxu0 0.0
        %2228 = vmatpush2.xpose.msra.mxu0 0.0
        %2229 = vmatprep.subr.mxu0 0.0
        %2230 = vmatpush2.xpose.msra.mxu0 0.0
        %2231 = vmatprep.subr.mxu0 0.0
        %2232 = vmatpush2.xpose.msra.mxu0 0.0
        %2233 = vmatprep.subr.mxu0 0.0
        %2234 = vmatpush2.xpose.msra.mxu0 0.0
        %2235 = vmatprep.subr.mxu0 0.0
        %2236 = vmatpush2.xpose.msra.mxu0 0.0
        %2237 = vmatprep.subr.mxu0 0.0
        %2238 = vmatpush2.xpose.msra.mxu0 0.0
        %2239 = vmatprep.subr.mxu0 0.0
        %2240 = vmatpush2.xpose.msra.mxu0 0.0
        %2241 = vmatprep.subr.mxu0 0.0
        %2242 = vmatpush2.xpose.msra.mxu0 0.0
        %2243 = vmatprep.subr.mxu0 0.0
        %2244 = vmatpush2.xpose.msra.mxu0 0.0
        %2245 = vmatprep.subr.mxu0 0.0
        %2246 = vmatpush2.xpose.msra.mxu0 0.0
        %2247 = vmatprep.subr.mxu0 0.0
        %2248 = vmatpush2.xpose.msra.mxu0 0.0
        %2249 = vmatprep.subr.mxu0 0.0
        %2250 = vmatpush2.xpose.msra.mxu0 0.0
        %2251 = vmatprep.subr.mxu0 0.0
        %2252 = vmatpush2.xpose.msra.mxu0 0.0
        %2253 = vmatprep.mubr.f32.mxu0 0.0
        %v2254 = vand.u32 %v1958, 4294901760
        %v2255 = vsub.f32 %v1958, %v2254
        %v2256 = vand.u32 %v2255, 4294901760
        %2257 = vmatmul.mubr.f32.gmra.mxu0 %v2256
        %v2258 = vpop.f32.mrf.mxu0
        %v2259 = vadd.f32 %v2185, %v2258
        %v2260 = vpop.f32.mrf.mxu0
        %2261 = vdwg.mxu0
        %2262 = vmatprep.subr.mxu0 0.0
        %2263 = vmatpush1.xpose.msra.mxu0 0.0
        %2264 = vmatprep.subr.mxu0 0.0
        %2265 = vmatpush1.xpose.msra.mxu0 0.0
        %2266 = vmatprep.subr.mxu0 0.0
        %2267 = vmatpush1.xpose.msra.mxu0 0.0
        %2268 = vmatprep.subr.mxu0 0.0
        %2269 = vmatpush1.xpose.msra.mxu0 0.0
        %2270 = vmatprep.subr.mxu0 0.0
        %2271 = vmatpush1.xpose.msra.mxu0 0.0
        %2272 = vmatprep.subr.mxu0 0.0
        %2273 = vmatpush1.xpose.msra.mxu0 0.0
        %2274 = vmatprep.subr.mxu0 0.0
        %2275 = vmatpush1.xpose.msra.mxu0 0.0
        %2276 = vmatprep.subr.mxu0 0.0
        %2277 = vmatpush1.xpose.msra.mxu0 0.0
        %2278 = vmatprep.subr.mxu0 0.0
        %2279 = vmatpush1.xpose.msra.mxu0 0.0
        %2280 = vmatprep.subr.mxu0 0.0
        %2281 = vmatpush1.xpose.msra.mxu0 0.0
        %2282 = vmatprep.subr.mxu0 0.0
        %2283 = vmatpush1.xpose.msra.mxu0 0.0
        %2284 = vmatprep.subr.mxu0 0.0
        %2285 = vmatpush1.xpose.msra.mxu0 0.0
        %2286 = vmatprep.subr.mxu0 0.0
        %2287 = vmatpush1.xpose.msra.mxu0 0.0
        %2288 = vmatprep.subr.mxu0 0.0
        %2289 = vmatpush1.xpose.msra.mxu0 0.0
        %2290 = vmatprep.subr.mxu0 0.0
        %2291 = vmatpush1.xpose.msra.mxu0 0.0
        %2292 = vmatprep.subr.mxu0 0.0
        %v2293 = vand.u32 %v1960, 4294901760
        %v2294 = vsub.f32 %v1960, %v2293
        %v2295 = vand.u32 %v2294, 4294901760
        %2296 = vmatpush1.xpose.msra.mxu0 %v2295
        %2297 = vmatprep.subr.mxu0 0.0
        %2298 = vmatpush2.xpose.msra.mxu0 0.0
        %2299 = vmatprep.subr.mxu0 0.0
        %2300 = vmatpush2.xpose.msra.mxu0 0.0
        %2301 = vmatprep.subr.mxu0 0.0
        %2302 = vmatpush2.xpose.msra.mxu0 0.0
        %2303 = vmatprep.subr.mxu0 0.0
        %2304 = vmatpush2.xpose.msra.mxu0 0.0
        %2305 = vmatprep.subr.mxu0 0.0
        %2306 = vmatpush2.xpose.msra.mxu0 0.0
        %2307 = vmatprep.subr.mxu0 0.0
        %2308 = vmatpush2.xpose.msra.mxu0 0.0
        %2309 = vmatprep.subr.mxu0 0.0
        %2310 = vmatpush2.xpose.msra.mxu0 0.0
        %2311 = vmatprep.subr.mxu0 0.0
        %2312 = vmatpush2.xpose.msra.mxu0 0.0
        %2313 = vmatprep.subr.mxu0 0.0
        %2314 = vmatpush2.xpose.msra.mxu0 0.0
        %2315 = vmatprep.subr.mxu0 0.0
        %2316 = vmatpush2.xpose.msra.mxu0 0.0
        %2317 = vmatprep.subr.mxu0 0.0
        %2318 = vmatpush2.xpose.msra.mxu0 0.0
        %2319 = vmatprep.subr.mxu0 0.0
        %2320 = vmatpush2.xpose.msra.mxu0 0.0
        %2321 = vmatprep.subr.mxu0 0.0
        %2322 = vmatpush2.xpose.msra.mxu0 0.0
        %2323 = vmatprep.subr.mxu0 0.0
        %2324 = vmatpush2.xpose.msra.mxu0 0.0
        %2325 = vmatprep.subr.mxu0 0.0
        %2326 = vmatpush2.xpose.msra.mxu0 0.0
        %2327 = vmatprep.subr.mxu0 0.0
        %2328 = vmatpush2.xpose.msra.mxu0 0.0
        %2329 = vmatprep.mubr.f32.mxu0 0.0
        %v2330 = vand.u32 %v1958, 4294901760
        %2331 = vmatmul.mubr.f32.gmra.mxu0 %v2330
        %v2332 = vpop.f32.mrf.mxu0
        %v2333 = vadd.f32 %v2259, %v2332
        %v2334 = vpop.f32.mrf.mxu0
        %2335 = vdwg.mxu0
        %2336 = vmatprep.subr.mxu0 0.0
        %2337 = vmatpush1.xpose.msra.mxu0 0.0
        %2338 = vmatprep.subr.mxu0 0.0
        %2339 = vmatpush1.xpose.msra.mxu0 0.0
        %2340 = vmatprep.subr.mxu0 0.0
        %2341 = vmatpush1.xpose.msra.mxu0 0.0
        %2342 = vmatprep.subr.mxu0 0.0
        %2343 = vmatpush1.xpose.msra.mxu0 0.0
        %2344 = vmatprep.subr.mxu0 0.0
        %2345 = vmatpush1.xpose.msra.mxu0 0.0
        %2346 = vmatprep.subr.mxu0 0.0
        %2347 = vmatpush1.xpose.msra.mxu0 0.0
        %2348 = vmatprep.subr.mxu0 0.0
        %2349 = vmatpush1.xpose.msra.mxu0 0.0
        %2350 = vmatprep.subr.mxu0 0.0
        %2351 = vmatpush1.xpose.msra.mxu0 0.0
        %2352 = vmatprep.subr.mxu0 0.0
        %2353 = vmatpush1.xpose.msra.mxu0 0.0
        %2354 = vmatprep.subr.mxu0 0.0
        %2355 = vmatpush1.xpose.msra.mxu0 0.0
        %2356 = vmatprep.subr.mxu0 0.0
        %2357 = vmatpush1.xpose.msra.mxu0 0.0
        %2358 = vmatprep.subr.mxu0 0.0
        %2359 = vmatpush1.xpose.msra.mxu0 0.0
        %2360 = vmatprep.subr.mxu0 0.0
        %2361 = vmatpush1.xpose.msra.mxu0 0.0
        %2362 = vmatprep.subr.mxu0 0.0
        %2363 = vmatpush1.xpose.msra.mxu0 0.0
        %2364 = vmatprep.subr.mxu0 0.0
        %2365 = vmatpush1.xpose.msra.mxu0 0.0
        %2366 = vmatprep.subr.mxu0 0.0
        %v2367 = vand.u32 %v1960, 4294901760
        %2368 = vmatpush1.xpose.msra.mxu0 %v2367
        %2369 = vmatprep.subr.mxu0 0.0
        %2370 = vmatpush2.xpose.msra.mxu0 0.0
        %2371 = vmatprep.subr.mxu0 0.0
        %2372 = vmatpush2.xpose.msra.mxu0 0.0
        %2373 = vmatprep.subr.mxu0 0.0
        %2374 = vmatpush2.xpose.msra.mxu0 0.0
        %2375 = vmatprep.subr.mxu0 0.0
        %2376 = vmatpush2.xpose.msra.mxu0 0.0
        %2377 = vmatprep.subr.mxu0 0.0
        %2378 = vmatpush2.xpose.msra.mxu0 0.0
        %2379 = vmatprep.subr.mxu0 0.0
        %2380 = vmatpush2.xpose.msra.mxu0 0.0
        %2381 = vmatprep.subr.mxu0 0.0
        %2382 = vmatpush2.xpose.msra.mxu0 0.0
        %2383 = vmatprep.subr.mxu0 0.0
        %2384 = vmatpush2.xpose.msra.mxu0 0.0
        %2385 = vmatprep.subr.mxu0 0.0
        %2386 = vmatpush2.xpose.msra.mxu0 0.0
        %2387 = vmatprep.subr.mxu0 0.0
        %2388 = vmatpush2.xpose.msra.mxu0 0.0
        %2389 = vmatprep.subr.mxu0 0.0
        %2390 = vmatpush2.xpose.msra.mxu0 0.0
        %2391 = vmatprep.subr.mxu0 0.0
        %2392 = vmatpush2.xpose.msra.mxu0 0.0
        %2393 = vmatprep.subr.mxu0 0.0
        %2394 = vmatpush2.xpose.msra.mxu0 0.0
        %2395 = vmatprep.subr.mxu0 0.0
        %2396 = vmatpush2.xpose.msra.mxu0 0.0
        %2397 = vmatprep.subr.mxu0 0.0
        %2398 = vmatpush2.xpose.msra.mxu0 0.0
        %2399 = vmatprep.subr.mxu0 0.0
        %2400 = vmatpush2.xpose.msra.mxu0 0.0
        %2401 = vmatprep.mubr.f32.mxu0 0.0
        %v2402 = vand.u32 %v1958, 4294901760
        %2403 = vmatmul.mubr.f32.gmra.mxu0 %v2402
        %v2404 = vpop.f32.mrf.mxu0
        %v2405 = vadd.f32 %v2333, %v2404
        %v2406 = vpop.f32.mrf.mxu0
        %2407 = vdwg.mxu0
        %v2408 = vmul.f32 %v2405, 0.35355338
        %v2409 = vsel %vm1488, -1e+30, %v2408
        %v2410 = vsel %vm1036, %v2409, -inf
        %2411 = vmax.xlane.f32.xlu0 %v2410
        %v2412 = vpop.xlane.xlu0 %2411
        %v2413 = vsub.f32 %v2409, %v2412
        %v2414 = vmul.f32 %v2413, 1.442695
        %v2415 = vpow.pop %v2414
        %v2416 = vsel %vm1036, %v2415, 0.0
        %2417 = vadd.xlane.f32.xlu0 %v2416
        %v2418 = vpop.xlane.xlu0 %2417
        %v2419 = vrcp.pop %v2418
        %v2420 = vmul.f32 %v2415, %v2419
        %s2421 = scalar_lea.vmem %s496, 8 [#allocation4]
        %2422 = vst.msk [vmem:[%s2421] sm:$0xff] %vm1036, %v2420
        %2423 = vrot.lane.b32.xlu0 %v1030, 56
        %v2424 = vpop.permute.xlu0 %2423
        %v2427 = vsel %vm1036, %v2420, 0
        %2429 = vmatprep.subr.mxu0 0.0
        %2430 = vmatpush1.msra.mxu0 0.0
        %2431 = vmatprep.subr.mxu0 0.0
        %2432 = vmatpush1.msra.mxu0 0.0
        %2433 = vmatprep.subr.mxu0 0.0
        %2434 = vmatpush1.msra.mxu0 0.0
        %2435 = vmatprep.subr.mxu0 0.0
        %2436 = vmatpush1.msra.mxu0 0.0
        %2437 = vmatprep.subr.mxu0 0.0
        %2438 = vmatpush1.msra.mxu0 0.0
        %2439 = vmatprep.subr.mxu0 0.0
        %2440 = vmatpush1.msra.mxu0 0.0
        %2441 = vmatprep.subr.mxu0 0.0
        %2442 = vmatpush1.msra.mxu0 0.0
        %2443 = vmatprep.subr.mxu0 0.0
        %2444 = vmatpush1.msra.mxu0 0.0
        %2445 = vmatprep.subr.mxu0 0.0
        %2446 = vmatpush1.msra.mxu0 0.0
        %2447 = vmatprep.subr.mxu0 0.0
        %2448 = vmatpush1.msra.mxu0 0.0
        %2449 = vmatprep.subr.mxu0 0.0
        %2450 = vmatpush1.msra.mxu0 0.0
        %2451 = vmatprep.subr.mxu0 0.0
        %2452 = vmatpush1.msra.mxu0 0.0
        %2453 = vmatprep.subr.mxu0 0.0
        %2454 = vmatpush1.msra.mxu0 0.0
        %2455 = vmatprep.subr.mxu0 0.0
        %2456 = vmatpush1.msra.mxu0 0.0
        %2457 = vmatprep.subr.mxu0 0.0
        %2458 = vmatpush1.msra.mxu0 0.0
        %2459 = vmatprep.subr.mxu0 0.0
        %v2460 = vand.u32 %v2424, 4294901760
        %2461 = vmatpush1.msra.mxu0 %v2460
        %2462 = vmatprep.subr.mxu0 0.0
        %2463 = vmatpush2.msra.mxu0 0.0
        %2464 = vmatprep.subr.mxu0 0.0
        %2465 = vmatpush2.msra.mxu0 0.0
        %2466 = vmatprep.subr.mxu0 0.0
        %2467 = vmatpush2.msra.mxu0 0.0
        %2468 = vmatprep.subr.mxu0 0.0
        %2469 = vmatpush2.msra.mxu0 0.0
        %2470 = vmatprep.subr.mxu0 0.0
        %2471 = vmatpush2.msra.mxu0 0.0
        %2472 = vmatprep.subr.mxu0 0.0
        %2473 = vmatpush2.msra.mxu0 0.0
        %2474 = vmatprep.subr.mxu0 0.0
        %2475 = vmatpush2.msra.mxu0 0.0
        %2476 = vmatprep.subr.mxu0 0.0
        %2477 = vmatpush2.msra.mxu0 0.0
        %2478 = vmatprep.subr.mxu0 0.0
        %2479 = vmatpush2.msra.mxu0 0.0
        %2480 = vmatprep.subr.mxu0 0.0
        %2481 = vmatpush2.msra.mxu0 0.0
        %2482 = vmatprep.subr.mxu0 0.0
        %2483 = vmatpush2.msra.mxu0 0.0
        %2484 = vmatprep.subr.mxu0 0.0
        %2485 = vmatpush2.msra.mxu0 0.0
        %2486 = vmatprep.subr.mxu0 0.0
        %2487 = vmatpush2.msra.mxu0 0.0
        %2488 = vmatprep.subr.mxu0 0.0
        %2489 = vmatpush2.msra.mxu0 0.0
        %2490 = vmatprep.subr.mxu0 0.0
        %2491 = vmatpush2.msra.mxu0 0.0
        %2492 = vmatprep.subr.mxu0 0.0
        %2493 = vmatpush2.msra.mxu0 0.0
        %2494 = vmatprep.mubr.f32.mxu0 0.0
        %v2495 = vand.u32 %v2427, 4294901760
        %v2496 = vsub.f32 %v2427, %v2495
        %v2497 = vand.u32 %v2496, 4294901760
        %v2498 = vsub.f32 %v2496, %v2497
        %v2499 = vand.u32 %v2498, 4294901760
        %2500 = vmatmul.mubr.f32.gmra.mxu0 %v2499
        %v2501 = vpop.f32.mrf.mxu0
        %v2502 = vadd.f32 0.0, %v2501
        %v2503 = vpop.f32.mrf.mxu0
        %2504 = vdwg.mxu0
        %2505 = vmatprep.subr.mxu0 0.0
        %2506 = vmatpush1.msra.mxu0 0.0
        %2507 = vmatprep.subr.mxu0 0.0
        %2508 = vmatpush1.msra.mxu0 0.0
        %2509 = vmatprep.subr.mxu0 0.0
        %2510 = vmatpush1.msra.mxu0 0.0
        %2511 = vmatprep.subr.mxu0 0.0
        %2512 = vmatpush1.msra.mxu0 0.0
        %2513 = vmatprep.subr.mxu0 0.0
        %2514 = vmatpush1.msra.mxu0 0.0
        %2515 = vmatprep.subr.mxu0 0.0
        %2516 = vmatpush1.msra.mxu0 0.0
        %2517 = vmatprep.subr.mxu0 0.0
        %2518 = vmatpush1.msra.mxu0 0.0
        %2519 = vmatprep.subr.mxu0 0.0
        %2520 = vmatpush1.msra.mxu0 0.0
        %2521 = vmatprep.subr.mxu0 0.0
        %2522 = vmatpush1.msra.mxu0 0.0
        %2523 = vmatprep.subr.mxu0 0.0
        %2524 = vmatpush1.msra.mxu0 0.0
        %2525 = vmatprep.subr.mxu0 0.0
        %2526 = vmatpush1.msra.mxu0 0.0
        %2527 = vmatprep.subr.mxu0 0.0
        %2528 = vmatpush1.msra.mxu0 0.0
        %2529 = vmatprep.subr.mxu0 0.0
        %2530 = vmatpush1.msra.mxu0 0.0
        %2531 = vmatprep.subr.mxu0 0.0
        %2532 = vmatpush1.msra.mxu0 0.0
        %2533 = vmatprep.subr.mxu0 0.0
        %2534 = vmatpush1.msra.mxu0 0.0
        %2535 = vmatprep.subr.mxu0 0.0
        %v2536 = vand.u32 %v2424, 4294901760
        %v2537 = vsub.f32 %v2424, %v2536
        %v2538 = vand.u32 %v2537, 4294901760
        %v2539 = vsub.f32 %v2537, %v2538
        %v2540 = vand.u32 %v2539, 4294901760
        %2541 = vmatpush1.msra.mxu0 %v2540
        %2542 = vmatprep.subr.mxu0 0.0
        %2543 = vmatpush2.msra.mxu0 0.0
        %2544 = vmatprep.subr.mxu0 0.0
        %2545 = vmatpush2.msra.mxu0 0.0
        %2546 = vmatprep.subr.mxu0 0.0
        %2547 = vmatpush2.msra.mxu0 0.0
        %2548 = vmatprep.subr.mxu0 0.0
        %2549 = vmatpush2.msra.mxu0 0.0
        %2550 = vmatprep.subr.mxu0 0.0
        %2551 = vmatpush2.msra.mxu0 0.0
        %2552 = vmatprep.subr.mxu0 0.0
        %2553 = vmatpush2.msra.mxu0 0.0
        %2554 = vmatprep.subr.mxu0 0.0
        %2555 = vmatpush2.msra.mxu0 0.0
        %2556 = vmatprep.subr.mxu0 0.0
        %2557 = vmatpush2.msra.mxu0 0.0
        %2558 = vmatprep.subr.mxu0 0.0
        %2559 = vmatpush2.msra.mxu0 0.0
        %2560 = vmatprep.subr.mxu0 0.0
        %2561 = vmatpush2.msra.mxu0 0.0
        %2562 = vmatprep.subr.mxu0 0.0
        %2563 = vmatpush2.msra.mxu0 0.0
        %2564 = vmatprep.subr.mxu0 0.0
        %2565 = vmatpush2.msra.mxu0 0.0
        %2566 = vmatprep.subr.mxu0 0.0
        %2567 = vmatpush2.msra.mxu0 0.0
        %2568 = vmatprep.subr.mxu0 0.0
        %2569 = vmatpush2.msra.mxu0 0.0
        %2570 = vmatprep.subr.mxu0 0.0
        %2571 = vmatpush2.msra.mxu0 0.0
        %2572 = vmatprep.subr.mxu0 0.0
        %2573 = vmatpush2.msra.mxu0 0.0
        %2574 = vmatprep.mubr.f32.mxu0 0.0
        %v2575 = vand.u32 %v2427, 4294901760
        %2576 = vmatmul.mubr.f32.gmra.mxu0 %v2575
        %v2577 = vpop.f32.mrf.mxu0
        %v2578 = vadd.f32 %v2502, %v2577
        %v2579 = vpop.f32.mrf.mxu0
        %2580 = vdwg.mxu0
        %2581 = vmatprep.subr.mxu0 0.0
        %2582 = vmatpush1.msra.mxu0 0.0
        %2583 = vmatprep.subr.mxu0 0.0
        %2584 = vmatpush1.msra.mxu0 0.0
        %2585 = vmatprep.subr.mxu0 0.0
        %2586 = vmatpush1.msra.mxu0 0.0
        %2587 = vmatprep.subr.mxu0 0.0
        %2588 = vmatpush1.msra.mxu0 0.0
        %2589 = vmatprep.subr.mxu0 0.0
        %2590 = vmatpush1.msra.mxu0 0.0
        %2591 = vmatprep.subr.mxu0 0.0
        %2592 = vmatpush1.msra.mxu0 0.0
        %2593 = vmatprep.subr.mxu0 0.0
        %2594 = vmatpush1.msra.mxu0 0.0
        %2595 = vmatprep.subr.mxu0 0.0
        %2596 = vmatpush1.msra.mxu0 0.0
        %2597 = vmatprep.subr.mxu0 0.0
        %2598 = vmatpush1.msra.mxu0 0.0
        %2599 = vmatprep.subr.mxu0 0.0
        %2600 = vmatpush1.msra.mxu0 0.0
        %2601 = vmatprep.subr.mxu0 0.0
        %2602 = vmatpush1.msra.mxu0 0.0
        %2603 = vmatprep.subr.mxu0 0.0
        %2604 = vmatpush1.msra.mxu0 0.0
        %2605 = vmatprep.subr.mxu0 0.0
        %2606 = vmatpush1.msra.mxu0 0.0
        %2607 = vmatprep.subr.mxu0 0.0
        %2608 = vmatpush1.msra.mxu0 0.0
        %2609 = vmatprep.subr.mxu0 0.0
        %2610 = vmatpush1.msra.mxu0 0.0
        %2611 = vmatprep.subr.mxu0 0.0
        %v2612 = vand.u32 %v2424, 4294901760
        %v2613 = vsub.f32 %v2424, %v2612
        %2614 = vmatpush1.msra.mxu0 %v2613
        %2615 = vmatprep.subr.mxu0 0.0
        %2616 = vmatpush2.msra.mxu0 0.0
        %2617 = vmatprep.subr.mxu0 0.0
        %2618 = vmatpush2.msra.mxu0 0.0
        %2619 = vmatprep.subr.mxu0 0.0
        %2620 = vmatpush2.msra.mxu0 0.0
        %2621 = vmatprep.subr.mxu0 0.0
        %2622 = vmatpush2.msra.mxu0 0.0
        %2623 = vmatprep.subr.mxu0 0.0
        %2624 = vmatpush2.msra.mxu0 0.0
        %2625 = vmatprep.subr.mxu0 0.0
        %2626 = vmatpush2.msra.mxu0 0.0
        %2627 = vmatprep.subr.mxu0 0.0
        %2628 = vmatpush2.msra.mxu0 0.0
        %2629 = vmatprep.subr.mxu0 0.0
        %2630 = vmatpush2.msra.mxu0 0.0
        %2631 = vmatprep.subr.mxu0 0.0
        %2632 = vmatpush2.msra.mxu0 0.0
        %2633 = vmatprep.subr.mxu0 0.0
        %2634 = vmatpush2.msra.mxu0 0.0
        %2635 = vmatprep.subr.mxu0 0.0
        %2636 = vmatpush2.msra.mxu0 0.0
        %2637 = vmatprep.subr.mxu0 0.0
        %2638 = vmatpush2.msra.mxu0 0.0
        %2639 = vmatprep.subr.mxu0 0.0
        %2640 = vmatpush2.msra.mxu0 0.0
        %2641 = vmatprep.subr.mxu0 0.0
        %2642 = vmatpush2.msra.mxu0 0.0
        %2643 = vmatprep.subr.mxu0 0.0
        %2644 = vmatpush2.msra.mxu0 0.0
        %2645 = vmatprep.subr.mxu0 0.0
        %2646 = vmatpush2.msra.mxu0 0.0
        %2647 = vmatprep.mubr.f32.mxu0 0.0
        %v2648 = vand.u32 %v2427, 4294901760
        %v2649 = vsub.f32 %v2427, %v2648
        %2650 = vmatmul.mubr.f32.gmra.mxu0 %v2649
        %v2651 = vpop.f32.mrf.mxu0
        %v2652 = vadd.f32 %v2578, %v2651
        %v2653 = vpop.f32.mrf.mxu0
        %2654 = vdwg.mxu0
        %2655 = vmatprep.subr.mxu0 0.0
        %2656 = vmatpush1.msra.mxu0 0.0
        %2657 = vmatprep.subr.mxu0 0.0
        %2658 = vmatpush1.msra.mxu0 0.0
        %2659 = vmatprep.subr.mxu0 0.0
        %2660 = vmatpush1.msra.mxu0 0.0
        %2661 = vmatprep.subr.mxu0 0.0
        %2662 = vmatpush1.msra.mxu0 0.0
        %2663 = vmatprep.subr.mxu0 0.0
        %2664 = vmatpush1.msra.mxu0 0.0
        %2665 = vmatprep.subr.mxu0 0.0
        %2666 = vmatpush1.msra.mxu0 0.0
        %2667 = vmatprep.subr.mxu0 0.0
        %2668 = vmatpush1.msra.mxu0 0.0
        %2669 = vmatprep.subr.mxu0 0.0
        %2670 = vmatpush1.msra.mxu0 0.0
        %2671 = vmatprep.subr.mxu0 0.0
        %2672 = vmatpush1.msra.mxu0 0.0
        %2673 = vmatprep.subr.mxu0 0.0
        %2674 = vmatpush1.msra.mxu0 0.0
        %2675 = vmatprep.subr.mxu0 0.0
        %2676 = vmatpush1.msra.mxu0 0.0
        %2677 = vmatprep.subr.mxu0 0.0
        %2678 = vmatpush1.msra.mxu0 0.0
        %2679 = vmatprep.subr.mxu0 0.0
        %2680 = vmatpush1.msra.mxu0 0.0
        %2681 = vmatprep.subr.mxu0 0.0
        %2682 = vmatpush1.msra.mxu0 0.0
        %2683 = vmatprep.subr.mxu0 0.0
        %2684 = vmatpush1.msra.mxu0 0.0
        %2685 = vmatprep.subr.mxu0 0.0
        %v2686 = vand.u32 %v2424, 4294901760
        %2687 = vmatpush1.msra.mxu0 %v2686
        %2688 = vmatprep.subr.mxu0 0.0
        %2689 = vmatpush2.msra.mxu0 0.0
        %2690 = vmatprep.subr.mxu0 0.0
        %2691 = vmatpush2.msra.mxu0 0.0
        %2692 = vmatprep.subr.mxu0 0.0
        %2693 = vmatpush2.msra.mxu0 0.0
        %2694 = vmatprep.subr.mxu0 0.0
        %2695 = vmatpush2.msra.mxu0 0.0
        %2696 = vmatprep.subr.mxu0 0.0
        %2697 = vmatpush2.msra.mxu0 0.0
        %2698 = vmatprep.subr.mxu0 0.0
        %2699 = vmatpush2.msra.mxu0 0.0
        %2700 = vmatprep.subr.mxu0 0.0
        %2701 = vmatpush2.msra.mxu0 0.0
        %2702 = vmatprep.subr.mxu0 0.0
        %2703 = vmatpush2.msra.mxu0 0.0
        %2704 = vmatprep.subr.mxu0 0.0
        %2705 = vmatpush2.msra.mxu0 0.0
        %2706 = vmatprep.subr.mxu0 0.0
        %2707 = vmatpush2.msra.mxu0 0.0
        %2708 = vmatprep.subr.mxu0 0.0
        %2709 = vmatpush2.msra.mxu0 0.0
        %2710 = vmatprep.subr.mxu0 0.0
        %2711 = vmatpush2.msra.mxu0 0.0
        %2712 = vmatprep.subr.mxu0 0.0
        %2713 = vmatpush2.msra.mxu0 0.0
        %2714 = vmatprep.subr.mxu0 0.0
        %2715 = vmatpush2.msra.mxu0 0.0
        %2716 = vmatprep.subr.mxu0 0.0
        %2717 = vmatpush2.msra.mxu0 0.0
        %2718 = vmatprep.subr.mxu0 0.0
        %2719 = vmatpush2.msra.mxu0 0.0
        %2720 = vmatprep.mubr.f32.mxu0 0.0
        %v2721 = vand.u32 %v2427, 4294901760
        %v2722 = vsub.f32 %v2427, %v2721
        %v2723 = vand.u32 %v2722, 4294901760
        %2724 = vmatmul.mubr.f32.gmra.mxu0 %v2723
        %v2725 = vpop.f32.mrf.mxu0
        %v2726 = vadd.f32 %v2652, %v2725
        %v2727 = vpop.f32.mrf.mxu0
        %2728 = vdwg.mxu0
        %2729 = vmatprep.subr.mxu0 0.0
        %2730 = vmatpush1.msra.mxu0 0.0
        %2731 = vmatprep.subr.mxu0 0.0
        %2732 = vmatpush1.msra.mxu0 0.0
        %2733 = vmatprep.subr.mxu0 0.0
        %2734 = vmatpush1.msra.mxu0 0.0
        %2735 = vmatprep.subr.mxu0 0.0
        %2736 = vmatpush1.msra.mxu0 0.0
        %2737 = vmatprep.subr.mxu0 0.0
        %2738 = vmatpush1.msra.mxu0 0.0
        %2739 = vmatprep.subr.mxu0 0.0
        %2740 = vmatpush1.msra.mxu0 0.0
        %2741 = vmatprep.subr.mxu0 0.0
        %2742 = vmatpush1.msra.mxu0 0.0
        %2743 = vmatprep.subr.mxu0 0.0
        %2744 = vmatpush1.msra.mxu0 0.0
        %2745 = vmatprep.subr.mxu0 0.0
        %2746 = vmatpush1.msra.mxu0 0.0
        %2747 = vmatprep.subr.mxu0 0.0
        %2748 = vmatpush1.msra.mxu0 0.0
        %2749 = vmatprep.subr.mxu0 0.0
        %2750 = vmatpush1.msra.mxu0 0.0
        %2751 = vmatprep.subr.mxu0 0.0
        %2752 = vmatpush1.msra.mxu0 0.0
        %2753 = vmatprep.subr.mxu0 0.0
        %2754 = vmatpush1.msra.mxu0 0.0
        %2755 = vmatprep.subr.mxu0 0.0
        %2756 = vmatpush1.msra.mxu0 0.0
        %2757 = vmatprep.subr.mxu0 0.0
        %2758 = vmatpush1.msra.mxu0 0.0
        %2759 = vmatprep.subr.mxu0 0.0
        %v2760 = vand.u32 %v2424, 4294901760
        %v2761 = vsub.f32 %v2424, %v2760
        %v2762 = vand.u32 %v2761, 4294901760
        %2763 = vmatpush1.msra.mxu0 %v2762
        %2764 = vmatprep.subr.mxu0 0.0
        %2765 = vmatpush2.msra.mxu0 0.0
        %2766 = vmatprep.subr.mxu0 0.0
        %2767 = vmatpush2.msra.mxu0 0.0
        %2768 = vmatprep.subr.mxu0 0.0
        %2769 = vmatpush2.msra.mxu0 0.0
        %2770 = vmatprep.subr.mxu0 0.0
        %2771 = vmatpush2.msra.mxu0 0.0
        %2772 = vmatprep.subr.mxu0 0.0
        %2773 = vmatpush2.msra.mxu0 0.0
        %2774 = vmatprep.subr.mxu0 0.0
        %2775 = vmatpush2.msra.mxu0 0.0
        %2776 = vmatprep.subr.mxu0 0.0
        %2777 = vmatpush2.msra.mxu0 0.0
        %2778 = vmatprep.subr.mxu0 0.0
        %2779 = vmatpush2.msra.mxu0 0.0
        %2780 = vmatprep.subr.mxu0 0.0
        %2781 = vmatpush2.msra.mxu0 0.0
        %2782 = vmatprep.subr.mxu0 0.0
        %2783 = vmatpush2.msra.mxu0 0.0
        %2784 = vmatprep.subr.mxu0 0.0
        %2785 = vmatpush2.msra.mxu0 0.0
        %2786 = vmatprep.subr.mxu0 0.0
        %2787 = vmatpush2.msra.mxu0 0.0
        %2788 = vmatprep.subr.mxu0 0.0
        %2789 = vmatpush2.msra.mxu0 0.0
        %2790 = vmatprep.subr.mxu0 0.0
        %2791 = vmatpush2.msra.mxu0 0.0
        %2792 = vmatprep.subr.mxu0 0.0
        %2793 = vmatpush2.msra.mxu0 0.0
        %2794 = vmatprep.subr.mxu0 0.0
        %2795 = vmatpush2.msra.mxu0 0.0
        %2796 = vmatprep.mubr.f32.mxu0 0.0
        %v2797 = vand.u32 %v2427, 4294901760
        %2798 = vmatmul.mubr.f32.gmra.mxu0 %v2797
        %v2799 = vpop.f32.mrf.mxu0
        %v2800 = vadd.f32 %v2726, %v2799
        %v2801 = vpop.f32.mrf.mxu0
        %2802 = vdwg.mxu0
        %2803 = vmatprep.subr.mxu0 0.0
        %2804 = vmatpush1.msra.mxu0 0.0
        %2805 = vmatprep.subr.mxu0 0.0
        %2806 = vmatpush1.msra.mxu0 0.0
        %2807 = vmatprep.subr.mxu0 0.0
        %2808 = vmatpush1.msra.mxu0 0.0
        %2809 = vmatprep.subr.mxu0 0.0
        %2810 = vmatpush1.msra.mxu0 0.0
        %2811 = vmatprep.subr.mxu0 0.0
        %2812 = vmatpush1.msra.mxu0 0.0
        %2813 = vmatprep.subr.mxu0 0.0
        %2814 = vmatpush1.msra.mxu0 0.0
        %2815 = vmatprep.subr.mxu0 0.0
        %2816 = vmatpush1.msra.mxu0 0.0
        %2817 = vmatprep.subr.mxu0 0.0
        %2818 = vmatpush1.msra.mxu0 0.0
        %2819 = vmatprep.subr.mxu0 0.0
        %2820 = vmatpush1.msra.mxu0 0.0
        %2821 = vmatprep.subr.mxu0 0.0
        %2822 = vmatpush1.msra.mxu0 0.0
        %2823 = vmatprep.subr.mxu0 0.0
        %2824 = vmatpush1.msra.mxu0 0.0
        %2825 = vmatprep.subr.mxu0 0.0
        %2826 = vmatpush1.msra.mxu0 0.0
        %2827 = vmatprep.subr.mxu0 0.0
        %2828 = vmatpush1.msra.mxu0 0.0
        %2829 = vmatprep.subr.mxu0 0.0
        %2830 = vmatpush1.msra.mxu0 0.0
        %2831 = vmatprep.subr.mxu0 0.0
        %2832 = vmatpush1.msra.mxu0 0.0
        %2833 = vmatprep.subr.mxu0 0.0
        %v2834 = vand.u32 %v2424, 4294901760
        %2835 = vmatpush1.msra.mxu0 %v2834
        %2836 = vmatprep.subr.mxu0 0.0
        %2837 = vmatpush2.msra.mxu0 0.0
        %2838 = vmatprep.subr.mxu0 0.0
        %2839 = vmatpush2.msra.mxu0 0.0
        %2840 = vmatprep.subr.mxu0 0.0
        %2841 = vmatpush2.msra.mxu0 0.0
        %2842 = vmatprep.subr.mxu0 0.0
        %2843 = vmatpush2.msra.mxu0 0.0
        %2844 = vmatprep.subr.mxu0 0.0
        %2845 = vmatpush2.msra.mxu0 0.0
        %2846 = vmatprep.subr.mxu0 0.0
        %2847 = vmatpush2.msra.mxu0 0.0
        %2848 = vmatprep.subr.mxu0 0.0
        %2849 = vmatpush2.msra.mxu0 0.0
        %2850 = vmatprep.subr.mxu0 0.0
        %2851 = vmatpush2.msra.mxu0 0.0
        %2852 = vmatprep.subr.mxu0 0.0
        %2853 = vmatpush2.msra.mxu0 0.0
        %2854 = vmatprep.subr.mxu0 0.0
        %2855 = vmatpush2.msra.mxu0 0.0
        %2856 = vmatprep.subr.mxu0 0.0
        %2857 = vmatpush2.msra.mxu0 0.0
        %2858 = vmatprep.subr.mxu0 0.0
        %2859 = vmatpush2.msra.mxu0 0.0
        %2860 = vmatprep.subr.mxu0 0.0
        %2861 = vmatpush2.msra.mxu0 0.0
        %2862 = vmatprep.subr.mxu0 0.0
        %2863 = vmatpush2.msra.mxu0 0.0
        %2864 = vmatprep.subr.mxu0 0.0
        %2865 = vmatpush2.msra.mxu0 0.0
        %2866 = vmatprep.subr.mxu0 0.0
        %2867 = vmatpush2.msra.mxu0 0.0
        %2868 = vmatprep.mubr.f32.mxu0 0.0
        %v2869 = vand.u32 %v2427, 4294901760
        %2870 = vmatmul.mubr.f32.gmra.mxu0 %v2869
        %v2871 = vpop.f32.mrf.mxu0
        %v2872 = vadd.f32 %v2800, %v2871
        %v2873 = vpop.f32.mrf.mxu0
        %2874 = vdwg.mxu0
        %2875 = vrot.lane.b32.xlu0 %v1030, 112
        %v2876 = vpop.permute.xlu0 %2875
        %2877 = vrot.lane.b32.xlu0 %v1030, 80
        %v2878 = vpop.permute.xlu0 %2877
        %v2879 = vsel %vm1036, %v2876, 0
        %v2881 = vsel %vm1036, %v2878, 0
        %2883 = vmatprep.subr.mxu0 0.0
        %2884 = vmatpush1.xpose.msra.mxu0 0.0
        %2885 = vmatprep.subr.mxu0 0.0
        %2886 = vmatpush1.xpose.msra.mxu0 0.0
        %2887 = vmatprep.subr.mxu0 0.0
        %2888 = vmatpush1.xpose.msra.mxu0 0.0
        %2889 = vmatprep.subr.mxu0 0.0
        %2890 = vmatpush1.xpose.msra.mxu0 0.0
        %2891 = vmatprep.subr.mxu0 0.0
        %2892 = vmatpush1.xpose.msra.mxu0 0.0
        %2893 = vmatprep.subr.mxu0 0.0
        %2894 = vmatpush1.xpose.msra.mxu0 0.0
        %2895 = vmatprep.subr.mxu0 0.0
        %2896 = vmatpush1.xpose.msra.mxu0 0.0
        %2897 = vmatprep.subr.mxu0 0.0
        %2898 = vmatpush1.xpose.msra.mxu0 0.0
        %2899 = vmatprep.subr.mxu0 0.0
        %2900 = vmatpush1.xpose.msra.mxu0 0.0
        %2901 = vmatprep.subr.mxu0 0.0
        %2902 = vmatpush1.xpose.msra.mxu0 0.0
        %2903 = vmatprep.subr.mxu0 0.0
        %2904 = vmatpush1.xpose.msra.mxu0 0.0
        %2905 = vmatprep.subr.mxu0 0.0
        %2906 = vmatpush1.xpose.msra.mxu0 0.0
        %2907 = vmatprep.subr.mxu0 0.0
        %2908 = vmatpush1.xpose.msra.mxu0 0.0
        %2909 = vmatprep.subr.mxu0 0.0
        %2910 = vmatpush1.xpose.msra.mxu0 0.0
        %2911 = vmatprep.subr.mxu0 0.0
        %2912 = vmatpush1.xpose.msra.mxu0 0.0
        %2913 = vmatprep.subr.mxu0 0.0
        %v2914 = vand.u32 %v2881, 4294901760
        %2915 = vmatpush1.xpose.msra.mxu0 %v2914
        %2916 = vmatprep.subr.mxu0 0.0
        %2917 = vmatpush2.xpose.msra.mxu0 0.0
        %2918 = vmatprep.subr.mxu0 0.0
        %2919 = vmatpush2.xpose.msra.mxu0 0.0
        %2920 = vmatprep.subr.mxu0 0.0
        %2921 = vmatpush2.xpose.msra.mxu0 0.0
        %2922 = vmatprep.subr.mxu0 0.0
        %2923 = vmatpush2.xpose.msra.mxu0 0.0
        %2924 = vmatprep.subr.mxu0 0.0
        %2925 = vmatpush2.xpose.msra.mxu0 0.0
        %2926 = vmatprep.subr.mxu0 0.0
        %2927 = vmatpush2.xpose.msra.mxu0 0.0
        %2928 = vmatprep.subr.mxu0 0.0
        %2929 = vmatpush2.xpose.msra.mxu0 0.0
        %2930 = vmatprep.subr.mxu0 0.0
        %2931 = vmatpush2.xpose.msra.mxu0 0.0
        %2932 = vmatprep.subr.mxu0 0.0
        %2933 = vmatpush2.xpose.msra.mxu0 0.0
        %2934 = vmatprep.subr.mxu0 0.0
        %2935 = vmatpush2.xpose.msra.mxu0 0.0
        %2936 = vmatprep.subr.mxu0 0.0
        %2937 = vmatpush2.xpose.msra.mxu0 0.0
        %2938 = vmatprep.subr.mxu0 0.0
        %2939 = vmatpush2.xpose.msra.mxu0 0.0
        %2940 = vmatprep.subr.mxu0 0.0
        %2941 = vmatpush2.xpose.msra.mxu0 0.0
        %2942 = vmatprep.subr.mxu0 0.0
        %2943 = vmatpush2.xpose.msra.mxu0 0.0
        %2944 = vmatprep.subr.mxu0 0.0
        %2945 = vmatpush2.xpose.msra.mxu0 0.0
        %2946 = vmatprep.subr.mxu0 0.0
        %2947 = vmatpush2.xpose.msra.mxu0 0.0
        %2948 = vmatprep.mubr.f32.mxu0 0.0
        %v2949 = vand.u32 %v2879, 4294901760
        %v2950 = vsub.f32 %v2879, %v2949
        %v2951 = vand.u32 %v2950, 4294901760
        %v2952 = vsub.f32 %v2950, %v2951
        %v2953 = vand.u32 %v2952, 4294901760
        %2954 = vmatmul.mubr.f32.gmra.mxu0 %v2953
        %v2955 = vpop.f32.mrf.mxu0
        %v2956 = vadd.f32 0.0, %v2955
        %v2957 = vpop.f32.mrf.mxu0
        %2958 = vdwg.mxu0
        %2959 = vmatprep.subr.mxu0 0.0
        %2960 = vmatpush1.xpose.msra.mxu0 0.0
        %2961 = vmatprep.subr.mxu0 0.0
        %2962 = vmatpush1.xpose.msra.mxu0 0.0
        %2963 = vmatprep.subr.mxu0 0.0
        %2964 = vmatpush1.xpose.msra.mxu0 0.0
        %2965 = vmatprep.subr.mxu0 0.0
        %2966 = vmatpush1.xpose.msra.mxu0 0.0
        %2967 = vmatprep.subr.mxu0 0.0
        %2968 = vmatpush1.xpose.msra.mxu0 0.0
        %2969 = vmatprep.subr.mxu0 0.0
        %2970 = vmatpush1.xpose.msra.mxu0 0.0
        %2971 = vmatprep.subr.mxu0 0.0
        %2972 = vmatpush1.xpose.msra.mxu0 0.0
        %2973 = vmatprep.subr.mxu0 0.0
        %2974 = vmatpush1.xpose.msra.mxu0 0.0
        %2975 = vmatprep.subr.mxu0 0.0
        %2976 = vmatpush1.xpose.msra.mxu0 0.0
        %2977 = vmatprep.subr.mxu0 0.0
        %2978 = vmatpush1.xpose.msra.mxu0 0.0
        %2979 = vmatprep.subr.mxu0 0.0
        %2980 = vmatpush1.xpose.msra.mxu0 0.0
        %2981 = vmatprep.subr.mxu0 0.0
        %2982 = vmatpush1.xpose.msra.mxu0 0.0
        %2983 = vmatprep.subr.mxu0 0.0
        %2984 = vmatpush1.xpose.msra.mxu0 0.0
        %2985 = vmatprep.subr.mxu0 0.0
        %2986 = vmatpush1.xpose.msra.mxu0 0.0
        %2987 = vmatprep.subr.mxu0 0.0
        %2988 = vmatpush1.xpose.msra.mxu0 0.0
        %2989 = vmatprep.subr.mxu0 0.0
        %v2990 = vand.u32 %v2881, 4294901760
        %v2991 = vsub.f32 %v2881, %v2990
        %v2992 = vand.u32 %v2991, 4294901760
        %v2993 = vsub.f32 %v2991, %v2992
        %v2994 = vand.u32 %v2993, 4294901760
        %2995 = vmatpush1.xpose.msra.mxu0 %v2994
        %2996 = vmatprep.subr.mxu0 0.0
        %2997 = vmatpush2.xpose.msra.mxu0 0.0
        %2998 = vmatprep.subr.mxu0 0.0
        %2999 = vmatpush2.xpose.msra.mxu0 0.0
        %3000 = vmatprep.subr.mxu0 0.0
        %3001 = vmatpush2.xpose.msra.mxu0 0.0
        %3002 = vmatprep.subr.mxu0 0.0
        %3003 = vmatpush2.xpose.msra.mxu0 0.0
        %3004 = vmatprep.subr.mxu0 0.0
        %3005 = vmatpush2.xpose.msra.mxu0 0.0
        %3006 = vmatprep.subr.mxu0 0.0
        %3007 = vmatpush2.xpose.msra.mxu0 0.0
        %3008 = vmatprep.subr.mxu0 0.0
        %3009 = vmatpush2.xpose.msra.mxu0 0.0
        %3010 = vmatprep.subr.mxu0 0.0
        %3011 = vmatpush2.xpose.msra.mxu0 0.0
        %3012 = vmatprep.subr.mxu0 0.0
        %3013 = vmatpush2.xpose.msra.mxu0 0.0
        %3014 = vmatprep.subr.mxu0 0.0
        %3015 = vmatpush2.xpose.msra.mxu0 0.0
        %3016 = vmatprep.subr.mxu0 0.0
        %3017 = vmatpush2.xpose.msra.mxu0 0.0
        %3018 = vmatprep.subr.mxu0 0.0
        %3019 = vmatpush2.xpose.msra.mxu0 0.0
        %3020 = vmatprep.subr.mxu0 0.0
        %3021 = vmatpush2.xpose.msra.mxu0 0.0
        %3022 = vmatprep.subr.mxu0 0.0
        %3023 = vmatpush2.xpose.msra.mxu0 0.0
        %3024 = vmatprep.subr.mxu0 0.0
        %3025 = vmatpush2.xpose.msra.mxu0 0.0
        %3026 = vmatprep.subr.mxu0 0.0
        %3027 = vmatpush2.xpose.msra.mxu0 0.0
        %3028 = vmatprep.mubr.f32.mxu0 0.0
        %v3029 = vand.u32 %v2879, 4294901760
        %3030 = vmatmul.mubr.f32.gmra.mxu0 %v3029
        %v3031 = vpop.f32.mrf.mxu0
        %v3032 = vadd.f32 %v2956, %v3031
        %v3033 = vpop.f32.mrf.mxu0
        %3034 = vdwg.mxu0
        %3035 = vmatprep.subr.mxu0 0.0
        %3036 = vmatpush1.xpose.msra.mxu0 0.0
        %3037 = vmatprep.subr.mxu0 0.0
        %3038 = vmatpush1.xpose.msra.mxu0 0.0
        %3039 = vmatprep.subr.mxu0 0.0
        %3040 = vmatpush1.xpose.msra.mxu0 0.0
        %3041 = vmatprep.subr.mxu0 0.0
        %3042 = vmatpush1.xpose.msra.mxu0 0.0
        %3043 = vmatprep.subr.mxu0 0.0
        %3044 = vmatpush1.xpose.msra.mxu0 0.0
        %3045 = vmatprep.subr.mxu0 0.0
        %3046 = vmatpush1.xpose.msra.mxu0 0.0
        %3047 = vmatprep.subr.mxu0 0.0
        %3048 = vmatpush1.xpose.msra.mxu0 0.0
        %3049 = vmatprep.subr.mxu0 0.0
        %3050 = vmatpush1.xpose.msra.mxu0 0.0
        %3051 = vmatprep.subr.mxu0 0.0
        %3052 = vmatpush1.xpose.msra.mxu0 0.0
        %3053 = vmatprep.subr.mxu0 0.0
        %3054 = vmatpush1.xpose.msra.mxu0 0.0
        %3055 = vmatprep.subr.mxu0 0.0
        %3056 = vmatpush1.xpose.msra.mxu0 0.0
        %3057 = vmatprep.subr.mxu0 0.0
        %3058 = vmatpush1.xpose.msra.mxu0 0.0
        %3059 = vmatprep.subr.mxu0 0.0
        %3060 = vmatpush1.xpose.msra.mxu0 0.0
        %3061 = vmatprep.subr.mxu0 0.0
        %3062 = vmatpush1.xpose.msra.mxu0 0.0
        %3063 = vmatprep.subr.mxu0 0.0
        %3064 = vmatpush1.xpose.msra.mxu0 0.0
        %3065 = vmatprep.subr.mxu0 0.0
        %v3066 = vand.u32 %v2881, 4294901760
        %v3067 = vsub.f32 %v2881, %v3066
        %3068 = vmatpush1.xpose.msra.mxu0 %v3067
        %3069 = vmatprep.subr.mxu0 0.0
        %3070 = vmatpush2.xpose.msra.mxu0 0.0
        %3071 = vmatprep.subr.mxu0 0.0
        %3072 = vmatpush2.xpose.msra.mxu0 0.0
        %3073 = vmatprep.subr.mxu0 0.0
        %3074 = vmatpush2.xpose.msra.mxu0 0.0
        %3075 = vmatprep.subr.mxu0 0.0
        %3076 = vmatpush2.xpose.msra.mxu0 0.0
        %3077 = vmatprep.subr.mxu0 0.0
        %3078 = vmatpush2.xpose.msra.mxu0 0.0
        %3079 = vmatprep.subr.mxu0 0.0
        %3080 = vmatpush2.xpose.msra.mxu0 0.0
        %3081 = vmatprep.subr.mxu0 0.0
        %3082 = vmatpush2.xpose.msra.mxu0 0.0
        %3083 = vmatprep.subr.mxu0 0.0
        %3084 = vmatpush2.xpose.msra.mxu0 0.0
        %3085 = vmatprep.subr.mxu0 0.0
        %3086 = vmatpush2.xpose.msra.mxu0 0.0
        %3087 = vmatprep.subr.mxu0 0.0
        %3088 = vmatpush2.xpose.msra.mxu0 0.0
        %3089 = vmatprep.subr.mxu0 0.0
        %3090 = vmatpush2.xpose.msra.mxu0 0.0
        %3091 = vmatprep.subr.mxu0 0.0
        %3092 = vmatpush2.xpose.msra.mxu0 0.0
        %3093 = vmatprep.subr.mxu0 0.0
        %3094 = vmatpush2.xpose.msra.mxu0 0.0
        %3095 = vmatprep.subr.mxu0 0.0
        %3096 = vmatpush2.xpose.msra.mxu0 0.0
        %3097 = vmatprep.subr.mxu0 0.0
        %3098 = vmatpush2.xpose.msra.mxu0 0.0
        %3099 = vmatprep.subr.mxu0 0.0
        %3100 = vmatpush2.xpose.msra.mxu0 0.0
        %3101 = vmatprep.mubr.f32.mxu0 0.0
        %v3102 = vand.u32 %v2879, 4294901760
        %v3103 = vsub.f32 %v2879, %v3102
        %3104 = vmatmul.mubr.f32.gmra.mxu0 %v3103
        %v3105 = vpop.f32.mrf.mxu0
        %v3106 = vadd.f32 %v3032, %v3105
        %v3107 = vpop.f32.mrf.mxu0
        %3108 = vdwg.mxu0
        %3109 = vmatprep.subr.mxu0 0.0
        %3110 = vmatpush1.xpose.msra.mxu0 0.0
        %3111 = vmatprep.subr.mxu0 0.0
        %3112 = vmatpush1.xpose.msra.mxu0 0.0
        %3113 = vmatprep.subr.mxu0 0.0
        %3114 = vmatpush1.xpose.msra.mxu0 0.0
        %3115 = vmatprep.subr.mxu0 0.0
        %3116 = vmatpush1.xpose.msra.mxu0 0.0
        %3117 = vmatprep.subr.mxu0 0.0
        %3118 = vmatpush1.xpose.msra.mxu0 0.0
        %3119 = vmatprep.subr.mxu0 0.0
        %3120 = vmatpush1.xpose.msra.mxu0 0.0
        %3121 = vmatprep.subr.mxu0 0.0
        %3122 = vmatpush1.xpose.msra.mxu0 0.0
        %3123 = vmatprep.subr.mxu0 0.0
        %3124 = vmatpush1.xpose.msra.mxu0 0.0
        %3125 = vmatprep.subr.mxu0 0.0
        %3126 = vmatpush1.xpose.msra.mxu0 0.0
        %3127 = vmatprep.subr.mxu0 0.0
        %3128 = vmatpush1.xpose.msra.mxu0 0.0
        %3129 = vmatprep.subr.mxu0 0.0
        %3130 = vmatpush1.xpose.msra.mxu0 0.0
        %3131 = vmatprep.subr.mxu0 0.0
        %3132 = vmatpush1.xpose.msra.mxu0 0.0
        %3133 = vmatprep.subr.mxu0 0.0
        %3134 = vmatpush1.xpose.msra.mxu0 0.0
        %3135 = vmatprep.subr.mxu0 0.0
        %3136 = vmatpush1.xpose.msra.mxu0 0.0
        %3137 = vmatprep.subr.mxu0 0.0
        %3138 = vmatpush1.xpose.msra.mxu0 0.0
        %3139 = vmatprep.subr.mxu0 0.0
        %v3140 = vand.u32 %v2881, 4294901760
        %3141 = vmatpush1.xpose.msra.mxu0 %v3140
        %3142 = vmatprep.subr.mxu0 0.0
        %3143 = vmatpush2.xpose.msra.mxu0 0.0
        %3144 = vmatprep.subr.mxu0 0.0
        %3145 = vmatpush2.xpose.msra.mxu0 0.0
        %3146 = vmatprep.subr.mxu0 0.0
        %3147 = vmatpush2.xpose.msra.mxu0 0.0
        %3148 = vmatprep.subr.mxu0 0.0
        %3149 = vmatpush2.xpose.msra.mxu0 0.0
        %3150 = vmatprep.subr.mxu0 0.0
        %3151 = vmatpush2.xpose.msra.mxu0 0.0
        %3152 = vmatprep.subr.mxu0 0.0
        %3153 = vmatpush2.xpose.msra.mxu0 0.0
        %3154 = vmatprep.subr.mxu0 0.0
        %3155 = vmatpush2.xpose.msra.mxu0 0.0
        %3156 = vmatprep.subr.mxu0 0.0
        %3157 = vmatpush2.xpose.msra.mxu0 0.0
        %3158 = vmatprep.subr.mxu0 0.0
        %3159 = vmatpush2.xpose.msra.mxu0 0.0
        %3160 = vmatprep.subr.mxu0 0.0
        %3161 = vmatpush2.xpose.msra.mxu0 0.0
        %3162 = vmatprep.subr.mxu0 0.0
        %3163 = vmatpush2.xpose.msra.mxu0 0.0
        %3164 = vmatprep.subr.mxu0 0.0
        %3165 = vmatpush2.xpose.msra.mxu0 0.0
        %3166 = vmatprep.subr.mxu0 0.0
        %3167 = vmatpush2.xpose.msra.mxu0 0.0
        %3168 = vmatprep.subr.mxu0 0.0
        %3169 = vmatpush2.xpose.msra.mxu0 0.0
        %3170 = vmatprep.subr.mxu0 0.0
        %3171 = vmatpush2.xpose.msra.mxu0 0.0
        %3172 = vmatprep.subr.mxu0 0.0
        %3173 = vmatpush2.xpose.msra.mxu0 0.0
        %3174 = vmatprep.mubr.f32.mxu0 0.0
        %v3175 = vand.u32 %v2879, 4294901760
        %v3176 = vsub.f32 %v2879, %v3175
        %v3177 = vand.u32 %v3176, 4294901760
        %3178 = vmatmul.mubr.f32.gmra.mxu0 %v3177
        %v3179 = vpop.f32.mrf.mxu0
        %v3180 = vadd.f32 %v3106, %v3179
        %v3181 = vpop.f32.mrf.mxu0
        %3182 = vdwg.mxu0
        %3183 = vmatprep.subr.mxu0 0.0
        %3184 = vmatpush1.xpose.msra.mxu0 0.0
        %3185 = vmatprep.subr.mxu0 0.0
        %3186 = vmatpush1.xpose.msra.mxu0 0.0
        %3187 = vmatprep.subr.mxu0 0.0
        %3188 = vmatpush1.xpose.msra.mxu0 0.0
        %3189 = vmatprep.subr.mxu0 0.0
        %3190 = vmatpush1.xpose.msra.mxu0 0.0
        %3191 = vmatprep.subr.mxu0 0.0
        %3192 = vmatpush1.xpose.msra.mxu0 0.0
        %3193 = vmatprep.subr.mxu0 0.0
        %3194 = vmatpush1.xpose.msra.mxu0 0.0
        %3195 = vmatprep.subr.mxu0 0.0
        %3196 = vmatpush1.xpose.msra.mxu0 0.0
        %3197 = vmatprep.subr.mxu0 0.0
        %3198 = vmatpush1.xpose.msra.mxu0 0.0
        %3199 = vmatprep.subr.mxu0 0.0
        %3200 = vmatpush1.xpose.msra.mxu0 0.0
        %3201 = vmatprep.subr.mxu0 0.0
        %3202 = vmatpush1.xpose.msra.mxu0 0.0
        %3203 = vmatprep.subr.mxu0 0.0
        %3204 = vmatpush1.xpose.msra.mxu0 0.0
        %3205 = vmatprep.subr.mxu0 0.0
        %3206 = vmatpush1.xpose.msra.mxu0 0.0
        %3207 = vmatprep.subr.mxu0 0.0
        %3208 = vmatpush1.xpose.msra.mxu0 0.0
        %3209 = vmatprep.subr.mxu0 0.0
        %3210 = vmatpush1.xpose.msra.mxu0 0.0
        %3211 = vmatprep.subr.mxu0 0.0
        %3212 = vmatpush1.xpose.msra.mxu0 0.0
        %3213 = vmatprep.subr.mxu0 0.0
        %v3214 = vand.u32 %v2881, 4294901760
        %v3215 = vsub.f32 %v2881, %v3214
        %v3216 = vand.u32 %v3215, 4294901760
        %3217 = vmatpush1.xpose.msra.mxu0 %v3216
        %3218 = vmatprep.subr.mxu0 0.0
        %3219 = vmatpush2.xpose.msra.mxu0 0.0
        %3220 = vmatprep.subr.mxu0 0.0
        %3221 = vmatpush2.xpose.msra.mxu0 0.0
        %3222 = vmatprep.subr.mxu0 0.0
        %3223 = vmatpush2.xpose.msra.mxu0 0.0
        %3224 = vmatprep.subr.mxu0 0.0
        %3225 = vmatpush2.xpose.msra.mxu0 0.0
        %3226 = vmatprep.subr.mxu0 0.0
        %3227 = vmatpush2.xpose.msra.mxu0 0.0
        %3228 = vmatprep.subr.mxu0 0.0
        %3229 = vmatpush2.xpose.msra.mxu0 0.0
        %3230 = vmatprep.subr.mxu0 0.0
        %3231 = vmatpush2.xpose.msra.mxu0 0.0
        %3232 = vmatprep.subr.mxu0 0.0
        %3233 = vmatpush2.xpose.msra.mxu0 0.0
        %3234 = vmatprep.subr.mxu0 0.0
        %3235 = vmatpush2.xpose.msra.mxu0 0.0
        %3236 = vmatprep.subr.mxu0 0.0
        %3237 = vmatpush2.xpose.msra.mxu0 0.0
        %3238 = vmatprep.subr.mxu0 0.0
        %3239 = vmatpush2.xpose.msra.mxu0 0.0
        %3240 = vmatprep.subr.mxu0 0.0
        %3241 = vmatpush2.xpose.msra.mxu0 0.0
        %3242 = vmatprep.subr.mxu0 0.0
        %3243 = vmatpush2.xpose.msra.mxu0 0.0
        %3244 = vmatprep.subr.mxu0 0.0
        %3245 = vmatpush2.xpose.msra.mxu0 0.0
        %3246 = vmatprep.subr.mxu0 0.0
        %3247 = vmatpush2.xpose.msra.mxu0 0.0
        %3248 = vmatprep.subr.mxu0 0.0
        %3249 = vmatpush2.xpose.msra.mxu0 0.0
        %3250 = vmatprep.mubr.f32.mxu0 0.0
        %v3251 = vand.u32 %v2879, 4294901760
        %3252 = vmatmul.mubr.f32.gmra.mxu0 %v3251
        %v3253 = vpop.f32.mrf.mxu0
        %v3254 = vadd.f32 %v3180, %v3253
        %v3255 = vpop.f32.mrf.mxu0
        %3256 = vdwg.mxu0
        %3257 = vmatprep.subr.mxu0 0.0
        %3258 = vmatpush1.xpose.msra.mxu0 0.0
        %3259 = vmatprep.subr.mxu0 0.0
        %3260 = vmatpush1.xpose.msra.mxu0 0.0
        %3261 = vmatprep.subr.mxu0 0.0
        %3262 = vmatpush1.xpose.msra.mxu0 0.0
        %3263 = vmatprep.subr.mxu0 0.0
        %3264 = vmatpush1.xpose.msra.mxu0 0.0
        %3265 = vmatprep.subr.mxu0 0.0
        %3266 = vmatpush1.xpose.msra.mxu0 0.0
        %3267 = vmatprep.subr.mxu0 0.0
        %3268 = vmatpush1.xpose.msra.mxu0 0.0
        %3269 = vmatprep.subr.mxu0 0.0
        %3270 = vmatpush1.xpose.msra.mxu0 0.0
        %3271 = vmatprep.subr.mxu0 0.0
        %3272 = vmatpush1.xpose.msra.mxu0 0.0
        %3273 = vmatprep.subr.mxu0 0.0
        %3274 = vmatpush1.xpose.msra.mxu0 0.0
        %3275 = vmatprep.subr.mxu0 0.0
        %3276 = vmatpush1.xpose.msra.mxu0 0.0
        %3277 = vmatprep.subr.mxu0 0.0
        %3278 = vmatpush1.xpose.msra.mxu0 0.0
        %3279 = vmatprep.subr.mxu0 0.0
        %3280 = vmatpush1.xpose.msra.mxu0 0.0
        %3281 = vmatprep.subr.mxu0 0.0
        %3282 = vmatpush1.xpose.msra.mxu0 0.0
        %3283 = vmatprep.subr.mxu0 0.0
        %3284 = vmatpush1.xpose.msra.mxu0 0.0
        %3285 = vmatprep.subr.mxu0 0.0
        %3286 = vmatpush1.xpose.msra.mxu0 0.0
        %3287 = vmatprep.subr.mxu0 0.0
        %v3288 = vand.u32 %v2881, 4294901760
        %3289 = vmatpush1.xpose.msra.mxu0 %v3288
        %3290 = vmatprep.subr.mxu0 0.0
        %3291 = vmatpush2.xpose.msra.mxu0 0.0
        %3292 = vmatprep.subr.mxu0 0.0
        %3293 = vmatpush2.xpose.msra.mxu0 0.0
        %3294 = vmatprep.subr.mxu0 0.0
        %3295 = vmatpush2.xpose.msra.mxu0 0.0
        %3296 = vmatprep.subr.mxu0 0.0
        %3297 = vmatpush2.xpose.msra.mxu0 0.0
        %3298 = vmatprep.subr.mxu0 0.0
        %3299 = vmatpush2.xpose.msra.mxu0 0.0
        %3300 = vmatprep.subr.mxu0 0.0
        %3301 = vmatpush2.xpose.msra.mxu0 0.0
        %3302 = vmatprep.subr.mxu0 0.0
        %3303 = vmatpush2.xpose.msra.mxu0 0.0
        %3304 = vmatprep.subr.mxu0 0.0
        %3305 = vmatpush2.xpose.msra.mxu0 0.0
        %3306 = vmatprep.subr.mxu0 0.0
        %3307 = vmatpush2.xpose.msra.mxu0 0.0
        %3308 = vmatprep.subr.mxu0 0.0
        %3309 = vmatpush2.xpose.msra.mxu0 0.0
        %3310 = vmatprep.subr.mxu0 0.0
        %3311 = vmatpush2.xpose.msra.mxu0 0.0
        %3312 = vmatprep.subr.mxu0 0.0
        %3313 = vmatpush2.xpose.msra.mxu0 0.0
        %3314 = vmatprep.subr.mxu0 0.0
        %3315 = vmatpush2.xpose.msra.mxu0 0.0
        %3316 = vmatprep.subr.mxu0 0.0
        %3317 = vmatpush2.xpose.msra.mxu0 0.0
        %3318 = vmatprep.subr.mxu0 0.0
        %3319 = vmatpush2.xpose.msra.mxu0 0.0
        %3320 = vmatprep.subr.mxu0 0.0
        %3321 = vmatpush2.xpose.msra.mxu0 0.0
        %3322 = vmatprep.mubr.f32.mxu0 0.0
        %v3323 = vand.u32 %v2879, 4294901760
        %3324 = vmatmul.mubr.f32.gmra.mxu0 %v3323
        %v3325 = vpop.f32.mrf.mxu0
        %v3326 = vadd.f32 %v3254, %v3325
        %v3327 = vpop.f32.mrf.mxu0
        %3328 = vdwg.mxu0
        %v3329 = vmul.f32 %v3326, 0.35355338
        %v3330 = vsel %vm1488, -1e+30, %v3329
        %v3331 = vsel %vm1036, %v3330, -inf
        %3332 = vmax.xlane.f32.xlu0 %v3331
        %v3333 = vpop.xlane.xlu0 %3332
        %v3334 = vsub.f32 %v3330, %v3333
        %v3335 = vmul.f32 %v3334, 1.442695
        %v3336 = vpow.pop %v3335
        %v3337 = vsel %vm1036, %v3336, 0.0
        %3338 = vadd.xlane.f32.xlu0 %v3337
        %v3339 = vpop.xlane.xlu0 %3338
        %v3340 = vrcp.pop %v3339
        %v3341 = vmul.f32 %v3336, %v3340
        %s3342 = scalar_lea.vmem %s496, 16 [#allocation4]
        %3343 = vst.msk [vmem:[%s3342] sm:$0xff] %vm1036, %v3341
        %3344 = vrot.lane.b32.xlu0 %v1030, 48
        %v3345 = vpop.permute.xlu0 %3344
        %v3348 = vsel %vm1036, %v3341, 0
        %3350 = vmatprep.subr.mxu0 0.0
        %3351 = vmatpush1.msra.mxu0 0.0
        %3352 = vmatprep.subr.mxu0 0.0
        %3353 = vmatpush1.msra.mxu0 0.0
        %3354 = vmatprep.subr.mxu0 0.0
        %3355 = vmatpush1.msra.mxu0 0.0
        %3356 = vmatprep.subr.mxu0 0.0
        %3357 = vmatpush1.msra.mxu0 0.0
        %3358 = vmatprep.subr.mxu0 0.0
        %3359 = vmatpush1.msra.mxu0 0.0
        %3360 = vmatprep.subr.mxu0 0.0
        %3361 = vmatpush1.msra.mxu0 0.0
        %3362 = vmatprep.subr.mxu0 0.0
        %3363 = vmatpush1.msra.mxu0 0.0
        %3364 = vmatprep.subr.mxu0 0.0
        %3365 = vmatpush1.msra.mxu0 0.0
        %3366 = vmatprep.subr.mxu0 0.0
        %3367 = vmatpush1.msra.mxu0 0.0
        %3368 = vmatprep.subr.mxu0 0.0
        %3369 = vmatpush1.msra.mxu0 0.0
        %3370 = vmatprep.subr.mxu0 0.0
        %3371 = vmatpush1.msra.mxu0 0.0
        %3372 = vmatprep.subr.mxu0 0.0
        %3373 = vmatpush1.msra.mxu0 0.0
        %3374 = vmatprep.subr.mxu0 0.0
        %3375 = vmatpush1.msra.mxu0 0.0
        %3376 = vmatprep.subr.mxu0 0.0
        %3377 = vmatpush1.msra.mxu0 0.0
        %3378 = vmatprep.subr.mxu0 0.0
        %3379 = vmatpush1.msra.mxu0 0.0
        %3380 = vmatprep.subr.mxu0 0.0
        %v3381 = vand.u32 %v3345, 4294901760
        %3382 = vmatpush1.msra.mxu0 %v3381
        %3383 = vmatprep.subr.mxu0 0.0
        %3384 = vmatpush2.msra.mxu0 0.0
        %3385 = vmatprep.subr.mxu0 0.0
        %3386 = vmatpush2.msra.mxu0 0.0
        %3387 = vmatprep.subr.mxu0 0.0
        %3388 = vmatpush2.msra.mxu0 0.0
        %3389 = vmatprep.subr.mxu0 0.0
        %3390 = vmatpush2.msra.mxu0 0.0
        %3391 = vmatprep.subr.mxu0 0.0
        %3392 = vmatpush2.msra.mxu0 0.0
        %3393 = vmatprep.subr.mxu0 0.0
        %3394 = vmatpush2.msra.mxu0 0.0
        %3395 = vmatprep.subr.mxu0 0.0
        %3396 = vmatpush2.msra.mxu0 0.0
        %3397 = vmatprep.subr.mxu0 0.0
        %3398 = vmatpush2.msra.mxu0 0.0
        %3399 = vmatprep.subr.mxu0 0.0
        %3400 = vmatpush2.msra.mxu0 0.0
        %3401 = vmatprep.subr.mxu0 0.0
        %3402 = vmatpush2.msra.mxu0 0.0
        %3403 = vmatprep.subr.mxu0 0.0
        %3404 = vmatpush2.msra.mxu0 0.0
        %3405 = vmatprep.subr.mxu0 0.0
        %3406 = vmatpush2.msra.mxu0 0.0
        %3407 = vmatprep.subr.mxu0 0.0
        %3408 = vmatpush2.msra.mxu0 0.0
        %3409 = vmatprep.subr.mxu0 0.0
        %3410 = vmatpush2.msra.mxu0 0.0
        %3411 = vmatprep.subr.mxu0 0.0
        %3412 = vmatpush2.msra.mxu0 0.0
        %3413 = vmatprep.subr.mxu0 0.0
        %3414 = vmatpush2.msra.mxu0 0.0
        %3415 = vmatprep.mubr.f32.mxu0 0.0
        %v3416 = vand.u32 %v3348, 4294901760
        %v3417 = vsub.f32 %v3348, %v3416
        %v3418 = vand.u32 %v3417, 4294901760
        %v3419 = vsub.f32 %v3417, %v3418
        %v3420 = vand.u32 %v3419, 4294901760
        %3421 = vmatmul.mubr.f32.gmra.mxu0 %v3420
        %v3422 = vpop.f32.mrf.mxu0
        %v3423 = vadd.f32 0.0, %v3422
        %v3424 = vpop.f32.mrf.mxu0
        %3425 = vdwg.mxu0
        %3426 = vmatprep.subr.mxu0 0.0
        %3427 = vmatpush1.msra.mxu0 0.0
        %3428 = vmatprep.subr.mxu0 0.0
        %3429 = vmatpush1.msra.mxu0 0.0
        %3430 = vmatprep.subr.mxu0 0.0
        %3431 = vmatpush1.msra.mxu0 0.0
        %3432 = vmatprep.subr.mxu0 0.0
        %3433 = vmatpush1.msra.mxu0 0.0
        %3434 = vmatprep.subr.mxu0 0.0
        %3435 = vmatpush1.msra.mxu0 0.0
        %3436 = vmatprep.subr.mxu0 0.0
        %3437 = vmatpush1.msra.mxu0 0.0
        %3438 = vmatprep.subr.mxu0 0.0
        %3439 = vmatpush1.msra.mxu0 0.0
        %3440 = vmatprep.subr.mxu0 0.0
        %3441 = vmatpush1.msra.mxu0 0.0
        %3442 = vmatprep.subr.mxu0 0.0
        %3443 = vmatpush1.msra.mxu0 0.0
        %3444 = vmatprep.subr.mxu0 0.0
        %3445 = vmatpush1.msra.mxu0 0.0
        %3446 = vmatprep.subr.mxu0 0.0
        %3447 = vmatpush1.msra.mxu0 0.0
        %3448 = vmatprep.subr.mxu0 0.0
        %3449 = vmatpush1.msra.mxu0 0.0
        %3450 = vmatprep.subr.mxu0 0.0
        %3451 = vmatpush1.msra.mxu0 0.0
        %3452 = vmatprep.subr.mxu0 0.0
        %3453 = vmatpush1.msra.mxu0 0.0
        %3454 = vmatprep.subr.mxu0 0.0
        %3455 = vmatpush1.msra.mxu0 0.0
        %3456 = vmatprep.subr.mxu0 0.0
        %v3457 = vand.u32 %v3345, 4294901760
        %v3458 = vsub.f32 %v3345, %v3457
        %v3459 = vand.u32 %v3458, 4294901760
        %v3460 = vsub.f32 %v3458, %v3459
        %v3461 = vand.u32 %v3460, 4294901760
        %3462 = vmatpush1.msra.mxu0 %v3461
        %3463 = vmatprep.subr.mxu0 0.0
        %3464 = vmatpush2.msra.mxu0 0.0
        %3465 = vmatprep.subr.mxu0 0.0
        %3466 = vmatpush2.msra.mxu0 0.0
        %3467 = vmatprep.subr.mxu0 0.0
        %3468 = vmatpush2.msra.mxu0 0.0
        %3469 = vmatprep.subr.mxu0 0.0
        %3470 = vmatpush2.msra.mxu0 0.0
        %3471 = vmatprep.subr.mxu0 0.0
        %3472 = vmatpush2.msra.mxu0 0.0
        %3473 = vmatprep.subr.mxu0 0.0
        %3474 = vmatpush2.msra.mxu0 0.0
        %3475 = vmatprep.subr.mxu0 0.0
        %3476 = vmatpush2.msra.mxu0 0.0
        %3477 = vmatprep.subr.mxu0 0.0
        %3478 = vmatpush2.msra.mxu0 0.0
        %3479 = vmatprep.subr.mxu0 0.0
        %3480 = vmatpush2.msra.mxu0 0.0
        %3481 = vmatprep.subr.mxu0 0.0
        %3482 = vmatpush2.msra.mxu0 0.0
        %3483 = vmatprep.subr.mxu0 0.0
        %3484 = vmatpush2.msra.mxu0 0.0
        %3485 = vmatprep.subr.mxu0 0.0
        %3486 = vmatpush2.msra.mxu0 0.0
        %3487 = vmatprep.subr.mxu0 0.0
        %3488 = vmatpush2.msra.mxu0 0.0
        %3489 = vmatprep.subr.mxu0 0.0
        %3490 = vmatpush2.msra.mxu0 0.0
        %3491 = vmatprep.subr.mxu0 0.0
        %3492 = vmatpush2.msra.mxu0 0.0
        %3493 = vmatprep.subr.mxu0 0.0
        %3494 = vmatpush2.msra.mxu0 0.0
        %3495 = vmatprep.mubr.f32.mxu0 0.0
        %v3496 = vand.u32 %v3348, 4294901760
        %3497 = vmatmul.mubr.f32.gmra.mxu0 %v3496
        %v3498 = vpop.f32.mrf.mxu0
        %v3499 = vadd.f32 %v3423, %v3498
        %v3500 = vpop.f32.mrf.mxu0
        %3501 = vdwg.mxu0
        %3502 = vmatprep.subr.mxu0 0.0
        %3503 = vmatpush1.msra.mxu0 0.0
        %3504 = vmatprep.subr.mxu0 0.0
        %3505 = vmatpush1.msra.mxu0 0.0
        %3506 = vmatprep.subr.mxu0 0.0
        %3507 = vmatpush1.msra.mxu0 0.0
        %3508 = vmatprep.subr.mxu0 0.0
        %3509 = vmatpush1.msra.mxu0 0.0
        %3510 = vmatprep.subr.mxu0 0.0
        %3511 = vmatpush1.msra.mxu0 0.0
        %3512 = vmatprep.subr.mxu0 0.0
        %3513 = vmatpush1.msra.mxu0 0.0
        %3514 = vmatprep.subr.mxu0 0.0
        %3515 = vmatpush1.msra.mxu0 0.0
        %3516 = vmatprep.subr.mxu0 0.0
        %3517 = vmatpush1.msra.mxu0 0.0
        %3518 = vmatprep.subr.mxu0 0.0
        %3519 = vmatpush1.msra.mxu0 0.0
        %3520 = vmatprep.subr.mxu0 0.0
        %3521 = vmatpush1.msra.mxu0 0.0
        %3522 = vmatprep.subr.mxu0 0.0
        %3523 = vmatpush1.msra.mxu0 0.0
        %3524 = vmatprep.subr.mxu0 0.0
        %3525 = vmatpush1.msra.mxu0 0.0
        %3526 = vmatprep.subr.mxu0 0.0
        %3527 = vmatpush1.msra.mxu0 0.0
        %3528 = vmatprep.subr.mxu0 0.0
        %3529 = vmatpush1.msra.mxu0 0.0
        %3530 = vmatprep.subr.mxu0 0.0
        %3531 = vmatpush1.msra.mxu0 0.0
        %3532 = vmatprep.subr.mxu0 0.0
        %v3533 = vand.u32 %v3345, 4294901760
        %v3534 = vsub.f32 %v3345, %v3533
        %3535 = vmatpush1.msra.mxu0 %v3534
        %3536 = vmatprep.subr.mxu0 0.0
        %3537 = vmatpush2.msra.mxu0 0.0
        %3538 = vmatprep.subr.mxu0 0.0
        %3539 = vmatpush2.msra.mxu0 0.0
        %3540 = vmatprep.subr.mxu0 0.0
        %3541 = vmatpush2.msra.mxu0 0.0
        %3542 = vmatprep.subr.mxu0 0.0
        %3543 = vmatpush2.msra.mxu0 0.0
        %3544 = vmatprep.subr.mxu0 0.0
        %3545 = vmatpush2.msra.mxu0 0.0
        %3546 = vmatprep.subr.mxu0 0.0
        %3547 = vmatpush2.msra.mxu0 0.0
        %3548 = vmatprep.subr.mxu0 0.0
        %3549 = vmatpush2.msra.mxu0 0.0
        %3550 = vmatprep.subr.mxu0 0.0
        %3551 = vmatpush2.msra.mxu0 0.0
        %3552 = vmatprep.subr.mxu0 0.0
        %3553 = vmatpush2.msra.mxu0 0.0
        %3554 = vmatprep.subr.mxu0 0.0
        %3555 = vmatpush2.msra.mxu0 0.0
        %3556 = vmatprep.subr.mxu0 0.0
        %3557 = vmatpush2.msra.mxu0 0.0
        %3558 = vmatprep.subr.mxu0 0.0
        %3559 = vmatpush2.msra.mxu0 0.0
        %3560 = vmatprep.subr.mxu0 0.0
        %3561 = vmatpush2.msra.mxu0 0.0
        %3562 = vmatprep.subr.mxu0 0.0
        %3563 = vmatpush2.msra.mxu0 0.0
        %3564 = vmatprep.subr.mxu0 0.0
        %3565 = vmatpush2.msra.mxu0 0.0
        %3566 = vmatprep.subr.mxu0 0.0
        %3567 = vmatpush2.msra.mxu0 0.0
        %3568 = vmatprep.mubr.f32.mxu0 0.0
        %v3569 = vand.u32 %v3348, 4294901760
        %v3570 = vsub.f32 %v3348, %v3569
        %3571 = vmatmul.mubr.f32.gmra.mxu0 %v3570
        %v3572 = vpop.f32.mrf.mxu0
        %v3573 = vadd.f32 %v3499, %v3572
        %v3574 = vpop.f32.mrf.mxu0
        %3575 = vdwg.mxu0
        %3576 = vmatprep.subr.mxu0 0.0
        %3577 = vmatpush1.msra.mxu0 0.0
        %3578 = vmatprep.subr.mxu0 0.0
        %3579 = vmatpush1.msra.mxu0 0.0
        %3580 = vmatprep.subr.mxu0 0.0
        %3581 = vmatpush1.msra.mxu0 0.0
        %3582 = vmatprep.subr.mxu0 0.0
        %3583 = vmatpush1.msra.mxu0 0.0
        %3584 = vmatprep.subr.mxu0 0.0
        %3585 = vmatpush1.msra.mxu0 0.0
        %3586 = vmatprep.subr.mxu0 0.0
        %3587 = vmatpush1.msra.mxu0 0.0
        %3588 = vmatprep.subr.mxu0 0.0
        %3589 = vmatpush1.msra.mxu0 0.0
        %3590 = vmatprep.subr.mxu0 0.0
        %3591 = vmatpush1.msra.mxu0 0.0
        %3592 = vmatprep.subr.mxu0 0.0
        %3593 = vmatpush1.msra.mxu0 0.0
        %3594 = vmatprep.subr.mxu0 0.0
        %3595 = vmatpush1.msra.mxu0 0.0
        %3596 = vmatprep.subr.mxu0 0.0
        %3597 = vmatpush1.msra.mxu0 0.0
        %3598 = vmatprep.subr.mxu0 0.0
        %3599 = vmatpush1.msra.mxu0 0.0
        %3600 = vmatprep.subr.mxu0 0.0
        %3601 = vmatpush1.msra.mxu0 0.0
        %3602 = vmatprep.subr.mxu0 0.0
        %3603 = vmatpush1.msra.mxu0 0.0
        %3604 = vmatprep.subr.mxu0 0.0
        %3605 = vmatpush1.msra.mxu0 0.0
        %3606 = vmatprep.subr.mxu0 0.0
        %v3607 = vand.u32 %v3345, 4294901760
        %3608 = vmatpush1.msra.mxu0 %v3607
        %3609 = vmatprep.subr.mxu0 0.0
        %3610 = vmatpush2.msra.mxu0 0.0
        %3611 = vmatprep.subr.mxu0 0.0
        %3612 = vmatpush2.msra.mxu0 0.0
        %3613 = vmatprep.subr.mxu0 0.0
        %3614 = vmatpush2.msra.mxu0 0.0
        %3615 = vmatprep.subr.mxu0 0.0
        %3616 = vmatpush2.msra.mxu0 0.0
        %3617 = vmatprep.subr.mxu0 0.0
        %3618 = vmatpush2.msra.mxu0 0.0
        %3619 = vmatprep.subr.mxu0 0.0
        %3620 = vmatpush2.msra.mxu0 0.0
        %3621 = vmatprep.subr.mxu0 0.0
        %3622 = vmatpush2.msra.mxu0 0.0
        %3623 = vmatprep.subr.mxu0 0.0
        %3624 = vmatpush2.msra.mxu0 0.0
        %3625 = vmatprep.subr.mxu0 0.0
        %3626 = vmatpush2.msra.mxu0 0.0
        %3627 = vmatprep.subr.mxu0 0.0
        %3628 = vmatpush2.msra.mxu0 0.0
        %3629 = vmatprep.subr.mxu0 0.0
        %3630 = vmatpush2.msra.mxu0 0.0
        %3631 = vmatprep.subr.mxu0 0.0
        %3632 = vmatpush2.msra.mxu0 0.0
        %3633 = vmatprep.subr.mxu0 0.0
        %3634 = vmatpush2.msra.mxu0 0.0
        %3635 = vmatprep.subr.mxu0 0.0
        %3636 = vmatpush2.msra.mxu0 0.0
        %3637 = vmatprep.subr.mxu0 0.0
        %3638 = vmatpush2.msra.mxu0 0.0
        %3639 = vmatprep.subr.mxu0 0.0
        %3640 = vmatpush2.msra.mxu0 0.0
        %3641 = vmatprep.mubr.f32.mxu0 0.0
        %v3642 = vand.u32 %v3348, 4294901760
        %v3643 = vsub.f32 %v3348, %v3642
        %v3644 = vand.u32 %v3643, 4294901760
        %3645 = vmatmul.mubr.f32.gmra.mxu0 %v3644
        %v3646 = vpop.f32.mrf.mxu0
        %v3647 = vadd.f32 %v3573, %v3646
        %v3648 = vpop.f32.mrf.mxu0
        %3649 = vdwg.mxu0
        %3650 = vmatprep.subr.mxu0 0.0
        %3651 = vmatpush1.msra.mxu0 0.0
        %3652 = vmatprep.subr.mxu0 0.0
        %3653 = vmatpush1.msra.mxu0 0.0
        %3654 = vmatprep.subr.mxu0 0.0
        %3655 = vmatpush1.msra.mxu0 0.0
        %3656 = vmatprep.subr.mxu0 0.0
        %3657 = vmatpush1.msra.mxu0 0.0
        %3658 = vmatprep.subr.mxu0 0.0
        %3659 = vmatpush1.msra.mxu0 0.0
        %3660 = vmatprep.subr.mxu0 0.0
        %3661 = vmatpush1.msra.mxu0 0.0
        %3662 = vmatprep.subr.mxu0 0.0
        %3663 = vmatpush1.msra.mxu0 0.0
        %3664 = vmatprep.subr.mxu0 0.0
        %3665 = vmatpush1.msra.mxu0 0.0
        %3666 = vmatprep.subr.mxu0 0.0
        %3667 = vmatpush1.msra.mxu0 0.0
        %3668 = vmatprep.subr.mxu0 0.0
        %3669 = vmatpush1.msra.mxu0 0.0
        %3670 = vmatprep.subr.mxu0 0.0
        %3671 = vmatpush1.msra.mxu0 0.0
        %3672 = vmatprep.subr.mxu0 0.0
        %3673 = vmatpush1.msra.mxu0 0.0
        %3674 = vmatprep.subr.mxu0 0.0
        %3675 = vmatpush1.msra.mxu0 0.0
        %3676 = vmatprep.subr.mxu0 0.0
        %3677 = vmatpush1.msra.mxu0 0.0
        %3678 = vmatprep.subr.mxu0 0.0
        %3679 = vmatpush1.msra.mxu0 0.0
        %3680 = vmatprep.subr.mxu0 0.0
        %v3681 = vand.u32 %v3345, 4294901760
        %v3682 = vsub.f32 %v3345, %v3681
        %v3683 = vand.u32 %v3682, 4294901760
        %3684 = vmatpush1.msra.mxu0 %v3683
        %3685 = vmatprep.subr.mxu0 0.0
        %3686 = vmatpush2.msra.mxu0 0.0
        %3687 = vmatprep.subr.mxu0 0.0
        %3688 = vmatpush2.msra.mxu0 0.0
        %3689 = vmatprep.subr.mxu0 0.0
        %3690 = vmatpush2.msra.mxu0 0.0
        %3691 = vmatprep.subr.mxu0 0.0
        %3692 = vmatpush2.msra.mxu0 0.0
        %3693 = vmatprep.subr.mxu0 0.0
        %3694 = vmatpush2.msra.mxu0 0.0
        %3695 = vmatprep.subr.mxu0 0.0
        %3696 = vmatpush2.msra.mxu0 0.0
        %3697 = vmatprep.subr.mxu0 0.0
        %3698 = vmatpush2.msra.mxu0 0.0
        %3699 = vmatprep.subr.mxu0 0.0
        %3700 = vmatpush2.msra.mxu0 0.0
        %3701 = vmatprep.subr.mxu0 0.0
        %3702 = vmatpush2.msra.mxu0 0.0
        %3703 = vmatprep.subr.mxu0 0.0
        %3704 = vmatpush2.msra.mxu0 0.0
        %3705 = vmatprep.subr.mxu0 0.0
        %3706 = vmatpush2.msra.mxu0 0.0
        %3707 = vmatprep.subr.mxu0 0.0
        %3708 = vmatpush2.msra.mxu0 0.0
        %3709 = vmatprep.subr.mxu0 0.0
        %3710 = vmatpush2.msra.mxu0 0.0
        %3711 = vmatprep.subr.mxu0 0.0
        %3712 = vmatpush2.msra.mxu0 0.0
        %3713 = vmatprep.subr.mxu0 0.0
        %3714 = vmatpush2.msra.mxu0 0.0
        %3715 = vmatprep.subr.mxu0 0.0
        %3716 = vmatpush2.msra.mxu0 0.0
        %3717 = vmatprep.mubr.f32.mxu0 0.0
        %v3718 = vand.u32 %v3348, 4294901760
        %3719 = vmatmul.mubr.f32.gmra.mxu0 %v3718
        %v3720 = vpop.f32.mrf.mxu0
        %v3721 = vadd.f32 %v3647, %v3720
        %v3722 = vpop.f32.mrf.mxu0
        %3723 = vdwg.mxu0
        %3724 = vmatprep.subr.mxu0 0.0
        %3725 = vmatpush1.msra.mxu0 0.0
        %3726 = vmatprep.subr.mxu0 0.0
        %3727 = vmatpush1.msra.mxu0 0.0
        %3728 = vmatprep.subr.mxu0 0.0
        %3729 = vmatpush1.msra.mxu0 0.0
        %3730 = vmatprep.subr.mxu0 0.0
        %3731 = vmatpush1.msra.mxu0 0.0
        %3732 = vmatprep.subr.mxu0 0.0
        %3733 = vmatpush1.msra.mxu0 0.0
        %3734 = vmatprep.subr.mxu0 0.0
        %3735 = vmatpush1.msra.mxu0 0.0
        %3736 = vmatprep.subr.mxu0 0.0
        %3737 = vmatpush1.msra.mxu0 0.0
        %3738 = vmatprep.subr.mxu0 0.0
        %3739 = vmatpush1.msra.mxu0 0.0
        %3740 = vmatprep.subr.mxu0 0.0
        %3741 = vmatpush1.msra.mxu0 0.0
        %3742 = vmatprep.subr.mxu0 0.0
        %3743 = vmatpush1.msra.mxu0 0.0
        %3744 = vmatprep.subr.mxu0 0.0
        %3745 = vmatpush1.msra.mxu0 0.0
        %3746 = vmatprep.subr.mxu0 0.0
        %3747 = vmatpush1.msra.mxu0 0.0
        %3748 = vmatprep.subr.mxu0 0.0
        %3749 = vmatpush1.msra.mxu0 0.0
        %3750 = vmatprep.subr.mxu0 0.0
        %3751 = vmatpush1.msra.mxu0 0.0
        %3752 = vmatprep.subr.mxu0 0.0
        %3753 = vmatpush1.msra.mxu0 0.0
        %3754 = vmatprep.subr.mxu0 0.0
        %v3755 = vand.u32 %v3345, 4294901760
        %3756 = vmatpush1.msra.mxu0 %v3755
        %3757 = vmatprep.subr.mxu0 0.0
        %3758 = vmatpush2.msra.mxu0 0.0
        %3759 = vmatprep.subr.mxu0 0.0
        %3760 = vmatpush2.msra.mxu0 0.0
        %3761 = vmatprep.subr.mxu0 0.0
        %3762 = vmatpush2.msra.mxu0 0.0
        %3763 = vmatprep.subr.mxu0 0.0
        %3764 = vmatpush2.msra.mxu0 0.0
        %3765 = vmatprep.subr.mxu0 0.0
        %3766 = vmatpush2.msra.mxu0 0.0
        %3767 = vmatprep.subr.mxu0 0.0
        %3768 = vmatpush2.msra.mxu0 0.0
        %3769 = vmatprep.subr.mxu0 0.0
        %3770 = vmatpush2.msra.mxu0 0.0
        %3771 = vmatprep.subr.mxu0 0.0
        %3772 = vmatpush2.msra.mxu0 0.0
        %3773 = vmatprep.subr.mxu0 0.0
        %3774 = vmatpush2.msra.mxu0 0.0
        %3775 = vmatprep.subr.mxu0 0.0
        %3776 = vmatpush2.msra.mxu0 0.0
        %3777 = vmatprep.subr.mxu0 0.0
        %3778 = vmatpush2.msra.mxu0 0.0
        %3779 = vmatprep.subr.mxu0 0.0
        %3780 = vmatpush2.msra.mxu0 0.0
        %3781 = vmatprep.subr.mxu0 0.0
        %3782 = vmatpush2.msra.mxu0 0.0
        %3783 = vmatprep.subr.mxu0 0.0
        %3784 = vmatpush2.msra.mxu0 0.0
        %3785 = vmatprep.subr.mxu0 0.0
        %3786 = vmatpush2.msra.mxu0 0.0
        %3787 = vmatprep.subr.mxu0 0.0
        %3788 = vmatpush2.msra.mxu0 0.0
        %3789 = vmatprep.mubr.f32.mxu0 0.0
        %v3790 = vand.u32 %v3348, 4294901760
        %3791 = vmatmul.mubr.f32.gmra.mxu0 %v3790
        %v3792 = vpop.f32.mrf.mxu0
        %v3793 = vadd.f32 %v3721, %v3792
        %v3794 = vpop.f32.mrf.mxu0
        %3795 = vdwg.mxu0
        %3796 = vrot.lane.b32.xlu0 %v1030, 104
        %v3797 = vpop.permute.xlu0 %3796
        %3798 = vrot.lane.b32.xlu0 %v1030, 72
        %v3799 = vpop.permute.xlu0 %3798
        %v3800 = vsel %vm1036, %v3797, 0
        %v3802 = vsel %vm1036, %v3799, 0
        %3804 = vmatprep.subr.mxu0 0.0
        %3805 = vmatpush1.xpose.msra.mxu0 0.0
        %3806 = vmatprep.subr.mxu0 0.0
        %3807 = vmatpush1.xpose.msra.mxu0 0.0
        %3808 = vmatprep.subr.mxu0 0.0
        %3809 = vmatpush1.xpose.msra.mxu0 0.0
        %3810 = vmatprep.subr.mxu0 0.0
        %3811 = vmatpush1.xpose.msra.mxu0 0.0
        %3812 = vmatprep.subr.mxu0 0.0
        %3813 = vmatpush1.xpose.msra.mxu0 0.0
        %3814 = vmatprep.subr.mxu0 0.0
        %3815 = vmatpush1.xpose.msra.mxu0 0.0
        %3816 = vmatprep.subr.mxu0 0.0
        %3817 = vmatpush1.xpose.msra.mxu0 0.0
        %3818 = vmatprep.subr.mxu0 0.0
        %3819 = vmatpush1.xpose.msra.mxu0 0.0
        %3820 = vmatprep.subr.mxu0 0.0
        %3821 = vmatpush1.xpose.msra.mxu0 0.0
        %3822 = vmatprep.subr.mxu0 0.0
        %3823 = vmatpush1.xpose.msra.mxu0 0.0
        %3824 = vmatprep.subr.mxu0 0.0
        %3825 = vmatpush1.xpose.msra.mxu0 0.0
        %3826 = vmatprep.subr.mxu0 0.0
        %3827 = vmatpush1.xpose.msra.mxu0 0.0
        %3828 = vmatprep.subr.mxu0 0.0
        %3829 = vmatpush1.xpose.msra.mxu0 0.0
        %3830 = vmatprep.subr.mxu0 0.0
        %3831 = vmatpush1.xpose.msra.mxu0 0.0
        %3832 = vmatprep.subr.mxu0 0.0
        %3833 = vmatpush1.xpose.msra.mxu0 0.0
        %3834 = vmatprep.subr.mxu0 0.0
        %v3835 = vand.u32 %v3802, 4294901760
        %3836 = vmatpush1.xpose.msra.mxu0 %v3835
        %3837 = vmatprep.subr.mxu0 0.0
        %3838 = vmatpush2.xpose.msra.mxu0 0.0
        %3839 = vmatprep.subr.mxu0 0.0
        %3840 = vmatpush2.xpose.msra.mxu0 0.0
        %3841 = vmatprep.subr.mxu0 0.0
        %3842 = vmatpush2.xpose.msra.mxu0 0.0
        %3843 = vmatprep.subr.mxu0 0.0
        %3844 = vmatpush2.xpose.msra.mxu0 0.0
        %3845 = vmatprep.subr.mxu0 0.0
        %3846 = vmatpush2.xpose.msra.mxu0 0.0
        %3847 = vmatprep.subr.mxu0 0.0
        %3848 = vmatpush2.xpose.msra.mxu0 0.0
        %3849 = vmatprep.subr.mxu0 0.0
        %3850 = vmatpush2.xpose.msra.mxu0 0.0
        %3851 = vmatprep.subr.mxu0 0.0
        %3852 = vmatpush2.xpose.msra.mxu0 0.0
        %3853 = vmatprep.subr.mxu0 0.0
        %3854 = vmatpush2.xpose.msra.mxu0 0.0
        %3855 = vmatprep.subr.mxu0 0.0
        %3856 = vmatpush2.xpose.msra.mxu0 0.0
        %3857 = vmatprep.subr.mxu0 0.0
        %3858 = vmatpush2.xpose.msra.mxu0 0.0
        %3859 = vmatprep.subr.mxu0 0.0
        %3860 = vmatpush2.xpose.msra.mxu0 0.0
        %3861 = vmatprep.subr.mxu0 0.0
        %3862 = vmatpush2.xpose.msra.mxu0 0.0
        %3863 = vmatprep.subr.mxu0 0.0
        %3864 = vmatpush2.xpose.msra.mxu0 0.0
        %3865 = vmatprep.subr.mxu0 0.0
        %3866 = vmatpush2.xpose.msra.mxu0 0.0
        %3867 = vmatprep.subr.mxu0 0.0
        %3868 = vmatpush2.xpose.msra.mxu0 0.0
        %3869 = vmatprep.mubr.f32.mxu0 0.0
        %v3870 = vand.u32 %v3800, 4294901760
        %v3871 = vsub.f32 %v3800, %v3870
        %v3872 = vand.u32 %v3871, 4294901760
        %v3873 = vsub.f32 %v3871, %v3872
        %v3874 = vand.u32 %v3873, 4294901760
        %3875 = vmatmul.mubr.f32.gmra.mxu0 %v3874
        %v3876 = vpop.f32.mrf.mxu0
        %v3877 = vadd.f32 0.0, %v3876
        %v3878 = vpop.f32.mrf.mxu0
        %3879 = vdwg.mxu0
        %3880 = vmatprep.subr.mxu0 0.0
        %3881 = vmatpush1.xpose.msra.mxu0 0.0
        %3882 = vmatprep.subr.mxu0 0.0
        %3883 = vmatpush1.xpose.msra.mxu0 0.0
        %3884 = vmatprep.subr.mxu0 0.0
        %3885 = vmatpush1.xpose.msra.mxu0 0.0
        %3886 = vmatprep.subr.mxu0 0.0
        %3887 = vmatpush1.xpose.msra.mxu0 0.0
        %3888 = vmatprep.subr.mxu0 0.0
        %3889 = vmatpush1.xpose.msra.mxu0 0.0
        %3890 = vmatprep.subr.mxu0 0.0
        %3891 = vmatpush1.xpose.msra.mxu0 0.0
        %3892 = vmatprep.subr.mxu0 0.0
        %3893 = vmatpush1.xpose.msra.mxu0 0.0
        %3894 = vmatprep.subr.mxu0 0.0
        %3895 = vmatpush1.xpose.msra.mxu0 0.0
        %3896 = vmatprep.subr.mxu0 0.0
        %3897 = vmatpush1.xpose.msra.mxu0 0.0
        %3898 = vmatprep.subr.mxu0 0.0
        %3899 = vmatpush1.xpose.msra.mxu0 0.0
        %3900 = vmatprep.subr.mxu0 0.0
        %3901 = vmatpush1.xpose.msra.mxu0 0.0
        %3902 = vmatprep.subr.mxu0 0.0
        %3903 = vmatpush1.xpose.msra.mxu0 0.0
        %3904 = vmatprep.subr.mxu0 0.0
        %3905 = vmatpush1.xpose.msra.mxu0 0.0
        %3906 = vmatprep.subr.mxu0 0.0
        %3907 = vmatpush1.xpose.msra.mxu0 0.0
        %3908 = vmatprep.subr.mxu0 0.0
        %3909 = vmatpush1.xpose.msra.mxu0 0.0
        %3910 = vmatprep.subr.mxu0 0.0
        %v3911 = vand.u32 %v3802, 4294901760
        %v3912 = vsub.f32 %v3802, %v3911
        %v3913 = vand.u32 %v3912, 4294901760
        %v3914 = vsub.f32 %v3912, %v3913
        %v3915 = vand.u32 %v3914, 4294901760
        %3916 = vmatpush1.xpose.msra.mxu0 %v3915
        %3917 = vmatprep.subr.mxu0 0.0
        %3918 = vmatpush2.xpose.msra.mxu0 0.0
        %3919 = vmatprep.subr.mxu0 0.0
        %3920 = vmatpush2.xpose.msra.mxu0 0.0
        %3921 = vmatprep.subr.mxu0 0.0
        %3922 = vmatpush2.xpose.msra.mxu0 0.0
        %3923 = vmatprep.subr.mxu0 0.0
        %3924 = vmatpush2.xpose.msra.mxu0 0.0
        %3925 = vmatprep.subr.mxu0 0.0
        %3926 = vmatpush2.xpose.msra.mxu0 0.0
        %3927 = vmatprep.subr.mxu0 0.0
        %3928 = vmatpush2.xpose.msra.mxu0 0.0
        %3929 = vmatprep.subr.mxu0 0.0
        %3930 = vmatpush2.xpose.msra.mxu0 0.0
        %3931 = vmatprep.subr.mxu0 0.0
        %3932 = vmatpush2.xpose.msra.mxu0 0.0
        %3933 = vmatprep.subr.mxu0 0.0
        %3934 = vmatpush2.xpose.msra.mxu0 0.0
        %3935 = vmatprep.subr.mxu0 0.0
        %3936 = vmatpush2.xpose.msra.mxu0 0.0
        %3937 = vmatprep.subr.mxu0 0.0
        %3938 = vmatpush2.xpose.msra.mxu0 0.0
        %3939 = vmatprep.subr.mxu0 0.0
        %3940 = vmatpush2.xpose.msra.mxu0 0.0
        %3941 = vmatprep.subr.mxu0 0.0
        %3942 = vmatpush2.xpose.msra.mxu0 0.0
        %3943 = vmatprep.subr.mxu0 0.0
        %3944 = vmatpush2.xpose.msra.mxu0 0.0
        %3945 = vmatprep.subr.mxu0 0.0
        %3946 = vmatpush2.xpose.msra.mxu0 0.0
        %3947 = vmatprep.subr.mxu0 0.0
        %3948 = vmatpush2.xpose.msra.mxu0 0.0
        %3949 = vmatprep.mubr.f32.mxu0 0.0
        %v3950 = vand.u32 %v3800, 4294901760
        %3951 = vmatmul.mubr.f32.gmra.mxu0 %v3950
        %v3952 = vpop.f32.mrf.mxu0
        %v3953 = vadd.f32 %v3877, %v3952
        %v3954 = vpop.f32.mrf.mxu0
        %3955 = vdwg.mxu0
        %3956 = vmatprep.subr.mxu0 0.0
        %3957 = vmatpush1.xpose.msra.mxu0 0.0
        %3958 = vmatprep.subr.mxu0 0.0
        %3959 = vmatpush1.xpose.msra.mxu0 0.0
        %3960 = vmatprep.subr.mxu0 0.0
        %3961 = vmatpush1.xpose.msra.mxu0 0.0
        %3962 = vmatprep.subr.mxu0 0.0
        %3963 = vmatpush1.xpose.msra.mxu0 0.0
        %3964 = vmatprep.subr.mxu0 0.0
        %3965 = vmatpush1.xpose.msra.mxu0 0.0
        %3966 = vmatprep.subr.mxu0 0.0
        %3967 = vmatpush1.xpose.msra.mxu0 0.0
        %3968 = vmatprep.subr.mxu0 0.0
        %3969 = vmatpush1.xpose.msra.mxu0 0.0
        %3970 = vmatprep.subr.mxu0 0.0
        %3971 = vmatpush1.xpose.msra.mxu0 0.0
        %3972 = vmatprep.subr.mxu0 0.0
        %3973 = vmatpush1.xpose.msra.mxu0 0.0
        %3974 = vmatprep.subr.mxu0 0.0
        %3975 = vmatpush1.xpose.msra.mxu0 0.0
        %3976 = vmatprep.subr.mxu0 0.0
        %3977 = vmatpush1.xpose.msra.mxu0 0.0
        %3978 = vmatprep.subr.mxu0 0.0
        %3979 = vmatpush1.xpose.msra.mxu0 0.0
        %3980 = vmatprep.subr.mxu0 0.0
        %3981 = vmatpush1.xpose.msra.mxu0 0.0
        %3982 = vmatprep.subr.mxu0 0.0
        %3983 = vmatpush1.xpose.msra.mxu0 0.0
        %3984 = vmatprep.subr.mxu0 0.0
        %3985 = vmatpush1.xpose.msra.mxu0 0.0
        %3986 = vmatprep.subr.mxu0 0.0
        %v3987 = vand.u32 %v3802, 4294901760
        %v3988 = vsub.f32 %v3802, %v3987
        %3989 = vmatpush1.xpose.msra.mxu0 %v3988
        %3990 = vmatprep.subr.mxu0 0.0
        %3991 = vmatpush2.xpose.msra.mxu0 0.0
        %3992 = vmatprep.subr.mxu0 0.0
        %3993 = vmatpush2.xpose.msra.mxu0 0.0
        %3994 = vmatprep.subr.mxu0 0.0
        %3995 = vmatpush2.xpose.msra.mxu0 0.0
        %3996 = vmatprep.subr.mxu0 0.0
        %3997 = vmatpush2.xpose.msra.mxu0 0.0
        %3998 = vmatprep.subr.mxu0 0.0
        %3999 = vmatpush2.xpose.msra.mxu0 0.0
        %4000 = vmatprep.subr.mxu0 0.0
        %4001 = vmatpush2.xpose.msra.mxu0 0.0
        %4002 = vmatprep.subr.mxu0 0.0
        %4003 = vmatpush2.xpose.msra.mxu0 0.0
        %4004 = vmatprep.subr.mxu0 0.0
        %4005 = vmatpush2.xpose.msra.mxu0 0.0
        %4006 = vmatprep.subr.mxu0 0.0
        %4007 = vmatpush2.xpose.msra.mxu0 0.0
        %4008 = vmatprep.subr.mxu0 0.0
        %4009 = vmatpush2.xpose.msra.mxu0 0.0
        %4010 = vmatprep.subr.mxu0 0.0
        %4011 = vmatpush2.xpose.msra.mxu0 0.0
        %4012 = vmatprep.subr.mxu0 0.0
        %4013 = vmatpush2.xpose.msra.mxu0 0.0
        %4014 = vmatprep.subr.mxu0 0.0
        %4015 = vmatpush2.xpose.msra.mxu0 0.0
        %4016 = vmatprep.subr.mxu0 0.0
        %4017 = vmatpush2.xpose.msra.mxu0 0.0
        %4018 = vmatprep.subr.mxu0 0.0
        %4019 = vmatpush2.xpose.msra.mxu0 0.0
        %4020 = vmatprep.subr.mxu0 0.0
        %4021 = vmatpush2.xpose.msra.mxu0 0.0
        %4022 = vmatprep.mubr.f32.mxu0 0.0
        %v4023 = vand.u32 %v3800, 4294901760
        %v4024 = vsub.f32 %v3800, %v4023
        %4025 = vmatmul.mubr.f32.gmra.mxu0 %v4024
        %v4026 = vpop.f32.mrf.mxu0
        %v4027 = vadd.f32 %v3953, %v4026
        %v4028 = vpop.f32.mrf.mxu0
        %4029 = vdwg.mxu0
        %4030 = vmatprep.subr.mxu0 0.0
        %4031 = vmatpush1.xpose.msra.mxu0 0.0
        %4032 = vmatprep.subr.mxu0 0.0
        %4033 = vmatpush1.xpose.msra.mxu0 0.0
        %4034 = vmatprep.subr.mxu0 0.0
        %4035 = vmatpush1.xpose.msra.mxu0 0.0
        %4036 = vmatprep.subr.mxu0 0.0
        %4037 = vmatpush1.xpose.msra.mxu0 0.0
        %4038 = vmatprep.subr.mxu0 0.0
        %4039 = vmatpush1.xpose.msra.mxu0 0.0
        %4040 = vmatprep.subr.mxu0 0.0
        %4041 = vmatpush1.xpose.msra.mxu0 0.0
        %4042 = vmatprep.subr.mxu0 0.0
        %4043 = vmatpush1.xpose.msra.mxu0 0.0
        %4044 = vmatprep.subr.mxu0 0.0
        %4045 = vmatpush1.xpose.msra.mxu0 0.0
        %4046 = vmatprep.subr.mxu0 0.0
        %4047 = vmatpush1.xpose.msra.mxu0 0.0
        %4048 = vmatprep.subr.mxu0 0.0
        %4049 = vmatpush1.xpose.msra.mxu0 0.0
        %4050 = vmatprep.subr.mxu0 0.0
        %4051 = vmatpush1.xpose.msra.mxu0 0.0
        %4052 = vmatprep.subr.mxu0 0.0
        %4053 = vmatpush1.xpose.msra.mxu0 0.0
        %4054 = vmatprep.subr.mxu0 0.0
        %4055 = vmatpush1.xpose.msra.mxu0 0.0
        %4056 = vmatprep.subr.mxu0 0.0
        %4057 = vmatpush1.xpose.msra.mxu0 0.0
        %4058 = vmatprep.subr.mxu0 0.0
        %4059 = vmatpush1.xpose.msra.mxu0 0.0
        %4060 = vmatprep.subr.mxu0 0.0
        %v4061 = vand.u32 %v3802, 4294901760
        %4062 = vmatpush1.xpose.msra.mxu0 %v4061
        %4063 = vmatprep.subr.mxu0 0.0
        %4064 = vmatpush2.xpose.msra.mxu0 0.0
        %4065 = vmatprep.subr.mxu0 0.0
        %4066 = vmatpush2.xpose.msra.mxu0 0.0
        %4067 = vmatprep.subr.mxu0 0.0
        %4068 = vmatpush2.xpose.msra.mxu0 0.0
        %4069 = vmatprep.subr.mxu0 0.0
        %4070 = vmatpush2.xpose.msra.mxu0 0.0
        %4071 = vmatprep.subr.mxu0 0.0
        %4072 = vmatpush2.xpose.msra.mxu0 0.0
        %4073 = vmatprep.subr.mxu0 0.0
        %4074 = vmatpush2.xpose.msra.mxu0 0.0
        %4075 = vmatprep.subr.mxu0 0.0
        %4076 = vmatpush2.xpose.msra.mxu0 0.0
        %4077 = vmatprep.subr.mxu0 0.0
        %4078 = vmatpush2.xpose.msra.mxu0 0.0
        %4079 = vmatprep.subr.mxu0 0.0
        %4080 = vmatpush2.xpose.msra.mxu0 0.0
        %4081 = vmatprep.subr.mxu0 0.0
        %4082 = vmatpush2.xpose.msra.mxu0 0.0
        %4083 = vmatprep.subr.mxu0 0.0
        %4084 = vmatpush2.xpose.msra.mxu0 0.0
        %4085 = vmatprep.subr.mxu0 0.0
        %4086 = vmatpush2.xpose.msra.mxu0 0.0
        %4087 = vmatprep.subr.mxu0 0.0
        %4088 = vmatpush2.xpose.msra.mxu0 0.0
        %4089 = vmatprep.subr.mxu0 0.0
        %4090 = vmatpush2.xpose.msra.mxu0 0.0
        %4091 = vmatprep.subr.mxu0 0.0
        %4092 = vmatpush2.xpose.msra.mxu0 0.0
        %4093 = vmatprep.subr.mxu0 0.0
        %4094 = vmatpush2.xpose.msra.mxu0 0.0
        %4095 = vmatprep.mubr.f32.mxu0 0.0
        %v4096 = vand.u32 %v3800, 4294901760
        %v4097 = vsub.f32 %v3800, %v4096
        %v4098 = vand.u32 %v4097, 4294901760
        %4099 = vmatmul.mubr.f32.gmra.mxu0 %v4098
        %v4100 = vpop.f32.mrf.mxu0
        %v4101 = vadd.f32 %v4027, %v4100
        %v4102 = vpop.f32.mrf.mxu0
        %4103 = vdwg.mxu0
        %4104 = vmatprep.subr.mxu0 0.0
        %4105 = vmatpush1.xpose.msra.mxu0 0.0
        %4106 = vmatprep.subr.mxu0 0.0
        %4107 = vmatpush1.xpose.msra.mxu0 0.0
        %4108 = vmatprep.subr.mxu0 0.0
        %4109 = vmatpush1.xpose.msra.mxu0 0.0
        %4110 = vmatprep.subr.mxu0 0.0
        %4111 = vmatpush1.xpose.msra.mxu0 0.0
        %4112 = vmatprep.subr.mxu0 0.0
        %4113 = vmatpush1.xpose.msra.mxu0 0.0
        %4114 = vmatprep.subr.mxu0 0.0
        %4115 = vmatpush1.xpose.msra.mxu0 0.0
        %4116 = vmatprep.subr.mxu0 0.0
        %4117 = vmatpush1.xpose.msra.mxu0 0.0
        %4118 = vmatprep.subr.mxu0 0.0
        %4119 = vmatpush1.xpose.msra.mxu0 0.0
        %4120 = vmatprep.subr.mxu0 0.0
        %4121 = vmatpush1.xpose.msra.mxu0 0.0
        %4122 = vmatprep.subr.mxu0 0.0
        %4123 = vmatpush1.xpose.msra.mxu0 0.0
        %4124 = vmatprep.subr.mxu0 0.0
        %4125 = vmatpush1.xpose.msra.mxu0 0.0
        %4126 = vmatprep.subr.mxu0 0.0
        %4127 = vmatpush1.xpose.msra.mxu0 0.0
        %4128 = vmatprep.subr.mxu0 0.0
        %4129 = vmatpush1.xpose.msra.mxu0 0.0
        %4130 = vmatprep.subr.mxu0 0.0
        %4131 = vmatpush1.xpose.msra.mxu0 0.0
        %4132 = vmatprep.subr.mxu0 0.0
        %4133 = vmatpush1.xpose.msra.mxu0 0.0
        %4134 = vmatprep.subr.mxu0 0.0
        %v4135 = vand.u32 %v3802, 4294901760
        %v4136 = vsub.f32 %v3802, %v4135
        %v4137 = vand.u32 %v4136, 4294901760
        %4138 = vmatpush1.xpose.msra.mxu0 %v4137
        %4139 = vmatprep.subr.mxu0 0.0
        %4140 = vmatpush2.xpose.msra.mxu0 0.0
        %4141 = vmatprep.subr.mxu0 0.0
        %4142 = vmatpush2.xpose.msra.mxu0 0.0
        %4143 = vmatprep.subr.mxu0 0.0
        %4144 = vmatpush2.xpose.msra.mxu0 0.0
        %4145 = vmatprep.subr.mxu0 0.0
        %4146 = vmatpush2.xpose.msra.mxu0 0.0
        %4147 = vmatprep.subr.mxu0 0.0
        %4148 = vmatpush2.xpose.msra.mxu0 0.0
        %4149 = vmatprep.subr.mxu0 0.0
        %4150 = vmatpush2.xpose.msra.mxu0 0.0
        %4151 = vmatprep.subr.mxu0 0.0
        %4152 = vmatpush2.xpose.msra.mxu0 0.0
        %4153 = vmatprep.subr.mxu0 0.0
        %4154 = vmatpush2.xpose.msra.mxu0 0.0
        %4155 = vmatprep.subr.mxu0 0.0
        %4156 = vmatpush2.xpose.msra.mxu0 0.0
        %4157 = vmatprep.subr.mxu0 0.0
        %4158 = vmatpush2.xpose.msra.mxu0 0.0
        %4159 = vmatprep.subr.mxu0 0.0
        %4160 = vmatpush2.xpose.msra.mxu0 0.0
        %4161 = vmatprep.subr.mxu0 0.0
        %4162 = vmatpush2.xpose.msra.mxu0 0.0
        %4163 = vmatprep.subr.mxu0 0.0
        %4164 = vmatpush2.xpose.msra.mxu0 0.0
        %4165 = vmatprep.subr.mxu0 0.0
        %4166 = vmatpush2.xpose.msra.mxu0 0.0
        %4167 = vmatprep.subr.mxu0 0.0
        %4168 = vmatpush2.xpose.msra.mxu0 0.0
        %4169 = vmatprep.subr.mxu0 0.0
        %4170 = vmatpush2.xpose.msra.mxu0 0.0
        %4171 = vmatprep.mubr.f32.mxu0 0.0
        %v4172 = vand.u32 %v3800, 4294901760
        %4173 = vmatmul.mubr.f32.gmra.mxu0 %v4172
        %v4174 = vpop.f32.mrf.mxu0
        %v4175 = vadd.f32 %v4101, %v4174
        %v4176 = vpop.f32.mrf.mxu0
        %4177 = vdwg.mxu0
        %4178 = vmatprep.subr.mxu0 0.0
        %4179 = vmatpush1.xpose.msra.mxu0 0.0
        %4180 = vmatprep.subr.mxu0 0.0
        %4181 = vmatpush1.xpose.msra.mxu0 0.0
        %4182 = vmatprep.subr.mxu0 0.0
        %4183 = vmatpush1.xpose.msra.mxu0 0.0
        %4184 = vmatprep.subr.mxu0 0.0
        %4185 = vmatpush1.xpose.msra.mxu0 0.0
        %4186 = vmatprep.subr.mxu0 0.0
        %4187 = vmatpush1.xpose.msra.mxu0 0.0
        %4188 = vmatprep.subr.mxu0 0.0
        %4189 = vmatpush1.xpose.msra.mxu0 0.0
        %4190 = vmatprep.subr.mxu0 0.0
        %4191 = vmatpush1.xpose.msra.mxu0 0.0
        %4192 = vmatprep.subr.mxu0 0.0
        %4193 = vmatpush1.xpose.msra.mxu0 0.0
        %4194 = vmatprep.subr.mxu0 0.0
        %4195 = vmatpush1.xpose.msra.mxu0 0.0
        %4196 = vmatprep.subr.mxu0 0.0
        %4197 = vmatpush1.xpose.msra.mxu0 0.0
        %4198 = vmatprep.subr.mxu0 0.0
        %4199 = vmatpush1.xpose.msra.mxu0 0.0
        %4200 = vmatprep.subr.mxu0 0.0
        %4201 = vmatpush1.xpose.msra.mxu0 0.0
        %4202 = vmatprep.subr.mxu0 0.0
        %4203 = vmatpush1.xpose.msra.mxu0 0.0
        %4204 = vmatprep.subr.mxu0 0.0
        %4205 = vmatpush1.xpose.msra.mxu0 0.0
        %4206 = vmatprep.subr.mxu0 0.0
        %4207 = vmatpush1.xpose.msra.mxu0 0.0
        %4208 = vmatprep.subr.mxu0 0.0
        %v4209 = vand.u32 %v3802, 4294901760
        %4210 = vmatpush1.xpose.msra.mxu0 %v4209
        %4211 = vmatprep.subr.mxu0 0.0
        %4212 = vmatpush2.xpose.msra.mxu0 0.0
        %4213 = vmatprep.subr.mxu0 0.0
        %4214 = vmatpush2.xpose.msra.mxu0 0.0
        %4215 = vmatprep.subr.mxu0 0.0
        %4216 = vmatpush2.xpose.msra.mxu0 0.0
        %4217 = vmatprep.subr.mxu0 0.0
        %4218 = vmatpush2.xpose.msra.mxu0 0.0
        %4219 = vmatprep.subr.mxu0 0.0
        %4220 = vmatpush2.xpose.msra.mxu0 0.0
        %4221 = vmatprep.subr.mxu0 0.0
        %4222 = vmatpush2.xpose.msra.mxu0 0.0
        %4223 = vmatprep.subr.mxu0 0.0
        %4224 = vmatpush2.xpose.msra.mxu0 0.0
        %4225 = vmatprep.subr.mxu0 0.0
        %4226 = vmatpush2.xpose.msra.mxu0 0.0
        %4227 = vmatprep.subr.mxu0 0.0
        %4228 = vmatpush2.xpose.msra.mxu0 0.0
        %4229 = vmatprep.subr.mxu0 0.0
        %4230 = vmatpush2.xpose.msra.mxu0 0.0
        %4231 = vmatprep.subr.mxu0 0.0
        %4232 = vmatpush2.xpose.msra.mxu0 0.0
        %4233 = vmatprep.subr.mxu0 0.0
        %4234 = vmatpush2.xpose.msra.mxu0 0.0
        %4235 = vmatprep.subr.mxu0 0.0
        %4236 = vmatpush2.xpose.msra.mxu0 0.0
        %4237 = vmatprep.subr.mxu0 0.0
        %4238 = vmatpush2.xpose.msra.mxu0 0.0
        %4239 = vmatprep.subr.mxu0 0.0
        %4240 = vmatpush2.xpose.msra.mxu0 0.0
        %4241 = vmatprep.subr.mxu0 0.0
        %4242 = vmatpush2.xpose.msra.mxu0 0.0
        %4243 = vmatprep.mubr.f32.mxu0 0.0
        %v4244 = vand.u32 %v3800, 4294901760
        %4245 = vmatmul.mubr.f32.gmra.mxu0 %v4244
        %v4246 = vpop.f32.mrf.mxu0
        %v4247 = vadd.f32 %v4175, %v4246
        %v4248 = vpop.f32.mrf.mxu0
        %4249 = vdwg.mxu0
        %v4250 = vmul.f32 %v4247, 0.35355338
        %v4251 = vsel %vm1488, -1e+30, %v4250
        %v4252 = vsel %vm1036, %v4251, -inf
        %4253 = vmax.xlane.f32.xlu0 %v4252
        %v4254 = vpop.xlane.xlu0 %4253
        %v4255 = vsub.f32 %v4251, %v4254
        %v4256 = vmul.f32 %v4255, 1.442695
        %v4257 = vpow.pop %v4256
        %v4258 = vsel %vm1036, %v4257, 0.0
        %4259 = vadd.xlane.f32.xlu0 %v4258
        %v4260 = vpop.xlane.xlu0 %4259
        %v4261 = vrcp.pop %v4260
        %v4262 = vmul.f32 %v4257, %v4261
        %s4263 = scalar_lea.vmem %s496, 24 [#allocation4]
        %4264 = vst.msk [vmem:[%s4263] sm:$0xff] %vm1036, %v4262
        %4265 = vrot.lane.b32.xlu0 %v1030, 40
        %v4266 = vpop.permute.xlu0 %4265
        %v4269 = vsel %vm1036, %v4262, 0
        %4271 = vmatprep.subr.mxu0 0.0
        %4272 = vmatpush1.msra.mxu0 0.0
        %4273 = vmatprep.subr.mxu0 0.0
        %4274 = vmatpush1.msra.mxu0 0.0
        %4275 = vmatprep.subr.mxu0 0.0
        %4276 = vmatpush1.msra.mxu0 0.0
        %4277 = vmatprep.subr.mxu0 0.0
        %4278 = vmatpush1.msra.mxu0 0.0
        %4279 = vmatprep.subr.mxu0 0.0
        %4280 = vmatpush1.msra.mxu0 0.0
        %4281 = vmatprep.subr.mxu0 0.0
        %4282 = vmatpush1.msra.mxu0 0.0
        %4283 = vmatprep.subr.mxu0 0.0
        %4284 = vmatpush1.msra.mxu0 0.0
        %4285 = vmatprep.subr.mxu0 0.0
        %4286 = vmatpush1.msra.mxu0 0.0
        %4287 = vmatprep.subr.mxu0 0.0
        %4288 = vmatpush1.msra.mxu0 0.0
        %4289 = vmatprep.subr.mxu0 0.0
        %4290 = vmatpush1.msra.mxu0 0.0
        %4291 = vmatprep.subr.mxu0 0.0
        %4292 = vmatpush1.msra.mxu0 0.0
        %4293 = vmatprep.subr.mxu0 0.0
        %4294 = vmatpush1.msra.mxu0 0.0
        %4295 = vmatprep.subr.mxu0 0.0
        %4296 = vmatpush1.msra.mxu0 0.0
        %4297 = vmatprep.subr.mxu0 0.0
        %4298 = vmatpush1.msra.mxu0 0.0
        %4299 = vmatprep.subr.mxu0 0.0
        %4300 = vmatpush1.msra.mxu0 0.0
        %4301 = vmatprep.subr.mxu0 0.0
        %v4302 = vand.u32 %v4266, 4294901760
        %4303 = vmatpush1.msra.mxu0 %v4302
        %4304 = vmatprep.subr.mxu0 0.0
        %4305 = vmatpush2.msra.mxu0 0.0
        %4306 = vmatprep.subr.mxu0 0.0
        %4307 = vmatpush2.msra.mxu0 0.0
        %4308 = vmatprep.subr.mxu0 0.0
        %4309 = vmatpush2.msra.mxu0 0.0
        %4310 = vmatprep.subr.mxu0 0.0
        %4311 = vmatpush2.msra.mxu0 0.0
        %4312 = vmatprep.subr.mxu0 0.0
        %4313 = vmatpush2.msra.mxu0 0.0
        %4314 = vmatprep.subr.mxu0 0.0
        %4315 = vmatpush2.msra.mxu0 0.0
        %4316 = vmatprep.subr.mxu0 0.0
        %4317 = vmatpush2.msra.mxu0 0.0
        %4318 = vmatprep.subr.mxu0 0.0
        %4319 = vmatpush2.msra.mxu0 0.0
        %4320 = vmatprep.subr.mxu0 0.0
        %4321 = vmatpush2.msra.mxu0 0.0
        %4322 = vmatprep.subr.mxu0 0.0
        %4323 = vmatpush2.msra.mxu0 0.0
        %4324 = vmatprep.subr.mxu0 0.0
        %4325 = vmatpush2.msra.mxu0 0.0
        %4326 = vmatprep.subr.mxu0 0.0
        %4327 = vmatpush2.msra.mxu0 0.0
        %4328 = vmatprep.subr.mxu0 0.0
        %4329 = vmatpush2.msra.mxu0 0.0
        %4330 = vmatprep.subr.mxu0 0.0
        %4331 = vmatpush2.msra.mxu0 0.0
        %4332 = vmatprep.subr.mxu0 0.0
        %4333 = vmatpush2.msra.mxu0 0.0
        %4334 = vmatprep.subr.mxu0 0.0
        %4335 = vmatpush2.msra.mxu0 0.0
        %4336 = vmatprep.mubr.f32.mxu0 0.0
        %v4337 = vand.u32 %v4269, 4294901760
        %v4338 = vsub.f32 %v4269, %v4337
        %v4339 = vand.u32 %v4338, 4294901760
        %v4340 = vsub.f32 %v4338, %v4339
        %v4341 = vand.u32 %v4340, 4294901760
        %4342 = vmatmul.mubr.f32.gmra.mxu0 %v4341
        %v4343 = vpop.f32.mrf.mxu0
        %v4344 = vadd.f32 0.0, %v4343
        %v4345 = vpop.f32.mrf.mxu0
        %4346 = vdwg.mxu0
        %4347 = vmatprep.subr.mxu0 0.0
        %4348 = vmatpush1.msra.mxu0 0.0
        %4349 = vmatprep.subr.mxu0 0.0
        %4350 = vmatpush1.msra.mxu0 0.0
        %4351 = vmatprep.subr.mxu0 0.0
        %4352 = vmatpush1.msra.mxu0 0.0
        %4353 = vmatprep.subr.mxu0 0.0
        %4354 = vmatpush1.msra.mxu0 0.0
        %4355 = vmatprep.subr.mxu0 0.0
        %4356 = vmatpush1.msra.mxu0 0.0
        %4357 = vmatprep.subr.mxu0 0.0
        %4358 = vmatpush1.msra.mxu0 0.0
        %4359 = vmatprep.subr.mxu0 0.0
        %4360 = vmatpush1.msra.mxu0 0.0
        %4361 = vmatprep.subr.mxu0 0.0
        %4362 = vmatpush1.msra.mxu0 0.0
        %4363 = vmatprep.subr.mxu0 0.0
        %4364 = vmatpush1.msra.mxu0 0.0
        %4365 = vmatprep.subr.mxu0 0.0
        %4366 = vmatpush1.msra.mxu0 0.0
        %4367 = vmatprep.subr.mxu0 0.0
        %4368 = vmatpush1.msra.mxu0 0.0
        %4369 = vmatprep.subr.mxu0 0.0
        %4370 = vmatpush1.msra.mxu0 0.0
        %4371 = vmatprep.subr.mxu0 0.0
        %4372 = vmatpush1.msra.mxu0 0.0
        %4373 = vmatprep.subr.mxu0 0.0
        %4374 = vmatpush1.msra.mxu0 0.0
        %4375 = vmatprep.subr.mxu0 0.0
        %4376 = vmatpush1.msra.mxu0 0.0
        %4377 = vmatprep.subr.mxu0 0.0
        %v4378 = vand.u32 %v4266, 4294901760
        %v4379 = vsub.f32 %v4266, %v4378
        %v4380 = vand.u32 %v4379, 4294901760
        %v4381 = vsub.f32 %v4379, %v4380
        %v4382 = vand.u32 %v4381, 4294901760
        %4383 = vmatpush1.msra.mxu0 %v4382
        %4384 = vmatprep.subr.mxu0 0.0
        %4385 = vmatpush2.msra.mxu0 0.0
        %4386 = vmatprep.subr.mxu0 0.0
        %4387 = vmatpush2.msra.mxu0 0.0
        %4388 = vmatprep.subr.mxu0 0.0
        %4389 = vmatpush2.msra.mxu0 0.0
        %4390 = vmatprep.subr.mxu0 0.0
        %4391 = vmatpush2.msra.mxu0 0.0
        %4392 = vmatprep.subr.mxu0 0.0
        %4393 = vmatpush2.msra.mxu0 0.0
        %4394 = vmatprep.subr.mxu0 0.0
        %4395 = vmatpush2.msra.mxu0 0.0
        %4396 = vmatprep.subr.mxu0 0.0
        %4397 = vmatpush2.msra.mxu0 0.0
        %4398 = vmatprep.subr.mxu0 0.0
        %4399 = vmatpush2.msra.mxu0 0.0
        %4400 = vmatprep.subr.mxu0 0.0
        %4401 = vmatpush2.msra.mxu0 0.0
        %4402 = vmatprep.subr.mxu0 0.0
        %4403 = vmatpush2.msra.mxu0 0.0
        %4404 = vmatprep.subr.mxu0 0.0
        %4405 = vmatpush2.msra.mxu0 0.0
        %4406 = vmatprep.subr.mxu0 0.0
        %4407 = vmatpush2.msra.mxu0 0.0
        %4408 = vmatprep.subr.mxu0 0.0
        %4409 = vmatpush2.msra.mxu0 0.0
        %4410 = vmatprep.subr.mxu0 0.0
        %4411 = vmatpush2.msra.mxu0 0.0
        %4412 = vmatprep.subr.mxu0 0.0
        %4413 = vmatpush2.msra.mxu0 0.0
        %4414 = vmatprep.subr.mxu0 0.0
        %4415 = vmatpush2.msra.mxu0 0.0
        %4416 = vmatprep.mubr.f32.mxu0 0.0
        %v4417 = vand.u32 %v4269, 4294901760
        %4418 = vmatmul.mubr.f32.gmra.mxu0 %v4417
        %v4419 = vpop.f32.mrf.mxu0
        %v4420 = vadd.f32 %v4344, %v4419
        %v4421 = vpop.f32.mrf.mxu0
        %4422 = vdwg.mxu0
        %4423 = vmatprep.subr.mxu0 0.0
        %4424 = vmatpush1.msra.mxu0 0.0
        %4425 = vmatprep.subr.mxu0 0.0
        %4426 = vmatpush1.msra.mxu0 0.0
        %4427 = vmatprep.subr.mxu0 0.0
        %4428 = vmatpush1.msra.mxu0 0.0
        %4429 = vmatprep.subr.mxu0 0.0
        %4430 = vmatpush1.msra.mxu0 0.0
        %4431 = vmatprep.subr.mxu0 0.0
        %4432 = vmatpush1.msra.mxu0 0.0
        %4433 = vmatprep.subr.mxu0 0.0
        %4434 = vmatpush1.msra.mxu0 0.0
        %4435 = vmatprep.subr.mxu0 0.0
        %4436 = vmatpush1.msra.mxu0 0.0
        %4437 = vmatprep.subr.mxu0 0.0
        %4438 = vmatpush1.msra.mxu0 0.0
        %4439 = vmatprep.subr.mxu0 0.0
        %4440 = vmatpush1.msra.mxu0 0.0
        %4441 = vmatprep.subr.mxu0 0.0
        %4442 = vmatpush1.msra.mxu0 0.0
        %4443 = vmatprep.subr.mxu0 0.0
        %4444 = vmatpush1.msra.mxu0 0.0
        %4445 = vmatprep.subr.mxu0 0.0
        %4446 = vmatpush1.msra.mxu0 0.0
        %4447 = vmatprep.subr.mxu0 0.0
        %4448 = vmatpush1.msra.mxu0 0.0
        %4449 = vmatprep.subr.mxu0 0.0
        %4450 = vmatpush1.msra.mxu0 0.0
        %4451 = vmatprep.subr.mxu0 0.0
        %4452 = vmatpush1.msra.mxu0 0.0
        %4453 = vmatprep.subr.mxu0 0.0
        %v4454 = vand.u32 %v4266, 4294901760
        %v4455 = vsub.f32 %v4266, %v4454
        %4456 = vmatpush1.msra.mxu0 %v4455
        %4457 = vmatprep.subr.mxu0 0.0
        %4458 = vmatpush2.msra.mxu0 0.0
        %4459 = vmatprep.subr.mxu0 0.0
        %4460 = vmatpush2.msra.mxu0 0.0
        %4461 = vmatprep.subr.mxu0 0.0
        %4462 = vmatpush2.msra.mxu0 0.0
        %4463 = vmatprep.subr.mxu0 0.0
        %4464 = vmatpush2.msra.mxu0 0.0
        %4465 = vmatprep.subr.mxu0 0.0
        %4466 = vmatpush2.msra.mxu0 0.0
        %4467 = vmatprep.subr.mxu0 0.0
        %4468 = vmatpush2.msra.mxu0 0.0
        %4469 = vmatprep.subr.mxu0 0.0
        %4470 = vmatpush2.msra.mxu0 0.0
        %4471 = vmatprep.subr.mxu0 0.0
        %4472 = vmatpush2.msra.mxu0 0.0
        %4473 = vmatprep.subr.mxu0 0.0
        %4474 = vmatpush2.msra.mxu0 0.0
        %4475 = vmatprep.subr.mxu0 0.0
        %4476 = vmatpush2.msra.mxu0 0.0
        %4477 = vmatprep.subr.mxu0 0.0
        %4478 = vmatpush2.msra.mxu0 0.0
        %4479 = vmatprep.subr.mxu0 0.0
        %4480 = vmatpush2.msra.mxu0 0.0
        %4481 = vmatprep.subr.mxu0 0.0
        %4482 = vmatpush2.msra.mxu0 0.0
        %4483 = vmatprep.subr.mxu0 0.0
        %4484 = vmatpush2.msra.mxu0 0.0
        %4485 = vmatprep.subr.mxu0 0.0
        %4486 = vmatpush2.msra.mxu0 0.0
        %4487 = vmatprep.subr.mxu0 0.0
        %4488 = vmatpush2.msra.mxu0 0.0
        %4489 = vmatprep.mubr.f32.mxu0 0.0
        %v4490 = vand.u32 %v4269, 4294901760
        %v4491 = vsub.f32 %v4269, %v4490
        %4492 = vmatmul.mubr.f32.gmra.mxu0 %v4491
        %v4493 = vpop.f32.mrf.mxu0
        %v4494 = vadd.f32 %v4420, %v4493
        %v4495 = vpop.f32.mrf.mxu0
        %4496 = vdwg.mxu0
        %4497 = vmatprep.subr.mxu0 0.0
        %4498 = vmatpush1.msra.mxu0 0.0
        %4499 = vmatprep.subr.mxu0 0.0
        %4500 = vmatpush1.msra.mxu0 0.0
        %4501 = vmatprep.subr.mxu0 0.0
        %4502 = vmatpush1.msra.mxu0 0.0
        %4503 = vmatprep.subr.mxu0 0.0
        %4504 = vmatpush1.msra.mxu0 0.0
        %4505 = vmatprep.subr.mxu0 0.0
        %4506 = vmatpush1.msra.mxu0 0.0
        %4507 = vmatprep.subr.mxu0 0.0
        %4508 = vmatpush1.msra.mxu0 0.0
        %4509 = vmatprep.subr.mxu0 0.0
        %4510 = vmatpush1.msra.mxu0 0.0
        %4511 = vmatprep.subr.mxu0 0.0
        %4512 = vmatpush1.msra.mxu0 0.0
        %4513 = vmatprep.subr.mxu0 0.0
        %4514 = vmatpush1.msra.mxu0 0.0
        %4515 = vmatprep.subr.mxu0 0.0
        %4516 = vmatpush1.msra.mxu0 0.0
        %4517 = vmatprep.subr.mxu0 0.0
        %4518 = vmatpush1.msra.mxu0 0.0
        %4519 = vmatprep.subr.mxu0 0.0
        %4520 = vmatpush1.msra.mxu0 0.0
        %4521 = vmatprep.subr.mxu0 0.0
        %4522 = vmatpush1.msra.mxu0 0.0
        %4523 = vmatprep.subr.mxu0 0.0
        %4524 = vmatpush1.msra.mxu0 0.0
        %4525 = vmatprep.subr.mxu0 0.0
        %4526 = vmatpush1.msra.mxu0 0.0
        %4527 = vmatprep.subr.mxu0 0.0
        %v4528 = vand.u32 %v4266, 4294901760
        %4529 = vmatpush1.msra.mxu0 %v4528
        %4530 = vmatprep.subr.mxu0 0.0
        %4531 = vmatpush2.msra.mxu0 0.0
        %4532 = vmatprep.subr.mxu0 0.0
        %4533 = vmatpush2.msra.mxu0 0.0
        %4534 = vmatprep.subr.mxu0 0.0
        %4535 = vmatpush2.msra.mxu0 0.0
        %4536 = vmatprep.subr.mxu0 0.0
        %4537 = vmatpush2.msra.mxu0 0.0
        %4538 = vmatprep.subr.mxu0 0.0
        %4539 = vmatpush2.msra.mxu0 0.0
        %4540 = vmatprep.subr.mxu0 0.0
        %4541 = vmatpush2.msra.mxu0 0.0
        %4542 = vmatprep.subr.mxu0 0.0
        %4543 = vmatpush2.msra.mxu0 0.0
        %4544 = vmatprep.subr.mxu0 0.0
        %4545 = vmatpush2.msra.mxu0 0.0
        %4546 = vmatprep.subr.mxu0 0.0
        %4547 = vmatpush2.msra.mxu0 0.0
        %4548 = vmatprep.subr.mxu0 0.0
        %4549 = vmatpush2.msra.mxu0 0.0
        %4550 = vmatprep.subr.mxu0 0.0
        %4551 = vmatpush2.msra.mxu0 0.0
        %4552 = vmatprep.subr.mxu0 0.0
        %4553 = vmatpush2.msra.mxu0 0.0
        %4554 = vmatprep.subr.mxu0 0.0
        %4555 = vmatpush2.msra.mxu0 0.0
        %4556 = vmatprep.subr.mxu0 0.0
        %4557 = vmatpush2.msra.mxu0 0.0
        %4558 = vmatprep.subr.mxu0 0.0
        %4559 = vmatpush2.msra.mxu0 0.0
        %4560 = vmatprep.subr.mxu0 0.0
        %4561 = vmatpush2.msra.mxu0 0.0
        %4562 = vmatprep.mubr.f32.mxu0 0.0
        %v4563 = vand.u32 %v4269, 4294901760
        %v4564 = vsub.f32 %v4269, %v4563
        %v4565 = vand.u32 %v4564, 4294901760
        %4566 = vmatmul.mubr.f32.gmra.mxu0 %v4565
        %v4567 = vpop.f32.mrf.mxu0
        %v4568 = vadd.f32 %v4494, %v4567
        %v4569 = vpop.f32.mrf.mxu0
        %4570 = vdwg.mxu0
        %4571 = vmatprep.subr.mxu0 0.0
        %4572 = vmatpush1.msra.mxu0 0.0
        %4573 = vmatprep.subr.mxu0 0.0
        %4574 = vmatpush1.msra.mxu0 0.0
        %4575 = vmatprep.subr.mxu0 0.0
        %4576 = vmatpush1.msra.mxu0 0.0
        %4577 = vmatprep.subr.mxu0 0.0
        %4578 = vmatpush1.msra.mxu0 0.0
        %4579 = vmatprep.subr.mxu0 0.0
        %4580 = vmatpush1.msra.mxu0 0.0
        %4581 = vmatprep.subr.mxu0 0.0
        %4582 = vmatpush1.msra.mxu0 0.0
        %4583 = vmatprep.subr.mxu0 0.0
        %4584 = vmatpush1.msra.mxu0 0.0
        %4585 = vmatprep.subr.mxu0 0.0
        %4586 = vmatpush1.msra.mxu0 0.0
        %4587 = vmatprep.subr.mxu0 0.0
        %4588 = vmatpush1.msra.mxu0 0.0
        %4589 = vmatprep.subr.mxu0 0.0
        %4590 = vmatpush1.msra.mxu0 0.0
        %4591 = vmatprep.subr.mxu0 0.0
        %4592 = vmatpush1.msra.mxu0 0.0
        %4593 = vmatprep.subr.mxu0 0.0
        %4594 = vmatpush1.msra.mxu0 0.0
        %4595 = vmatprep.subr.mxu0 0.0
        %4596 = vmatpush1.msra.mxu0 0.0
        %4597 = vmatprep.subr.mxu0 0.0
        %4598 = vmatpush1.msra.mxu0 0.0
        %4599 = vmatprep.subr.mxu0 0.0
        %4600 = vmatpush1.msra.mxu0 0.0
        %4601 = vmatprep.subr.mxu0 0.0
        %v4602 = vand.u32 %v4266, 4294901760
        %v4603 = vsub.f32 %v4266, %v4602
        %v4604 = vand.u32 %v4603, 4294901760
        %4605 = vmatpush1.msra.mxu0 %v4604
        %4606 = vmatprep.subr.mxu0 0.0
        %4607 = vmatpush2.msra.mxu0 0.0
        %4608 = vmatprep.subr.mxu0 0.0
        %4609 = vmatpush2.msra.mxu0 0.0
        %4610 = vmatprep.subr.mxu0 0.0
        %4611 = vmatpush2.msra.mxu0 0.0
        %4612 = vmatprep.subr.mxu0 0.0
        %4613 = vmatpush2.msra.mxu0 0.0
        %4614 = vmatprep.subr.mxu0 0.0
        %4615 = vmatpush2.msra.mxu0 0.0
        %4616 = vmatprep.subr.mxu0 0.0
        %4617 = vmatpush2.msra.mxu0 0.0
        %4618 = vmatprep.subr.mxu0 0.0
        %4619 = vmatpush2.msra.mxu0 0.0
        %4620 = vmatprep.subr.mxu0 0.0
        %4621 = vmatpush2.msra.mxu0 0.0
        %4622 = vmatprep.subr.mxu0 0.0
        %4623 = vmatpush2.msra.mxu0 0.0
        %4624 = vmatprep.subr.mxu0 0.0
        %4625 = vmatpush2.msra.mxu0 0.0
        %4626 = vmatprep.subr.mxu0 0.0
        %4627 = vmatpush2.msra.mxu0 0.0
        %4628 = vmatprep.subr.mxu0 0.0
        %4629 = vmatpush2.msra.mxu0 0.0
        %4630 = vmatprep.subr.mxu0 0.0
        %4631 = vmatpush2.msra.mxu0 0.0
        %4632 = vmatprep.subr.mxu0 0.0
        %4633 = vmatpush2.msra.mxu0 0.0
        %4634 = vmatprep.subr.mxu0 0.0
        %4635 = vmatpush2.msra.mxu0 0.0
        %4636 = vmatprep.subr.mxu0 0.0
        %4637 = vmatpush2.msra.mxu0 0.0
        %4638 = vmatprep.mubr.f32.mxu0 0.0
        %v4639 = vand.u32 %v4269, 4294901760
        %4640 = vmatmul.mubr.f32.gmra.mxu0 %v4639
        %v4641 = vpop.f32.mrf.mxu0
        %v4642 = vadd.f32 %v4568, %v4641
        %v4643 = vpop.f32.mrf.mxu0
        %4644 = vdwg.mxu0
        %4645 = vmatprep.subr.mxu0 0.0
        %4646 = vmatpush1.msra.mxu0 0.0
        %4647 = vmatprep.subr.mxu0 0.0
        %4648 = vmatpush1.msra.mxu0 0.0
        %4649 = vmatprep.subr.mxu0 0.0
        %4650 = vmatpush1.msra.mxu0 0.0
        %4651 = vmatprep.subr.mxu0 0.0
        %4652 = vmatpush1.msra.mxu0 0.0
        %4653 = vmatprep.subr.mxu0 0.0
        %4654 = vmatpush1.msra.mxu0 0.0
        %4655 = vmatprep.subr.mxu0 0.0
        %4656 = vmatpush1.msra.mxu0 0.0
        %4657 = vmatprep.subr.mxu0 0.0
        %4658 = vmatpush1.msra.mxu0 0.0
        %4659 = vmatprep.subr.mxu0 0.0
        %4660 = vmatpush1.msra.mxu0 0.0
        %4661 = vmatprep.subr.mxu0 0.0
        %4662 = vmatpush1.msra.mxu0 0.0
        %4663 = vmatprep.subr.mxu0 0.0
        %4664 = vmatpush1.msra.mxu0 0.0
        %4665 = vmatprep.subr.mxu0 0.0
        %4666 = vmatpush1.msra.mxu0 0.0
        %4667 = vmatprep.subr.mxu0 0.0
        %4668 = vmatpush1.msra.mxu0 0.0
        %4669 = vmatprep.subr.mxu0 0.0
        %4670 = vmatpush1.msra.mxu0 0.0
        %4671 = vmatprep.subr.mxu0 0.0
        %4672 = vmatpush1.msra.mxu0 0.0
        %4673 = vmatprep.subr.mxu0 0.0
        %4674 = vmatpush1.msra.mxu0 0.0
        %4675 = vmatprep.subr.mxu0 0.0
        %v4676 = vand.u32 %v4266, 4294901760
        %4677 = vmatpush1.msra.mxu0 %v4676
        %4678 = vmatprep.subr.mxu0 0.0
        %4679 = vmatpush2.msra.mxu0 0.0
        %4680 = vmatprep.subr.mxu0 0.0
        %4681 = vmatpush2.msra.mxu0 0.0
        %4682 = vmatprep.subr.mxu0 0.0
        %4683 = vmatpush2.msra.mxu0 0.0
        %4684 = vmatprep.subr.mxu0 0.0
        %4685 = vmatpush2.msra.mxu0 0.0
        %4686 = vmatprep.subr.mxu0 0.0
        %4687 = vmatpush2.msra.mxu0 0.0
        %4688 = vmatprep.subr.mxu0 0.0
        %4689 = vmatpush2.msra.mxu0 0.0
        %4690 = vmatprep.subr.mxu0 0.0
        %4691 = vmatpush2.msra.mxu0 0.0
        %4692 = vmatprep.subr.mxu0 0.0
        %4693 = vmatpush2.msra.mxu0 0.0
        %4694 = vmatprep.subr.mxu0 0.0
        %4695 = vmatpush2.msra.mxu0 0.0
        %4696 = vmatprep.subr.mxu0 0.0
        %4697 = vmatpush2.msra.mxu0 0.0
        %4698 = vmatprep.subr.mxu0 0.0
        %4699 = vmatpush2.msra.mxu0 0.0
        %4700 = vmatprep.subr.mxu0 0.0
        %4701 = vmatpush2.msra.mxu0 0.0
        %4702 = vmatprep.subr.mxu0 0.0
        %4703 = vmatpush2.msra.mxu0 0.0
        %4704 = vmatprep.subr.mxu0 0.0
        %4705 = vmatpush2.msra.mxu0 0.0
        %4706 = vmatprep.subr.mxu0 0.0
        %4707 = vmatpush2.msra.mxu0 0.0
        %4708 = vmatprep.subr.mxu0 0.0
        %4709 = vmatpush2.msra.mxu0 0.0
        %4710 = vmatprep.mubr.f32.mxu0 0.0
        %v4711 = vand.u32 %v4269, 4294901760
        %4712 = vmatmul.mubr.f32.gmra.mxu0 %v4711
        %v4713 = vpop.f32.mrf.mxu0
        %v4714 = vadd.f32 %v4642, %v4713
        %v4715 = vpop.f32.mrf.mxu0
        %4716 = vdwg.mxu0
        %4718 = vrot.lane.b32.xlu0 %v2872, 8
        %v4719 = vpop.permute.xlu0 %4718
        %4722 = vrot.lane.b32.xlu0 %v3793, 16
        %v4723 = vpop.permute.xlu0 %4722
        %4726 = vrot.lane.b32.xlu0 %v4714, 24
        %v4727 = vpop.permute.xlu0 %4726
        %v4729 = vsel %vm1036, %v1951, %v4719
        %vm4730 = vcmask 130048
        %v4731 = vsel %vm4730, %v4729, %v4723
        %vm4732 = vcmask 195584
        %v4733 = vsel %vm4732, %v4731, %v4727
        %v4734 = vld [vmem:[%s6] sm:$0xff]
        %v4735 = vld [vmem:[%s6 + $0x8] sm:$0xff]
        %v4736 = vld [vmem:[%s6 + $0x10] sm:$0xff]
        %v4737 = vld [vmem:[%s6 + $0x18] sm:$0xff]
        %v4738 = vld [vmem:[%s7] sm:$0x1]
        %v4740 = vlaneseq
        %v4741 = vshrl.u32 %v4740, 7
        %v4742 = vsub.s32 0, %v4741
        %v4743 = vrot.slane %v4738, %v4742
        %v4746 = vsel %vm505, %v4733, 0
        %4748 = vmatprep.subr.mxu0 0.0
        %4749 = vmatpush1.msra.mxu0 0.0
        %4750 = vmatprep.subr.mxu0 0.0
        %4751 = vmatpush1.msra.mxu0 0.0
        %4752 = vmatprep.subr.mxu0 0.0
        %4753 = vmatpush1.msra.mxu0 0.0
        %4754 = vmatprep.subr.mxu0 0.0
        %4755 = vmatpush1.msra.mxu0 0.0
        %4756 = vmatprep.subr.mxu0 0.0
        %4757 = vmatpush1.msra.mxu0 0.0
        %4758 = vmatprep.subr.mxu0 0.0
        %4759 = vmatpush1.msra.mxu0 0.0
        %4760 = vmatprep.subr.mxu0 0.0
        %4761 = vmatpush1.msra.mxu0 0.0
        %4762 = vmatprep.subr.mxu0 0.0
        %4763 = vmatpush1.msra.mxu0 0.0
        %4764 = vmatprep.subr.mxu0 0.0
        %4765 = vmatpush1.msra.mxu0 0.0
        %4766 = vmatprep.subr.mxu0 0.0
        %4767 = vmatpush1.msra.mxu0 0.0
        %4768 = vmatprep.subr.mxu0 0.0
        %4769 = vmatpush1.msra.mxu0 0.0
        %4770 = vmatprep.subr.mxu0 0.0
        %4771 = vmatpush1.msra.mxu0 0.0
        %4772 = vmatprep.subr.mxu0 0.0
        %v4773 = vand.u32 %v4737, 4294901760
        %4774 = vmatpush1.msra.mxu0 %v4773
        %4775 = vmatprep.subr.mxu0 0.0
        %v4776 = vand.u32 %v4736, 4294901760
        %4777 = vmatpush1.msra.mxu0 %v4776
        %4778 = vmatprep.subr.mxu0 0.0
        %v4779 = vand.u32 %v4735, 4294901760
        %4780 = vmatpush1.msra.mxu0 %v4779
        %4781 = vmatprep.subr.mxu0 0.0
        %v4782 = vand.u32 %v4734, 4294901760
        %4783 = vmatpush1.msra.mxu0 %v4782
        %4784 = vmatprep.subr.mxu0 0.0
        %4785 = vmatpush2.msra.mxu0 0.0
        %4786 = vmatprep.subr.mxu0 0.0
        %4787 = vmatpush2.msra.mxu0 0.0
        %4788 = vmatprep.subr.mxu0 0.0
        %4789 = vmatpush2.msra.mxu0 0.0
        %4790 = vmatprep.subr.mxu0 0.0
        %4791 = vmatpush2.msra.mxu0 0.0
        %4792 = vmatprep.subr.mxu0 0.0
        %4793 = vmatpush2.msra.mxu0 0.0
        %4794 = vmatprep.subr.mxu0 0.0
        %4795 = vmatpush2.msra.mxu0 0.0
        %4796 = vmatprep.subr.mxu0 0.0
        %4797 = vmatpush2.msra.mxu0 0.0
        %4798 = vmatprep.subr.mxu0 0.0
        %4799 = vmatpush2.msra.mxu0 0.0
        %4800 = vmatprep.subr.mxu0 0.0
        %4801 = vmatpush2.msra.mxu0 0.0
        %4802 = vmatprep.subr.mxu0 0.0
        %4803 = vmatpush2.msra.mxu0 0.0
        %4804 = vmatprep.subr.mxu0 0.0
        %4805 = vmatpush2.msra.mxu0 0.0
        %4806 = vmatprep.subr.mxu0 0.0
        %4807 = vmatpush2.msra.mxu0 0.0
        %4808 = vmatprep.subr.mxu0 0.0
        %4809 = vmatpush2.msra.mxu0 0.0
        %4810 = vmatprep.subr.mxu0 0.0
        %4811 = vmatpush2.msra.mxu0 0.0
        %4812 = vmatprep.subr.mxu0 0.0
        %4813 = vmatpush2.msra.mxu0 0.0
        %4814 = vmatprep.subr.mxu0 0.0
        %4815 = vmatpush2.msra.mxu0 0.0
        %4816 = vmatprep.mubr.f32.mxu0 0.0
        %v4817 = vand.u32 %v4746, 4294901760
        %v4818 = vsub.f32 %v4746, %v4817
        %v4819 = vand.u32 %v4818, 4294901760
        %v4820 = vsub.f32 %v4818, %v4819
        %v4821 = vand.u32 %v4820, 4294901760
        %4822 = vmatmul.mubr.f32.gmra.mxu0 %v4821
        %v4823 = vpop.f32.mrf.mxu0
        %v4824 = vadd.f32 %v4743, %v4823
        %v4825 = vpop.f32.mrf.mxu0
        %4826 = vdwg.mxu0
        %4827 = vmatprep.subr.mxu0 0.0
        %4828 = vmatpush1.msra.mxu0 0.0
        %4829 = vmatprep.subr.mxu0 0.0
        %4830 = vmatpush1.msra.mxu0 0.0
        %4831 = vmatprep.subr.mxu0 0.0
        %4832 = vmatpush1.msra.mxu0 0.0
        %4833 = vmatprep.subr.mxu0 0.0
        %4834 = vmatpush1.msra.mxu0 0.0
        %4835 = vmatprep.subr.mxu0 0.0
        %4836 = vmatpush1.msra.mxu0 0.0
        %4837 = vmatprep.subr.mxu0 0.0
        %4838 = vmatpush1.msra.mxu0 0.0
        %4839 = vmatprep.subr.mxu0 0.0
        %4840 = vmatpush1.msra.mxu0 0.0
        %4841 = vmatprep.subr.mxu0 0.0
        %4842 = vmatpush1.msra.mxu0 0.0
        %4843 = vmatprep.subr.mxu0 0.0
        %4844 = vmatpush1.msra.mxu0 0.0
        %4845 = vmatprep.subr.mxu0 0.0
        %4846 = vmatpush1.msra.mxu0 0.0
        %4847 = vmatprep.subr.mxu0 0.0
        %4848 = vmatpush1.msra.mxu0 0.0
        %4849 = vmatprep.subr.mxu0 0.0
        %4850 = vmatpush1.msra.mxu0 0.0
        %4851 = vmatprep.subr.mxu0 0.0
        %v4852 = vand.u32 %v4737, 4294901760
        %v4853 = vsub.f32 %v4737, %v4852
        %v4854 = vand.u32 %v4853, 4294901760
        %v4855 = vsub.f32 %v4853, %v4854
        %v4856 = vand.u32 %v4855, 4294901760
        %4857 = vmatpush1.msra.mxu0 %v4856
        %4858 = vmatprep.subr.mxu0 0.0
        %v4859 = vand.u32 %v4736, 4294901760
        %v4860 = vsub.f32 %v4736, %v4859
        %v4861 = vand.u32 %v4860, 4294901760
        %v4862 = vsub.f32 %v4860, %v4861
        %v4863 = vand.u32 %v4862, 4294901760
        %4864 = vmatpush1.msra.mxu0 %v4863
        %4865 = vmatprep.subr.mxu0 0.0
        %v4866 = vand.u32 %v4735, 4294901760
        %v4867 = vsub.f32 %v4735, %v4866
        %v4868 = vand.u32 %v4867, 4294901760
        %v4869 = vsub.f32 %v4867, %v4868
        %v4870 = vand.u32 %v4869, 4294901760
        %4871 = vmatpush1.msra.mxu0 %v4870
        %4872 = vmatprep.subr.mxu0 0.0
        %v4873 = vand.u32 %v4734, 4294901760
        %v4874 = vsub.f32 %v4734, %v4873
        %v4875 = vand.u32 %v4874, 4294901760
        %v4876 = vsub.f32 %v4874, %v4875
        %v4877 = vand.u32 %v4876, 4294901760
        %4878 = vmatpush1.msra.mxu0 %v4877
        %4879 = vmatprep.subr.mxu0 0.0
        %4880 = vmatpush2.msra.mxu0 0.0
        %4881 = vmatprep.subr.mxu0 0.0
        %4882 = vmatpush2.msra.mxu0 0.0
        %4883 = vmatprep.subr.mxu0 0.0
        %4884 = vmatpush2.msra.mxu0 0.0
        %4885 = vmatprep.subr.mxu0 0.0
        %4886 = vmatpush2.msra.mxu0 0.0
        %4887 = vmatprep.subr.mxu0 0.0
        %4888 = vmatpush2.msra.mxu0 0.0
        %4889 = vmatprep.subr.mxu0 0.0
        %4890 = vmatpush2.msra.mxu0 0.0
        %4891 = vmatprep.subr.mxu0 0.0
        %4892 = vmatpush2.msra.mxu0 0.0
        %4893 = vmatprep.subr.mxu0 0.0
        %4894 = vmatpush2.msra.mxu0 0.0
        %4895 = vmatprep.subr.mxu0 0.0
        %4896 = vmatpush2.msra.mxu0 0.0
        %4897 = vmatprep.subr.mxu0 0.0
        %4898 = vmatpush2.msra.mxu0 0.0
        %4899 = vmatprep.subr.mxu0 0.0
        %4900 = vmatpush2.msra.mxu0 0.0
        %4901 = vmatprep.subr.mxu0 0.0
        %4902 = vmatpush2.msra.mxu0 0.0
        %4903 = vmatprep.subr.mxu0 0.0
        %4904 = vmatpush2.msra.mxu0 0.0
        %4905 = vmatprep.subr.mxu0 0.0
        %4906 = vmatpush2.msra.mxu0 0.0
        %4907 = vmatprep.subr.mxu0 0.0
        %4908 = vmatpush2.msra.mxu0 0.0
        %4909 = vmatprep.subr.mxu0 0.0
        %4910 = vmatpush2.msra.mxu0 0.0
        %4911 = vmatprep.mubr.f32.mxu0 0.0
        %v4912 = vand.u32 %v4746, 4294901760
        %4913 = vmatmul.mubr.f32.gmra.mxu0 %v4912
        %v4914 = vpop.f32.mrf.mxu0
        %v4915 = vadd.f32 %v4824, %v4914
        %v4916 = vpop.f32.mrf.mxu0
        %4917 = vdwg.mxu0
        %4918 = vmatprep.subr.mxu0 0.0
        %4919 = vmatpush1.msra.mxu0 0.0
        %4920 = vmatprep.subr.mxu0 0.0
        %4921 = vmatpush1.msra.mxu0 0.0
        %4922 = vmatprep.subr.mxu0 0.0
        %4923 = vmatpush1.msra.mxu0 0.0
        %4924 = vmatprep.subr.mxu0 0.0
        %4925 = vmatpush1.msra.mxu0 0.0
        %4926 = vmatprep.subr.mxu0 0.0
        %4927 = vmatpush1.msra.mxu0 0.0
        %4928 = vmatprep.subr.mxu0 0.0
        %4929 = vmatpush1.msra.mxu0 0.0
        %4930 = vmatprep.subr.mxu0 0.0
        %4931 = vmatpush1.msra.mxu0 0.0
        %4932 = vmatprep.subr.mxu0 0.0
        %4933 = vmatpush1.msra.mxu0 0.0
        %4934 = vmatprep.subr.mxu0 0.0
        %4935 = vmatpush1.msra.mxu0 0.0
        %4936 = vmatprep.subr.mxu0 0.0
        %4937 = vmatpush1.msra.mxu0 0.0
        %4938 = vmatprep.subr.mxu0 0.0
        %4939 = vmatpush1.msra.mxu0 0.0
        %4940 = vmatprep.subr.mxu0 0.0
        %4941 = vmatpush1.msra.mxu0 0.0
        %4942 = vmatprep.subr.mxu0 0.0
        %v4943 = vand.u32 %v4737, 4294901760
        %v4944 = vsub.f32 %v4737, %v4943
        %4945 = vmatpush1.msra.mxu0 %v4944
        %4946 = vmatprep.subr.mxu0 0.0
        %v4947 = vand.u32 %v4736, 4294901760
        %v4948 = vsub.f32 %v4736, %v4947
        %4949 = vmatpush1.msra.mxu0 %v4948
        %4950 = vmatprep.subr.mxu0 0.0
        %v4951 = vand.u32 %v4735, 4294901760
        %v4952 = vsub.f32 %v4735, %v4951
        %4953 = vmatpush1.msra.mxu0 %v4952
        %4954 = vmatprep.subr.mxu0 0.0
        %v4955 = vand.u32 %v4734, 4294901760
        %v4956 = vsub.f32 %v4734, %v4955
        %4957 = vmatpush1.msra.mxu0 %v4956
        %4958 = vmatprep.subr.mxu0 0.0
        %4959 = vmatpush2.msra.mxu0 0.0
        %4960 = vmatprep.subr.mxu0 0.0
        %4961 = vmatpush2.msra.mxu0 0.0
        %4962 = vmatprep.subr.mxu0 0.0
        %4963 = vmatpush2.msra.mxu0 0.0
        %4964 = vmatprep.subr.mxu0 0.0
        %4965 = vmatpush2.msra.mxu0 0.0
        %4966 = vmatprep.subr.mxu0 0.0
        %4967 = vmatpush2.msra.mxu0 0.0
        %4968 = vmatprep.subr.mxu0 0.0
        %4969 = vmatpush2.msra.mxu0 0.0
        %4970 = vmatprep.subr.mxu0 0.0
        %4971 = vmatpush2.msra.mxu0 0.0
        %4972 = vmatprep.subr.mxu0 0.0
        %4973 = vmatpush2.msra.mxu0 0.0
        %4974 = vmatprep.subr.mxu0 0.0
        %4975 = vmatpush2.msra.mxu0 0.0
        %4976 = vmatprep.subr.mxu0 0.0
        %4977 = vmatpush2.msra.mxu0 0.0
        %4978 = vmatprep.subr.mxu0 0.0
        %4979 = vmatpush2.msra.mxu0 0.0
        %4980 = vmatprep.subr.mxu0 0.0
        %4981 = vmatpush2.msra.mxu0 0.0
        %4982 = vmatprep.subr.mxu0 0.0
        %4983 = vmatpush2.msra.mxu0 0.0
        %4984 = vmatprep.subr.mxu0 0.0
        %4985 = vmatpush2.msra.mxu0 0.0
        %4986 = vmatprep.subr.mxu0 0.0
        %4987 = vmatpush2.msra.mxu0 0.0
        %4988 = vmatprep.subr.mxu0 0.0
        %4989 = vmatpush2.msra.mxu0 0.0
        %4990 = vmatprep.mubr.f32.mxu0 0.0
        %v4991 = vand.u32 %v4746, 4294901760
        %v4992 = vsub.f32 %v4746, %v4991
        %4993 = vmatmul.mubr.f32.gmra.mxu0 %v4992
        %v4994 = vpop.f32.mrf.mxu0
        %v4995 = vadd.f32 %v4915, %v4994
        %v4996 = vpop.f32.mrf.mxu0
        %4997 = vdwg.mxu0
        %4998 = vmatprep.subr.mxu0 0.0
        %4999 = vmatpush1.msra.mxu0 0.0
        %5000 = vmatprep.subr.mxu0 0.0
        %5001 = vmatpush1.msra.mxu0 0.0
        %5002 = vmatprep.subr.mxu0 0.0
        %5003 = vmatpush1.msra.mxu0 0.0
        %5004 = vmatprep.subr.mxu0 0.0
        %5005 = vmatpush1.msra.mxu0 0.0
        %5006 = vmatprep.subr.mxu0 0.0
        %5007 = vmatpush1.msra.mxu0 0.0
        %5008 = vmatprep.subr.mxu0 0.0
        %5009 = vmatpush1.msra.mxu0 0.0
        %5010 = vmatprep.subr.mxu0 0.0
        %5011 = vmatpush1.msra.mxu0 0.0
        %5012 = vmatprep.subr.mxu0 0.0
        %5013 = vmatpush1.msra.mxu0 0.0
        %5014 = vmatprep.subr.mxu0 0.0
        %5015 = vmatpush1.msra.mxu0 0.0
        %5016 = vmatprep.subr.mxu0 0.0
        %5017 = vmatpush1.msra.mxu0 0.0
        %5018 = vmatprep.subr.mxu0 0.0
        %5019 = vmatpush1.msra.mxu0 0.0
        %5020 = vmatprep.subr.mxu0 0.0
        %5021 = vmatpush1.msra.mxu0 0.0
        %5022 = vmatprep.subr.mxu0 0.0
        %v5023 = vand.u32 %v4737, 4294901760
        %5024 = vmatpush1.msra.mxu0 %v5023
        %5025 = vmatprep.subr.mxu0 0.0
        %v5026 = vand.u32 %v4736, 4294901760
        %5027 = vmatpush1.msra.mxu0 %v5026
        %5028 = vmatprep.subr.mxu0 0.0
        %v5029 = vand.u32 %v4735, 4294901760
        %5030 = vmatpush1.msra.mxu0 %v5029
        %5031 = vmatprep.subr.mxu0 0.0
        %v5032 = vand.u32 %v4734, 4294901760
        %5033 = vmatpush1.msra.mxu0 %v5032
        %5034 = vmatprep.subr.mxu0 0.0
        %5035 = vmatpush2.msra.mxu0 0.0
        %5036 = vmatprep.subr.mxu0 0.0
        %5037 = vmatpush2.msra.mxu0 0.0
        %5038 = vmatprep.subr.mxu0 0.0
        %5039 = vmatpush2.msra.mxu0 0.0
        %5040 = vmatprep.subr.mxu0 0.0
        %5041 = vmatpush2.msra.mxu0 0.0
        %5042 = vmatprep.subr.mxu0 0.0
        %5043 = vmatpush2.msra.mxu0 0.0
        %5044 = vmatprep.subr.mxu0 0.0
        %5045 = vmatpush2.msra.mxu0 0.0
        %5046 = vmatprep.subr.mxu0 0.0
        %5047 = vmatpush2.msra.mxu0 0.0
        %5048 = vmatprep.subr.mxu0 0.0
        %5049 = vmatpush2.msra.mxu0 0.0
        %5050 = vmatprep.subr.mxu0 0.0
        %5051 = vmatpush2.msra.mxu0 0.0
        %5052 = vmatprep.subr.mxu0 0.0
        %5053 = vmatpush2.msra.mxu0 0.0
        %5054 = vmatprep.subr.mxu0 0.0
        %5055 = vmatpush2.msra.mxu0 0.0
        %5056 = vmatprep.subr.mxu0 0.0
        %5057 = vmatpush2.msra.mxu0 0.0
        %5058 = vmatprep.subr.mxu0 0.0
        %5059 = vmatpush2.msra.mxu0 0.0
        %5060 = vmatprep.subr.mxu0 0.0
        %5061 = vmatpush2.msra.mxu0 0.0
        %5062 = vmatprep.subr.mxu0 0.0
        %5063 = vmatpush2.msra.mxu0 0.0
        %5064 = vmatprep.subr.mxu0 0.0
        %5065 = vmatpush2.msra.mxu0 0.0
        %5066 = vmatprep.mubr.f32.mxu0 0.0
        %v5067 = vand.u32 %v4746, 4294901760
        %v5068 = vsub.f32 %v4746, %v5067
        %v5069 = vand.u32 %v5068, 4294901760
        %5070 = vmatmul.mubr.f32.gmra.mxu0 %v5069
        %v5071 = vpop.f32.mrf.mxu0
        %v5072 = vadd.f32 %v4995, %v5071
        %v5073 = vpop.f32.mrf.mxu0
        %5074 = vdwg.mxu0
        %5075 = vmatprep.subr.mxu0 0.0
        %5076 = vmatpush1.msra.mxu0 0.0
        %5077 = vmatprep.subr.mxu0 0.0
        %5078 = vmatpush1.msra.mxu0 0.0
        %5079 = vmatprep.subr.mxu0 0.0
        %5080 = vmatpush1.msra.mxu0 0.0
        %5081 = vmatprep.subr.mxu0 0.0
        %5082 = vmatpush1.msra.mxu0 0.0
        %5083 = vmatprep.subr.mxu0 0.0
        %5084 = vmatpush1.msra.mxu0 0.0
        %5085 = vmatprep.subr.mxu0 0.0
        %5086 = vmatpush1.msra.mxu0 0.0
        %5087 = vmatprep.subr.mxu0 0.0
        %5088 = vmatpush1.msra.mxu0 0.0
        %5089 = vmatprep.subr.mxu0 0.0
        %5090 = vmatpush1.msra.mxu0 0.0
        %5091 = vmatprep.subr.mxu0 0.0
        %5092 = vmatpush1.msra.mxu0 0.0
        %5093 = vmatprep.subr.mxu0 0.0
        %5094 = vmatpush1.msra.mxu0 0.0
        %5095 = vmatprep.subr.mxu0 0.0
        %5096 = vmatpush1.msra.mxu0 0.0
        %5097 = vmatprep.subr.mxu0 0.0
        %5098 = vmatpush1.msra.mxu0 0.0
        %5099 = vmatprep.subr.mxu0 0.0
        %v5100 = vand.u32 %v4737, 4294901760
        %v5101 = vsub.f32 %v4737, %v5100
        %v5102 = vand.u32 %v5101, 4294901760
        %5103 = vmatpush1.msra.mxu0 %v5102
        %5104 = vmatprep.subr.mxu0 0.0
        %v5105 = vand.u32 %v4736, 4294901760
        %v5106 = vsub.f32 %v4736, %v5105
        %v5107 = vand.u32 %v5106, 4294901760
        %5108 = vmatpush1.msra.mxu0 %v5107
        %5109 = vmatprep.subr.mxu0 0.0
        %v5110 = vand.u32 %v4735, 4294901760
        %v5111 = vsub.f32 %v4735, %v5110
        %v5112 = vand.u32 %v5111, 4294901760
        %5113 = vmatpush1.msra.mxu0 %v5112
        %5114 = vmatprep.subr.mxu0 0.0
        %v5115 = vand.u32 %v4734, 4294901760
        %v5116 = vsub.f32 %v4734, %v5115
        %v5117 = vand.u32 %v5116, 4294901760
        %5118 = vmatpush1.msra.mxu0 %v5117
        %5119 = vmatprep.subr.mxu0 0.0
        %5120 = vmatpush2.msra.mxu0 0.0
        %5121 = vmatprep.subr.mxu0 0.0
        %5122 = vmatpush2.msra.mxu0 0.0
        %5123 = vmatprep.subr.mxu0 0.0
        %5124 = vmatpush2.msra.mxu0 0.0
        %5125 = vmatprep.subr.mxu0 0.0
        %5126 = vmatpush2.msra.mxu0 0.0
        %5127 = vmatprep.subr.mxu0 0.0
        %5128 = vmatpush2.msra.mxu0 0.0
        %5129 = vmatprep.subr.mxu0 0.0
        %5130 = vmatpush2.msra.mxu0 0.0
        %5131 = vmatprep.subr.mxu0 0.0
        %5132 = vmatpush2.msra.mxu0 0.0
        %5133 = vmatprep.subr.mxu0 0.0
        %5134 = vmatpush2.msra.mxu0 0.0
        %5135 = vmatprep.subr.mxu0 0.0
        %5136 = vmatpush2.msra.mxu0 0.0
        %5137 = vmatprep.subr.mxu0 0.0
        %5138 = vmatpush2.msra.mxu0 0.0
        %5139 = vmatprep.subr.mxu0 0.0
        %5140 = vmatpush2.msra.mxu0 0.0
        %5141 = vmatprep.subr.mxu0 0.0
        %5142 = vmatpush2.msra.mxu0 0.0
        %5143 = vmatprep.subr.mxu0 0.0
        %5144 = vmatpush2.msra.mxu0 0.0
        %5145 = vmatprep.subr.mxu0 0.0
        %5146 = vmatpush2.msra.mxu0 0.0
        %5147 = vmatprep.subr.mxu0 0.0
        %5148 = vmatpush2.msra.mxu0 0.0
        %5149 = vmatprep.subr.mxu0 0.0
        %5150 = vmatpush2.msra.mxu0 0.0
        %5151 = vmatprep.mubr.f32.mxu0 0.0
        %v5152 = vand.u32 %v4746, 4294901760
        %5153 = vmatmul.mubr.f32.gmra.mxu0 %v5152
        %v5154 = vpop.f32.mrf.mxu0
        %v5155 = vadd.f32 %v5072, %v5154
        %v5156 = vpop.f32.mrf.mxu0
        %5157 = vdwg.mxu0
        %5158 = vmatprep.subr.mxu0 0.0
        %5159 = vmatpush1.msra.mxu0 0.0
        %5160 = vmatprep.subr.mxu0 0.0
        %5161 = vmatpush1.msra.mxu0 0.0
        %5162 = vmatprep.subr.mxu0 0.0
        %5163 = vmatpush1.msra.mxu0 0.0
        %5164 = vmatprep.subr.mxu0 0.0
        %5165 = vmatpush1.msra.mxu0 0.0
        %5166 = vmatprep.subr.mxu0 0.0
        %5167 = vmatpush1.msra.mxu0 0.0
        %5168 = vmatprep.subr.mxu0 0.0
        %5169 = vmatpush1.msra.mxu0 0.0
        %5170 = vmatprep.subr.mxu0 0.0
        %5171 = vmatpush1.msra.mxu0 0.0
        %5172 = vmatprep.subr.mxu0 0.0
        %5173 = vmatpush1.msra.mxu0 0.0
        %5174 = vmatprep.subr.mxu0 0.0
        %5175 = vmatpush1.msra.mxu0 0.0
        %5176 = vmatprep.subr.mxu0 0.0
        %5177 = vmatpush1.msra.mxu0 0.0
        %5178 = vmatprep.subr.mxu0 0.0
        %5179 = vmatpush1.msra.mxu0 0.0
        %5180 = vmatprep.subr.mxu0 0.0
        %5181 = vmatpush1.msra.mxu0 0.0
        %5182 = vmatprep.subr.mxu0 0.0
        %v5183 = vand.u32 %v4737, 4294901760
        %5184 = vmatpush1.msra.mxu0 %v5183
        %5185 = vmatprep.subr.mxu0 0.0
        %v5186 = vand.u32 %v4736, 4294901760
        %5187 = vmatpush1.msra.mxu0 %v5186
        %5188 = vmatprep.subr.mxu0 0.0
        %v5189 = vand.u32 %v4735, 4294901760
        %5190 = vmatpush1.msra.mxu0 %v5189
        %5191 = vmatprep.subr.mxu0 0.0
        %v5192 = vand.u32 %v4734, 4294901760
        %5193 = vmatpush1.msra.mxu0 %v5192
        %5194 = vmatprep.subr.mxu0 0.0
        %5195 = vmatpush2.msra.mxu0 0.0
        %5196 = vmatprep.subr.mxu0 0.0
        %5197 = vmatpush2.msra.mxu0 0.0
        %5198 = vmatprep.subr.mxu0 0.0
        %5199 = vmatpush2.msra.mxu0 0.0
        %5200 = vmatprep.subr.mxu0 0.0
        %5201 = vmatpush2.msra.mxu0 0.0
        %5202 = vmatprep.subr.mxu0 0.0
        %5203 = vmatpush2.msra.mxu0 0.0
        %5204 = vmatprep.subr.mxu0 0.0
        %5205 = vmatpush2.msra.mxu0 0.0
        %5206 = vmatprep.subr.mxu0 0.0
        %5207 = vmatpush2.msra.mxu0 0.0
        %5208 = vmatprep.subr.mxu0 0.0
        %5209 = vmatpush2.msra.mxu0 0.0
        %5210 = vmatprep.subr.mxu0 0.0
        %5211 = vmatpush2.msra.mxu0 0.0
        %5212 = vmatprep.subr.mxu0 0.0
        %5213 = vmatpush2.msra.mxu0 0.0
        %5214 = vmatprep.subr.mxu0 0.0
        %5215 = vmatpush2.msra.mxu0 0.0
        %5216 = vmatprep.subr.mxu0 0.0
        %5217 = vmatpush2.msra.mxu0 0.0
        %5218 = vmatprep.subr.mxu0 0.0
        %5219 = vmatpush2.msra.mxu0 0.0
        %5220 = vmatprep.subr.mxu0 0.0
        %5221 = vmatpush2.msra.mxu0 0.0
        %5222 = vmatprep.subr.mxu0 0.0
        %5223 = vmatpush2.msra.mxu0 0.0
        %5224 = vmatprep.subr.mxu0 0.0
        %5225 = vmatpush2.msra.mxu0 0.0
        %5226 = vmatprep.mubr.f32.mxu0 0.0
        %v5227 = vand.u32 %v4746, 4294901760
        %5228 = vmatmul.mubr.f32.gmra.mxu0 %v5227
        %v5229 = vpop.f32.mrf.mxu0
        %v5230 = vadd.f32 %v5155, %v5229
        %v5231 = vpop.f32.mrf.mxu0
        %5232 = vdwg.mxu0
        %v5233 = vadd.f32 %v5230, %v501
        %v5234 = vld [vmem:[%s8] sm:$0x1]
        %v5235 = vld [vmem:[%s9] sm:$0x1]
        %v5236 = vsel %vm505, %v5233, 0.0
        %5237 = vadd.xlane.f32.xlu0 %v5236
        %v5238 = vpop.xlane.xlu0 %5237
        %v5239 = vmul.f32 %v5238, %v509
        %v5240 = vsub.f32 %v5233, %v5239
        %v5241 = vmul.f32 %v5240, %v5240
        %v5242 = vsel %vm505, %v5241, 0.0
        %5243 = vadd.xlane.f32.xlu0 %v5242
        %v5244 = vpop.xlane.xlu0 %5243
        %v5245 = vmul.f32 %v5244, %v509
        %v5246 = vadd.f32 %v5245, 1e-05
        %v5247 = vrsqrt.pop %v5246
        %v5248 = vmul.f32 %v5240, %v5247
        %v5250 = vlaneseq
        %v5251 = vshrl.u32 %v5250, 7
        %v5252 = vsub.s32 0, %v5251
        %v5253 = vrot.slane %v5234, %v5252
        %v5255 = vmul.f32 %v5248, %v5253
        %v5257 = vlaneseq
        %v5258 = vshrl.u32 %v5257, 7
        %v5259 = vsub.s32 0, %v5258
        %v5260 = vrot.slane %v5235, %v5259
        %v5262 = vadd.f32 %v5255, %v5260
        %v5263 = vld [vmem:[%s10] sm:$0xff]
        %v5264 = vld [vmem:[%s10 + $0x8] sm:$0xff]
        %v5265 = vld [vmem:[%s10 + $0x10] sm:$0xff]
        %v5266 = vld [vmem:[%s10 + $0x18] sm:$0xff]
        %v5267 = vld [vmem:[%s11] sm:$0x1]
        %v5269 = vlaneseq
        %v5270 = vshrl.u32 %v5269, 7
        %v5271 = vsub.s32 0, %v5270
        %v5272 = vrot.slane %v5267, %v5271
        %v5275 = vsel %vm505, %v5262, 0
        %5277 = vmatprep.subr.mxu0 0.0
        %5278 = vmatpush1.msra.mxu0 0.0
        %5279 = vmatprep.subr.mxu0 0.0
        %5280 = vmatpush1.msra.mxu0 0.0
        %5281 = vmatprep.subr.mxu0 0.0
        %5282 = vmatpush1.msra.mxu0 0.0
        %5283 = vmatprep.subr.mxu0 0.0
        %5284 = vmatpush1.msra.mxu0 0.0
        %5285 = vmatprep.subr.mxu0 0.0
        %5286 = vmatpush1.msra.mxu0 0.0
        %5287 = vmatprep.subr.mxu0 0.0
        %5288 = vmatpush1.msra.mxu0 0.0
        %5289 = vmatprep.subr.mxu0 0.0
        %5290 = vmatpush1.msra.mxu0 0.0
        %5291 = vmatprep.subr.mxu0 0.0
        %5292 = vmatpush1.msra.mxu0 0.0
        %5293 = vmatprep.subr.mxu0 0.0
        %5294 = vmatpush1.msra.mxu0 0.0
        %5295 = vmatprep.subr.mxu0 0.0
        %5296 = vmatpush1.msra.mxu0 0.0
        %5297 = vmatprep.subr.mxu0 0.0
        %5298 = vmatpush1.msra.mxu0 0.0
        %5299 = vmatprep.subr.mxu0 0.0
        %5300 = vmatpush1.msra.mxu0 0.0
        %5301 = vmatprep.subr.mxu0 0.0
        %v5302 = vand.u32 %v5266, 4294901760
        %5303 = vmatpush1.msra.mxu0 %v5302
        %5304 = vmatprep.subr.mxu0 0.0
        %v5305 = vand.u32 %v5265, 4294901760
        %5306 = vmatpush1.msra.mxu0 %v5305
        %5307 = vmatprep.subr.mxu0 0.0
        %v5308 = vand.u32 %v5264, 4294901760
        %5309 = vmatpush1.msra.mxu0 %v5308
        %5310 = vmatprep.subr.mxu0 0.0
        %v5311 = vand.u32 %v5263, 4294901760
        %5312 = vmatpush1.msra.mxu0 %v5311
        %5313 = vmatprep.subr.mxu0 0.0
        %5314 = vmatpush2.msra.mxu0 0.0
        %5315 = vmatprep.subr.mxu0 0.0
        %5316 = vmatpush2.msra.mxu0 0.0
        %5317 = vmatprep.subr.mxu0 0.0
        %5318 = vmatpush2.msra.mxu0 0.0
        %5319 = vmatprep.subr.mxu0 0.0
        %5320 = vmatpush2.msra.mxu0 0.0
        %5321 = vmatprep.subr.mxu0 0.0
        %5322 = vmatpush2.msra.mxu0 0.0
        %5323 = vmatprep.subr.mxu0 0.0
        %5324 = vmatpush2.msra.mxu0 0.0
        %5325 = vmatprep.subr.mxu0 0.0
        %5326 = vmatpush2.msra.mxu0 0.0
        %5327 = vmatprep.subr.mxu0 0.0
        %5328 = vmatpush2.msra.mxu0 0.0
        %5329 = vmatprep.subr.mxu0 0.0
        %5330 = vmatpush2.msra.mxu0 0.0
        %5331 = vmatprep.subr.mxu0 0.0
        %5332 = vmatpush2.msra.mxu0 0.0
        %5333 = vmatprep.subr.mxu0 0.0
        %5334 = vmatpush2.msra.mxu0 0.0
        %5335 = vmatprep.subr.mxu0 0.0
        %5336 = vmatpush2.msra.mxu0 0.0
        %5337 = vmatprep.subr.mxu0 0.0
        %5338 = vmatpush2.msra.mxu0 0.0
        %5339 = vmatprep.subr.mxu0 0.0
        %5340 = vmatpush2.msra.mxu0 0.0
        %5341 = vmatprep.subr.mxu0 0.0
        %5342 = vmatpush2.msra.mxu0 0.0
        %5343 = vmatprep.subr.mxu0 0.0
        %5344 = vmatpush2.msra.mxu0 0.0
        %5345 = vmatprep.mubr.f32.mxu0 0.0
        %v5346 = vand.u32 %v5275, 4294901760
        %v5347 = vsub.f32 %v5275, %v5346
        %v5348 = vand.u32 %v5347, 4294901760
        %v5349 = vsub.f32 %v5347, %v5348
        %v5350 = vand.u32 %v5349, 4294901760
        %5351 = vmatmul.mubr.f32.gmra.mxu0 %v5350
        %v5352 = vpop.f32.mrf.mxu0
        %v5353 = vadd.f32 %v5272, %v5352
        %v5354 = vpop.f32.mrf.mxu0
        %5355 = vdwg.mxu0
        %5356 = vmatprep.subr.mxu0 0.0
        %5357 = vmatpush1.msra.mxu0 0.0
        %5358 = vmatprep.subr.mxu0 0.0
        %5359 = vmatpush1.msra.mxu0 0.0
        %5360 = vmatprep.subr.mxu0 0.0
        %5361 = vmatpush1.msra.mxu0 0.0
        %5362 = vmatprep.subr.mxu0 0.0
        %5363 = vmatpush1.msra.mxu0 0.0
        %5364 = vmatprep.subr.mxu0 0.0
        %5365 = vmatpush1.msra.mxu0 0.0
        %5366 = vmatprep.subr.mxu0 0.0
        %5367 = vmatpush1.msra.mxu0 0.0
        %5368 = vmatprep.subr.mxu0 0.0
        %5369 = vmatpush1.msra.mxu0 0.0
        %5370 = vmatprep.subr.mxu0 0.0
        %5371 = vmatpush1.msra.mxu0 0.0
        %5372 = vmatprep.subr.mxu0 0.0
        %5373 = vmatpush1.msra.mxu0 0.0
        %5374 = vmatprep.subr.mxu0 0.0
        %5375 = vmatpush1.msra.mxu0 0.0
        %5376 = vmatprep.subr.mxu0 0.0
        %5377 = vmatpush1.msra.mxu0 0.0
        %5378 = vmatprep.subr.mxu0 0.0
        %5379 = vmatpush1.msra.mxu0 0.0
        %5380 = vmatprep.subr.mxu0 0.0
        %v5381 = vand.u32 %v5266, 4294901760
        %v5382 = vsub.f32 %v5266, %v5381
        %v5383 = vand.u32 %v5382, 4294901760
        %v5384 = vsub.f32 %v5382, %v5383
        %v5385 = vand.u32 %v5384, 4294901760
        %5386 = vmatpush1.msra.mxu0 %v5385
        %5387 = vmatprep.subr.mxu0 0.0
        %v5388 = vand.u32 %v5265, 4294901760
        %v5389 = vsub.f32 %v5265, %v5388
        %v5390 = vand.u32 %v5389, 4294901760
        %v5391 = vsub.f32 %v5389, %v5390
        %v5392 = vand.u32 %v5391, 4294901760
        %5393 = vmatpush1.msra.mxu0 %v5392
        %5394 = vmatprep.subr.mxu0 0.0
        %v5395 = vand.u32 %v5264, 4294901760
        %v5396 = vsub.f32 %v5264, %v5395
        %v5397 = vand.u32 %v5396, 4294901760
        %v5398 = vsub.f32 %v5396, %v5397
        %v5399 = vand.u32 %v5398, 4294901760
        %5400 = vmatpush1.msra.mxu0 %v5399
        %5401 = vmatprep.subr.mxu0 0.0
        %v5402 = vand.u32 %v5263, 4294901760
        %v5403 = vsub.f32 %v5263, %v5402
        %v5404 = vand.u32 %v5403, 4294901760
        %v5405 = vsub.f32 %v5403, %v5404
        %v5406 = vand.u32 %v5405, 4294901760
        %5407 = vmatpush1.msra.mxu0 %v5406
        %5408 = vmatprep.subr.mxu0 0.0
        %5409 = vmatpush2.msra.mxu0 0.0
        %5410 = vmatprep.subr.mxu0 0.0
        %5411 = vmatpush2.msra.mxu0 0.0
        %5412 = vmatprep.subr.mxu0 0.0
        %5413 = vmatpush2.msra.mxu0 0.0
        %5414 = vmatprep.subr.mxu0 0.0
        %5415 = vmatpush2.msra.mxu0 0.0
        %5416 = vmatprep.subr.mxu0 0.0
        %5417 = vmatpush2.msra.mxu0 0.0
        %5418 = vmatprep.subr.mxu0 0.0
        %5419 = vmatpush2.msra.mxu0 0.0
        %5420 = vmatprep.subr.mxu0 0.0
        %5421 = vmatpush2.msra.mxu0 0.0
        %5422 = vmatprep.subr.mxu0 0.0
        %5423 = vmatpush2.msra.mxu0 0.0
        %5424 = vmatprep.subr.mxu0 0.0
        %5425 = vmatpush2.msra.mxu0 0.0
        %5426 = vmatprep.subr.mxu0 0.0
        %5427 = vmatpush2.msra.mxu0 0.0
        %5428 = vmatprep.subr.mxu0 0.0
        %5429 = vmatpush2.msra.mxu0 0.0
        %5430 = vmatprep.subr.mxu0 0.0
        %5431 = vmatpush2.msra.mxu0 0.0
        %5432 = vmatprep.subr.mxu0 0.0
        %5433 = vmatpush2.msra.mxu0 0.0
        %5434 = vmatprep.subr.mxu0 0.0
        %5435 = vmatpush2.msra.mxu0 0.0
        %5436 = vmatprep.subr.mxu0 0.0
        %5437 = vmatpush2.msra.mxu0 0.0
        %5438 = vmatprep.subr.mxu0 0.0
        %5439 = vmatpush2.msra.mxu0 0.0
        %5440 = vmatprep.mubr.f32.mxu0 0.0
        %v5441 = vand.u32 %v5275, 4294901760
        %5442 = vmatmul.mubr.f32.gmra.mxu0 %v5441
        %v5443 = vpop.f32.mrf.mxu0
        %v5444 = vadd.f32 %v5353, %v5443
        %v5445 = vpop.f32.mrf.mxu0
        %5446 = vdwg.mxu0
        %5447 = vmatprep.subr.mxu0 0.0
        %5448 = vmatpush1.msra.mxu0 0.0
        %5449 = vmatprep.subr.mxu0 0.0
        %5450 = vmatpush1.msra.mxu0 0.0
        %5451 = vmatprep.subr.mxu0 0.0
        %5452 = vmatpush1.msra.mxu0 0.0
        %5453 = vmatprep.subr.mxu0 0.0
        %5454 = vmatpush1.msra.mxu0 0.0
        %5455 = vmatprep.subr.mxu0 0.0
        %5456 = vmatpush1.msra.mxu0 0.0
        %5457 = vmatprep.subr.mxu0 0.0
        %5458 = vmatpush1.msra.mxu0 0.0
        %5459 = vmatprep.subr.mxu0 0.0
        %5460 = vmatpush1.msra.mxu0 0.0
        %5461 = vmatprep.subr.mxu0 0.0
        %5462 = vmatpush1.msra.mxu0 0.0
        %5463 = vmatprep.subr.mxu0 0.0
        %5464 = vmatpush1.msra.mxu0 0.0
        %5465 = vmatprep.subr.mxu0 0.0
        %5466 = vmatpush1.msra.mxu0 0.0
        %5467 = vmatprep.subr.mxu0 0.0
        %5468 = vmatpush1.msra.mxu0 0.0
        %5469 = vmatprep.subr.mxu0 0.0
        %5470 = vmatpush1.msra.mxu0 0.0
        %5471 = vmatprep.subr.mxu0 0.0
        %v5472 = vand.u32 %v5266, 4294901760
        %v5473 = vsub.f32 %v5266, %v5472
        %5474 = vmatpush1.msra.mxu0 %v5473
        %5475 = vmatprep.subr.mxu0 0.0
        %v5476 = vand.u32 %v5265, 4294901760
        %v5477 = vsub.f32 %v5265, %v5476
        %5478 = vmatpush1.msra.mxu0 %v5477
        %5479 = vmatprep.subr.mxu0 0.0
        %v5480 = vand.u32 %v5264, 4294901760
        %v5481 = vsub.f32 %v5264, %v5480
        %5482 = vmatpush1.msra.mxu0 %v5481
        %5483 = vmatprep.subr.mxu0 0.0
        %v5484 = vand.u32 %v5263, 4294901760
        %v5485 = vsub.f32 %v5263, %v5484
        %5486 = vmatpush1.msra.mxu0 %v5485
        %5487 = vmatprep.subr.mxu0 0.0
        %5488 = vmatpush2.msra.mxu0 0.0
        %5489 = vmatprep.subr.mxu0 0.0
        %5490 = vmatpush2.msra.mxu0 0.0
        %5491 = vmatprep.subr.mxu0 0.0
        %5492 = vmatpush2.msra.mxu0 0.0
        %5493 = vmatprep.subr.mxu0 0.0
        %5494 = vmatpush2.msra.mxu0 0.0
        %5495 = vmatprep.subr.mxu0 0.0
        %5496 = vmatpush2.msra.mxu0 0.0
        %5497 = vmatprep.subr.mxu0 0.0
        %5498 = vmatpush2.msra.mxu0 0.0
        %5499 = vmatprep.subr.mxu0 0.0
        %5500 = vmatpush2.msra.mxu0 0.0
        %5501 = vmatprep.subr.mxu0 0.0
        %5502 = vmatpush2.msra.mxu0 0.0
        %5503 = vmatprep.subr.mxu0 0.0
        %5504 = vmatpush2.msra.mxu0 0.0
        %5505 = vmatprep.subr.mxu0 0.0
        %5506 = vmatpush2.msra.mxu0 0.0
        %5507 = vmatprep.subr.mxu0 0.0
        %5508 = vmatpush2.msra.mxu0 0.0
        %5509 = vmatprep.subr.mxu0 0.0
        %5510 = vmatpush2.msra.mxu0 0.0
        %5511 = vmatprep.subr.mxu0 0.0
        %5512 = vmatpush2.msra.mxu0 0.0
        %5513 = vmatprep.subr.mxu0 0.0
        %5514 = vmatpush2.msra.mxu0 0.0
        %5515 = vmatprep.subr.mxu0 0.0
        %5516 = vmatpush2.msra.mxu0 0.0
        %5517 = vmatprep.subr.mxu0 0.0
        %5518 = vmatpush2.msra.mxu0 0.0
        %5519 = vmatprep.mubr.f32.mxu0 0.0
        %v5520 = vand.u32 %v5275, 4294901760
        %v5521 = vsub.f32 %v5275, %v5520
        %5522 = vmatmul.mubr.f32.gmra.mxu0 %v5521
        %v5523 = vpop.f32.mrf.mxu0
        %v5524 = vadd.f32 %v5444, %v5523
        %v5525 = vpop.f32.mrf.mxu0
        %5526 = vdwg.mxu0
        %5527 = vmatprep.subr.mxu0 0.0
        %5528 = vmatpush1.msra.mxu0 0.0
        %5529 = vmatprep.subr.mxu0 0.0
        %5530 = vmatpush1.msra.mxu0 0.0
        %5531 = vmatprep.subr.mxu0 0.0
        %5532 = vmatpush1.msra.mxu0 0.0
        %5533 = vmatprep.subr.mxu0 0.0
        %5534 = vmatpush1.msra.mxu0 0.0
        %5535 = vmatprep.subr.mxu0 0.0
        %5536 = vmatpush1.msra.mxu0 0.0
        %5537 = vmatprep.subr.mxu0 0.0
        %5538 = vmatpush1.msra.mxu0 0.0
        %5539 = vmatprep.subr.mxu0 0.0
        %5540 = vmatpush1.msra.mxu0 0.0
        %5541 = vmatprep.subr.mxu0 0.0
        %5542 = vmatpush1.msra.mxu0 0.0
        %5543 = vmatprep.subr.mxu0 0.0
        %5544 = vmatpush1.msra.mxu0 0.0
        %5545 = vmatprep.subr.mxu0 0.0
        %5546 = vmatpush1.msra.mxu0 0.0
        %5547 = vmatprep.subr.mxu0 0.0
        %5548 = vmatpush1.msra.mxu0 0.0
        %5549 = vmatprep.subr.mxu0 0.0
        %5550 = vmatpush1.msra.mxu0 0.0
        %5551 = vmatprep.subr.mxu0 0.0
        %v5552 = vand.u32 %v5266, 4294901760
        %5553 = vmatpush1.msra.mxu0 %v5552
        %5554 = vmatprep.subr.mxu0 0.0
        %v5555 = vand.u32 %v5265, 4294901760
        %5556 = vmatpush1.msra.mxu0 %v5555
        %5557 = vmatprep.subr.mxu0 0.0
        %v5558 = vand.u32 %v5264, 4294901760
        %5559 = vmatpush1.msra.mxu0 %v5558
        %5560 = vmatprep.subr.mxu0 0.0
        %v5561 = vand.u32 %v5263, 4294901760
        %5562 = vmatpush1.msra.mxu0 %v5561
        %5563 = vmatprep.subr.mxu0 0.0
        %5564 = vmatpush2.msra.mxu0 0.0
        %5565 = vmatprep.subr.mxu0 0.0
        %5566 = vmatpush2.msra.mxu0 0.0
        %5567 = vmatprep.subr.mxu0 0.0
        %5568 = vmatpush2.msra.mxu0 0.0
        %5569 = vmatprep.subr.mxu0 0.0
        %5570 = vmatpush2.msra.mxu0 0.0
        %5571 = vmatprep.subr.mxu0 0.0
        %5572 = vmatpush2.msra.mxu0 0.0
        %5573 = vmatprep.subr.mxu0 0.0
        %5574 = vmatpush2.msra.mxu0 0.0
        %5575 = vmatprep.subr.mxu0 0.0
        %5576 = vmatpush2.msra.mxu0 0.0
        %5577 = vmatprep.subr.mxu0 0.0
        %5578 = vmatpush2.msra.mxu0 0.0
        %5579 = vmatprep.subr.mxu0 0.0
        %5580 = vmatpush2.msra.mxu0 0.0
        %5581 = vmatprep.subr.mxu0 0.0
        %5582 = vmatpush2.msra.mxu0 0.0
        %5583 = vmatprep.subr.mxu0 0.0
        %5584 = vmatpush2.msra.mxu0 0.0
        %5585 = vmatprep.subr.mxu0 0.0
        %5586 = vmatpush2.msra.mxu0 0.0
        %5587 = vmatprep.subr.mxu0 0.0
        %5588 = vmatpush2.msra.mxu0 0.0
        %5589 = vmatprep.subr.mxu0 0.0
        %5590 = vmatpush2.msra.mxu0 0.0
        %5591 = vmatprep.subr.mxu0 0.0
        %5592 = vmatpush2.msra.mxu0 0.0
        %5593 = vmatprep.subr.mxu0 0.0
        %5594 = vmatpush2.msra.mxu0 0.0
        %5595 = vmatprep.mubr.f32.mxu0 0.0
        %v5596 = vand.u32 %v5275, 4294901760
        %v5597 = vsub.f32 %v5275, %v5596
        %v5598 = vand.u32 %v5597, 4294901760
        %5599 = vmatmul.mubr.f32.gmra.mxu0 %v5598
        %v5600 = vpop.f32.mrf.mxu0
        %v5601 = vadd.f32 %v5524, %v5600
        %v5602 = vpop.f32.mrf.mxu0
        %5603 = vdwg.mxu0
        %5604 = vmatprep.subr.mxu0 0.0
        %5605 = vmatpush1.msra.mxu0 0.0
        %5606 = vmatprep.subr.mxu0 0.0
        %5607 = vmatpush1.msra.mxu0 0.0
        %5608 = vmatprep.subr.mxu0 0.0
        %5609 = vmatpush1.msra.mxu0 0.0
        %5610 = vmatprep.subr.mxu0 0.0
        %5611 = vmatpush1.msra.mxu0 0.0
        %5612 = vmatprep.subr.mxu0 0.0
        %5613 = vmatpush1.msra.mxu0 0.0
        %5614 = vmatprep.subr.mxu0 0.0
        %5615 = vmatpush1.msra.mxu0 0.0
        %5616 = vmatprep.subr.mxu0 0.0
        %5617 = vmatpush1.msra.mxu0 0.0
        %5618 = vmatprep.subr.mxu0 0.0
        %5619 = vmatpush1.msra.mxu0 0.0
        %5620 = vmatprep.subr.mxu0 0.0
        %5621 = vmatpush1.msra.mxu0 0.0
        %5622 = vmatprep.subr.mxu0 0.0
        %5623 = vmatpush1.msra.mxu0 0.0
        %5624 = vmatprep.subr.mxu0 0.0
        %5625 = vmatpush1.msra.mxu0 0.0
        %5626 = vmatprep.subr.mxu0 0.0
        %5627 = vmatpush1.msra.mxu0 0.0
        %5628 = vmatprep.subr.mxu0 0.0
        %v5629 = vand.u32 %v5266, 4294901760
        %v5630 = vsub.f32 %v5266, %v5629
        %v5631 = vand.u32 %v5630, 4294901760
        %5632 = vmatpush1.msra.mxu0 %v5631
        %5633 = vmatprep.subr.mxu0 0.0
        %v5634 = vand.u32 %v5265, 4294901760
        %v5635 = vsub.f32 %v5265, %v5634
        %v5636 = vand.u32 %v5635, 4294901760
        %5637 = vmatpush1.msra.mxu0 %v5636
        %5638 = vmatprep.subr.mxu0 0.0
        %v5639 = vand.u32 %v5264, 4294901760
        %v5640 = vsub.f32 %v5264, %v5639
        %v5641 = vand.u32 %v5640, 4294901760
        %5642 = vmatpush1.msra.mxu0 %v5641
        %5643 = vmatprep.subr.mxu0 0.0
        %v5644 = vand.u32 %v5263, 4294901760
        %v5645 = vsub.f32 %v5263, %v5644
        %v5646 = vand.u32 %v5645, 4294901760
        %5647 = vmatpush1.msra.mxu0 %v5646
        %5648 = vmatprep.subr.mxu0 0.0
        %5649 = vmatpush2.msra.mxu0 0.0
        %5650 = vmatprep.subr.mxu0 0.0
        %5651 = vmatpush2.msra.mxu0 0.0
        %5652 = vmatprep.subr.mxu0 0.0
        %5653 = vmatpush2.msra.mxu0 0.0
        %5654 = vmatprep.subr.mxu0 0.0
        %5655 = vmatpush2.msra.mxu0 0.0
        %5656 = vmatprep.subr.mxu0 0.0
        %5657 = vmatpush2.msra.mxu0 0.0
        %5658 = vmatprep.subr.mxu0 0.0
        %5659 = vmatpush2.msra.mxu0 0.0
        %5660 = vmatprep.subr.mxu0 0.0
        %5661 = vmatpush2.msra.mxu0 0.0
        %5662 = vmatprep.subr.mxu0 0.0
        %5663 = vmatpush2.msra.mxu0 0.0
        %5664 = vmatprep.subr.mxu0 0.0
        %5665 = vmatpush2.msra.mxu0 0.0
        %5666 = vmatprep.subr.mxu0 0.0
        %5667 = vmatpush2.msra.mxu0 0.0
        %5668 = vmatprep.subr.mxu0 0.0
        %5669 = vmatpush2.msra.mxu0 0.0
        %5670 = vmatprep.subr.mxu0 0.0
        %5671 = vmatpush2.msra.mxu0 0.0
        %5672 = vmatprep.subr.mxu0 0.0
        %5673 = vmatpush2.msra.mxu0 0.0
        %5674 = vmatprep.subr.mxu0 0.0
        %5675 = vmatpush2.msra.mxu0 0.0
        %5676 = vmatprep.subr.mxu0 0.0
        %5677 = vmatpush2.msra.mxu0 0.0
        %5678 = vmatprep.subr.mxu0 0.0
        %5679 = vmatpush2.msra.mxu0 0.0
        %5680 = vmatprep.mubr.f32.mxu0 0.0
        %v5681 = vand.u32 %v5275, 4294901760
        %5682 = vmatmul.mubr.f32.gmra.mxu0 %v5681
        %v5683 = vpop.f32.mrf.mxu0
        %v5684 = vadd.f32 %v5601, %v5683
        %v5685 = vpop.f32.mrf.mxu0
        %5686 = vdwg.mxu0
        %5687 = vmatprep.subr.mxu0 0.0
        %5688 = vmatpush1.msra.mxu0 0.0
        %5689 = vmatprep.subr.mxu0 0.0
        %5690 = vmatpush1.msra.mxu0 0.0
        %5691 = vmatprep.subr.mxu0 0.0
        %5692 = vmatpush1.msra.mxu0 0.0
        %5693 = vmatprep.subr.mxu0 0.0
        %5694 = vmatpush1.msra.mxu0 0.0
        %5695 = vmatprep.subr.mxu0 0.0
        %5696 = vmatpush1.msra.mxu0 0.0
        %5697 = vmatprep.subr.mxu0 0.0
        %5698 = vmatpush1.msra.mxu0 0.0
        %5699 = vmatprep.subr.mxu0 0.0
        %5700 = vmatpush1.msra.mxu0 0.0
        %5701 = vmatprep.subr.mxu0 0.0
        %5702 = vmatpush1.msra.mxu0 0.0
        %5703 = vmatprep.subr.mxu0 0.0
        %5704 = vmatpush1.msra.mxu0 0.0
        %5705 = vmatprep.subr.mxu0 0.0
        %5706 = vmatpush1.msra.mxu0 0.0
        %5707 = vmatprep.subr.mxu0 0.0
        %5708 = vmatpush1.msra.mxu0 0.0
        %5709 = vmatprep.subr.mxu0 0.0
        %5710 = vmatpush1.msra.mxu0 0.0
        %5711 = vmatprep.subr.mxu0 0.0
        %v5712 = vand.u32 %v5266, 4294901760
        %5713 = vmatpush1.msra.mxu0 %v5712
        %5714 = vmatprep.subr.mxu0 0.0
        %v5715 = vand.u32 %v5265, 4294901760
        %5716 = vmatpush1.msra.mxu0 %v5715
        %5717 = vmatprep.subr.mxu0 0.0
        %v5718 = vand.u32 %v5264, 4294901760
        %5719 = vmatpush1.msra.mxu0 %v5718
        %5720 = vmatprep.subr.mxu0 0.0
        %v5721 = vand.u32 %v5263, 4294901760
        %5722 = vmatpush1.msra.mxu0 %v5721
        %5723 = vmatprep.subr.mxu0 0.0
        %5724 = vmatpush2.msra.mxu0 0.0
        %5725 = vmatprep.subr.mxu0 0.0
        %5726 = vmatpush2.msra.mxu0 0.0
        %5727 = vmatprep.subr.mxu0 0.0
        %5728 = vmatpush2.msra.mxu0 0.0
        %5729 = vmatprep.subr.mxu0 0.0
        %5730 = vmatpush2.msra.mxu0 0.0
        %5731 = vmatprep.subr.mxu0 0.0
        %5732 = vmatpush2.msra.mxu0 0.0
        %5733 = vmatprep.subr.mxu0 0.0
        %5734 = vmatpush2.msra.mxu0 0.0
        %5735 = vmatprep.subr.mxu0 0.0
        %5736 = vmatpush2.msra.mxu0 0.0
        %5737 = vmatprep.subr.mxu0 0.0
        %5738 = vmatpush2.msra.mxu0 0.0
        %5739 = vmatprep.subr.mxu0 0.0
        %5740 = vmatpush2.msra.mxu0 0.0
        %5741 = vmatprep.subr.mxu0 0.0
        %5742 = vmatpush2.msra.mxu0 0.0
        %5743 = vmatprep.subr.mxu0 0.0
        %5744 = vmatpush2.msra.mxu0 0.0
        %5745 = vmatprep.subr.mxu0 0.0
        %5746 = vmatpush2.msra.mxu0 0.0
        %5747 = vmatprep.subr.mxu0 0.0
        %5748 = vmatpush2.msra.mxu0 0.0
        %5749 = vmatprep.subr.mxu0 0.0
        %5750 = vmatpush2.msra.mxu0 0.0
        %5751 = vmatprep.subr.mxu0 0.0
        %5752 = vmatpush2.msra.mxu0 0.0
        %5753 = vmatprep.subr.mxu0 0.0
        %5754 = vmatpush2.msra.mxu0 0.0
        %5755 = vmatprep.mubr.f32.mxu0 0.0
        %v5756 = vand.u32 %v5275, 4294901760
        %5757 = vmatmul.mubr.f32.gmra.mxu0 %v5756
        %v5758 = vpop.f32.mrf.mxu0
        %v5759 = vadd.f32 %v5684, %v5758
        %v5760 = vpop.f32.mrf.mxu0
        %5761 = vdwg.mxu0
        %v5762 = vmul.f32 %v5759, 0.5
        %v5763 = vmul.f32 %v5759, 0.044715
        %v5764 = vmul.f32 %v5763, %v5759
        %v5765 = vmul.f32 %v5764, %v5759
        %v5766 = vadd.f32 %v5759, %v5765
        %v5767 = vmul.f32 %v5766, 0.7978846
        %v5768 = vtanh.pop %v5767
        %v5769 = vadd.f32 %v5768, 1.0
        %v5770 = vmul.f32 %v5762, %v5769
        %v5771 = vld [vmem:[%s12] sm:$0xff]
        %v5772 = vld [vmem:[%s12 + $0x8] sm:$0xff]
        %v5773 = vld [vmem:[%s12 + $0x10] sm:$0xff]
        %v5774 = vld [vmem:[%s12 + $0x18] sm:$0xff]
        %v5775 = vld [vmem:[%s12 + $0x20] sm:$0xff]
        %v5776 = vld [vmem:[%s12 + $0x28] sm:$0xff]
        %v5777 = vld [vmem:[%s12 + $0x30] sm:$0xff]
        %v5778 = vld [vmem:[%s12 + $0x38] sm:$0xff]
        %v5779 = vld [vmem:[%s12 + $0x40] sm:$0xff]
        %v5780 = vld [vmem:[%s12 + $0x48] sm:$0xff]
        %v5781 = vld [vmem:[%s12 + $0x50] sm:$0xff]
        %v5782 = vld [vmem:[%s12 + $0x58] sm:$0xff]
        %v5783 = vld [vmem:[%s12 + $0x60] sm:$0xff]
        %v5784 = vld [vmem:[%s12 + $0x68] sm:$0xff]
        %v5785 = vld [vmem:[%s12 + $0x70] sm:$0xff]
        %v5786 = vld [vmem:[%s12 + $0x78] sm:$0xff]
        %v5787 = vld [vmem:[%s13] sm:$0x1]
        %v5789 = vlaneseq
        %v5790 = vshrl.u32 %v5789, 7
        %v5791 = vsub.s32 0, %v5790
        %v5792 = vrot.slane %v5787, %v5791
        %5794 = vmatprep.subr.mxu0 0.0
        %v5795 = vand.u32 %v5786, 4294901760
        %5796 = vmatpush1.msra.mxu0 %v5795
        %5797 = vmatprep.subr.mxu0 0.0
        %v5798 = vand.u32 %v5785, 4294901760
        %5799 = vmatpush1.msra.mxu0 %v5798
        %5800 = vmatprep.subr.mxu0 0.0
        %v5801 = vand.u32 %v5784, 4294901760
        %5802 = vmatpush1.msra.mxu0 %v5801
        %5803 = vmatprep.subr.mxu0 0.0
        %v5804 = vand.u32 %v5783, 4294901760
        %5805 = vmatpush1.msra.mxu0 %v5804
        %5806 = vmatprep.subr.mxu0 0.0
        %v5807 = vand.u32 %v5782, 4294901760
        %5808 = vmatpush1.msra.mxu0 %v5807
        %5809 = vmatprep.subr.mxu0 0.0
        %v5810 = vand.u32 %v5781, 4294901760
        %5811 = vmatpush1.msra.mxu0 %v5810
        %5812 = vmatprep.subr.mxu0 0.0
        %v5813 = vand.u32 %v5780, 4294901760
        %5814 = vmatpush1.msra.mxu0 %v5813
        %5815 = vmatprep.subr.mxu0 0.0
        %v5816 = vand.u32 %v5779, 4294901760
        %5817 = vmatpush1.msra.mxu0 %v5816
        %5818 = vmatprep.subr.mxu0 0.0
        %v5819 = vand.u32 %v5778, 4294901760
        %5820 = vmatpush1.msra.mxu0 %v5819
        %5821 = vmatprep.subr.mxu0 0.0
        %v5822 = vand.u32 %v5777, 4294901760
        %5823 = vmatpush1.msra.mxu0 %v5822
        %5824 = vmatprep.subr.mxu0 0.0
        %v5825 = vand.u32 %v5776, 4294901760
        %5826 = vmatpush1.msra.mxu0 %v5825
        %5827 = vmatprep.subr.mxu0 0.0
        %v5828 = vand.u32 %v5775, 4294901760
        %5829 = vmatpush1.msra.mxu0 %v5828
        %5830 = vmatprep.subr.mxu0 0.0
        %v5831 = vand.u32 %v5774, 4294901760
        %5832 = vmatpush1.msra.mxu0 %v5831
        %5833 = vmatprep.subr.mxu0 0.0
        %v5834 = vand.u32 %v5773, 4294901760
        %5835 = vmatpush1.msra.mxu0 %v5834
        %5836 = vmatprep.subr.mxu0 0.0
        %v5837 = vand.u32 %v5772, 4294901760
        %5838 = vmatpush1.msra.mxu0 %v5837
        %5839 = vmatprep.subr.mxu0 0.0
        %v5840 = vand.u32 %v5771, 4294901760
        %5841 = vmatpush1.msra.mxu0 %v5840
        %5842 = vmatprep.subr.mxu0 0.0
        %5843 = vmatpush2.msra.mxu0 0.0
        %5844 = vmatprep.subr.mxu0 0.0
        %5845 = vmatpush2.msra.mxu0 0.0
        %5846 = vmatprep.subr.mxu0 0.0
        %5847 = vmatpush2.msra.mxu0 0.0
        %5848 = vmatprep.subr.mxu0 0.0
        %5849 = vmatpush2.msra.mxu0 0.0
        %5850 = vmatprep.subr.mxu0 0.0
        %5851 = vmatpush2.msra.mxu0 0.0
        %5852 = vmatprep.subr.mxu0 0.0
        %5853 = vmatpush2.msra.mxu0 0.0
        %5854 = vmatprep.subr.mxu0 0.0
        %5855 = vmatpush2.msra.mxu0 0.0
        %5856 = vmatprep.subr.mxu0 0.0
        %5857 = vmatpush2.msra.mxu0 0.0
        %5858 = vmatprep.subr.mxu0 0.0
        %5859 = vmatpush2.msra.mxu0 0.0
        %5860 = vmatprep.subr.mxu0 0.0
        %5861 = vmatpush2.msra.mxu0 0.0
        %5862 = vmatprep.subr.mxu0 0.0
        %5863 = vmatpush2.msra.mxu0 0.0
        %5864 = vmatprep.subr.mxu0 0.0
        %5865 = vmatpush2.msra.mxu0 0.0
        %5866 = vmatprep.subr.mxu0 0.0
        %5867 = vmatpush2.msra.mxu0 0.0
        %5868 = vmatprep.subr.mxu0 0.0
        %5869 = vmatpush2.msra.mxu0 0.0
        %5870 = vmatprep.subr.mxu0 0.0
        %5871 = vmatpush2.msra.mxu0 0.0
        %5872 = vmatprep.subr.mxu0 0.0
        %5873 = vmatpush2.msra.mxu0 0.0
        %5874 = vmatprep.mubr.f32.mxu0 0.0
        %v5875 = vand.u32 %v5770, 4294901760
        %v5876 = vsub.f32 %v5770, %v5875
        %v5877 = vand.u32 %v5876, 4294901760
        %v5878 = vsub.f32 %v5876, %v5877
        %v5879 = vand.u32 %v5878, 4294901760
        %5880 = vmatmul.mubr.f32.gmra.mxu0 %v5879
        %v5881 = vpop.f32.mrf.mxu0
        %v5882 = vadd.f32 %v5792, %v5881
        %v5883 = vpop.f32.mrf.mxu0
        %5884 = vdwg.mxu0
        %5885 = vmatprep.subr.mxu0 0.0
        %v5886 = vand.u32 %v5786, 4294901760
        %v5887 = vsub.f32 %v5786, %v5886
        %v5888 = vand.u32 %v5887, 4294901760
        %v5889 = vsub.f32 %v5887, %v5888
        %v5890 = vand.u32 %v5889, 4294901760
        %5891 = vmatpush1.msra.mxu0 %v5890
        %5892 = vmatprep.subr.mxu0 0.0
        %v5893 = vand.u32 %v5785, 4294901760
        %v5894 = vsub.f32 %v5785, %v5893
        %v5895 = vand.u32 %v5894, 4294901760
        %v5896 = vsub.f32 %v5894, %v5895
        %v5897 = vand.u32 %v5896, 4294901760
        %5898 = vmatpush1.msra.mxu0 %v5897
        %5899 = vmatprep.subr.mxu0 0.0
        %v5900 = vand.u32 %v5784, 4294901760
        %v5901 = vsub.f32 %v5784, %v5900
        %v5902 = vand.u32 %v5901, 4294901760
        %v5903 = vsub.f32 %v5901, %v5902
        %v5904 = vand.u32 %v5903, 4294901760
        %5905 = vmatpush1.msra.mxu0 %v5904
        %5906 = vmatprep.subr.mxu0 0.0
        %v5907 = vand.u32 %v5783, 4294901760
        %v5908 = vsub.f32 %v5783, %v5907
        %v5909 = vand.u32 %v5908, 4294901760
        %v5910 = vsub.f32 %v5908, %v5909
        %v5911 = vand.u32 %v5910, 4294901760
        %5912 = vmatpush1.msra.mxu0 %v5911
        %5913 = vmatprep.subr.mxu0 0.0
        %v5914 = vand.u32 %v5782, 4294901760
        %v5915 = vsub.f32 %v5782, %v5914
        %v5916 = vand.u32 %v5915, 4294901760
        %v5917 = vsub.f32 %v5915, %v5916
        %v5918 = vand.u32 %v5917, 4294901760
        %5919 = vmatpush1.msra.mxu0 %v5918
        %5920 = vmatprep.subr.mxu0 0.0
        %v5921 = vand.u32 %v5781, 4294901760
        %v5922 = vsub.f32 %v5781, %v5921
        %v5923 = vand.u32 %v5922, 4294901760
        %v5924 = vsub.f32 %v5922, %v5923
        %v5925 = vand.u32 %v5924, 4294901760
        %5926 = vmatpush1.msra.mxu0 %v5925
        %5927 = vmatprep.subr.mxu0 0.0
        %v5928 = vand.u32 %v5780, 4294901760
        %v5929 = vsub.f32 %v5780, %v5928
        %v5930 = vand.u32 %v5929, 4294901760
        %v5931 = vsub.f32 %v5929, %v5930
        %v5932 = vand.u32 %v5931, 4294901760
        %5933 = vmatpush1.msra.mxu0 %v5932
        %5934 = vmatprep.subr.mxu0 0.0
        %v5935 = vand.u32 %v5779, 4294901760
        %v5936 = vsub.f32 %v5779, %v5935
        %v5937 = vand.u32 %v5936, 4294901760
        %v5938 = vsub.f32 %v5936, %v5937
        %v5939 = vand.u32 %v5938, 4294901760
        %5940 = vmatpush1.msra.mxu0 %v5939
        %5941 = vmatprep.subr.mxu0 0.0
        %v5942 = vand.u32 %v5778, 4294901760
        %v5943 = vsub.f32 %v5778, %v5942
        %v5944 = vand.u32 %v5943, 4294901760
        %v5945 = vsub.f32 %v5943, %v5944
        %v5946 = vand.u32 %v5945, 4294901760
        %5947 = vmatpush1.msra.mxu0 %v5946
        %5948 = vmatprep.subr.mxu0 0.0
        %v5949 = vand.u32 %v5777, 4294901760
        %v5950 = vsub.f32 %v5777, %v5949
        %v5951 = vand.u32 %v5950, 4294901760
        %v5952 = vsub.f32 %v5950, %v5951
        %v5953 = vand.u32 %v5952, 4294901760
        %5954 = vmatpush1.msra.mxu0 %v5953
        %5955 = vmatprep.subr.mxu0 0.0
        %v5956 = vand.u32 %v5776, 4294901760
        %v5957 = vsub.f32 %v5776, %v5956
        %v5958 = vand.u32 %v5957, 4294901760
        %v5959 = vsub.f32 %v5957, %v5958
        %v5960 = vand.u32 %v5959, 4294901760
        %5961 = vmatpush1.msra.mxu0 %v5960
        %5962 = vmatprep.subr.mxu0 0.0
        %v5963 = vand.u32 %v5775, 4294901760
        %v5964 = vsub.f32 %v5775, %v5963
        %v5965 = vand.u32 %v5964, 4294901760
        %v5966 = vsub.f32 %v5964, %v5965
        %v5967 = vand.u32 %v5966, 4294901760
        %5968 = vmatpush1.msra.mxu0 %v5967
        %5969 = vmatprep.subr.mxu0 0.0
        %v5970 = vand.u32 %v5774, 4294901760
        %v5971 = vsub.f32 %v5774, %v5970
        %v5972 = vand.u32 %v5971, 4294901760
        %v5973 = vsub.f32 %v5971, %v5972
        %v5974 = vand.u32 %v5973, 4294901760
        %5975 = vmatpush1.msra.mxu0 %v5974
        %5976 = vmatprep.subr.mxu0 0.0
        %v5977 = vand.u32 %v5773, 4294901760
        %v5978 = vsub.f32 %v5773, %v5977
        %v5979 = vand.u32 %v5978, 4294901760
        %v5980 = vsub.f32 %v5978, %v5979
        %v5981 = vand.u32 %v5980, 4294901760
        %5982 = vmatpush1.msra.mxu0 %v5981
        %5983 = vmatprep.subr.mxu0 0.0
        %v5984 = vand.u32 %v5772, 4294901760
        %v5985 = vsub.f32 %v5772, %v5984
        %v5986 = vand.u32 %v5985, 4294901760
        %v5987 = vsub.f32 %v5985, %v5986
        %v5988 = vand.u32 %v5987, 4294901760
        %5989 = vmatpush1.msra.mxu0 %v5988
        %5990 = vmatprep.subr.mxu0 0.0
        %v5991 = vand.u32 %v5771, 4294901760
        %v5992 = vsub.f32 %v5771, %v5991
        %v5993 = vand.u32 %v5992, 4294901760
        %v5994 = vsub.f32 %v5992, %v5993
        %v5995 = vand.u32 %v5994, 4294901760
        %5996 = vmatpush1.msra.mxu0 %v5995
        %5997 = vmatprep.subr.mxu0 0.0
        %5998 = vmatpush2.msra.mxu0 0.0
        %5999 = vmatprep.subr.mxu0 0.0
        %6000 = vmatpush2.msra.mxu0 0.0
        %6001 = vmatprep.subr.mxu0 0.0
        %6002 = vmatpush2.msra.mxu0 0.0
        %6003 = vmatprep.subr.mxu0 0.0
        %6004 = vmatpush2.msra.mxu0 0.0
        %6005 = vmatprep.subr.mxu0 0.0
        %6006 = vmatpush2.msra.mxu0 0.0
        %6007 = vmatprep.subr.mxu0 0.0
        %6008 = vmatpush2.msra.mxu0 0.0
        %6009 = vmatprep.subr.mxu0 0.0
        %6010 = vmatpush2.msra.mxu0 0.0
        %6011 = vmatprep.subr.mxu0 0.0
        %6012 = vmatpush2.msra.mxu0 0.0
        %6013 = vmatprep.subr.mxu0 0.0
        %6014 = vmatpush2.msra.mxu0 0.0
        %6015 = vmatprep.subr.mxu0 0.0
        %6016 = vmatpush2.msra.mxu0 0.0
        %6017 = vmatprep.subr.mxu0 0.0
        %6018 = vmatpush2.msra.mxu0 0.0
        %6019 = vmatprep.subr.mxu0 0.0
        %6020 = vmatpush2.msra.mxu0 0.0
        %6021 = vmatprep.subr.mxu0 0.0
        %6022 = vmatpush2.msra.mxu0 0.0
        %6023 = vmatprep.subr.mxu0 0.0
        %6024 = vmatpush2.msra.mxu0 0.0
        %6025 = vmatprep.subr.mxu0 0.0
        %6026 = vmatpush2.msra.mxu0 0.0
        %6027 = vmatprep.subr.mxu0 0.0
        %6028 = vmatpush2.msra.mxu0 0.0
        %6029 = vmatprep.mubr.f32.mxu0 0.0
        %v6030 = vand.u32 %v5770, 4294901760
        %6031 = vmatmul.mubr.f32.gmra.mxu0 %v6030
        %v6032 = vpop.f32.mrf.mxu0
        %v6033 = vadd.f32 %v5882, %v6032
        %v6034 = vpop.f32.mrf.mxu0
        %6035 = vdwg.mxu0
        %6036 = vmatprep.subr.mxu0 0.0
        %v6037 = vand.u32 %v5786, 4294901760
        %v6038 = vsub.f32 %v5786, %v6037
        %6039 = vmatpush1.msra.mxu0 %v6038
        %6040 = vmatprep.subr.mxu0 0.0
        %v6041 = vand.u32 %v5785, 4294901760
        %v6042 = vsub.f32 %v5785, %v6041
        %6043 = vmatpush1.msra.mxu0 %v6042
        %6044 = vmatprep.subr.mxu0 0.0
        %v6045 = vand.u32 %v5784, 4294901760
        %v6046 = vsub.f32 %v5784, %v6045
        %6047 = vmatpush1.msra.mxu0 %v6046
        %6048 = vmatprep.subr.mxu0 0.0
        %v6049 = vand.u32 %v5783, 4294901760
        %v6050 = vsub.f32 %v5783, %v6049
        %6051 = vmatpush1.msra.mxu0 %v6050
        %6052 = vmatprep.subr.mxu0 0.0
        %v6053 = vand.u32 %v5782, 4294901760
        %v6054 = vsub.f32 %v5782, %v6053
        %6055 = vmatpush1.msra.mxu0 %v6054
        %6056 = vmatprep.subr.mxu0 0.0
        %v6057 = vand.u32 %v5781, 4294901760
        %v6058 = vsub.f32 %v5781, %v6057
        %6059 = vmatpush1.msra.mxu0 %v6058
        %6060 = vmatprep.subr.mxu0 0.0
        %v6061 = vand.u32 %v5780, 4294901760
        %v6062 = vsub.f32 %v5780, %v6061
        %6063 = vmatpush1.msra.mxu0 %v6062
        %6064 = vmatprep.subr.mxu0 0.0
        %v6065 = vand.u32 %v5779, 4294901760
        %v6066 = vsub.f32 %v5779, %v6065
        %6067 = vmatpush1.msra.mxu0 %v6066
        %6068 = vmatprep.subr.mxu0 0.0
        %v6069 = vand.u32 %v5778, 4294901760
        %v6070 = vsub.f32 %v5778, %v6069
        %6071 = vmatpush1.msra.mxu0 %v6070
        %6072 = vmatprep.subr.mxu0 0.0
        %v6073 = vand.u32 %v5777, 4294901760
        %v6074 = vsub.f32 %v5777, %v6073
        %6075 = vmatpush1.msra.mxu0 %v6074
        %6076 = vmatprep.subr.mxu0 0.0
        %v6077 = vand.u32 %v5776, 4294901760
        %v6078 = vsub.f32 %v5776, %v6077
        %6079 = vmatpush1.msra.mxu0 %v6078
        %6080 = vmatprep.subr.mxu0 0.0
        %v6081 = vand.u32 %v5775, 4294901760
        %v6082 = vsub.f32 %v5775, %v6081
        %6083 = vmatpush1.msra.mxu0 %v6082
        %6084 = vmatprep.subr.mxu0 0.0
        %v6085 = vand.u32 %v5774, 4294901760
        %v6086 = vsub.f32 %v5774, %v6085
        %6087 = vmatpush1.msra.mxu0 %v6086
        %6088 = vmatprep.subr.mxu0 0.0
        %v6089 = vand.u32 %v5773, 4294901760
        %v6090 = vsub.f32 %v5773, %v6089
        %6091 = vmatpush1.msra.mxu0 %v6090
        %6092 = vmatprep.subr.mxu0 0.0
        %v6093 = vand.u32 %v5772, 4294901760
        %v6094 = vsub.f32 %v5772, %v6093
        %6095 = vmatpush1.msra.mxu0 %v6094
        %6096 = vmatprep.subr.mxu0 0.0
        %v6097 = vand.u32 %v5771, 4294901760
        %v6098 = vsub.f32 %v5771, %v6097
        %6099 = vmatpush1.msra.mxu0 %v6098
        %6100 = vmatprep.subr.mxu0 0.0
        %6101 = vmatpush2.msra.mxu0 0.0
        %6102 = vmatprep.subr.mxu0 0.0
        %6103 = vmatpush2.msra.mxu0 0.0
        %6104 = vmatprep.subr.mxu0 0.0
        %6105 = vmatpush2.msra.mxu0 0.0
        %6106 = vmatprep.subr.mxu0 0.0
        %6107 = vmatpush2.msra.mxu0 0.0
        %6108 = vmatprep.subr.mxu0 0.0
        %6109 = vmatpush2.msra.mxu0 0.0
        %6110 = vmatprep.subr.mxu0 0.0
        %6111 = vmatpush2.msra.mxu0 0.0
        %6112 = vmatprep.subr.mxu0 0.0
        %6113 = vmatpush2.msra.mxu0 0.0
        %6114 = vmatprep.subr.mxu0 0.0
        %6115 = vmatpush2.msra.mxu0 0.0
        %6116 = vmatprep.subr.mxu0 0.0
        %6117 = vmatpush2.msra.mxu0 0.0
        %6118 = vmatprep.subr.mxu0 0.0
        %6119 = vmatpush2.msra.mxu0 0.0
        %6120 = vmatprep.subr.mxu0 0.0
        %6121 = vmatpush2.msra.mxu0 0.0
        %6122 = vmatprep.subr.mxu0 0.0
        %6123 = vmatpush2.msra.mxu0 0.0
        %6124 = vmatprep.subr.mxu0 0.0
        %6125 = vmatpush2.msra.mxu0 0.0
        %6126 = vmatprep.subr.mxu0 0.0
        %6127 = vmatpush2.msra.mxu0 0.0
        %6128 = vmatprep.subr.mxu0 0.0
        %6129 = vmatpush2.msra.mxu0 0.0
        %6130 = vmatprep.subr.mxu0 0.0
        %6131 = vmatpush2.msra.mxu0 0.0
        %6132 = vmatprep.mubr.f32.mxu0 0.0
        %v6133 = vand.u32 %v5770, 4294901760
        %v6134 = vsub.f32 %v5770, %v6133
        %6135 = vmatmul.mubr.f32.gmra.mxu0 %v6134
        %v6136 = vpop.f32.mrf.mxu0
        %v6137 = vadd.f32 %v6033, %v6136
        %v6138 = vpop.f32.mrf.mxu0
        %6139 = vdwg.mxu0
        %6140 = vmatprep.subr.mxu0 0.0
        %v6141 = vand.u32 %v5786, 4294901760
        %6142 = vmatpush1.msra.mxu0 %v6141
        %6143 = vmatprep.subr.mxu0 0.0
        %v6144 = vand.u32 %v5785, 4294901760
        %6145 = vmatpush1.msra.mxu0 %v6144
        %6146 = vmatprep.subr.mxu0 0.0
        %v6147 = vand.u32 %v5784, 4294901760
        %6148 = vmatpush1.msra.mxu0 %v6147
        %6149 = vmatprep.subr.mxu0 0.0
        %v6150 = vand.u32 %v5783, 4294901760
        %6151 = vmatpush1.msra.mxu0 %v6150
        %6152 = vmatprep.subr.mxu0 0.0
        %v6153 = vand.u32 %v5782, 4294901760
        %6154 = vmatpush1.msra.mxu0 %v6153
        %6155 = vmatprep.subr.mxu0 0.0
        %v6156 = vand.u32 %v5781, 4294901760
        %6157 = vmatpush1.msra.mxu0 %v6156
        %6158 = vmatprep.subr.mxu0 0.0
        %v6159 = vand.u32 %v5780, 4294901760
        %6160 = vmatpush1.msra.mxu0 %v6159
        %6161 = vmatprep.subr.mxu0 0.0
        %v6162 = vand.u32 %v5779, 4294901760
        %6163 = vmatpush1.msra.mxu0 %v6162
        %6164 = vmatprep.subr.mxu0 0.0
        %v6165 = vand.u32 %v5778, 4294901760
        %6166 = vmatpush1.msra.mxu0 %v6165
        %6167 = vmatprep.subr.mxu0 0.0
        %v6168 = vand.u32 %v5777, 4294901760
        %6169 = vmatpush1.msra.mxu0 %v6168
        %6170 = vmatprep.subr.mxu0 0.0
        %v6171 = vand.u32 %v5776, 4294901760
        %6172 = vmatpush1.msra.mxu0 %v6171
        %6173 = vmatprep.subr.mxu0 0.0
        %v6174 = vand.u32 %v5775, 4294901760
        %6175 = vmatpush1.msra.mxu0 %v6174
        %6176 = vmatprep.subr.mxu0 0.0
        %v6177 = vand.u32 %v5774, 4294901760
        %6178 = vmatpush1.msra.mxu0 %v6177
        %6179 = vmatprep.subr.mxu0 0.0
        %v6180 = vand.u32 %v5773, 4294901760
        %6181 = vmatpush1.msra.mxu0 %v6180
        %6182 = vmatprep.subr.mxu0 0.0
        %v6183 = vand.u32 %v5772, 4294901760
        %6184 = vmatpush1.msra.mxu0 %v6183
        %6185 = vmatprep.subr.mxu0 0.0
        %v6186 = vand.u32 %v5771, 4294901760
        %6187 = vmatpush1.msra.mxu0 %v6186
        %6188 = vmatprep.subr.mxu0 0.0
        %6189 = vmatpush2.msra.mxu0 0.0
        %6190 = vmatprep.subr.mxu0 0.0
        %6191 = vmatpush2.msra.mxu0 0.0
        %6192 = vmatprep.subr.mxu0 0.0
        %6193 = vmatpush2.msra.mxu0 0.0
        %6194 = vmatprep.subr.mxu0 0.0
        %6195 = vmatpush2.msra.mxu0 0.0
        %6196 = vmatprep.subr.mxu0 0.0
        %6197 = vmatpush2.msra.mxu0 0.0
        %6198 = vmatprep.subr.mxu0 0.0
        %6199 = vmatpush2.msra.mxu0 0.0
        %6200 = vmatprep.subr.mxu0 0.0
        %6201 = vmatpush2.msra.mxu0 0.0
        %6202 = vmatprep.subr.mxu0 0.0
        %6203 = vmatpush2.msra.mxu0 0.0
        %6204 = vmatprep.subr.mxu0 0.0
        %6205 = vmatpush2.msra.mxu0 0.0
        %6206 = vmatprep.subr.mxu0 0.0
        %6207 = vmatpush2.msra.mxu0 0.0
        %6208 = vmatprep.subr.mxu0 0.0
        %6209 = vmatpush2.msra.mxu0 0.0
        %6210 = vmatprep.subr.mxu0 0.0
        %6211 = vmatpush2.msra.mxu0 0.0
        %6212 = vmatprep.subr.mxu0 0.0
        %6213 = vmatpush2.msra.mxu0 0.0
        %6214 = vmatprep.subr.mxu0 0.0
        %6215 = vmatpush2.msra.mxu0 0.0
        %6216 = vmatprep.subr.mxu0 0.0
        %6217 = vmatpush2.msra.mxu0 0.0
        %6218 = vmatprep.subr.mxu0 0.0
        %6219 = vmatpush2.msra.mxu0 0.0
        %6220 = vmatprep.mubr.f32.mxu0 0.0
        %v6221 = vand.u32 %v5770, 4294901760
        %v6222 = vsub.f32 %v5770, %v6221
        %v6223 = vand.u32 %v6222, 4294901760
        %6224 = vmatmul.mubr.f32.gmra.mxu0 %v6223
        %v6225 = vpop.f32.mrf.mxu0
        %v6226 = vadd.f32 %v6137, %v6225
        %v6227 = vpop.f32.mrf.mxu0
        %6228 = vdwg.mxu0
        %6229 = vmatprep.subr.mxu0 0.0
        %v6230 = vand.u32 %v5786, 4294901760
        %v6231 = vsub.f32 %v5786, %v6230
        %v6232 = vand.u32 %v6231, 4294901760
        %6233 = vmatpush1.msra.mxu0 %v6232
        %6234 = vmatprep.subr.mxu0 0.0
        %v6235 = vand.u32 %v5785, 4294901760
        %v6236 = vsub.f32 %v5785, %v6235
        %v6237 = vand.u32 %v6236, 4294901760
        %6238 = vmatpush1.msra.mxu0 %v6237
        %6239 = vmatprep.subr.mxu0 0.0
        %v6240 = vand.u32 %v5784, 4294901760
        %v6241 = vsub.f32 %v5784, %v6240
        %v6242 = vand.u32 %v6241, 4294901760
        %6243 = vmatpush1.msra.mxu0 %v6242
        %6244 = vmatprep.subr.mxu0 0.0
        %v6245 = vand.u32 %v5783, 4294901760
        %v6246 = vsub.f32 %v5783, %v6245
        %v6247 = vand.u32 %v6246, 4294901760
        %6248 = vmatpush1.msra.mxu0 %v6247
        %6249 = vmatprep.subr.mxu0 0.0
        %v6250 = vand.u32 %v5782, 4294901760
        %v6251 = vsub.f32 %v5782, %v6250
        %v6252 = vand.u32 %v6251, 4294901760
        %6253 = vmatpush1.msra.mxu0 %v6252
        %6254 = vmatprep.subr.mxu0 0.0
        %v6255 = vand.u32 %v5781, 4294901760
        %v6256 = vsub.f32 %v5781, %v6255
        %v6257 = vand.u32 %v6256, 4294901760
        %6258 = vmatpush1.msra.mxu0 %v6257
        %6259 = vmatprep.subr.mxu0 0.0
        %v6260 = vand.u32 %v5780, 4294901760
        %v6261 = vsub.f32 %v5780, %v6260
        %v6262 = vand.u32 %v6261, 4294901760
        %6263 = vmatpush1.msra.mxu0 %v6262
        %6264 = vmatprep.subr.mxu0 0.0
        %v6265 = vand.u32 %v5779, 4294901760
        %v6266 = vsub.f32 %v5779, %v6265
        %v6267 = vand.u32 %v6266, 4294901760
        %6268 = vmatpush1.msra.mxu0 %v6267
        %6269 = vmatprep.subr.mxu0 0.0
        %v6270 = vand.u32 %v5778, 4294901760
        %v6271 = vsub.f32 %v5778, %v6270
        %v6272 = vand.u32 %v6271, 4294901760
        %6273 = vmatpush1.msra.mxu0 %v6272
        %6274 = vmatprep.subr.mxu0 0.0
        %v6275 = vand.u32 %v5777, 4294901760
        %v6276 = vsub.f32 %v5777, %v6275
        %v6277 = vand.u32 %v6276, 4294901760
        %6278 = vmatpush1.msra.mxu0 %v6277
        %6279 = vmatprep.subr.mxu0 0.0
        %v6280 = vand.u32 %v5776, 4294901760
        %v6281 = vsub.f32 %v5776, %v6280
        %v6282 = vand.u32 %v6281, 4294901760
        %6283 = vmatpush1.msra.mxu0 %v6282
        %6284 = vmatprep.subr.mxu0 0.0
        %v6285 = vand.u32 %v5775, 4294901760
        %v6286 = vsub.f32 %v5775, %v6285
        %v6287 = vand.u32 %v6286, 4294901760
        %6288 = vmatpush1.msra.mxu0 %v6287
        %6289 = vmatprep.subr.mxu0 0.0
        %v6290 = vand.u32 %v5774, 4294901760
        %v6291 = vsub.f32 %v5774, %v6290
        %v6292 = vand.u32 %v6291, 4294901760
        %6293 = vmatpush1.msra.mxu0 %v6292
        %6294 = vmatprep.subr.mxu0 0.0
        %v6295 = vand.u32 %v5773, 4294901760
        %v6296 = vsub.f32 %v5773, %v6295
        %v6297 = vand.u32 %v6296, 4294901760
        %6298 = vmatpush1.msra.mxu0 %v6297
        %6299 = vmatprep.subr.mxu0 0.0
        %v6300 = vand.u32 %v5772, 4294901760
        %v6301 = vsub.f32 %v5772, %v6300
        %v6302 = vand.u32 %v6301, 4294901760
        %6303 = vmatpush1.msra.mxu0 %v6302
        %6304 = vmatprep.subr.mxu0 0.0
        %v6305 = vand.u32 %v5771, 4294901760
        %v6306 = vsub.f32 %v5771, %v6305
        %v6307 = vand.u32 %v6306, 4294901760
        %6308 = vmatpush1.msra.mxu0 %v6307
        %6309 = vmatprep.subr.mxu0 0.0
        %6310 = vmatpush2.msra.mxu0 0.0
        %6311 = vmatprep.subr.mxu0 0.0
        %6312 = vmatpush2.msra.mxu0 0.0
        %6313 = vmatprep.subr.mxu0 0.0
        %6314 = vmatpush2.msra.mxu0 0.0
        %6315 = vmatprep.subr.mxu0 0.0
        %6316 = vmatpush2.msra.mxu0 0.0
        %6317 = vmatprep.subr.mxu0 0.0
        %6318 = vmatpush2.msra.mxu0 0.0
        %6319 = vmatprep.subr.mxu0 0.0
        %6320 = vmatpush2.msra.mxu0 0.0
        %6321 = vmatprep.subr.mxu0 0.0
        %6322 = vmatpush2.msra.mxu0 0.0
        %6323 = vmatprep.subr.mxu0 0.0
        %6324 = vmatpush2.msra.mxu0 0.0
        %6325 = vmatprep.subr.mxu0 0.0
        %6326 = vmatpush2.msra.mxu0 0.0
        %6327 = vmatprep.subr.mxu0 0.0
        %6328 = vmatpush2.msra.mxu0 0.0
        %6329 = vmatprep.subr.mxu0 0.0
        %6330 = vmatpush2.msra.mxu0 0.0
        %6331 = vmatprep.subr.mxu0 0.0
        %6332 = vmatpush2.msra.mxu0 0.0
        %6333 = vmatprep.subr.mxu0 0.0
        %6334 = vmatpush2.msra.mxu0 0.0
        %6335 = vmatprep.subr.mxu0 0.0
        %6336 = vmatpush2.msra.mxu0 0.0
        %6337 = vmatprep.subr.mxu0 0.0
        %6338 = vmatpush2.msra.mxu0 0.0
        %6339 = vmatprep.subr.mxu0 0.0
        %6340 = vmatpush2.msra.mxu0 0.0
        %6341 = vmatprep.mubr.f32.mxu0 0.0
        %v6342 = vand.u32 %v5770, 4294901760
        %6343 = vmatmul.mubr.f32.gmra.mxu0 %v6342
        %v6344 = vpop.f32.mrf.mxu0
        %v6345 = vadd.f32 %v6226, %v6344
        %v6346 = vpop.f32.mrf.mxu0
        %6347 = vdwg.mxu0
        %6348 = vmatprep.subr.mxu0 0.0
        %v6349 = vand.u32 %v5786, 4294901760
        %6350 = vmatpush1.msra.mxu0 %v6349
        %6351 = vmatprep.subr.mxu0 0.0
        %v6352 = vand.u32 %v5785, 4294901760
        %6353 = vmatpush1.msra.mxu0 %v6352
        %6354 = vmatprep.subr.mxu0 0.0
        %v6355 = vand.u32 %v5784, 4294901760
        %6356 = vmatpush1.msra.mxu0 %v6355
        %6357 = vmatprep.subr.mxu0 0.0
        %v6358 = vand.u32 %v5783, 4294901760
        %6359 = vmatpush1.msra.mxu0 %v6358
        %6360 = vmatprep.subr.mxu0 0.0
        %v6361 = vand.u32 %v5782, 4294901760
        %6362 = vmatpush1.msra.mxu0 %v6361
        %6363 = vmatprep.subr.mxu0 0.0
        %v6364 = vand.u32 %v5781, 4294901760
        %6365 = vmatpush1.msra.mxu0 %v6364
        %6366 = vmatprep.subr.mxu0 0.0
        %v6367 = vand.u32 %v5780, 4294901760
        %6368 = vmatpush1.msra.mxu0 %v6367
        %6369 = vmatprep.subr.mxu0 0.0
        %v6370 = vand.u32 %v5779, 4294901760
        %6371 = vmatpush1.msra.mxu0 %v6370
        %6372 = vmatprep.subr.mxu0 0.0
        %v6373 = vand.u32 %v5778, 4294901760
        %6374 = vmatpush1.msra.mxu0 %v6373
        %6375 = vmatprep.subr.mxu0 0.0
        %v6376 = vand.u32 %v5777, 4294901760
        %6377 = vmatpush1.msra.mxu0 %v6376
        %6378 = vmatprep.subr.mxu0 0.0
        %v6379 = vand.u32 %v5776, 4294901760
        %6380 = vmatpush1.msra.mxu0 %v6379
        %6381 = vmatprep.subr.mxu0 0.0
        %v6382 = vand.u32 %v5775, 4294901760
        %6383 = vmatpush1.msra.mxu0 %v6382
        %6384 = vmatprep.subr.mxu0 0.0
        %v6385 = vand.u32 %v5774, 4294901760
        %6386 = vmatpush1.msra.mxu0 %v6385
        %6387 = vmatprep.subr.mxu0 0.0
        %v6388 = vand.u32 %v5773, 4294901760
        %6389 = vmatpush1.msra.mxu0 %v6388
        %6390 = vmatprep.subr.mxu0 0.0
        %v6391 = vand.u32 %v5772, 4294901760
        %6392 = vmatpush1.msra.mxu0 %v6391
        %6393 = vmatprep.subr.mxu0 0.0
        %v6394 = vand.u32 %v5771, 4294901760
        %6395 = vmatpush1.msra.mxu0 %v6394
        %6396 = vmatprep.subr.mxu0 0.0
        %6397 = vmatpush2.msra.mxu0 0.0
        %6398 = vmatprep.subr.mxu0 0.0
        %6399 = vmatpush2.msra.mxu0 0.0
        %6400 = vmatprep.subr.mxu0 0.0
        %6401 = vmatpush2.msra.mxu0 0.0
        %6402 = vmatprep.subr.mxu0 0.0
        %6403 = vmatpush2.msra.mxu0 0.0
        %6404 = vmatprep.subr.mxu0 0.0
        %6405 = vmatpush2.msra.mxu0 0.0
        %6406 = vmatprep.subr.mxu0 0.0
        %6407 = vmatpush2.msra.mxu0 0.0
        %6408 = vmatprep.subr.mxu0 0.0
        %6409 = vmatpush2.msra.mxu0 0.0
        %6410 = vmatprep.subr.mxu0 0.0
        %6411 = vmatpush2.msra.mxu0 0.0
        %6412 = vmatprep.subr.mxu0 0.0
        %6413 = vmatpush2.msra.mxu0 0.0
        %6414 = vmatprep.subr.mxu0 0.0
        %6415 = vmatpush2.msra.mxu0 0.0
        %6416 = vmatprep.subr.mxu0 0.0
        %6417 = vmatpush2.msra.mxu0 0.0
        %6418 = vmatprep.subr.mxu0 0.0
        %6419 = vmatpush2.msra.mxu0 0.0
        %6420 = vmatprep.subr.mxu0 0.0
        %6421 = vmatpush2.msra.mxu0 0.0
        %6422 = vmatprep.subr.mxu0 0.0
        %6423 = vmatpush2.msra.mxu0 0.0
        %6424 = vmatprep.subr.mxu0 0.0
        %6425 = vmatpush2.msra.mxu0 0.0
        %6426 = vmatprep.subr.mxu0 0.0
        %6427 = vmatpush2.msra.mxu0 0.0
        %6428 = vmatprep.mubr.f32.mxu0 0.0
        %v6429 = vand.u32 %v5770, 4294901760
        %6430 = vmatmul.mubr.f32.gmra.mxu0 %v6429
        %v6431 = vpop.f32.mrf.mxu0
        %v6432 = vadd.f32 %v6345, %v6431
        %v6433 = vpop.f32.mrf.mxu0
        %6434 = vdwg.mxu0
        %v6435 = vadd.f32 %v6432, %v5233
        %6436 = vst.msk [vmem:[%s489] sm:$0xff] %vm505, %v6435
        %s6437 = sand.u32 %s340, 1
        %s6438 = scalar_lea.sflag [#allocation3], %s6437
        %s6439 = sand.u32 %s340, 1
        %s6440 = smul.addr %s6439, 8
        %s6441 = scalar_lea.vmem [#allocation2], %s6440
        %s6442 = sand.u32 %s366, 1
        %s6443 = scalar_lea.sflag [#allocation5], %s6442
        %s6444 = sand.u32 %s366, 1
        %s6445 = smul.addr %s6444, 32
        %s6446 = scalar_lea.vmem [#allocation4], %s6445
        // Predicated region
        $region77: #{block_forward.1} parent=75 // pred_check
          %p6447 = pneg %p350
        $region78: #{block_forward.1} parent=75 // pred_check_branch
          %6449 = sbr.rel (%p6447) target = $region80
        $region79: #{block_forward.1} parent=75 // pred_region
          %s6451 = ssub.s32 128, 128
          %6452 = vsyncadd %s6438, %s6451
          %s6453 = smul.addr %s33, 128
          %s6454 = scalar_lea.hbm %s14, %s6453
          %s6456 = sshll.u32 %s6441, 4
          %s6457 = int_to_ptr.vmem [resolvable:$true] %s6456
          %6459 = dma.vmem_to_hbm [thread:$0]  %s6457, 128, %s6454, %s6438
        $region80: #{block_forward.1} parent=75 // pred_fallthru
          _
        // Predicated region
        $region81: #{block_forward.1} parent=75 // pred_check
          %p6460 = pneg %p376
        $region82: #{block_forward.1} parent=75 // pred_check_branch
          %6462 = sbr.rel (%p6460) target = $region84
        $region83: #{block_forward.1} parent=75 // pred_region
          %s6464 = ssub.s32 512, 512
          %6465 = vsyncadd %s6443, %s6464
          %s6466 = smul.addr %s33, 4
          %s6467 = smul.addr %s6466, 128
          %s6468 = scalar_lea.hbm %s15, %s6467
          %s6469 = sshll.u32 %s6446, 4
          %s6470 = int_to_ptr.vmem [resolvable:$true] %s6469
          %6475 = dma.vmem_to_hbm [thread:$0]  %s6470, 512, %s6468, %s6443, 128, 128, 8
        $region84: #{block_forward.1} parent=75 // pred_fallthru
          _
      $region76: #{block_forward.1} parent=5 // pred_fallthru
        _
      %p6476 = scmp.le.s32.totalorder 2, %s28
      // Predicated region
      $region85: #{block_forward.1} parent=5 // pred_check
        %p6477 = pneg %p6476
      $region86: #{block_forward.1} parent=5 // pred_check_branch
        %6479 = sbr.rel (%p6477) target = $region88
      $region87: #{block_forward.1} parent=5 // pred_region
        %s6480 = ssub.s32 %s28, 2
        // Predicated region
        $region89: #{block_forward.1} parent=87 // pred_check
          %p6481 = pneg %p356
        $region90: #{block_forward.1} parent=87 // pred_check_branch
          %6483 = sbr.rel (%p6481) target = $region92
        $region91: #{block_forward.1} parent=87 // pred_region
          %s6484 = sand.u32 %s341, 1
          %s6485 = scalar_lea.sflag [#allocation3], %s6484
          %s6486 = sand.u32 %s341, 1
          %s6487 = smul.addr %s6486, 8
          %s6488 = scalar_lea.vmem [#allocation2], %s6487
          %6489 = dma.done %s6485, 128
        $region92: #{block_forward.1} parent=87 // pred_fallthru
          _
        // Predicated region
        $region93: #{block_forward.1} parent=87 // pred_check
          %p6490 = pneg %p382
        $region94: #{block_forward.1} parent=87 // pred_check_branch
          %6492 = sbr.rel (%p6490) target = $region96
        $region95: #{block_forward.1} parent=87 // pred_region
          %s6493 = sand.u32 %s367, 1
          %s6494 = scalar_lea.sflag [#allocation5], %s6493
          %s6495 = sand.u32 %s367, 1
          %s6496 = smul.addr %s6495, 32
          %s6497 = scalar_lea.vmem [#allocation4], %s6496
          %6498 = dma.done %s6494, 512
        $region96: #{block_forward.1} parent=87 // pred_fallthru
          _
      $region88: #{block_forward.1} parent=5 // pred_fallthru
        _
    $region6: #{block_forward.1} parent=1 // loop_footer
      %s32 = sadd.s32 1, %s28
    $region7: #{block_forward.1} parent=1 // loop_footer_branch
      %27 = sbr.rel target = $region3
    $region8: #{block_forward.1} parent=1 // loop_exit
      _
    %6499 = vsyncpa [#allocation3], 1
    %s6500 = scalar_lea.sflag [#allocation3], 1
    %6501 = vsyncpa %s6500, 1
    %6502 = vsyncpa [#allocation5], 1
    %s6503 = scalar_lea.sflag [#allocation5], 1
    %6504 = vsyncpa %s6503, 1

</llo_original>
